<compile_context>
chip_gen: v7x
topology: tpu7x:2x2x1
jax: 0.10.0
libtpu: 0.0.40
codegen_flags: <defaults>
</compile_context>

<pallas_src>
import functools

import jax
import jax.numpy as jnp
from jax.experimental import pallas as pl
from jax.experimental.pallas import tpu as pltpu

LANE = 128  # vreg lane width; every feature dim is padded to this


# ----------------------------------------------------------------------------
# padding helpers (wrapper-side layout plumbing, not compute)
# ----------------------------------------------------------------------------
def _pad2(a, rows, cols):
    return jnp.pad(a, ((0, rows - a.shape[0]), (0, cols - a.shape[1])))


def _pad1(v, cols):
    return jnp.pad(v, (0, cols - v.shape[0]))


# ----------------------------------------------------------------------------
# Fused whole-network kernel
# ----------------------------------------------------------------------------
def fused_net_kernel(a_ref, x_ref, crd_w_ref, cls_w_ref,
                     w1_ref, w2_ref, ws_ref, we_ref,
                     head_ref, blk_ref, o_ref,
                     *, hidden, num_classes, n_blocks):
    a = a_ref[...]                      # (N, N) normalized adjacency
    x = x_ref[...]                      # (N, 128) node features (zero-padded)

    lane = jax.lax.broadcasted_iota(jnp.int32, (1, LANE), 1)
    h_mask = lane < hidden              # real hidden lanes
    c_mask = lane < num_classes         # real class lanes
    inv_h = 1.0 / hidden

    def gcn(xin, w, b):
        # X @ W then A @ (XW) + b — each a single MXU pass at these padded sizes.
        t = jnp.dot(xin, w, preferred_element_type=jnp.float32)
        return jnp.dot(a, t, preferred_element_type=jnp.float32) + b

    def layernorm(h, gamma, beta):
        # Padded lanes of h are exactly 0, so the plain sum is the true sum over
        # the `hidden` real lanes; variance is masked to exclude padded lanes.
        mean = jnp.sum(h, axis=-1, keepdims=True) * inv_h
        c = h - mean
        var = jnp.sum(jnp.where(h_mask, c * c, 0.0), axis=-1, keepdims=True) * inv_h
        # gamma/beta are 0 on padded lanes -> padded lanes stay exactly 0.
        return c * jax.lax.rsqrt(var + 1e-5) * gamma + beta

    head = head_ref[...]                                  # (8, 128)
    crd_b, crd_g, crd_beta, cls_b = head[0:1], head[1:2], head[2:3], head[3:4]

    # --- CRD: conv -> LayerNorm -> ReLU --------------------------------------
    h = jnp.maximum(layernorm(gcn(x, crd_w_ref[...], crd_b), crd_g, crd_beta), 0.0)

    # --- GCN blocks (statically unrolled) ------------------------------------
    for i in range(n_blocks):
        v = blk_ref[i]                                    # (8, 128) packed vectors
        b1, g1, beta1 = v[0:1], v[1:2], v[2:3]
        b2, g2, beta2 = v[3:4], v[4:5], v[5:6]
        bs, be = v[6:7], v[7:8]

        skip = h
        h1 = jnp.maximum(layernorm(gcn(h, w1_ref[i], b1), g1, beta1), 0.0)
        h2 = layernorm(gcn(h1, w2_ref[i], b2), g2, beta2)

        # SE: s = relu(h2 @ Ws + bs); g = sigmoid(s @ We + be)
        s = jnp.maximum(
            jnp.dot(h2, ws_ref[i], preferred_element_type=jnp.float32) + bs, 0.0)
        g = jax.nn.sigmoid(
            jnp.dot(s, we_ref[i], preferred_element_type=jnp.float32) + be)

        # residual + ReLU (padded lanes: h2==0 and skip==0 -> stay 0)
        h = jnp.maximum(h2 * g + skip, 0.0)

    # dropout(p=0.0) / eval mode -> identity (skipped)

    # --- CLS: conv -> log_softmax over the real classes ----------------------
    logits = gcn(h, cls_w_ref[...], cls_b)
    logits = jnp.where(c_mask, logits, -1e30)             # exclude padded classes
    m = jnp.max(logits, axis=-1, keepdims=True)
    lse = m + jnp.log(jnp.sum(jnp.exp(logits - m), axis=-1, keepdims=True))
    o_ref[...] = logits - lse                             # lane-dense (N, 128) store


def net_forward(packed, x, a_norm, *, hidden, num_classes):
    n = x.shape[0]
    x_pad = _pad2(x, n, LANE)
    n_blocks = packed["w1"].shape[0]
    kern = functools.partial(fused_net_kernel, hidden=hidden,
                             num_classes=num_classes, n_blocks=n_blocks)
    vmem = pl.BlockSpec(memory_space=pltpu.MemorySpace.VMEM)
    out = pl.pallas_call(
        kern,
        out_shape=jax.ShapeDtypeStruct((n, LANE), jnp.float32),
        in_specs=[vmem] * 10,
        out_specs=vmem,
    )(a_norm, x_pad, packed["crd_w"], packed["cls_w"],
      packed["w1"], packed["w2"], packed["ws"], packed["we"],
      packed["head_vecs"], packed["blk_vecs"])
    return out[:, :num_classes]


# ----------------------------------------------------------------------------
# Parameters: raw (unpadded, reference) + packed (padded, kernel operands)
# ----------------------------------------------------------------------------
def init_raw_params(key, num_features, hidden, num_classes, n_blocks, s_rate=0.125):
    d_se = int(hidden * s_rate)

    def nrm(k, shape):
        return 0.1 * jax.random.normal(k, shape, dtype=jnp.float32)

    keys = jax.random.split(key, 6 + 12 * n_blocks)
    ki = iter(keys)

    raw = {
        "crd_conv_w": nrm(next(ki), (num_features, hidden)),
        "crd_conv_b": nrm(next(ki), (hidden,)),
        "crd_norm_g": 1.0 + nrm(next(ki), (hidden,)),
        "crd_norm_b": nrm(next(ki), (hidden,)),
        "blocks": [],
    }
    for _ in range(n_blocks):
        raw["blocks"].append({
            "conv1_w": nrm(next(ki), (hidden, hidden)),
            "conv1_b": nrm(next(ki), (hidden,)),
            "norm1_g": 1.0 + nrm(next(ki), (hidden,)),
            "norm1_b": nrm(next(ki), (hidden,)),
            "conv2_w": nrm(next(ki), (hidden, hidden)),
            "conv2_b": nrm(next(ki), (hidden,)),
            "norm2_g": 1.0 + nrm(next(ki), (hidden,)),
            "norm2_b": nrm(next(ki), (hidden,)),
            "se_s_w": nrm(next(ki), (hidden, d_se)),
            "se_s_b": nrm(next(ki), (d_se,)),
            "se_e_w": nrm(next(ki), (d_se, hidden)),
            "se_e_b": nrm(next(ki), (hidden,)),
        })
    raw["cls_conv_w"] = nrm(next(ki), (hidden, num_classes))
    raw["cls_conv_b"] = nrm(next(ki), (num_classes,))
    return raw


def pack_params(raw):
    head = jnp.stack([
        _pad1(raw["crd_conv_b"], LANE),
        _pad1(raw["crd_norm_g"], LANE),   # gamma padded with 0 keeps dead lanes at 0
        _pad1(raw["crd_norm_b"], LANE),
        _pad1(raw["cls_conv_b"], LANE),
        jnp.zeros((LANE,), jnp.float32),
        jnp.zeros((LANE,), jnp.float32),
        jnp.zeros((LANE,), jnp.float32),
        jnp.zeros((LANE,), jnp.float32),
    ])                                                    # (8, 128)

    blk_vecs = jnp.stack([
        jnp.stack([
            _pad1(b["conv1_b"], LANE), _pad1(b["norm1_g"], LANE), _pad1(b["norm1_b"], LANE),
            _pad1(b["conv2_b"], LANE), _pad1(b["norm2_g"], LANE), _pad1(b["norm2_b"], LANE),
            _pad1(b["se_s_b"], LANE), _pad1(b["se_e_b"], LANE),
        ]) for b in raw["blocks"]
    ])                                                    # (n_blocks, 8, 128)

    return {
        "crd_w": _pad2(raw["crd_conv_w"], LANE, LANE),
        "cls_w": _pad2(raw["cls_conv_w"], LANE, LANE),
        "w1": jnp.stack([_pad2(b["conv1_w"], LANE, LANE) for b in raw["blocks"]]),
        "w2": jnp.stack([_pad2(b["conv2_w"], LANE, LANE) for b in raw["blocks"]]),
        "ws": jnp.stack([_pad2(b["se_s_w"], LANE, LANE) for b in raw["blocks"]]),
        "we": jnp.stack([_pad2(b["se_e_w"], LANE, LANE) for b in raw["blocks"]]),
        "head_vecs": head,
        "blk_vecs": blk_vecs,
    }


# ----------------------------------------------------------------------------
# Pure-JAX reference (unpadded) for correctness check
# ----------------------------------------------------------------------------
def net_forward_ref(raw, x, a):
    hi = jax.lax.Precision.HIGHEST

    def gcn(xin, w, b):
        return jnp.dot(a, jnp.dot(xin, w, precision=hi), precision=hi) + b

    def ln(h, g, beta):
        mean = jnp.mean(h, axis=-1, keepdims=True)
        var = jnp.mean((h - mean) ** 2, axis=-1, keepdims=True)
        return (h - mean) * jax.lax.rsqrt(var + 1e-5) * g + beta

    h = jax.nn.relu(ln(gcn(x, raw["crd_conv_w"], raw["crd_conv_b"]),
                       raw["crd_norm_g"], raw["crd_norm_b"]))
    for b in raw["blocks"]:
        skip = h
        h1 = jax.nn.relu(ln(gcn(h, b["conv1_w"], b["conv1_b"]), b["norm1_g"], b["norm1_b"]))
        h2 = ln(gcn(h1, b["conv2_w"], b["conv2_b"]), b["norm2_g"], b["norm2_b"])
        s = jax.nn.relu(jnp.dot(h2, b["se_s_w"], precision=hi) + b["se_s_b"])
        g = jax.nn.sigmoid(jnp.dot(s, b["se_e_w"], precision=hi) + b["se_e_b"])
        h = jax.nn.relu(h2 * g + skip)
    logits = gcn(h, raw["cls_conv_w"], raw["cls_conv_b"])
    return jax.nn.log_softmax(logits, axis=1)


# ----------------------------------------------------------------------------
# Graph preprocessing: GCNConv(improved=True) normalized dense adjacency
# ----------------------------------------------------------------------------
def build_norm_adj(src, dst, num_nodes):
    a = jnp.zeros((num_nodes, num_nodes), jnp.float32)
    a = a.at[src, dst].set(1.0)
    a = jnp.maximum(a, a.T)                                   # undirected graph
    a = a + 2.0 * jnp.eye(num_nodes, dtype=jnp.float32)       # improved self-loops
    d_inv_sqrt = jax.lax.rsqrt(jnp.sum(a, axis=1))            # deg >= 2, safe
    return d_inv_sqrt[:, None] * a * d_inv_sqrt[None, :]


if __name__ == "__main__":
    N = 64            # graph nodes
    NUM_FEATURES = 16
    HIDDEN = 32
    NUM_CLASSES = 8
    N_BLOCKS = 5
    N_EDGES = 256

    key = jax.random.PRNGKey(0)
    k_src, k_dst, k_x, k_params = jax.random.split(key, 4)

    src = jax.random.randint(k_src, (N_EDGES,), 0, N)
    dst = jax.random.randint(k_dst, (N_EDGES,), 0, N)
    a_norm = build_norm_adj(src, dst, N)

    x = jax.random.normal(k_x, (N, NUM_FEATURES), dtype=jnp.float32)

    raw = init_raw_params(k_params, NUM_FEATURES, HIDDEN, NUM_CLASSES, N_BLOCKS)
    packed = pack_params(raw)

    out = net_forward(packed, x, a_norm, hidden=HIDDEN, num_classes=NUM_CLASSES)
    out = jax.block_until_ready(out)

    assert out.shape == (N, NUM_CLASSES)
    # log_softmax sanity: each row's exp sums to ~1
    row_sums = jnp.sum(jnp.exp(out), axis=1)
    assert bool(jnp.all(jnp.abs(row_sums - 1.0) < 1e-3))

    # correctness vs unpadded pure-JAX reference
    ref = net_forward_ref(raw, x, a_norm)
    max_err = float(jnp.max(jnp.abs(out - ref)))
    assert max_err < 1e-2, f"max abs err vs reference: {max_err}"

    print("KERNEL_OK")
</pallas_src>

<mosaic_0001>
module attributes {stable_mosaic.version = 11 : i64} {
  func.func @fused_net_kernel(%arg0: memref<64x64xf32, #tpu.memory_space<vmem>>, %arg1: memref<64x128xf32, #tpu.memory_space<vmem>>, %arg2: memref<128x128xf32, #tpu.memory_space<vmem>>, %arg3: memref<128x128xf32, #tpu.memory_space<vmem>>, %arg4: memref<5x128x128xf32, #tpu.memory_space<vmem>>, %arg5: memref<5x128x128xf32, #tpu.memory_space<vmem>>, %arg6: memref<5x128x128xf32, #tpu.memory_space<vmem>>, %arg7: memref<5x128x128xf32, #tpu.memory_space<vmem>>, %arg8: memref<8x128xf32, #tpu.memory_space<vmem>>, %arg9: memref<5x8x128xf32, #tpu.memory_space<vmem>>, %arg10: memref<64x128xf32, #tpu.memory_space<vmem>>) attributes {dimension_semantics = [], scalar_prefetch = 0 : i64, scratch_operands = 0 : i64, tpu.core_type = #tpu.core_type<tc>} {
    %c0 = arith.constant 0 : index
    %c0_0 = arith.constant 0 : index
    %0 = vector.load %arg0[%c0, %c0_0] : memref<64x64xf32, #tpu.memory_space<vmem>>, vector<64x64xf32>
    %c0_1 = arith.constant 0 : index
    %c0_2 = arith.constant 0 : index
    %1 = vector.load %arg1[%c0_1, %c0_2] : memref<64x128xf32, #tpu.memory_space<vmem>>, vector<64x128xf32>
    %2 = tpu.iota {dimensions = array<i32: 1>} : vector<1x128xi32>
    %c32_i32 = arith.constant 32 : i32
    %3 = vector.broadcast %c32_i32 : i32 to vector<1x128xi32>
    %4 = arith.cmpi slt, %2, %3 : vector<1x128xi32>
    %c8_i32 = arith.constant 8 : i32
    %5 = vector.broadcast %c8_i32 : i32 to vector<1x128xi32>
    %6 = arith.cmpi slt, %2, %5 : vector<1x128xi32>
    %c0_3 = arith.constant 0 : index
    %c0_4 = arith.constant 0 : index
    %7 = vector.load %arg8[%c0_3, %c0_4] : memref<8x128xf32, #tpu.memory_space<vmem>>, vector<8x128xf32>
    %8 = vector.extract_strided_slice %7 {offsets = [0, 0], sizes = [1, 128], strides = [1, 1]} : vector<8x128xf32> to vector<1x128xf32>
    %9 = vector.extract_strided_slice %7 {offsets = [1, 0], sizes = [1, 128], strides = [1, 1]} : vector<8x128xf32> to vector<1x128xf32>
    %10 = vector.extract_strided_slice %7 {offsets = [2, 0], sizes = [1, 128], strides = [1, 1]} : vector<8x128xf32> to vector<1x128xf32>
    %11 = vector.extract_strided_slice %7 {offsets = [3, 0], sizes = [1, 128], strides = [1, 1]} : vector<8x128xf32> to vector<1x128xf32>
    %c0_5 = arith.constant 0 : index
    %c0_6 = arith.constant 0 : index
    %12 = vector.load %arg2[%c0_5, %c0_6] : memref<128x128xf32, #tpu.memory_space<vmem>>, vector<128x128xf32>
    %cst = arith.constant dense<0.000000e+00> : vector<64x128xf32>
    %13 = tpu.matmul %1, %12, %cst {dimension_numbers = #tpu.dot_dimension_numbers<[1], [0], [0], [1], [0, 0, 1, 1], [], []>} : vector<64x128xf32>, vector<128x128xf32>, vector<64x128xf32> -> vector<64x128xf32>
    %cst_7 = arith.constant dense<0.000000e+00> : vector<64x128xf32>
    %14 = tpu.matmul %0, %13, %cst_7 {dimension_numbers = #tpu.dot_dimension_numbers<[1], [0], [0], [1], [0, 0, 1, 1], [], []>} : vector<64x64xf32>, vector<64x128xf32>, vector<64x128xf32> -> vector<64x128xf32>
    %15 = vector.broadcast %8 : vector<1x128xf32> to vector<64x128xf32>
    %16 = arith.addf %14, %15 : vector<64x128xf32>
    %cst_8 = arith.constant dense<0.000000e+00> : vector<64xf32>
    %17 = vector.multi_reduction <add>, %16, %cst_8 [1] : vector<64x128xf32> to vector<64xf32>
    %18 = vector.shape_cast %17 : vector<64xf32> to vector<64x1xf32>
    %cst_9 = arith.constant 3.125000e-02 : f32
    %19 = vector.broadcast %cst_9 : f32 to vector<64x1xf32>
    %20 = arith.mulf %18, %19 : vector<64x1xf32>
    %21 = vector.broadcast %20 : vector<64x1xf32> to vector<64x128xf32>
    %22 = arith.subf %16, %21 : vector<64x128xf32>
    %23 = arith.mulf %22, %22 : vector<64x128xf32>
    %cst_10 = arith.constant 0.000000e+00 : f32
    %24 = vector.shape_cast %4 : vector<1x128xi1> to vector<1x128xi1>
    %25 = vector.broadcast %24 : vector<1x128xi1> to vector<64x128xi1>
    %26 = vector.broadcast %cst_10 : f32 to vector<64x128xf32>
    %27 = arith.select %25, %23, %26 : vector<64x128xi1>, vector<64x128xf32>
    %cst_11 = arith.constant dense<0.000000e+00> : vector<64xf32>
    %28 = vector.multi_reduction <add>, %27, %cst_11 [1] : vector<64x128xf32> to vector<64xf32>
    %29 = vector.shape_cast %28 : vector<64xf32> to vector<64x1xf32>
    %cst_12 = arith.constant 3.125000e-02 : f32
    %30 = vector.broadcast %cst_12 : f32 to vector<64x1xf32>
    %31 = arith.mulf %29, %30 : vector<64x1xf32>
    %cst_13 = arith.constant 9.99999974E-6 : f32
    %32 = vector.broadcast %cst_13 : f32 to vector<64x1xf32>
    %33 = arith.addf %31, %32 : vector<64x1xf32>
    %34 = math.rsqrt %33 : vector<64x1xf32>
    %35 = vector.broadcast %34 : vector<64x1xf32> to vector<64x128xf32>
    %36 = arith.mulf %22, %35 : vector<64x128xf32>
    %37 = vector.broadcast %9 : vector<1x128xf32> to vector<64x128xf32>
    %38 = arith.mulf %36, %37 : vector<64x128xf32>
    %39 = vector.broadcast %10 : vector<1x128xf32> to vector<64x128xf32>
    %40 = arith.addf %38, %39 : vector<64x128xf32>
    %cst_14 = arith.constant 0.000000e+00 : f32
    %41 = vector.broadcast %cst_14 : f32 to vector<64x128xf32>
    %42 = arith.maximumf %40, %41 : vector<64x128xf32>
    %c0_15 = arith.constant 0 : index
    %c0_16 = arith.constant 0 : index
    %c0_17 = arith.constant 0 : index
    %43 = vector.load %arg9[%c0_15, %c0_16, %c0_17] : memref<5x8x128xf32, #tpu.memory_space<vmem>>, vector<1x8x128xf32>
    %44 = vector.shape_cast %43 : vector<1x8x128xf32> to vector<8x128xf32>
    %45 = vector.extract_strided_slice %44 {offsets = [0, 0], sizes = [1, 128], strides = [1, 1]} : vector<8x128xf32> to vector<1x128xf32>
    %46 = vector.extract_strided_slice %44 {offsets = [1, 0], sizes = [1, 128], strides = [1, 1]} : vector<8x128xf32> to vector<1x128xf32>
    %47 = vector.extract_strided_slice %44 {offsets = [2, 0], sizes = [1, 128], strides = [1, 1]} : vector<8x128xf32> to vector<1x128xf32>
    %48 = vector.extract_strided_slice %44 {offsets = [3, 0], sizes = [1, 128], strides = [1, 1]} : vector<8x128xf32> to vector<1x128xf32>
    %49 = vector.extract_strided_slice %44 {offsets = [4, 0], sizes = [1, 128], strides = [1, 1]} : vector<8x128xf32> to vector<1x128xf32>
    %50 = vector.extract_strided_slice %44 {offsets = [5, 0], sizes = [1, 128], strides = [1, 1]} : vector<8x128xf32> to vector<1x128xf32>
    %51 = vector.extract_strided_slice %44 {offsets = [6, 0], sizes = [1, 128], strides = [1, 1]} : vector<8x128xf32> to vector<1x128xf32>
    %52 = vector.extract_strided_slice %44 {offsets = [7, 0], sizes = [1, 128], strides = [1, 1]} : vector<8x128xf32> to vector<1x128xf32>
    %c0_18 = arith.constant 0 : index
    %c0_19 = arith.constant 0 : index
    %c0_20 = arith.constant 0 : index
    %53 = vector.load %arg4[%c0_18, %c0_19, %c0_20] : memref<5x128x128xf32, #tpu.memory_space<vmem>>, vector<1x128x128xf32>
    %54 = vector.shape_cast %53 : vector<1x128x128xf32> to vector<128x128xf32>
    %cst_21 = arith.constant dense<0.000000e+00> : vector<64x128xf32>
    %55 = tpu.matmul %42, %54, %cst_21 {dimension_numbers = #tpu.dot_dimension_numbers<[1], [0], [0], [1], [0, 0, 1, 1], [], []>} : vector<64x128xf32>, vector<128x128xf32>, vector<64x128xf32> -> vector<64x128xf32>
    %cst_22 = arith.constant dense<0.000000e+00> : vector<64x128xf32>
    %56 = tpu.matmul %0, %55, %cst_22 {dimension_numbers = #tpu.dot_dimension_numbers<[1], [0], [0], [1], [0, 0, 1, 1], [], []>} : vector<64x64xf32>, vector<64x128xf32>, vector<64x128xf32> -> vector<64x128xf32>
    %57 = vector.broadcast %45 : vector<1x128xf32> to vector<64x128xf32>
    %58 = arith.addf %56, %57 : vector<64x128xf32>
    %cst_23 = arith.constant dense<0.000000e+00> : vector<64xf32>
    %59 = vector.multi_reduction <add>, %58, %cst_23 [1] : vector<64x128xf32> to vector<64xf32>
    %60 = vector.shape_cast %59 : vector<64xf32> to vector<64x1xf32>
    %cst_24 = arith.constant 3.125000e-02 : f32
    %61 = vector.broadcast %cst_24 : f32 to vector<64x1xf32>
    %62 = arith.mulf %60, %61 : vector<64x1xf32>
    %63 = vector.broadcast %62 : vector<64x1xf32> to vector<64x128xf32>
    %64 = arith.subf %58, %63 : vector<64x128xf32>
    %65 = arith.mulf %64, %64 : vector<64x128xf32>
    %cst_25 = arith.constant 0.000000e+00 : f32
    %66 = vector.shape_cast %4 : vector<1x128xi1> to vector<1x128xi1>
    %67 = vector.broadcast %66 : vector<1x128xi1> to vector<64x128xi1>
    %68 = vector.broadcast %cst_25 : f32 to vector<64x128xf32>
    %69 = arith.select %67, %65, %68 : vector<64x128xi1>, vector<64x128xf32>
    %cst_26 = arith.constant dense<0.000000e+00> : vector<64xf32>
    %70 = vector.multi_reduction <add>, %69, %cst_26 [1] : vector<64x128xf32> to vector<64xf32>
    %71 = vector.shape_cast %70 : vector<64xf32> to vector<64x1xf32>
    %cst_27 = arith.constant 3.125000e-02 : f32
    %72 = vector.broadcast %cst_27 : f32 to vector<64x1xf32>
    %73 = arith.mulf %71, %72 : vector<64x1xf32>
    %cst_28 = arith.constant 9.99999974E-6 : f32
    %74 = vector.broadcast %cst_28 : f32 to vector<64x1xf32>
    %75 = arith.addf %73, %74 : vector<64x1xf32>
    %76 = math.rsqrt %75 : vector<64x1xf32>
    %77 = vector.broadcast %76 : vector<64x1xf32> to vector<64x128xf32>
    %78 = arith.mulf %64, %77 : vector<64x128xf32>
    %79 = vector.broadcast %46 : vector<1x128xf32> to vector<64x128xf32>
    %80 = arith.mulf %78, %79 : vector<64x128xf32>
    %81 = vector.broadcast %47 : vector<1x128xf32> to vector<64x128xf32>
    %82 = arith.addf %80, %81 : vector<64x128xf32>
    %cst_29 = arith.constant 0.000000e+00 : f32
    %83 = vector.broadcast %cst_29 : f32 to vector<64x128xf32>
    %84 = arith.maximumf %82, %83 : vector<64x128xf32>
    %c0_30 = arith.constant 0 : index
    %c0_31 = arith.constant 0 : index
    %c0_32 = arith.constant 0 : index
    %85 = vector.load %arg5[%c0_30, %c0_31, %c0_32] : memref<5x128x128xf32, #tpu.memory_space<vmem>>, vector<1x128x128xf32>
    %86 = vector.shape_cast %85 : vector<1x128x128xf32> to vector<128x128xf32>
    %cst_33 = arith.constant dense<0.000000e+00> : vector<64x128xf32>
    %87 = tpu.matmul %84, %86, %cst_33 {dimension_numbers = #tpu.dot_dimension_numbers<[1], [0], [0], [1], [0, 0, 1, 1], [], []>} : vector<64x128xf32>, vector<128x128xf32>, vector<64x128xf32> -> vector<64x128xf32>
    %cst_34 = arith.constant dense<0.000000e+00> : vector<64x128xf32>
    %88 = tpu.matmul %0, %87, %cst_34 {dimension_numbers = #tpu.dot_dimension_numbers<[1], [0], [0], [1], [0, 0, 1, 1], [], []>} : vector<64x64xf32>, vector<64x128xf32>, vector<64x128xf32> -> vector<64x128xf32>
    %89 = vector.broadcast %48 : vector<1x128xf32> to vector<64x128xf32>
    %90 = arith.addf %88, %89 : vector<64x128xf32>
    %cst_35 = arith.constant dense<0.000000e+00> : vector<64xf32>
    %91 = vector.multi_reduction <add>, %90, %cst_35 [1] : vector<64x128xf32> to vector<64xf32>
    %92 = vector.shape_cast %91 : vector<64xf32> to vector<64x1xf32>
    %cst_36 = arith.constant 3.125000e-02 : f32
    %93 = vector.broadcast %cst_36 : f32 to vector<64x1xf32>
    %94 = arith.mulf %92, %93 : vector<64x1xf32>
    %95 = vector.broadcast %94 : vector<64x1xf32> to vector<64x128xf32>
    %96 = arith.subf %90, %95 : vector<64x128xf32>
    %97 = arith.mulf %96, %96 : vector<64x128xf32>
    %cst_37 = arith.constant 0.000000e+00 : f32
    %98 = vector.shape_cast %4 : vector<1x128xi1> to vector<1x128xi1>
    %99 = vector.broadcast %98 : vector<1x128xi1> to vector<64x128xi1>
    %100 = vector.broadcast %cst_37 : f32 to vector<64x128xf32>
    %101 = arith.select %99, %97, %100 : vector<64x128xi1>, vector<64x128xf32>
    %cst_38 = arith.constant dense<0.000000e+00> : vector<64xf32>
    %102 = vector.multi_reduction <add>, %101, %cst_38 [1] : vector<64x128xf32> to vector<64xf32>
    %103 = vector.shape_cast %102 : vector<64xf32> to vector<64x1xf32>
    %cst_39 = arith.constant 3.125000e-02 : f32
    %104 = vector.broadcast %cst_39 : f32 to vector<64x1xf32>
    %105 = arith.mulf %103, %104 : vector<64x1xf32>
    %cst_40 = arith.constant 9.99999974E-6 : f32
    %106 = vector.broadcast %cst_40 : f32 to vector<64x1xf32>
    %107 = arith.addf %105, %106 : vector<64x1xf32>
    %108 = math.rsqrt %107 : vector<64x1xf32>
    %109 = vector.broadcast %108 : vector<64x1xf32> to vector<64x128xf32>
    %110 = arith.mulf %96, %109 : vector<64x128xf32>
    %111 = vector.broadcast %49 : vector<1x128xf32> to vector<64x128xf32>
    %112 = arith.mulf %110, %111 : vector<64x128xf32>
    %113 = vector.broadcast %50 : vector<1x128xf32> to vector<64x128xf32>
    %114 = arith.addf %112, %113 : vector<64x128xf32>
    %c0_41 = arith.constant 0 : index
    %c0_42 = arith.constant 0 : index
    %c0_43 = arith.constant 0 : index
    %115 = vector.load %arg6[%c0_41, %c0_42, %c0_43] : memref<5x128x128xf32, #tpu.memory_space<vmem>>, vector<1x128x128xf32>
    %116 = vector.shape_cast %115 : vector<1x128x128xf32> to vector<128x128xf32>
    %cst_44 = arith.constant dense<0.000000e+00> : vector<64x128xf32>
    %117 = tpu.matmul %114, %116, %cst_44 {dimension_numbers = #tpu.dot_dimension_numbers<[1], [0], [0], [1], [0, 0, 1, 1], [], []>} : vector<64x128xf32>, vector<128x128xf32>, vector<64x128xf32> -> vector<64x128xf32>
    %118 = vector.broadcast %51 : vector<1x128xf32> to vector<64x128xf32>
    %119 = arith.addf %117, %118 : vector<64x128xf32>
    %cst_45 = arith.constant 0.000000e+00 : f32
    %120 = vector.broadcast %cst_45 : f32 to vector<64x128xf32>
    %121 = arith.maximumf %119, %120 : vector<64x128xf32>
    %c0_46 = arith.constant 0 : index
    %c0_47 = arith.constant 0 : index
    %c0_48 = arith.constant 0 : index
    %122 = vector.load %arg7[%c0_46, %c0_47, %c0_48] : memref<5x128x128xf32, #tpu.memory_space<vmem>>, vector<1x128x128xf32>
    %123 = vector.shape_cast %122 : vector<1x128x128xf32> to vector<128x128xf32>
    %cst_49 = arith.constant dense<0.000000e+00> : vector<64x128xf32>
    %124 = tpu.matmul %121, %123, %cst_49 {dimension_numbers = #tpu.dot_dimension_numbers<[1], [0], [0], [1], [0, 0, 1, 1], [], []>} : vector<64x128xf32>, vector<128x128xf32>, vector<64x128xf32> -> vector<64x128xf32>
    %125 = vector.broadcast %52 : vector<1x128xf32> to vector<64x128xf32>
    %126 = arith.addf %124, %125 : vector<64x128xf32>
    %127 = arith.negf %126 : vector<64x128xf32>
    %128 = math.exp %127 : vector<64x128xf32>
    %cst_50 = arith.constant 1.000000e+00 : f32
    %129 = vector.broadcast %cst_50 : f32 to vector<64x128xf32>
    %130 = arith.addf %129, %128 : vector<64x128xf32>
    %131 = arith.divf %129, %130 : vector<64x128xf32>
    %132 = arith.mulf %114, %131 : vector<64x128xf32>
    %133 = arith.addf %132, %42 : vector<64x128xf32>
    %cst_51 = arith.constant 0.000000e+00 : f32
    %134 = vector.broadcast %cst_51 : f32 to vector<64x128xf32>
    %135 = arith.maximumf %133, %134 : vector<64x128xf32>
    %c1 = arith.constant 1 : index
    %c0_52 = arith.constant 0 : index
    %c0_53 = arith.constant 0 : index
    %136 = vector.load %arg9[%c1, %c0_52, %c0_53] : memref<5x8x128xf32, #tpu.memory_space<vmem>>, vector<1x8x128xf32>
    %137 = vector.shape_cast %136 : vector<1x8x128xf32> to vector<8x128xf32>
    %138 = vector.extract_strided_slice %137 {offsets = [0, 0], sizes = [1, 128], strides = [1, 1]} : vector<8x128xf32> to vector<1x128xf32>
    %139 = vector.extract_strided_slice %137 {offsets = [1, 0], sizes = [1, 128], strides = [1, 1]} : vector<8x128xf32> to vector<1x128xf32>
    %140 = vector.extract_strided_slice %137 {offsets = [2, 0], sizes = [1, 128], strides = [1, 1]} : vector<8x128xf32> to vector<1x128xf32>
    %141 = vector.extract_strided_slice %137 {offsets = [3, 0], sizes = [1, 128], strides = [1, 1]} : vector<8x128xf32> to vector<1x128xf32>
    %142 = vector.extract_strided_slice %137 {offsets = [4, 0], sizes = [1, 128], strides = [1, 1]} : vector<8x128xf32> to vector<1x128xf32>
    %143 = vector.extract_strided_slice %137 {offsets = [5, 0], sizes = [1, 128], strides = [1, 1]} : vector<8x128xf32> to vector<1x128xf32>
    %144 = vector.extract_strided_slice %137 {offsets = [6, 0], sizes = [1, 128], strides = [1, 1]} : vector<8x128xf32> to vector<1x128xf32>
    %145 = vector.extract_strided_slice %137 {offsets = [7, 0], sizes = [1, 128], strides = [1, 1]} : vector<8x128xf32> to vector<1x128xf32>
    %c1_54 = arith.constant 1 : index
    %c0_55 = arith.constant 0 : index
    %c0_56 = arith.constant 0 : index
    %146 = vector.load %arg4[%c1_54, %c0_55, %c0_56] : memref<5x128x128xf32, #tpu.memory_space<vmem>>, vector<1x128x128xf32>
    %147 = vector.shape_cast %146 : vector<1x128x128xf32> to vector<128x128xf32>
    %cst_57 = arith.constant dense<0.000000e+00> : vector<64x128xf32>
    %148 = tpu.matmul %135, %147, %cst_57 {dimension_numbers = #tpu.dot_dimension_numbers<[1], [0], [0], [1], [0, 0, 1, 1], [], []>} : vector<64x128xf32>, vector<128x128xf32>, vector<64x128xf32> -> vector<64x128xf32>
    %cst_58 = arith.constant dense<0.000000e+00> : vector<64x128xf32>
    %149 = tpu.matmul %0, %148, %cst_58 {dimension_numbers = #tpu.dot_dimension_numbers<[1], [0], [0], [1], [0, 0, 1, 1], [], []>} : vector<64x64xf32>, vector<64x128xf32>, vector<64x128xf32> -> vector<64x128xf32>
    %150 = vector.broadcast %138 : vector<1x128xf32> to vector<64x128xf32>
    %151 = arith.addf %149, %150 : vector<64x128xf32>
    %cst_59 = arith.constant dense<0.000000e+00> : vector<64xf32>
    %152 = vector.multi_reduction <add>, %151, %cst_59 [1] : vector<64x128xf32> to vector<64xf32>
    %153 = vector.shape_cast %152 : vector<64xf32> to vector<64x1xf32>
    %cst_60 = arith.constant 3.125000e-02 : f32
    %154 = vector.broadcast %cst_60 : f32 to vector<64x1xf32>
    %155 = arith.mulf %153, %154 : vector<64x1xf32>
    %156 = vector.broadcast %155 : vector<64x1xf32> to vector<64x128xf32>
    %157 = arith.subf %151, %156 : vector<64x128xf32>
    %158 = arith.mulf %157, %157 : vector<64x128xf32>
    %cst_61 = arith.constant 0.000000e+00 : f32
    %159 = vector.shape_cast %4 : vector<1x128xi1> to vector<1x128xi1>
    %160 = vector.broadcast %159 : vector<1x128xi1> to vector<64x128xi1>
    %161 = vector.broadcast %cst_61 : f32 to vector<64x128xf32>
    %162 = arith.select %160, %158, %161 : vector<64x128xi1>, vector<64x128xf32>
    %cst_62 = arith.constant dense<0.000000e+00> : vector<64xf32>
    %163 = vector.multi_reduction <add>, %162, %cst_62 [1] : vector<64x128xf32> to vector<64xf32>
    %164 = vector.shape_cast %163 : vector<64xf32> to vector<64x1xf32>
    %cst_63 = arith.constant 3.125000e-02 : f32
    %165 = vector.broadcast %cst_63 : f32 to vector<64x1xf32>
    %166 = arith.mulf %164, %165 : vector<64x1xf32>
    %cst_64 = arith.constant 9.99999974E-6 : f32
    %167 = vector.broadcast %cst_64 : f32 to vector<64x1xf32>
    %168 = arith.addf %166, %167 : vector<64x1xf32>
    %169 = math.rsqrt %168 : vector<64x1xf32>
    %170 = vector.broadcast %169 : vector<64x1xf32> to vector<64x128xf32>
    %171 = arith.mulf %157, %170 : vector<64x128xf32>
    %172 = vector.broadcast %139 : vector<1x128xf32> to vector<64x128xf32>
    %173 = arith.mulf %171, %172 : vector<64x128xf32>
    %174 = vector.broadcast %140 : vector<1x128xf32> to vector<64x128xf32>
    %175 = arith.addf %173, %174 : vector<64x128xf32>
    %cst_65 = arith.constant 0.000000e+00 : f32
    %176 = vector.broadcast %cst_65 : f32 to vector<64x128xf32>
    %177 = arith.maximumf %175, %176 : vector<64x128xf32>
    %c1_66 = arith.constant 1 : index
    %c0_67 = arith.constant 0 : index
    %c0_68 = arith.constant 0 : index
    %178 = vector.load %arg5[%c1_66, %c0_67, %c0_68] : memref<5x128x128xf32, #tpu.memory_space<vmem>>, vector<1x128x128xf32>
    %179 = vector.shape_cast %178 : vector<1x128x128xf32> to vector<128x128xf32>
    %cst_69 = arith.constant dense<0.000000e+00> : vector<64x128xf32>
    %180 = tpu.matmul %177, %179, %cst_69 {dimension_numbers = #tpu.dot_dimension_numbers<[1], [0], [0], [1], [0, 0, 1, 1], [], []>} : vector<64x128xf32>, vector<128x128xf32>, vector<64x128xf32> -> vector<64x128xf32>
    %cst_70 = arith.constant dense<0.000000e+00> : vector<64x128xf32>
    %181 = tpu.matmul %0, %180, %cst_70 {dimension_numbers = #tpu.dot_dimension_numbers<[1], [0], [0], [1], [0, 0, 1, 1], [], []>} : vector<64x64xf32>, vector<64x128xf32>, vector<64x128xf32> -> vector<64x128xf32>
    %182 = vector.broadcast %141 : vector<1x128xf32> to vector<64x128xf32>
    %183 = arith.addf %181, %182 : vector<64x128xf32>
    %cst_71 = arith.constant dense<0.000000e+00> : vector<64xf32>
    %184 = vector.multi_reduction <add>, %183, %cst_71 [1] : vector<64x128xf32> to vector<64xf32>
    %185 = vector.shape_cast %184 : vector<64xf32> to vector<64x1xf32>
    %cst_72 = arith.constant 3.125000e-02 : f32
    %186 = vector.broadcast %cst_72 : f32 to vector<64x1xf32>
    %187 = arith.mulf %185, %186 : vector<64x1xf32>
    %188 = vector.broadcast %187 : vector<64x1xf32> to vector<64x128xf32>
    %189 = arith.subf %183, %188 : vector<64x128xf32>
    %190 = arith.mulf %189, %189 : vector<64x128xf32>
    %cst_73 = arith.constant 0.000000e+00 : f32
    %191 = vector.shape_cast %4 : vector<1x128xi1> to vector<1x128xi1>
    %192 = vector.broadcast %191 : vector<1x128xi1> to vector<64x128xi1>
    %193 = vector.broadcast %cst_73 : f32 to vector<64x128xf32>
    %194 = arith.select %192, %190, %193 : vector<64x128xi1>, vector<64x128xf32>
    %cst_74 = arith.constant dense<0.000000e+00> : vector<64xf32>
    %195 = vector.multi_reduction <add>, %194, %cst_74 [1] : vector<64x128xf32> to vector<64xf32>
    %196 = vector.shape_cast %195 : vector<64xf32> to vector<64x1xf32>
    %cst_75 = arith.constant 3.125000e-02 : f32
    %197 = vector.broadcast %cst_75 : f32 to vector<64x1xf32>
    %198 = arith.mulf %196, %197 : vector<64x1xf32>
    %cst_76 = arith.constant 9.99999974E-6 : f32
    %199 = vector.broadcast %cst_76 : f32 to vector<64x1xf32>
    %200 = arith.addf %198, %199 : vector<64x1xf32>
    %201 = math.rsqrt %200 : vector<64x1xf32>
    %202 = vector.broadcast %201 : vector<64x1xf32> to vector<64x128xf32>
    %203 = arith.mulf %189, %202 : vector<64x128xf32>
    %204 = vector.broadcast %142 : vector<1x128xf32> to vector<64x128xf32>
    %205 = arith.mulf %203, %204 : vector<64x128xf32>
    %206 = vector.broadcast %143 : vector<1x128xf32> to vector<64x128xf32>
    %207 = arith.addf %205, %206 : vector<64x128xf32>
    %c1_77 = arith.constant 1 : index
    %c0_78 = arith.constant 0 : index
    %c0_79 = arith.constant 0 : index
    %208 = vector.load %arg6[%c1_77, %c0_78, %c0_79] : memref<5x128x128xf32, #tpu.memory_space<vmem>>, vector<1x128x128xf32>
    %209 = vector.shape_cast %208 : vector<1x128x128xf32> to vector<128x128xf32>
    %cst_80 = arith.constant dense<0.000000e+00> : vector<64x128xf32>
    %210 = tpu.matmul %207, %209, %cst_80 {dimension_numbers = #tpu.dot_dimension_numbers<[1], [0], [0], [1], [0, 0, 1, 1], [], []>} : vector<64x128xf32>, vector<128x128xf32>, vector<64x128xf32> -> vector<64x128xf32>
    %211 = vector.broadcast %144 : vector<1x128xf32> to vector<64x128xf32>
    %212 = arith.addf %210, %211 : vector<64x128xf32>
    %cst_81 = arith.constant 0.000000e+00 : f32
    %213 = vector.broadcast %cst_81 : f32 to vector<64x128xf32>
    %214 = arith.maximumf %212, %213 : vector<64x128xf32>
    %c1_82 = arith.constant 1 : index
    %c0_83 = arith.constant 0 : index
    %c0_84 = arith.constant 0 : index
    %215 = vector.load %arg7[%c1_82, %c0_83, %c0_84] : memref<5x128x128xf32, #tpu.memory_space<vmem>>, vector<1x128x128xf32>
    %216 = vector.shape_cast %215 : vector<1x128x128xf32> to vector<128x128xf32>
    %cst_85 = arith.constant dense<0.000000e+00> : vector<64x128xf32>
    %217 = tpu.matmul %214, %216, %cst_85 {dimension_numbers = #tpu.dot_dimension_numbers<[1], [0], [0], [1], [0, 0, 1, 1], [], []>} : vector<64x128xf32>, vector<128x128xf32>, vector<64x128xf32> -> vector<64x128xf32>
    %218 = vector.broadcast %145 : vector<1x128xf32> to vector<64x128xf32>
    %219 = arith.addf %217, %218 : vector<64x128xf32>
    %220 = arith.negf %219 : vector<64x128xf32>
    %221 = math.exp %220 : vector<64x128xf32>
    %cst_86 = arith.constant 1.000000e+00 : f32
    %222 = vector.broadcast %cst_86 : f32 to vector<64x128xf32>
    %223 = arith.addf %222, %221 : vector<64x128xf32>
    %224 = arith.divf %222, %223 : vector<64x128xf32>
    %225 = arith.mulf %207, %224 : vector<64x128xf32>
    %226 = arith.addf %225, %135 : vector<64x128xf32>
    %cst_87 = arith.constant 0.000000e+00 : f32
    %227 = vector.broadcast %cst_87 : f32 to vector<64x128xf32>
    %228 = arith.maximumf %226, %227 : vector<64x128xf32>
    %c2 = arith.constant 2 : index
    %c0_88 = arith.constant 0 : index
    %c0_89 = arith.constant 0 : index
    %229 = vector.load %arg9[%c2, %c0_88, %c0_89] : memref<5x8x128xf32, #tpu.memory_space<vmem>>, vector<1x8x128xf32>
    %230 = vector.shape_cast %229 : vector<1x8x128xf32> to vector<8x128xf32>
    %231 = vector.extract_strided_slice %230 {offsets = [0, 0], sizes = [1, 128], strides = [1, 1]} : vector<8x128xf32> to vector<1x128xf32>
    %232 = vector.extract_strided_slice %230 {offsets = [1, 0], sizes = [1, 128], strides = [1, 1]} : vector<8x128xf32> to vector<1x128xf32>
    %233 = vector.extract_strided_slice %230 {offsets = [2, 0], sizes = [1, 128], strides = [1, 1]} : vector<8x128xf32> to vector<1x128xf32>
    %234 = vector.extract_strided_slice %230 {offsets = [3, 0], sizes = [1, 128], strides = [1, 1]} : vector<8x128xf32> to vector<1x128xf32>
    %235 = vector.extract_strided_slice %230 {offsets = [4, 0], sizes = [1, 128], strides = [1, 1]} : vector<8x128xf32> to vector<1x128xf32>
    %236 = vector.extract_strided_slice %230 {offsets = [5, 0], sizes = [1, 128], strides = [1, 1]} : vector<8x128xf32> to vector<1x128xf32>
    %237 = vector.extract_strided_slice %230 {offsets = [6, 0], sizes = [1, 128], strides = [1, 1]} : vector<8x128xf32> to vector<1x128xf32>
    %238 = vector.extract_strided_slice %230 {offsets = [7, 0], sizes = [1, 128], strides = [1, 1]} : vector<8x128xf32> to vector<1x128xf32>
    %c2_90 = arith.constant 2 : index
    %c0_91 = arith.constant 0 : index
    %c0_92 = arith.constant 0 : index
    %239 = vector.load %arg4[%c2_90, %c0_91, %c0_92] : memref<5x128x128xf32, #tpu.memory_space<vmem>>, vector<1x128x128xf32>
    %240 = vector.shape_cast %239 : vector<1x128x128xf32> to vector<128x128xf32>
    %cst_93 = arith.constant dense<0.000000e+00> : vector<64x128xf32>
    %241 = tpu.matmul %228, %240, %cst_93 {dimension_numbers = #tpu.dot_dimension_numbers<[1], [0], [0], [1], [0, 0, 1, 1], [], []>} : vector<64x128xf32>, vector<128x128xf32>, vector<64x128xf32> -> vector<64x128xf32>
    %cst_94 = arith.constant dense<0.000000e+00> : vector<64x128xf32>
    %242 = tpu.matmul %0, %241, %cst_94 {dimension_numbers = #tpu.dot_dimension_numbers<[1], [0], [0], [1], [0, 0, 1, 1], [], []>} : vector<64x64xf32>, vector<64x128xf32>, vector<64x128xf32> -> vector<64x128xf32>
    %243 = vector.broadcast %231 : vector<1x128xf32> to vector<64x128xf32>
    %244 = arith.addf %242, %243 : vector<64x128xf32>
    %cst_95 = arith.constant dense<0.000000e+00> : vector<64xf32>
    %245 = vector.multi_reduction <add>, %244, %cst_95 [1] : vector<64x128xf32> to vector<64xf32>
    %246 = vector.shape_cast %245 : vector<64xf32> to vector<64x1xf32>
    %cst_96 = arith.constant 3.125000e-02 : f32
    %247 = vector.broadcast %cst_96 : f32 to vector<64x1xf32>
    %248 = arith.mulf %246, %247 : vector<64x1xf32>
    %249 = vector.broadcast %248 : vector<64x1xf32> to vector<64x128xf32>
    %250 = arith.subf %244, %249 : vector<64x128xf32>
    %251 = arith.mulf %250, %250 : vector<64x128xf32>
    %cst_97 = arith.constant 0.000000e+00 : f32
    %252 = vector.shape_cast %4 : vector<1x128xi1> to vector<1x128xi1>
    %253 = vector.broadcast %252 : vector<1x128xi1> to vector<64x128xi1>
    %254 = vector.broadcast %cst_97 : f32 to vector<64x128xf32>
    %255 = arith.select %253, %251, %254 : vector<64x128xi1>, vector<64x128xf32>
    %cst_98 = arith.constant dense<0.000000e+00> : vector<64xf32>
    %256 = vector.multi_reduction <add>, %255, %cst_98 [1] : vector<64x128xf32> to vector<64xf32>
    %257 = vector.shape_cast %256 : vector<64xf32> to vector<64x1xf32>
    %cst_99 = arith.constant 3.125000e-02 : f32
    %258 = vector.broadcast %cst_99 : f32 to vector<64x1xf32>
    %259 = arith.mulf %257, %258 : vector<64x1xf32>
    %cst_100 = arith.constant 9.99999974E-6 : f32
    %260 = vector.broadcast %cst_100 : f32 to vector<64x1xf32>
    %261 = arith.addf %259, %260 : vector<64x1xf32>
    %262 = math.rsqrt %261 : vector<64x1xf32>
    %263 = vector.broadcast %262 : vector<64x1xf32> to vector<64x128xf32>
    %264 = arith.mulf %250, %263 : vector<64x128xf32>
    %265 = vector.broadcast %232 : vector<1x128xf32> to vector<64x128xf32>
    %266 = arith.mulf %264, %265 : vector<64x128xf32>
    %267 = vector.broadcast %233 : vector<1x128xf32> to vector<64x128xf32>
    %268 = arith.addf %266, %267 : vector<64x128xf32>
    %cst_101 = arith.constant 0.000000e+00 : f32
    %269 = vector.broadcast %cst_101 : f32 to vector<64x128xf32>
    %270 = arith.maximumf %268, %269 : vector<64x128xf32>
    %c2_102 = arith.constant 2 : index
    %c0_103 = arith.constant 0 : index
    %c0_104 = arith.constant 0 : index
    %271 = vector.load %arg5[%c2_102, %c0_103, %c0_104] : memref<5x128x128xf32, #tpu.memory_space<vmem>>, vector<1x128x128xf32>
    %272 = vector.shape_cast %271 : vector<1x128x128xf32> to vector<128x128xf32>
    %cst_105 = arith.constant dense<0.000000e+00> : vector<64x128xf32>
    %273 = tpu.matmul %270, %272, %cst_105 {dimension_numbers = #tpu.dot_dimension_numbers<[1], [0], [0], [1], [0, 0, 1, 1], [], []>} : vector<64x128xf32>, vector<128x128xf32>, vector<64x128xf32> -> vector<64x128xf32>
    %cst_106 = arith.constant dense<0.000000e+00> : vector<64x128xf32>
    %274 = tpu.matmul %0, %273, %cst_106 {dimension_numbers = #tpu.dot_dimension_numbers<[1], [0], [0], [1], [0, 0, 1, 1], [], []>} : vector<64x64xf32>, vector<64x128xf32>, vector<64x128xf32> -> vector<64x128xf32>
    %275 = vector.broadcast %234 : vector<1x128xf32> to vector<64x128xf32>
    %276 = arith.addf %274, %275 : vector<64x128xf32>
    %cst_107 = arith.constant dense<0.000000e+00> : vector<64xf32>
    %277 = vector.multi_reduction <add>, %276, %cst_107 [1] : vector<64x128xf32> to vector<64xf32>
    %278 = vector.shape_cast %277 : vector<64xf32> to vector<64x1xf32>
    %cst_108 = arith.constant 3.125000e-02 : f32
    %279 = vector.broadcast %cst_108 : f32 to vector<64x1xf32>
    %280 = arith.mulf %278, %279 : vector<64x1xf32>
    %281 = vector.broadcast %280 : vector<64x1xf32> to vector<64x128xf32>
    %282 = arith.subf %276, %281 : vector<64x128xf32>
    %283 = arith.mulf %282, %282 : vector<64x128xf32>
    %cst_109 = arith.constant 0.000000e+00 : f32
    %284 = vector.shape_cast %4 : vector<1x128xi1> to vector<1x128xi1>
    %285 = vector.broadcast %284 : vector<1x128xi1> to vector<64x128xi1>
    %286 = vector.broadcast %cst_109 : f32 to vector<64x128xf32>
    %287 = arith.select %285, %283, %286 : vector<64x128xi1>, vector<64x128xf32>
    %cst_110 = arith.constant dense<0.000000e+00> : vector<64xf32>
    %288 = vector.multi_reduction <add>, %287, %cst_110 [1] : vector<64x128xf32> to vector<64xf32>
    %289 = vector.shape_cast %288 : vector<64xf32> to vector<64x1xf32>
    %cst_111 = arith.constant 3.125000e-02 : f32
    %290 = vector.broadcast %cst_111 : f32 to vector<64x1xf32>
    %291 = arith.mulf %289, %290 : vector<64x1xf32>
    %cst_112 = arith.constant 9.99999974E-6 : f32
    %292 = vector.broadcast %cst_112 : f32 to vector<64x1xf32>
    %293 = arith.addf %291, %292 : vector<64x1xf32>
    %294 = math.rsqrt %293 : vector<64x1xf32>
    %295 = vector.broadcast %294 : vector<64x1xf32> to vector<64x128xf32>
    %296 = arith.mulf %282, %295 : vector<64x128xf32>
    %297 = vector.broadcast %235 : vector<1x128xf32> to vector<64x128xf32>
    %298 = arith.mulf %296, %297 : vector<64x128xf32>
    %299 = vector.broadcast %236 : vector<1x128xf32> to vector<64x128xf32>
    %300 = arith.addf %298, %299 : vector<64x128xf32>
    %c2_113 = arith.constant 2 : index
    %c0_114 = arith.constant 0 : index
    %c0_115 = arith.constant 0 : index
    %301 = vector.load %arg6[%c2_113, %c0_114, %c0_115] : memref<5x128x128xf32, #tpu.memory_space<vmem>>, vector<1x128x128xf32>
    %302 = vector.shape_cast %301 : vector<1x128x128xf32> to vector<128x128xf32>
    %cst_116 = arith.constant dense<0.000000e+00> : vector<64x128xf32>
    %303 = tpu.matmul %300, %302, %cst_116 {dimension_numbers = #tpu.dot_dimension_numbers<[1], [0], [0], [1], [0, 0, 1, 1], [], []>} : vector<64x128xf32>, vector<128x128xf32>, vector<64x128xf32> -> vector<64x128xf32>
    %304 = vector.broadcast %237 : vector<1x128xf32> to vector<64x128xf32>
    %305 = arith.addf %303, %304 : vector<64x128xf32>
    %cst_117 = arith.constant 0.000000e+00 : f32
    %306 = vector.broadcast %cst_117 : f32 to vector<64x128xf32>
    %307 = arith.maximumf %305, %306 : vector<64x128xf32>
    %c2_118 = arith.constant 2 : index
    %c0_119 = arith.constant 0 : index
    %c0_120 = arith.constant 0 : index
    %308 = vector.load %arg7[%c2_118, %c0_119, %c0_120] : memref<5x128x128xf32, #tpu.memory_space<vmem>>, vector<1x128x128xf32>
    %309 = vector.shape_cast %308 : vector<1x128x128xf32> to vector<128x128xf32>
    %cst_121 = arith.constant dense<0.000000e+00> : vector<64x128xf32>
    %310 = tpu.matmul %307, %309, %cst_121 {dimension_numbers = #tpu.dot_dimension_numbers<[1], [0], [0], [1], [0, 0, 1, 1], [], []>} : vector<64x128xf32>, vector<128x128xf32>, vector<64x128xf32> -> vector<64x128xf32>
    %311 = vector.broadcast %238 : vector<1x128xf32> to vector<64x128xf32>
    %312 = arith.addf %310, %311 : vector<64x128xf32>
    %313 = arith.negf %312 : vector<64x128xf32>
    %314 = math.exp %313 : vector<64x128xf32>
    %cst_122 = arith.constant 1.000000e+00 : f32
    %315 = vector.broadcast %cst_122 : f32 to vector<64x128xf32>
    %316 = arith.addf %315, %314 : vector<64x128xf32>
    %317 = arith.divf %315, %316 : vector<64x128xf32>
    %318 = arith.mulf %300, %317 : vector<64x128xf32>
    %319 = arith.addf %318, %228 : vector<64x128xf32>
    %cst_123 = arith.constant 0.000000e+00 : f32
    %320 = vector.broadcast %cst_123 : f32 to vector<64x128xf32>
    %321 = arith.maximumf %319, %320 : vector<64x128xf32>
    %c3 = arith.constant 3 : index
    %c0_124 = arith.constant 0 : index
    %c0_125 = arith.constant 0 : index
    %322 = vector.load %arg9[%c3, %c0_124, %c0_125] : memref<5x8x128xf32, #tpu.memory_space<vmem>>, vector<1x8x128xf32>
    %323 = vector.shape_cast %322 : vector<1x8x128xf32> to vector<8x128xf32>
    %324 = vector.extract_strided_slice %323 {offsets = [0, 0], sizes = [1, 128], strides = [1, 1]} : vector<8x128xf32> to vector<1x128xf32>
    %325 = vector.extract_strided_slice %323 {offsets = [1, 0], sizes = [1, 128], strides = [1, 1]} : vector<8x128xf32> to vector<1x128xf32>
    %326 = vector.extract_strided_slice %323 {offsets = [2, 0], sizes = [1, 128], strides = [1, 1]} : vector<8x128xf32> to vector<1x128xf32>
    %327 = vector.extract_strided_slice %323 {offsets = [3, 0], sizes = [1, 128], strides = [1, 1]} : vector<8x128xf32> to vector<1x128xf32>
    %328 = vector.extract_strided_slice %323 {offsets = [4, 0], sizes = [1, 128], strides = [1, 1]} : vector<8x128xf32> to vector<1x128xf32>
    %329 = vector.extract_strided_slice %323 {offsets = [5, 0], sizes = [1, 128], strides = [1, 1]} : vector<8x128xf32> to vector<1x128xf32>
    %330 = vector.extract_strided_slice %323 {offsets = [6, 0], sizes = [1, 128], strides = [1, 1]} : vector<8x128xf32> to vector<1x128xf32>
    %331 = vector.extract_strided_slice %323 {offsets = [7, 0], sizes = [1, 128], strides = [1, 1]} : vector<8x128xf32> to vector<1x128xf32>
    %c3_126 = arith.constant 3 : index
    %c0_127 = arith.constant 0 : index
    %c0_128 = arith.constant 0 : index
    %332 = vector.load %arg4[%c3_126, %c0_127, %c0_128] : memref<5x128x128xf32, #tpu.memory_space<vmem>>, vector<1x128x128xf32>
    %333 = vector.shape_cast %332 : vector<1x128x128xf32> to vector<128x128xf32>
    %cst_129 = arith.constant dense<0.000000e+00> : vector<64x128xf32>
    %334 = tpu.matmul %321, %333, %cst_129 {dimension_numbers = #tpu.dot_dimension_numbers<[1], [0], [0], [1], [0, 0, 1, 1], [], []>} : vector<64x128xf32>, vector<128x128xf32>, vector<64x128xf32> -> vector<64x128xf32>
    %cst_130 = arith.constant dense<0.000000e+00> : vector<64x128xf32>
    %335 = tpu.matmul %0, %334, %cst_130 {dimension_numbers = #tpu.dot_dimension_numbers<[1], [0], [0], [1], [0, 0, 1, 1], [], []>} : vector<64x64xf32>, vector<64x128xf32>, vector<64x128xf32> -> vector<64x128xf32>
    %336 = vector.broadcast %324 : vector<1x128xf32> to vector<64x128xf32>
    %337 = arith.addf %335, %336 : vector<64x128xf32>
    %cst_131 = arith.constant dense<0.000000e+00> : vector<64xf32>
    %338 = vector.multi_reduction <add>, %337, %cst_131 [1] : vector<64x128xf32> to vector<64xf32>
    %339 = vector.shape_cast %338 : vector<64xf32> to vector<64x1xf32>
    %cst_132 = arith.constant 3.125000e-02 : f32
    %340 = vector.broadcast %cst_132 : f32 to vector<64x1xf32>
    %341 = arith.mulf %339, %340 : vector<64x1xf32>
    %342 = vector.broadcast %341 : vector<64x1xf32> to vector<64x128xf32>
    %343 = arith.subf %337, %342 : vector<64x128xf32>
    %344 = arith.mulf %343, %343 : vector<64x128xf32>
    %cst_133 = arith.constant 0.000000e+00 : f32
    %345 = vector.shape_cast %4 : vector<1x128xi1> to vector<1x128xi1>
    %346 = vector.broadcast %345 : vector<1x128xi1> to vector<64x128xi1>
    %347 = vector.broadcast %cst_133 : f32 to vector<64x128xf32>
    %348 = arith.select %346, %344, %347 : vector<64x128xi1>, vector<64x128xf32>
    %cst_134 = arith.constant dense<0.000000e+00> : vector<64xf32>
    %349 = vector.multi_reduction <add>, %348, %cst_134 [1] : vector<64x128xf32> to vector<64xf32>
    %350 = vector.shape_cast %349 : vector<64xf32> to vector<64x1xf32>
    %cst_135 = arith.constant 3.125000e-02 : f32
    %351 = vector.broadcast %cst_135 : f32 to vector<64x1xf32>
    %352 = arith.mulf %350, %351 : vector<64x1xf32>
    %cst_136 = arith.constant 9.99999974E-6 : f32
    %353 = vector.broadcast %cst_136 : f32 to vector<64x1xf32>
    %354 = arith.addf %352, %353 : vector<64x1xf32>
    %355 = math.rsqrt %354 : vector<64x1xf32>
    %356 = vector.broadcast %355 : vector<64x1xf32> to vector<64x128xf32>
    %357 = arith.mulf %343, %356 : vector<64x128xf32>
    %358 = vector.broadcast %325 : vector<1x128xf32> to vector<64x128xf32>
    %359 = arith.mulf %357, %358 : vector<64x128xf32>
    %360 = vector.broadcast %326 : vector<1x128xf32> to vector<64x128xf32>
    %361 = arith.addf %359, %360 : vector<64x128xf32>
    %cst_137 = arith.constant 0.000000e+00 : f32
    %362 = vector.broadcast %cst_137 : f32 to vector<64x128xf32>
    %363 = arith.maximumf %361, %362 : vector<64x128xf32>
    %c3_138 = arith.constant 3 : index
    %c0_139 = arith.constant 0 : index
    %c0_140 = arith.constant 0 : index
    %364 = vector.load %arg5[%c3_138, %c0_139, %c0_140] : memref<5x128x128xf32, #tpu.memory_space<vmem>>, vector<1x128x128xf32>
    %365 = vector.shape_cast %364 : vector<1x128x128xf32> to vector<128x128xf32>
    %cst_141 = arith.constant dense<0.000000e+00> : vector<64x128xf32>
    %366 = tpu.matmul %363, %365, %cst_141 {dimension_numbers = #tpu.dot_dimension_numbers<[1], [0], [0], [1], [0, 0, 1, 1], [], []>} : vector<64x128xf32>, vector<128x128xf32>, vector<64x128xf32> -> vector<64x128xf32>
    %cst_142 = arith.constant dense<0.000000e+00> : vector<64x128xf32>
    %367 = tpu.matmul %0, %366, %cst_142 {dimension_numbers = #tpu.dot_dimension_numbers<[1], [0], [0], [1], [0, 0, 1, 1], [], []>} : vector<64x64xf32>, vector<64x128xf32>, vector<64x128xf32> -> vector<64x128xf32>
    %368 = vector.broadcast %327 : vector<1x128xf32> to vector<64x128xf32>
    %369 = arith.addf %367, %368 : vector<64x128xf32>
    %cst_143 = arith.constant dense<0.000000e+00> : vector<64xf32>
    %370 = vector.multi_reduction <add>, %369, %cst_143 [1] : vector<64x128xf32> to vector<64xf32>
    %371 = vector.shape_cast %370 : vector<64xf32> to vector<64x1xf32>
    %cst_144 = arith.constant 3.125000e-02 : f32
    %372 = vector.broadcast %cst_144 : f32 to vector<64x1xf32>
    %373 = arith.mulf %371, %372 : vector<64x1xf32>
    %374 = vector.broadcast %373 : vector<64x1xf32> to vector<64x128xf32>
    %375 = arith.subf %369, %374 : vector<64x128xf32>
    %376 = arith.mulf %375, %375 : vector<64x128xf32>
    %cst_145 = arith.constant 0.000000e+00 : f32
    %377 = vector.shape_cast %4 : vector<1x128xi1> to vector<1x128xi1>
    %378 = vector.broadcast %377 : vector<1x128xi1> to vector<64x128xi1>
    %379 = vector.broadcast %cst_145 : f32 to vector<64x128xf32>
    %380 = arith.select %378, %376, %379 : vector<64x128xi1>, vector<64x128xf32>
    %cst_146 = arith.constant dense<0.000000e+00> : vector<64xf32>
    %381 = vector.multi_reduction <add>, %380, %cst_146 [1] : vector<64x128xf32> to vector<64xf32>
    %382 = vector.shape_cast %381 : vector<64xf32> to vector<64x1xf32>
    %cst_147 = arith.constant 3.125000e-02 : f32
    %383 = vector.broadcast %cst_147 : f32 to vector<64x1xf32>
    %384 = arith.mulf %382, %383 : vector<64x1xf32>
    %cst_148 = arith.constant 9.99999974E-6 : f32
    %385 = vector.broadcast %cst_148 : f32 to vector<64x1xf32>
    %386 = arith.addf %384, %385 : vector<64x1xf32>
    %387 = math.rsqrt %386 : vector<64x1xf32>
    %388 = vector.broadcast %387 : vector<64x1xf32> to vector<64x128xf32>
    %389 = arith.mulf %375, %388 : vector<64x128xf32>
    %390 = vector.broadcast %328 : vector<1x128xf32> to vector<64x128xf32>
    %391 = arith.mulf %389, %390 : vector<64x128xf32>
    %392 = vector.broadcast %329 : vector<1x128xf32> to vector<64x128xf32>
    %393 = arith.addf %391, %392 : vector<64x128xf32>
    %c3_149 = arith.constant 3 : index
    %c0_150 = arith.constant 0 : index
    %c0_151 = arith.constant 0 : index
    %394 = vector.load %arg6[%c3_149, %c0_150, %c0_151] : memref<5x128x128xf32, #tpu.memory_space<vmem>>, vector<1x128x128xf32>
    %395 = vector.shape_cast %394 : vector<1x128x128xf32> to vector<128x128xf32>
    %cst_152 = arith.constant dense<0.000000e+00> : vector<64x128xf32>
    %396 = tpu.matmul %393, %395, %cst_152 {dimension_numbers = #tpu.dot_dimension_numbers<[1], [0], [0], [1], [0, 0, 1, 1], [], []>} : vector<64x128xf32>, vector<128x128xf32>, vector<64x128xf32> -> vector<64x128xf32>
    %397 = vector.broadcast %330 : vector<1x128xf32> to vector<64x128xf32>
    %398 = arith.addf %396, %397 : vector<64x128xf32>
    %cst_153 = arith.constant 0.000000e+00 : f32
    %399 = vector.broadcast %cst_153 : f32 to vector<64x128xf32>
    %400 = arith.maximumf %398, %399 : vector<64x128xf32>
    %c3_154 = arith.constant 3 : index
    %c0_155 = arith.constant 0 : index
    %c0_156 = arith.constant 0 : index
    %401 = vector.load %arg7[%c3_154, %c0_155, %c0_156] : memref<5x128x128xf32, #tpu.memory_space<vmem>>, vector<1x128x128xf32>
    %402 = vector.shape_cast %401 : vector<1x128x128xf32> to vector<128x128xf32>
    %cst_157 = arith.constant dense<0.000000e+00> : vector<64x128xf32>
    %403 = tpu.matmul %400, %402, %cst_157 {dimension_numbers = #tpu.dot_dimension_numbers<[1], [0], [0], [1], [0, 0, 1, 1], [], []>} : vector<64x128xf32>, vector<128x128xf32>, vector<64x128xf32> -> vector<64x128xf32>
    %404 = vector.broadcast %331 : vector<1x128xf32> to vector<64x128xf32>
    %405 = arith.addf %403, %404 : vector<64x128xf32>
    %406 = arith.negf %405 : vector<64x128xf32>
    %407 = math.exp %406 : vector<64x128xf32>
    %cst_158 = arith.constant 1.000000e+00 : f32
    %408 = vector.broadcast %cst_158 : f32 to vector<64x128xf32>
    %409 = arith.addf %408, %407 : vector<64x128xf32>
    %410 = arith.divf %408, %409 : vector<64x128xf32>
    %411 = arith.mulf %393, %410 : vector<64x128xf32>
    %412 = arith.addf %411, %321 : vector<64x128xf32>
    %cst_159 = arith.constant 0.000000e+00 : f32
    %413 = vector.broadcast %cst_159 : f32 to vector<64x128xf32>
    %414 = arith.maximumf %412, %413 : vector<64x128xf32>
    %c4 = arith.constant 4 : index
    %c0_160 = arith.constant 0 : index
    %c0_161 = arith.constant 0 : index
    %415 = vector.load %arg9[%c4, %c0_160, %c0_161] : memref<5x8x128xf32, #tpu.memory_space<vmem>>, vector<1x8x128xf32>
    %416 = vector.shape_cast %415 : vector<1x8x128xf32> to vector<8x128xf32>
    %417 = vector.extract_strided_slice %416 {offsets = [0, 0], sizes = [1, 128], strides = [1, 1]} : vector<8x128xf32> to vector<1x128xf32>
    %418 = vector.extract_strided_slice %416 {offsets = [1, 0], sizes = [1, 128], strides = [1, 1]} : vector<8x128xf32> to vector<1x128xf32>
    %419 = vector.extract_strided_slice %416 {offsets = [2, 0], sizes = [1, 128], strides = [1, 1]} : vector<8x128xf32> to vector<1x128xf32>
    %420 = vector.extract_strided_slice %416 {offsets = [3, 0], sizes = [1, 128], strides = [1, 1]} : vector<8x128xf32> to vector<1x128xf32>
    %421 = vector.extract_strided_slice %416 {offsets = [4, 0], sizes = [1, 128], strides = [1, 1]} : vector<8x128xf32> to vector<1x128xf32>
    %422 = vector.extract_strided_slice %416 {offsets = [5, 0], sizes = [1, 128], strides = [1, 1]} : vector<8x128xf32> to vector<1x128xf32>
    %423 = vector.extract_strided_slice %416 {offsets = [6, 0], sizes = [1, 128], strides = [1, 1]} : vector<8x128xf32> to vector<1x128xf32>
    %424 = vector.extract_strided_slice %416 {offsets = [7, 0], sizes = [1, 128], strides = [1, 1]} : vector<8x128xf32> to vector<1x128xf32>
    %c4_162 = arith.constant 4 : index
    %c0_163 = arith.constant 0 : index
    %c0_164 = arith.constant 0 : index
    %425 = vector.load %arg4[%c4_162, %c0_163, %c0_164] : memref<5x128x128xf32, #tpu.memory_space<vmem>>, vector<1x128x128xf32>
    %426 = vector.shape_cast %425 : vector<1x128x128xf32> to vector<128x128xf32>
    %cst_165 = arith.constant dense<0.000000e+00> : vector<64x128xf32>
    %427 = tpu.matmul %414, %426, %cst_165 {dimension_numbers = #tpu.dot_dimension_numbers<[1], [0], [0], [1], [0, 0, 1, 1], [], []>} : vector<64x128xf32>, vector<128x128xf32>, vector<64x128xf32> -> vector<64x128xf32>
    %cst_166 = arith.constant dense<0.000000e+00> : vector<64x128xf32>
    %428 = tpu.matmul %0, %427, %cst_166 {dimension_numbers = #tpu.dot_dimension_numbers<[1], [0], [0], [1], [0, 0, 1, 1], [], []>} : vector<64x64xf32>, vector<64x128xf32>, vector<64x128xf32> -> vector<64x128xf32>
    %429 = vector.broadcast %417 : vector<1x128xf32> to vector<64x128xf32>
    %430 = arith.addf %428, %429 : vector<64x128xf32>
    %cst_167 = arith.constant dense<0.000000e+00> : vector<64xf32>
    %431 = vector.multi_reduction <add>, %430, %cst_167 [1] : vector<64x128xf32> to vector<64xf32>
    %432 = vector.shape_cast %431 : vector<64xf32> to vector<64x1xf32>
    %cst_168 = arith.constant 3.125000e-02 : f32
    %433 = vector.broadcast %cst_168 : f32 to vector<64x1xf32>
    %434 = arith.mulf %432, %433 : vector<64x1xf32>
    %435 = vector.broadcast %434 : vector<64x1xf32> to vector<64x128xf32>
    %436 = arith.subf %430, %435 : vector<64x128xf32>
    %437 = arith.mulf %436, %436 : vector<64x128xf32>
    %cst_169 = arith.constant 0.000000e+00 : f32
    %438 = vector.shape_cast %4 : vector<1x128xi1> to vector<1x128xi1>
    %439 = vector.broadcast %438 : vector<1x128xi1> to vector<64x128xi1>
    %440 = vector.broadcast %cst_169 : f32 to vector<64x128xf32>
    %441 = arith.select %439, %437, %440 : vector<64x128xi1>, vector<64x128xf32>
    %cst_170 = arith.constant dense<0.000000e+00> : vector<64xf32>
    %442 = vector.multi_reduction <add>, %441, %cst_170 [1] : vector<64x128xf32> to vector<64xf32>
    %443 = vector.shape_cast %442 : vector<64xf32> to vector<64x1xf32>
    %cst_171 = arith.constant 3.125000e-02 : f32
    %444 = vector.broadcast %cst_171 : f32 to vector<64x1xf32>
    %445 = arith.mulf %443, %444 : vector<64x1xf32>
    %cst_172 = arith.constant 9.99999974E-6 : f32
    %446 = vector.broadcast %cst_172 : f32 to vector<64x1xf32>
    %447 = arith.addf %445, %446 : vector<64x1xf32>
    %448 = math.rsqrt %447 : vector<64x1xf32>
    %449 = vector.broadcast %448 : vector<64x1xf32> to vector<64x128xf32>
    %450 = arith.mulf %436, %449 : vector<64x128xf32>
    %451 = vector.broadcast %418 : vector<1x128xf32> to vector<64x128xf32>
    %452 = arith.mulf %450, %451 : vector<64x128xf32>
    %453 = vector.broadcast %419 : vector<1x128xf32> to vector<64x128xf32>
    %454 = arith.addf %452, %453 : vector<64x128xf32>
    %cst_173 = arith.constant 0.000000e+00 : f32
    %455 = vector.broadcast %cst_173 : f32 to vector<64x128xf32>
    %456 = arith.maximumf %454, %455 : vector<64x128xf32>
    %c4_174 = arith.constant 4 : index
    %c0_175 = arith.constant 0 : index
    %c0_176 = arith.constant 0 : index
    %457 = vector.load %arg5[%c4_174, %c0_175, %c0_176] : memref<5x128x128xf32, #tpu.memory_space<vmem>>, vector<1x128x128xf32>
    %458 = vector.shape_cast %457 : vector<1x128x128xf32> to vector<128x128xf32>
    %cst_177 = arith.constant dense<0.000000e+00> : vector<64x128xf32>
    %459 = tpu.matmul %456, %458, %cst_177 {dimension_numbers = #tpu.dot_dimension_numbers<[1], [0], [0], [1], [0, 0, 1, 1], [], []>} : vector<64x128xf32>, vector<128x128xf32>, vector<64x128xf32> -> vector<64x128xf32>
    %cst_178 = arith.constant dense<0.000000e+00> : vector<64x128xf32>
    %460 = tpu.matmul %0, %459, %cst_178 {dimension_numbers = #tpu.dot_dimension_numbers<[1], [0], [0], [1], [0, 0, 1, 1], [], []>} : vector<64x64xf32>, vector<64x128xf32>, vector<64x128xf32> -> vector<64x128xf32>
    %461 = vector.broadcast %420 : vector<1x128xf32> to vector<64x128xf32>
    %462 = arith.addf %460, %461 : vector<64x128xf32>
    %cst_179 = arith.constant dense<0.000000e+00> : vector<64xf32>
    %463 = vector.multi_reduction <add>, %462, %cst_179 [1] : vector<64x128xf32> to vector<64xf32>
    %464 = vector.shape_cast %463 : vector<64xf32> to vector<64x1xf32>
    %cst_180 = arith.constant 3.125000e-02 : f32
    %465 = vector.broadcast %cst_180 : f32 to vector<64x1xf32>
    %466 = arith.mulf %464, %465 : vector<64x1xf32>
    %467 = vector.broadcast %466 : vector<64x1xf32> to vector<64x128xf32>
    %468 = arith.subf %462, %467 : vector<64x128xf32>
    %469 = arith.mulf %468, %468 : vector<64x128xf32>
    %cst_181 = arith.constant 0.000000e+00 : f32
    %470 = vector.shape_cast %4 : vector<1x128xi1> to vector<1x128xi1>
    %471 = vector.broadcast %470 : vector<1x128xi1> to vector<64x128xi1>
    %472 = vector.broadcast %cst_181 : f32 to vector<64x128xf32>
    %473 = arith.select %471, %469, %472 : vector<64x128xi1>, vector<64x128xf32>
    %cst_182 = arith.constant dense<0.000000e+00> : vector<64xf32>
    %474 = vector.multi_reduction <add>, %473, %cst_182 [1] : vector<64x128xf32> to vector<64xf32>
    %475 = vector.shape_cast %474 : vector<64xf32> to vector<64x1xf32>
    %cst_183 = arith.constant 3.125000e-02 : f32
    %476 = vector.broadcast %cst_183 : f32 to vector<64x1xf32>
    %477 = arith.mulf %475, %476 : vector<64x1xf32>
    %cst_184 = arith.constant 9.99999974E-6 : f32
    %478 = vector.broadcast %cst_184 : f32 to vector<64x1xf32>
    %479 = arith.addf %477, %478 : vector<64x1xf32>
    %480 = math.rsqrt %479 : vector<64x1xf32>
    %481 = vector.broadcast %480 : vector<64x1xf32> to vector<64x128xf32>
    %482 = arith.mulf %468, %481 : vector<64x128xf32>
    %483 = vector.broadcast %421 : vector<1x128xf32> to vector<64x128xf32>
    %484 = arith.mulf %482, %483 : vector<64x128xf32>
    %485 = vector.broadcast %422 : vector<1x128xf32> to vector<64x128xf32>
    %486 = arith.addf %484, %485 : vector<64x128xf32>
    %c4_185 = arith.constant 4 : index
    %c0_186 = arith.constant 0 : index
    %c0_187 = arith.constant 0 : index
    %487 = vector.load %arg6[%c4_185, %c0_186, %c0_187] : memref<5x128x128xf32, #tpu.memory_space<vmem>>, vector<1x128x128xf32>
    %488 = vector.shape_cast %487 : vector<1x128x128xf32> to vector<128x128xf32>
    %cst_188 = arith.constant dense<0.000000e+00> : vector<64x128xf32>
    %489 = tpu.matmul %486, %488, %cst_188 {dimension_numbers = #tpu.dot_dimension_numbers<[1], [0], [0], [1], [0, 0, 1, 1], [], []>} : vector<64x128xf32>, vector<128x128xf32>, vector<64x128xf32> -> vector<64x128xf32>
    %490 = vector.broadcast %423 : vector<1x128xf32> to vector<64x128xf32>
    %491 = arith.addf %489, %490 : vector<64x128xf32>
    %cst_189 = arith.constant 0.000000e+00 : f32
    %492 = vector.broadcast %cst_189 : f32 to vector<64x128xf32>
    %493 = arith.maximumf %491, %492 : vector<64x128xf32>
    %c4_190 = arith.constant 4 : index
    %c0_191 = arith.constant 0 : index
    %c0_192 = arith.constant 0 : index
    %494 = vector.load %arg7[%c4_190, %c0_191, %c0_192] : memref<5x128x128xf32, #tpu.memory_space<vmem>>, vector<1x128x128xf32>
    %495 = vector.shape_cast %494 : vector<1x128x128xf32> to vector<128x128xf32>
    %cst_193 = arith.constant dense<0.000000e+00> : vector<64x128xf32>
    %496 = tpu.matmul %493, %495, %cst_193 {dimension_numbers = #tpu.dot_dimension_numbers<[1], [0], [0], [1], [0, 0, 1, 1], [], []>} : vector<64x128xf32>, vector<128x128xf32>, vector<64x128xf32> -> vector<64x128xf32>
    %497 = vector.broadcast %424 : vector<1x128xf32> to vector<64x128xf32>
    %498 = arith.addf %496, %497 : vector<64x128xf32>
    %499 = arith.negf %498 : vector<64x128xf32>
    %500 = math.exp %499 : vector<64x128xf32>
    %cst_194 = arith.constant 1.000000e+00 : f32
    %501 = vector.broadcast %cst_194 : f32 to vector<64x128xf32>
    %502 = arith.addf %501, %500 : vector<64x128xf32>
    %503 = arith.divf %501, %502 : vector<64x128xf32>
    %504 = arith.mulf %486, %503 : vector<64x128xf32>
    %505 = arith.addf %504, %414 : vector<64x128xf32>
    %cst_195 = arith.constant 0.000000e+00 : f32
    %506 = vector.broadcast %cst_195 : f32 to vector<64x128xf32>
    %507 = arith.maximumf %505, %506 : vector<64x128xf32>
    %c0_196 = arith.constant 0 : index
    %c0_197 = arith.constant 0 : index
    %508 = vector.load %arg3[%c0_196, %c0_197] : memref<128x128xf32, #tpu.memory_space<vmem>>, vector<128x128xf32>
    %cst_198 = arith.constant dense<0.000000e+00> : vector<64x128xf32>
    %509 = tpu.matmul %507, %508, %cst_198 {dimension_numbers = #tpu.dot_dimension_numbers<[1], [0], [0], [1], [0, 0, 1, 1], [], []>} : vector<64x128xf32>, vector<128x128xf32>, vector<64x128xf32> -> vector<64x128xf32>
    %cst_199 = arith.constant dense<0.000000e+00> : vector<64x128xf32>
    %510 = tpu.matmul %0, %509, %cst_199 {dimension_numbers = #tpu.dot_dimension_numbers<[1], [0], [0], [1], [0, 0, 1, 1], [], []>} : vector<64x64xf32>, vector<64x128xf32>, vector<64x128xf32> -> vector<64x128xf32>
    %511 = vector.broadcast %11 : vector<1x128xf32> to vector<64x128xf32>
    %512 = arith.addf %510, %511 : vector<64x128xf32>
    %cst_200 = arith.constant -1.000000e+30 : f32
    %513 = vector.shape_cast %6 : vector<1x128xi1> to vector<1x128xi1>
    %514 = vector.broadcast %513 : vector<1x128xi1> to vector<64x128xi1>
    %515 = vector.broadcast %cst_200 : f32 to vector<64x128xf32>
    %516 = arith.select %514, %512, %515 : vector<64x128xi1>, vector<64x128xf32>
    %cst_201 = arith.constant dense<0xFF800000> : vector<64xf32>
    %517 = vector.multi_reduction <maximumf>, %516, %cst_201 [1] : vector<64x128xf32> to vector<64xf32>
    %518 = vector.shape_cast %517 : vector<64xf32> to vector<64x1xf32>
    %519 = vector.broadcast %518 : vector<64x1xf32> to vector<64x128xf32>
    %520 = arith.subf %516, %519 : vector<64x128xf32>
    %521 = math.exp %520 : vector<64x128xf32>
    %cst_202 = arith.constant dense<0.000000e+00> : vector<64xf32>
    %522 = vector.multi_reduction <add>, %521, %cst_202 [1] : vector<64x128xf32> to vector<64xf32>
    %523 = vector.shape_cast %522 : vector<64xf32> to vector<64x1xf32>
    %524 = math.log %523 : vector<64x1xf32>
    %525 = arith.addf %518, %524 : vector<64x1xf32>
    %526 = vector.broadcast %525 : vector<64x1xf32> to vector<64x128xf32>
    %527 = arith.subf %516, %526 : vector<64x128xf32>
    %c0_203 = arith.constant 0 : index
    %c0_204 = arith.constant 0 : index
    %528 = vector.load %arg10[%c0_203, %c0_204] : memref<64x128xf32, #tpu.memory_space<vmem>>, vector<64x128xf32>
    tpu.vector_store %arg10[%c0_203, %c0_204], %527 {strides = array<i32>} : memref<64x128xf32, #tpu.memory_space<vmem>>, vector<64x128xf32>,
    return
  }
}

</mosaic_0001>

<llo_original>
// kernel: tpu_custom_call.1
$region0: #{tpu_custom_call.1}
  #allocation0 [shape = 'u32[]', space=smem, size = 0x4, offset = 0x4, fixed_abs, tag = 'smem constant byte address 0x4 - core index']
  #allocation1 [shape = 'u32[144,128]{1,0:T(1,128)}', space=vmem, size = 0x12000, scoped, tag = 'internal scratch']
  %s0 = inlined_call_operand.hbm [shape: f32[64,64], index: 0, kind: input, shape index: {}]
  %s1 = inlined_call_operand.hbm [shape: f32[64,128], index: 1, kind: input, shape index: {}]
  %s2 = inlined_call_operand.hbm [shape: f32[128,128], index: 2, kind: input, shape index: {}]
  %s3 = inlined_call_operand.hbm [shape: f32[128,128], index: 3, kind: input, shape index: {}]
  %s4 = inlined_call_operand.hbm [shape: f32[5,128,128], index: 4, kind: input, shape index: {}]
  %s5 = inlined_call_operand.hbm [shape: f32[5,128,128], index: 5, kind: input, shape index: {}]
  %s6 = inlined_call_operand.hbm [shape: f32[5,128,128], index: 6, kind: input, shape index: {}]
  %s7 = inlined_call_operand.hbm [shape: f32[5,128,128], index: 7, kind: input, shape index: {}]
  %s8 = inlined_call_operand.vmem [shape: f32[8,128], index: 8, kind: input, shape index: {}]
  %s9 = inlined_call_operand.hbm [shape: f32[5,8,128], index: 9, kind: input, shape index: {}]
  %s10 = inlined_call_operand.hbm [shape: f32[64,128], index: 10, kind: output, shape index: {}]
  %s11 = sld [smem:[#allocation0]]
  $region86: #{tpu_custom_call.1} parent=0
    _
  %s13 = ssub.s32 1, %s11
  %s14 = scalar_select 0, %s13, %s11
  $region1: #{tpu_custom_call.1} parent=0
    #allocation2 [shape = 'u8[32768]{0}', space=vmem, size = 0x8000, scoped, tag = 'input window, operand 0, single buffered']
    #allocation3 [shape = 's32[1]{0}', space=sflag, size = 0x4, scoped, tag = 'scoped memory for tpu_custom_call.1']
    #allocation4 [shape = 's32[1]{0}', space=sflag, size = 0x4, scoped, tag = 'scoped memory for tpu_custom_call.1']
    #allocation5 [shape = 'u8[32768]{0}', space=vmem, size = 0x8000, scoped, tag = 'input window, operand 1, single buffered']
    #allocation6 [shape = 's32[1]{0}', space=sflag, size = 0x4, scoped, tag = 'scoped memory for tpu_custom_call.1']
    #allocation7 [shape = 'u8[65536]{0}', space=vmem, size = 0x10000, scoped, tag = 'input window, operand 2, single buffered']
    #allocation8 [shape = 'u8[65536]{0}', space=vmem, size = 0x10000, scoped, tag = 'input window, operand 3, single buffered']
    #allocation9 [shape = 's32[1]{0}', space=sflag, size = 0x4, scoped, tag = 'scoped memory for tpu_custom_call.1']
    #allocation10 [shape = 'u8[327680]{0}', space=vmem, size = 0x50000, scoped, tag = 'input window, operand 4, single buffered']
    #allocation11 [shape = 'u8[327680]{0}', space=vmem, size = 0x50000, scoped, tag = 'input window, operand 5, single buffered']
    #allocation12 [shape = 's32[1]{0}', space=sflag, size = 0x4, scoped, tag = 'scoped memory for tpu_custom_call.1']
    #allocation13 [shape = 'u8[327680]{0}', space=vmem, size = 0x50000, scoped, tag = 'input window, operand 6, single buffered']
    #allocation14 [shape = 'u8[327680]{0}', space=vmem, size = 0x50000, scoped, tag = 'input window, operand 7, single buffered']
    #allocation15 [shape = 's32[1]{0}', space=sflag, size = 0x4, scoped, tag = 'scoped memory for tpu_custom_call.1']
    #allocation16 [shape = 'u8[20480]{0}', space=vmem, size = 0x5000, scoped, tag = 'input window, operand 9, single buffered']
    #allocation17 [shape = 'u8[32768]{0}', space=vmem, size = 0x8000, scoped, tag = 'output window, operand 0, single buffered']
    %15 = vsyncpa [#allocation3], 0
    %16 = vsyncpa [#allocation6], 0
    %17 = vsyncpa [#allocation9], 0
    %18 = vsyncpa [#allocation12], 0
    %19 = vsyncpa [#allocation15], 0
    %20 = vsyncpa [#allocation4], 0
    // Predicated region
    $region2: #{tpu_custom_call.1} parent=1 // pred_check
      _
    $region3: #{tpu_custom_call.1} parent=1 // pred_check_branch
      %22 = sbr.rel (0) target = $region5
    $region4: #{tpu_custom_call.1} parent=1 // pred_region
      %s24 = ssub.s32 1024, 1024
      %25 = vsyncadd [#allocation3], %s24
      %s26 = sshll.u32 [#allocation2], 4
      %s27 = int_to_ptr.vmem [resolvable:$true] %s26
      %32 = dma.hbm_to_vmem [thread:$0]  %s0, 1024, %s27, [#allocation3], 128, 128, 8
    $region5: #{tpu_custom_call.1} parent=1 // pred_fallthru
      _
    // Predicated region
    $region6: #{tpu_custom_call.1} parent=1 // pred_check
      _
    $region7: #{tpu_custom_call.1} parent=1 // pred_check_branch
      %34 = sbr.rel (0) target = $region9
    $region8: #{tpu_custom_call.1} parent=1 // pred_region
      %s36 = ssub.s32 1024, 1024
      %37 = vsyncadd [#allocation6], %s36
      %s38 = sshll.u32 [#allocation5], 4
      %s39 = int_to_ptr.vmem [resolvable:$true] %s38
      %44 = dma.hbm_to_vmem [thread:$0]  %s1, 1024, %s39, [#allocation6], 128, 128, 8
    $region9: #{tpu_custom_call.1} parent=1 // pred_fallthru
      _
    // Predicated region
    $region10: #{tpu_custom_call.1} parent=1 // pred_check
      _
    $region11: #{tpu_custom_call.1} parent=1 // pred_check_branch
      %46 = sbr.rel (0) target = $region13
    $region12: #{tpu_custom_call.1} parent=1 // pred_region
      %s48 = ssub.s32 2048, 2048
      %49 = vsyncadd [#allocation6], %s48
      %s50 = sshll.u32 [#allocation7], 4
      %s51 = int_to_ptr.vmem [resolvable:$true] %s50
      %56 = dma.hbm_to_vmem [thread:$0]  %s2, 2048, %s51, [#allocation6], 128, 128, 8
    $region13: #{tpu_custom_call.1} parent=1 // pred_fallthru
      _
    // Predicated region
    $region14: #{tpu_custom_call.1} parent=1 // pred_check
      _
    $region15: #{tpu_custom_call.1} parent=1 // pred_check_branch
      %58 = sbr.rel (0) target = $region17
    $region16: #{tpu_custom_call.1} parent=1 // pred_region
      %s60 = ssub.s32 2048, 2048
      %61 = vsyncadd [#allocation9], %s60
      %s62 = sshll.u32 [#allocation8], 4
      %s63 = int_to_ptr.vmem [resolvable:$true] %s62
      %68 = dma.hbm_to_vmem [thread:$0]  %s3, 2048, %s63, [#allocation9], 128, 128, 8
    $region17: #{tpu_custom_call.1} parent=1 // pred_fallthru
      _
    // Predicated region
    $region18: #{tpu_custom_call.1} parent=1 // pred_check
      _
    $region19: #{tpu_custom_call.1} parent=1 // pred_check_branch
      %70 = sbr.rel (0) target = $region21
    $region20: #{tpu_custom_call.1} parent=1 // pred_region
      %s72 = ssub.s32 10240, 10240
      %73 = vsyncadd [#allocation9], %s72
      %s74 = sshll.u32 [#allocation10], 4
      %s75 = int_to_ptr.vmem [resolvable:$true] %s74
      %80 = dma.hbm_to_vmem [thread:$0]  %s4, 10240, %s75, [#allocation9], 128, 128, 8
    $region21: #{tpu_custom_call.1} parent=1 // pred_fallthru
      _
    // Predicated region
    $region22: #{tpu_custom_call.1} parent=1 // pred_check
      _
    $region23: #{tpu_custom_call.1} parent=1 // pred_check_branch
      %82 = sbr.rel (0) target = $region25
    $region24: #{tpu_custom_call.1} parent=1 // pred_region
      %s84 = ssub.s32 10240, 10240
      %85 = vsyncadd [#allocation12], %s84
      %s86 = sshll.u32 [#allocation11], 4
      %s87 = int_to_ptr.vmem [resolvable:$true] %s86
      %92 = dma.hbm_to_vmem [thread:$0]  %s5, 10240, %s87, [#allocation12], 128, 128, 8
    $region25: #{tpu_custom_call.1} parent=1 // pred_fallthru
      _
    // Predicated region
    $region26: #{tpu_custom_call.1} parent=1 // pred_check
      _
    $region27: #{tpu_custom_call.1} parent=1 // pred_check_branch
      %94 = sbr.rel (0) target = $region29
    $region28: #{tpu_custom_call.1} parent=1 // pred_region
      %s96 = ssub.s32 10240, 10240
      %97 = vsyncadd [#allocation12], %s96
      %s98 = sshll.u32 [#allocation13], 4
      %s99 = int_to_ptr.vmem [resolvable:$true] %s98
      %104 = dma.hbm_to_vmem [thread:$0]  %s6, 10240, %s99, [#allocation12], 128, 128, 8
    $region29: #{tpu_custom_call.1} parent=1 // pred_fallthru
      _
    // Predicated region
    $region30: #{tpu_custom_call.1} parent=1 // pred_check
      _
    $region31: #{tpu_custom_call.1} parent=1 // pred_check_branch
      %106 = sbr.rel (0) target = $region33
    $region32: #{tpu_custom_call.1} parent=1 // pred_region
      %s108 = ssub.s32 10240, 10240
      %109 = vsyncadd [#allocation15], %s108
      %s110 = sshll.u32 [#allocation14], 4
      %s111 = int_to_ptr.vmem [resolvable:$true] %s110
      %116 = dma.hbm_to_vmem [thread:$0]  %s7, 10240, %s111, [#allocation15], 128, 128, 8
    $region33: #{tpu_custom_call.1} parent=1 // pred_fallthru
      _
    // Predicated region
    $region34: #{tpu_custom_call.1} parent=1 // pred_check
      _
    $region35: #{tpu_custom_call.1} parent=1 // pred_check_branch
      %118 = sbr.rel (0) target = $region37
    $region36: #{tpu_custom_call.1} parent=1 // pred_region
      _
    $region37: #{tpu_custom_call.1} parent=1 // pred_fallthru
      _
    // Predicated region
    $region38: #{tpu_custom_call.1} parent=1 // pred_check
      _
    $region39: #{tpu_custom_call.1} parent=1 // pred_check_branch
      %120 = sbr.rel (0) target = $region41
    $region40: #{tpu_custom_call.1} parent=1 // pred_region
      %s122 = ssub.s32 640, 640
      %123 = vsyncadd [#allocation15], %s122
      %s124 = sshll.u32 [#allocation16], 4
      %s125 = int_to_ptr.vmem [resolvable:$true] %s124
      %130 = dma.hbm_to_vmem [thread:$0]  %s9, 640, %s125, [#allocation15], 128, 128, 8
    $region41: #{tpu_custom_call.1} parent=1 // pred_fallthru
      _
    // Predicated region
    $region42: #{tpu_custom_call.1} parent=1 // pred_check
      _
    $region43: #{tpu_custom_call.1} parent=1 // pred_check_branch
      %132 = sbr.rel (0) target = $region45
    $region44: #{tpu_custom_call.1} parent=1 // pred_region
      %133 = dma.done [#allocation3], 1024
    $region45: #{tpu_custom_call.1} parent=1 // pred_fallthru
      _
    // Predicated region
    $region46: #{tpu_custom_call.1} parent=1 // pred_check
      _
    $region47: #{tpu_custom_call.1} parent=1 // pred_check_branch
      %135 = sbr.rel (0) target = $region49
    $region48: #{tpu_custom_call.1} parent=1 // pred_region
      %136 = dma.done [#allocation6], 1024
    $region49: #{tpu_custom_call.1} parent=1 // pred_fallthru
      _
    // Predicated region
    $region50: #{tpu_custom_call.1} parent=1 // pred_check
      _
    $region51: #{tpu_custom_call.1} parent=1 // pred_check_branch
      %138 = sbr.rel (0) target = $region53
    $region52: #{tpu_custom_call.1} parent=1 // pred_region
      %139 = dma.done [#allocation6], 2048
    $region53: #{tpu_custom_call.1} parent=1 // pred_fallthru
      _
    // Predicated region
    $region54: #{tpu_custom_call.1} parent=1 // pred_check
      _
    $region55: #{tpu_custom_call.1} parent=1 // pred_check_branch
      %141 = sbr.rel (0) target = $region57
    $region56: #{tpu_custom_call.1} parent=1 // pred_region
      %142 = dma.done [#allocation9], 2048
    $region57: #{tpu_custom_call.1} parent=1 // pred_fallthru
      _
    // Predicated region
    $region58: #{tpu_custom_call.1} parent=1 // pred_check
      _
    $region59: #{tpu_custom_call.1} parent=1 // pred_check_branch
      %144 = sbr.rel (0) target = $region61
    $region60: #{tpu_custom_call.1} parent=1 // pred_region
      %145 = dma.done [#allocation9], 10240
    $region61: #{tpu_custom_call.1} parent=1 // pred_fallthru
      _
    // Predicated region
    $region62: #{tpu_custom_call.1} parent=1 // pred_check
      _
    $region63: #{tpu_custom_call.1} parent=1 // pred_check_branch
      %147 = sbr.rel (0) target = $region65
    $region64: #{tpu_custom_call.1} parent=1 // pred_region
      %148 = dma.done [#allocation12], 10240
    $region65: #{tpu_custom_call.1} parent=1 // pred_fallthru
      _
    // Predicated region
    $region66: #{tpu_custom_call.1} parent=1 // pred_check
      _
    $region67: #{tpu_custom_call.1} parent=1 // pred_check_branch
      %150 = sbr.rel (0) target = $region69
    $region68: #{tpu_custom_call.1} parent=1 // pred_region
      %151 = dma.done [#allocation12], 10240
    $region69: #{tpu_custom_call.1} parent=1 // pred_fallthru
      _
    // Predicated region
    $region70: #{tpu_custom_call.1} parent=1 // pred_check
      _
    $region71: #{tpu_custom_call.1} parent=1 // pred_check_branch
      %153 = sbr.rel (0) target = $region73
    $region72: #{tpu_custom_call.1} parent=1 // pred_region
      %154 = dma.done [#allocation15], 10240
    $region73: #{tpu_custom_call.1} parent=1 // pred_fallthru
      _
    // Predicated region
    $region74: #{tpu_custom_call.1} parent=1 // pred_check
      _
    $region75: #{tpu_custom_call.1} parent=1 // pred_check_branch
      %156 = sbr.rel (0) target = $region77
    $region76: #{tpu_custom_call.1} parent=1 // pred_region
      %157 = dma.done [#allocation15], 640
    $region77: #{tpu_custom_call.1} parent=1 // pred_fallthru
      _
    %v158 = vld [vmem:[#allocation2] sm:$0xff]
    %v159 = vld [vmem:[#allocation2 + $0x8] sm:$0xff]
    %v160 = vld [vmem:[#allocation2 + $0x10] sm:$0xff]
    %v161 = vld [vmem:[#allocation2 + $0x18] sm:$0xff]
    %v162 = vld [vmem:[#allocation2 + $0x20] sm:$0xff]
    %v163 = vld [vmem:[#allocation2 + $0x28] sm:$0xff]
    %v164 = vld [vmem:[#allocation2 + $0x30] sm:$0xff]
    %v165 = vld [vmem:[#allocation2 + $0x38] sm:$0xff]
    %v166 = vld [vmem:[#allocation5] sm:$0xff]
    %v167 = vld [vmem:[#allocation5 + $0x8] sm:$0xff]
    %v168 = vld [vmem:[#allocation5 + $0x10] sm:$0xff]
    %v169 = vld [vmem:[#allocation5 + $0x18] sm:$0xff]
    %v170 = vld [vmem:[#allocation5 + $0x20] sm:$0xff]
    %v171 = vld [vmem:[#allocation5 + $0x28] sm:$0xff]
    %v172 = vld [vmem:[#allocation5 + $0x30] sm:$0xff]
    %v173 = vld [vmem:[#allocation5 + $0x38] sm:$0xff]
    %v174 = vlaneseq
    %v175 = vand.u32 %v174, 127
    %vm176 = vcmp.lt.s32.totalorder %v175, 32
    %vm177 = vcmp.lt.s32.totalorder %v175, 8
    %v178 = vld [vmem:[%s8] sm:$0xff]
    %v179 = vld [vmem:[#allocation7] sm:$0xff]
    %v180 = vld [vmem:[#allocation7 + $0x8] sm:$0xff]
    %v181 = vld [vmem:[#allocation7 + $0x10] sm:$0xff]
    %v182 = vld [vmem:[#allocation7 + $0x18] sm:$0xff]
    %v183 = vld [vmem:[#allocation7 + $0x20] sm:$0xff]
    %v184 = vld [vmem:[#allocation7 + $0x28] sm:$0xff]
    %v185 = vld [vmem:[#allocation7 + $0x30] sm:$0xff]
    %v186 = vld [vmem:[#allocation7 + $0x38] sm:$0xff]
    %v187 = vld [vmem:[#allocation7 + $0x40] sm:$0xff]
    %v188 = vld [vmem:[#allocation7 + $0x48] sm:$0xff]
    %v189 = vld [vmem:[#allocation7 + $0x50] sm:$0xff]
    %v190 = vld [vmem:[#allocation7 + $0x58] sm:$0xff]
    %v191 = vld [vmem:[#allocation7 + $0x60] sm:$0xff]
    %v192 = vld [vmem:[#allocation7 + $0x68] sm:$0xff]
    %v193 = vld [vmem:[#allocation7 + $0x70] sm:$0xff]
    %v194 = vld [vmem:[#allocation7 + $0x78] sm:$0xff]
    %195 = vmatprep.subr.mxu0 0.0
    %196 = vmatpush1.msra.mxu0 %v179
    %197 = vmatprep.subr.mxu0 0.0
    %198 = vmatpush1.msra.mxu0 %v180
    %199 = vmatprep.subr.mxu0 0.0
    %200 = vmatpush1.msra.mxu0 %v181
    %201 = vmatprep.subr.mxu0 0.0
    %202 = vmatpush1.msra.mxu0 %v182
    %203 = vmatprep.subr.mxu0 0.0
    %204 = vmatpush1.msra.mxu0 %v183
    %205 = vmatprep.subr.mxu0 0.0
    %206 = vmatpush1.msra.mxu0 %v184
    %207 = vmatprep.subr.mxu0 0.0
    %208 = vmatpush1.msra.mxu0 %v185
    %209 = vmatprep.subr.mxu0 0.0
    %210 = vmatpush1.msra.mxu0 %v186
    %211 = vmatprep.subr.mxu0 0.0
    %212 = vmatpush1.msra.mxu0 %v187
    %213 = vmatprep.subr.mxu0 0.0
    %214 = vmatpush1.msra.mxu0 %v188
    %215 = vmatprep.subr.mxu0 0.0
    %216 = vmatpush1.msra.mxu0 %v189
    %217 = vmatprep.subr.mxu0 0.0
    %218 = vmatpush1.msra.mxu0 %v190
    %219 = vmatprep.subr.mxu0 0.0
    %220 = vmatpush1.msra.mxu0 %v191
    %221 = vmatprep.subr.mxu0 0.0
    %222 = vmatpush1.msra.mxu0 %v192
    %223 = vmatprep.subr.mxu0 0.0
    %224 = vmatpush1.msra.mxu0 %v193
    %225 = vmatprep.subr.mxu0 0.0
    %226 = vmatpush1.msra.mxu0 %v194
    %227 = vmatprep.subr.mxu0 0.0
    %228 = vmatpush1.msra.mxu0 0.0
    %229 = vmatprep.subr.mxu0 0.0
    %230 = vmatpush1.msra.mxu0 0.0
    %231 = vmatprep.subr.mxu0 0.0
    %232 = vmatpush1.msra.mxu0 0.0
    %233 = vmatprep.subr.mxu0 0.0
    %234 = vmatpush1.msra.mxu0 0.0
    %235 = vmatprep.subr.mxu0 0.0
    %236 = vmatpush1.msra.mxu0 0.0
    %237 = vmatprep.subr.mxu0 0.0
    %238 = vmatpush1.msra.mxu0 0.0
    %239 = vmatprep.subr.mxu0 0.0
    %240 = vmatpush1.msra.mxu0 0.0
    %241 = vmatprep.subr.mxu0 0.0
    %242 = vmatpush1.msra.mxu0 0.0
    %243 = vmatprep.subr.mxu0 0.0
    %244 = vmatpush1.msra.mxu0 0.0
    %245 = vmatprep.subr.mxu0 0.0
    %246 = vmatpush1.msra.mxu0 0.0
    %247 = vmatprep.subr.mxu0 0.0
    %248 = vmatpush1.msra.mxu0 0.0
    %249 = vmatprep.subr.mxu0 0.0
    %250 = vmatpush1.msra.mxu0 0.0
    %251 = vmatprep.subr.mxu0 0.0
    %252 = vmatpush1.msra.mxu0 0.0
    %253 = vmatprep.subr.mxu0 0.0
    %254 = vmatpush1.msra.mxu0 0.0
    %255 = vmatprep.subr.mxu0 0.0
    %256 = vmatpush1.msra.mxu0 0.0
    %257 = vmatprep.subr.mxu0 0.0
    %258 = vmatpush1.msra.mxu0 0.0
    %259 = vmatprep.mubr.f32.mxu0 0.0
    %260 = vmatmul.mubr.f32.gmra.mrb[0].mxu0 %v166
    %v261 = vpop.f32.mrb[0].mxu0
    %v262 = vadd.f32 0.0, %v261
    %v263 = vpop.f32.mrb[0].mxu0
    %264 = vmatprep.mubr.f32.mxu0 0.0
    %265 = vmatmul.mubr.f32.gmra.mrb[0].mxu0 %v167
    %v266 = vpop.f32.mrb[0].mxu0
    %v267 = vadd.f32 0.0, %v266
    %v268 = vpop.f32.mrb[0].mxu0
    %269 = vmatprep.mubr.f32.mxu0 0.0
    %270 = vmatmul.mubr.f32.gmra.mrb[0].mxu0 %v168
    %v271 = vpop.f32.mrb[0].mxu0
    %v272 = vadd.f32 0.0, %v271
    %v273 = vpop.f32.mrb[0].mxu0
    %274 = vmatprep.mubr.f32.mxu0 0.0
    %275 = vmatmul.mubr.f32.gmra.mrb[0].mxu0 %v169
    %v276 = vpop.f32.mrb[0].mxu0
    %v277 = vadd.f32 0.0, %v276
    %v278 = vpop.f32.mrb[0].mxu0
    %279 = vmatprep.mubr.f32.mxu0 0.0
    %280 = vmatmul.mubr.f32.gmra.mrb[0].mxu0 %v170
    %v281 = vpop.f32.mrb[0].mxu0
    %v282 = vadd.f32 0.0, %v281
    %v283 = vpop.f32.mrb[0].mxu0
    %284 = vmatprep.mubr.f32.mxu0 0.0
    %285 = vmatmul.mubr.f32.gmra.mrb[0].mxu0 %v171
    %v286 = vpop.f32.mrb[0].mxu0
    %v287 = vadd.f32 0.0, %v286
    %v288 = vpop.f32.mrb[0].mxu0
    %289 = vmatprep.mubr.f32.mxu0 0.0
    %290 = vmatmul.mubr.f32.gmra.mrb[0].mxu0 %v172
    %v291 = vpop.f32.mrb[0].mxu0
    %v292 = vadd.f32 0.0, %v291
    %v293 = vpop.f32.mrb[0].mxu0
    %294 = vmatprep.mubr.f32.mxu0 0.0
    %295 = vmatmul.mubr.f32.gmra.mrb[0].mxu0 %v173
    %v296 = vpop.f32.mrb[0].mxu0
    %v297 = vadd.f32 0.0, %v296
    %v298 = vpop.f32.mrb[0].mxu0
    %299 = vdwg.mxu0
    %v300 = vlaneseq
    %v301 = vshrl.u32 %v300, 7
    %v302 = vsub.s32 0, %v301
    %v303 = vrot.slane %v178, %v302
    %vm304 = vcmask 523264
    %v306 = vsel %vm304, %v158, 0
    %v309 = vsel %vm304, %v159, 0
    %v312 = vsel %vm304, %v160, 0
    %v315 = vsel %vm304, %v161, 0
    %v318 = vsel %vm304, %v162, 0
    %v321 = vsel %vm304, %v163, 0
    %v324 = vsel %vm304, %v164, 0
    %v327 = vsel %vm304, %v165, 0
    %329 = vmatprep.subr.mxu0 0.0
    %330 = vmatpush1.msra.mxu0 %v262
    %331 = vmatprep.subr.mxu0 0.0
    %332 = vmatpush1.msra.mxu0 %v267
    %333 = vmatprep.subr.mxu0 0.0
    %334 = vmatpush1.msra.mxu0 %v272
    %335 = vmatprep.subr.mxu0 0.0
    %336 = vmatpush1.msra.mxu0 %v277
    %337 = vmatprep.subr.mxu0 0.0
    %338 = vmatpush1.msra.mxu0 %v282
    %339 = vmatprep.subr.mxu0 0.0
    %340 = vmatpush1.msra.mxu0 %v287
    %341 = vmatprep.subr.mxu0 0.0
    %342 = vmatpush1.msra.mxu0 %v292
    %343 = vmatprep.subr.mxu0 0.0
    %344 = vmatpush1.msra.mxu0 %v297
    %345 = vmatprep.subr.mxu0 0.0
    %346 = vmatpush1.msra.mxu0 0.0
    %347 = vmatprep.subr.mxu0 0.0
    %348 = vmatpush1.msra.mxu0 0.0
    %349 = vmatprep.subr.mxu0 0.0
    %350 = vmatpush1.msra.mxu0 0.0
    %351 = vmatprep.subr.mxu0 0.0
    %352 = vmatpush1.msra.mxu0 0.0
    %353 = vmatprep.subr.mxu0 0.0
    %354 = vmatpush1.msra.mxu0 0.0
    %355 = vmatprep.subr.mxu0 0.0
    %356 = vmatpush1.msra.mxu0 0.0
    %357 = vmatprep.subr.mxu0 0.0
    %358 = vmatpush1.msra.mxu0 0.0
    %359 = vmatprep.subr.mxu0 0.0
    %360 = vmatpush1.msra.mxu0 0.0
    %361 = vmatprep.subr.mxu0 0.0
    %362 = vmatpush1.msra.mxu0 0.0
    %363 = vmatprep.subr.mxu0 0.0
    %364 = vmatpush1.msra.mxu0 0.0
    %365 = vmatprep.subr.mxu0 0.0
    %366 = vmatpush1.msra.mxu0 0.0
    %367 = vmatprep.subr.mxu0 0.0
    %368 = vmatpush1.msra.mxu0 0.0
    %369 = vmatprep.subr.mxu0 0.0
    %370 = vmatpush1.msra.mxu0 0.0
    %371 = vmatprep.subr.mxu0 0.0
    %372 = vmatpush1.msra.mxu0 0.0
    %373 = vmatprep.subr.mxu0 0.0
    %374 = vmatpush1.msra.mxu0 0.0
    %375 = vmatprep.subr.mxu0 0.0
    %376 = vmatpush1.msra.mxu0 0.0
    %377 = vmatprep.subr.mxu0 0.0
    %378 = vmatpush1.msra.mxu0 0.0
    %379 = vmatprep.subr.mxu0 0.0
    %380 = vmatpush1.msra.mxu0 0.0
    %381 = vmatprep.subr.mxu0 0.0
    %382 = vmatpush1.msra.mxu0 0.0
    %383 = vmatprep.subr.mxu0 0.0
    %384 = vmatpush1.msra.mxu0 0.0
    %385 = vmatprep.subr.mxu0 0.0
    %386 = vmatpush1.msra.mxu0 0.0
    %387 = vmatprep.subr.mxu0 0.0
    %388 = vmatpush1.msra.mxu0 0.0
    %389 = vmatprep.subr.mxu0 0.0
    %390 = vmatpush1.msra.mxu0 0.0
    %391 = vmatprep.subr.mxu0 0.0
    %392 = vmatpush1.msra.mxu0 0.0
    %393 = vmatprep.mubr.f32.mxu0 0.0
    %394 = vmatmul.mubr.f32.gmra.mrb[0].mxu0 %v306
    %v395 = vpop.f32.mrb[0].mxu0
    %v396 = vadd.f32 %v303, %v395
    %v397 = vpop.f32.mrb[0].mxu0
    %398 = vmatprep.mubr.f32.mxu0 0.0
    %399 = vmatmul.mubr.f32.gmra.mrb[0].mxu0 %v309
    %v400 = vpop.f32.mrb[0].mxu0
    %v401 = vadd.f32 %v303, %v400
    %v402 = vpop.f32.mrb[0].mxu0
    %403 = vmatprep.mubr.f32.mxu0 0.0
    %404 = vmatmul.mubr.f32.gmra.mrb[0].mxu0 %v312
    %v405 = vpop.f32.mrb[0].mxu0
    %v406 = vadd.f32 %v303, %v405
    %v407 = vpop.f32.mrb[0].mxu0
    %408 = vmatprep.mubr.f32.mxu0 0.0
    %409 = vmatmul.mubr.f32.gmra.mrb[0].mxu0 %v315
    %v410 = vpop.f32.mrb[0].mxu0
    %v411 = vadd.f32 %v303, %v410
    %v412 = vpop.f32.mrb[0].mxu0
    %413 = vmatprep.mubr.f32.mxu0 0.0
    %414 = vmatmul.mubr.f32.gmra.mrb[0].mxu0 %v318
    %v415 = vpop.f32.mrb[0].mxu0
    %v416 = vadd.f32 %v303, %v415
    %v417 = vpop.f32.mrb[0].mxu0
    %418 = vmatprep.mubr.f32.mxu0 0.0
    %419 = vmatmul.mubr.f32.gmra.mrb[0].mxu0 %v321
    %v420 = vpop.f32.mrb[0].mxu0
    %v421 = vadd.f32 %v303, %v420
    %v422 = vpop.f32.mrb[0].mxu0
    %423 = vmatprep.mubr.f32.mxu0 0.0
    %424 = vmatmul.mubr.f32.gmra.mrb[0].mxu0 %v324
    %v425 = vpop.f32.mrb[0].mxu0
    %v426 = vadd.f32 %v303, %v425
    %v427 = vpop.f32.mrb[0].mxu0
    %428 = vmatprep.mubr.f32.mxu0 0.0
    %429 = vmatmul.mubr.f32.gmra.mrb[0].mxu0 %v327
    %v430 = vpop.f32.mrb[0].mxu0
    %v431 = vadd.f32 %v303, %v430
    %v432 = vpop.f32.mrb[0].mxu0
    %433 = vdwg.mxu0
    %434 = vadd.xlane.f32.xlu0 %v396
    %v435 = vpop.xlane.xlu0 %434
    %436 = vadd.xlane.f32.xlu0 %v401
    %v437 = vpop.xlane.xlu0 %436
    %438 = vadd.xlane.f32.xlu0 %v406
    %v439 = vpop.xlane.xlu0 %438
    %440 = vadd.xlane.f32.xlu0 %v411
    %v441 = vpop.xlane.xlu0 %440
    %442 = vadd.xlane.f32.xlu0 %v416
    %v443 = vpop.xlane.xlu0 %442
    %444 = vadd.xlane.f32.xlu0 %v421
    %v445 = vpop.xlane.xlu0 %444
    %446 = vadd.xlane.f32.xlu0 %v426
    %v447 = vpop.xlane.xlu0 %446
    %448 = vadd.xlane.f32.xlu0 %v431
    %v449 = vpop.xlane.xlu0 %448
    %v450 = vmul.f32 %v435, 0.03125
    %v451 = vmul.f32 %v437, 0.03125
    %v452 = vmul.f32 %v439, 0.03125
    %v453 = vmul.f32 %v441, 0.03125
    %v454 = vmul.f32 %v443, 0.03125
    %v455 = vmul.f32 %v445, 0.03125
    %v456 = vmul.f32 %v447, 0.03125
    %v457 = vmul.f32 %v449, 0.03125
    %v458 = vsub.f32 %v396, %v450
    %v459 = vsub.f32 %v401, %v451
    %v460 = vsub.f32 %v406, %v452
    %v461 = vsub.f32 %v411, %v453
    %v462 = vsub.f32 %v416, %v454
    %v463 = vsub.f32 %v421, %v455
    %v464 = vsub.f32 %v426, %v456
    %v465 = vsub.f32 %v431, %v457
    %v466 = vmul.f32 %v458, %v458
    %v467 = vmul.f32 %v459, %v459
    %v468 = vmul.f32 %v460, %v460
    %v469 = vmul.f32 %v461, %v461
    %v470 = vmul.f32 %v462, %v462
    %v471 = vmul.f32 %v463, %v463
    %v472 = vmul.f32 %v464, %v464
    %v473 = vmul.f32 %v465, %v465
    %v474 = vsel %vm176, 1, 0
    %vm475 = vcmp.eq.s32.totalorder %v474, 1
    %v476 = vsel %vm475, %v466, 0.0
    %v477 = vsel %vm475, %v467, 0.0
    %v478 = vsel %vm475, %v468, 0.0
    %v479 = vsel %vm475, %v469, 0.0
    %v480 = vsel %vm475, %v470, 0.0
    %v481 = vsel %vm475, %v471, 0.0
    %v482 = vsel %vm475, %v472, 0.0
    %v483 = vsel %vm475, %v473, 0.0
    %484 = vadd.xlane.f32.xlu0 %v476
    %v485 = vpop.xlane.xlu0 %484
    %486 = vadd.xlane.f32.xlu0 %v477
    %v487 = vpop.xlane.xlu0 %486
    %488 = vadd.xlane.f32.xlu0 %v478
    %v489 = vpop.xlane.xlu0 %488
    %490 = vadd.xlane.f32.xlu0 %v479
    %v491 = vpop.xlane.xlu0 %490
    %492 = vadd.xlane.f32.xlu0 %v480
    %v493 = vpop.xlane.xlu0 %492
    %494 = vadd.xlane.f32.xlu0 %v481
    %v495 = vpop.xlane.xlu0 %494
    %496 = vadd.xlane.f32.xlu0 %v482
    %v497 = vpop.xlane.xlu0 %496
    %498 = vadd.xlane.f32.xlu0 %v483
    %v499 = vpop.xlane.xlu0 %498
    %v500 = vmul.f32 %v485, 0.03125
    %v501 = vmul.f32 %v487, 0.03125
    %v502 = vmul.f32 %v489, 0.03125
    %v503 = vmul.f32 %v491, 0.03125
    %v504 = vmul.f32 %v493, 0.03125
    %v505 = vmul.f32 %v495, 0.03125
    %v506 = vmul.f32 %v497, 0.03125
    %v507 = vmul.f32 %v499, 0.03125
    %v508 = vadd.f32 %v500, 1e-05
    %v509 = vadd.f32 %v501, 1e-05
    %v510 = vadd.f32 %v502, 1e-05
    %v511 = vadd.f32 %v503, 1e-05
    %v512 = vadd.f32 %v504, 1e-05
    %v513 = vadd.f32 %v505, 1e-05
    %v514 = vadd.f32 %v506, 1e-05
    %v515 = vadd.f32 %v507, 1e-05
    %v516 = vrsqrt.pop %v508
    %v517 = vrsqrt.pop %v509
    %v518 = vrsqrt.pop %v510
    %v519 = vrsqrt.pop %v511
    %v520 = vrsqrt.pop %v512
    %v521 = vrsqrt.pop %v513
    %v522 = vrsqrt.pop %v514
    %v523 = vrsqrt.pop %v515
    %v524 = vmul.f32 %v458, %v516
    %v525 = vmul.f32 %v459, %v517
    %v526 = vmul.f32 %v460, %v518
    %v527 = vmul.f32 %v461, %v519
    %v528 = vmul.f32 %v462, %v520
    %v529 = vmul.f32 %v463, %v521
    %v530 = vmul.f32 %v464, %v522
    %v531 = vmul.f32 %v465, %v523
    %v532 = vlaneseq
    %v533 = vshrl.u32 %v532, 7
    %v534 = vsub.s32 1, %v533
    %v535 = vrot.slane %v178, %v534
    %v536 = vmul.f32 %v524, %v535
    %v537 = vmul.f32 %v525, %v535
    %v538 = vmul.f32 %v526, %v535
    %v539 = vmul.f32 %v527, %v535
    %v540 = vmul.f32 %v528, %v535
    %v541 = vmul.f32 %v529, %v535
    %v542 = vmul.f32 %v530, %v535
    %v543 = vmul.f32 %v531, %v535
    %v544 = vlaneseq
    %v545 = vshrl.u32 %v544, 7
    %v546 = vsub.s32 2, %v545
    %v547 = vrot.slane %v178, %v546
    %v548 = vadd.f32 %v536, %v547
    %v549 = vadd.f32 %v537, %v547
    %v550 = vadd.f32 %v538, %v547
    %v551 = vadd.f32 %v539, %v547
    %v552 = vadd.f32 %v540, %v547
    %v553 = vadd.f32 %v541, %v547
    %v554 = vadd.f32 %v542, %v547
    %v555 = vadd.f32 %v543, %v547
    %v556 = vmax.f32 %v548, 0.0
    %v557 = vmax.f32 %v549, 0.0
    %v558 = vmax.f32 %v550, 0.0
    %v559 = vmax.f32 %v551, 0.0
    %v560 = vmax.f32 %v552, 0.0
    %v561 = vmax.f32 %v553, 0.0
    %v562 = vmax.f32 %v554, 0.0
    %v563 = vmax.f32 %v555, 0.0
    %v564 = vld [vmem:[#allocation16] sm:$0xff]
    %v565 = vld [vmem:[#allocation10] sm:$0xff]
    %v566 = vld [vmem:[#allocation10 + $0x8] sm:$0xff]
    %v567 = vld [vmem:[#allocation10 + $0x10] sm:$0xff]
    %v568 = vld [vmem:[#allocation10 + $0x18] sm:$0xff]
    %v569 = vld [vmem:[#allocation10 + $0x20] sm:$0xff]
    %v570 = vld [vmem:[#allocation10 + $0x28] sm:$0xff]
    %v571 = vld [vmem:[#allocation10 + $0x30] sm:$0xff]
    %v572 = vld [vmem:[#allocation10 + $0x38] sm:$0xff]
    %v573 = vld [vmem:[#allocation10 + $0x40] sm:$0xff]
    %v574 = vld [vmem:[#allocation10 + $0x48] sm:$0xff]
    %v575 = vld [vmem:[#allocation10 + $0x50] sm:$0xff]
    %v576 = vld [vmem:[#allocation10 + $0x58] sm:$0xff]
    %v577 = vld [vmem:[#allocation10 + $0x60] sm:$0xff]
    %v578 = vld [vmem:[#allocation10 + $0x68] sm:$0xff]
    %v579 = vld [vmem:[#allocation10 + $0x70] sm:$0xff]
    %v580 = vld [vmem:[#allocation10 + $0x78] sm:$0xff]
    %581 = vmatprep.subr.mxu0 0.0
    %582 = vmatpush1.msra.mxu0 %v565
    %583 = vmatprep.subr.mxu0 0.0
    %584 = vmatpush1.msra.mxu0 %v566
    %585 = vmatprep.subr.mxu0 0.0
    %586 = vmatpush1.msra.mxu0 %v567
    %587 = vmatprep.subr.mxu0 0.0
    %588 = vmatpush1.msra.mxu0 %v568
    %589 = vmatprep.subr.mxu0 0.0
    %590 = vmatpush1.msra.mxu0 %v569
    %591 = vmatprep.subr.mxu0 0.0
    %592 = vmatpush1.msra.mxu0 %v570
    %593 = vmatprep.subr.mxu0 0.0
    %594 = vmatpush1.msra.mxu0 %v571
    %595 = vmatprep.subr.mxu0 0.0
    %596 = vmatpush1.msra.mxu0 %v572
    %597 = vmatprep.subr.mxu0 0.0
    %598 = vmatpush1.msra.mxu0 %v573
    %599 = vmatprep.subr.mxu0 0.0
    %600 = vmatpush1.msra.mxu0 %v574
    %601 = vmatprep.subr.mxu0 0.0
    %602 = vmatpush1.msra.mxu0 %v575
    %603 = vmatprep.subr.mxu0 0.0
    %604 = vmatpush1.msra.mxu0 %v576
    %605 = vmatprep.subr.mxu0 0.0
    %606 = vmatpush1.msra.mxu0 %v577
    %607 = vmatprep.subr.mxu0 0.0
    %608 = vmatpush1.msra.mxu0 %v578
    %609 = vmatprep.subr.mxu0 0.0
    %610 = vmatpush1.msra.mxu0 %v579
    %611 = vmatprep.subr.mxu0 0.0
    %612 = vmatpush1.msra.mxu0 %v580
    %613 = vmatprep.subr.mxu0 0.0
    %614 = vmatpush1.msra.mxu0 0.0
    %615 = vmatprep.subr.mxu0 0.0
    %616 = vmatpush1.msra.mxu0 0.0
    %617 = vmatprep.subr.mxu0 0.0
    %618 = vmatpush1.msra.mxu0 0.0
    %619 = vmatprep.subr.mxu0 0.0
    %620 = vmatpush1.msra.mxu0 0.0
    %621 = vmatprep.subr.mxu0 0.0
    %622 = vmatpush1.msra.mxu0 0.0
    %623 = vmatprep.subr.mxu0 0.0
    %624 = vmatpush1.msra.mxu0 0.0
    %625 = vmatprep.subr.mxu0 0.0
    %626 = vmatpush1.msra.mxu0 0.0
    %627 = vmatprep.subr.mxu0 0.0
    %628 = vmatpush1.msra.mxu0 0.0
    %629 = vmatprep.subr.mxu0 0.0
    %630 = vmatpush1.msra.mxu0 0.0
    %631 = vmatprep.subr.mxu0 0.0
    %632 = vmatpush1.msra.mxu0 0.0
    %633 = vmatprep.subr.mxu0 0.0
    %634 = vmatpush1.msra.mxu0 0.0
    %635 = vmatprep.subr.mxu0 0.0
    %636 = vmatpush1.msra.mxu0 0.0
    %637 = vmatprep.subr.mxu0 0.0
    %638 = vmatpush1.msra.mxu0 0.0
    %639 = vmatprep.subr.mxu0 0.0
    %640 = vmatpush1.msra.mxu0 0.0
    %641 = vmatprep.subr.mxu0 0.0
    %642 = vmatpush1.msra.mxu0 0.0
    %643 = vmatprep.subr.mxu0 0.0
    %644 = vmatpush1.msra.mxu0 0.0
    %645 = vmatprep.mubr.f32.mxu0 0.0
    %646 = vmatmul.mubr.f32.gmra.mrb[0].mxu0 %v556
    %v647 = vpop.f32.mrb[0].mxu0
    %v648 = vadd.f32 0.0, %v647
    %v649 = vpop.f32.mrb[0].mxu0
    %650 = vmatprep.mubr.f32.mxu0 0.0
    %651 = vmatmul.mubr.f32.gmra.mrb[0].mxu0 %v557
    %v652 = vpop.f32.mrb[0].mxu0
    %v653 = vadd.f32 0.0, %v652
    %v654 = vpop.f32.mrb[0].mxu0
    %655 = vmatprep.mubr.f32.mxu0 0.0
    %656 = vmatmul.mubr.f32.gmra.mrb[0].mxu0 %v558
    %v657 = vpop.f32.mrb[0].mxu0
    %v658 = vadd.f32 0.0, %v657
    %v659 = vpop.f32.mrb[0].mxu0
    %660 = vmatprep.mubr.f32.mxu0 0.0
    %661 = vmatmul.mubr.f32.gmra.mrb[0].mxu0 %v559
    %v662 = vpop.f32.mrb[0].mxu0
    %v663 = vadd.f32 0.0, %v662
    %v664 = vpop.f32.mrb[0].mxu0
    %665 = vmatprep.mubr.f32.mxu0 0.0
    %666 = vmatmul.mubr.f32.gmra.mrb[0].mxu0 %v560
    %v667 = vpop.f32.mrb[0].mxu0
    %v668 = vadd.f32 0.0, %v667
    %v669 = vpop.f32.mrb[0].mxu0
    %670 = vmatprep.mubr.f32.mxu0 0.0
    %671 = vmatmul.mubr.f32.gmra.mrb[0].mxu0 %v561
    %v672 = vpop.f32.mrb[0].mxu0
    %v673 = vadd.f32 0.0, %v672
    %v674 = vpop.f32.mrb[0].mxu0
    %675 = vmatprep.mubr.f32.mxu0 0.0
    %676 = vmatmul.mubr.f32.gmra.mrb[0].mxu0 %v562
    %v677 = vpop.f32.mrb[0].mxu0
    %v678 = vadd.f32 0.0, %v677
    %v679 = vpop.f32.mrb[0].mxu0
    %680 = vmatprep.mubr.f32.mxu0 0.0
    %681 = vmatmul.mubr.f32.gmra.mrb[0].mxu0 %v563
    %v682 = vpop.f32.mrb[0].mxu0
    %v683 = vadd.f32 0.0, %v682
    %v684 = vpop.f32.mrb[0].mxu0
    %685 = vdwg.mxu0
    %v686 = vlaneseq
    %v687 = vshrl.u32 %v686, 7
    %v688 = vsub.s32 0, %v687
    %v689 = vrot.slane %v564, %v688
    %690 = vmatprep.subr.mxu0 0.0
    %691 = vmatpush1.msra.mxu0 %v648
    %692 = vmatprep.subr.mxu0 0.0
    %693 = vmatpush1.msra.mxu0 %v653
    %694 = vmatprep.subr.mxu0 0.0
    %695 = vmatpush1.msra.mxu0 %v658
    %696 = vmatprep.subr.mxu0 0.0
    %697 = vmatpush1.msra.mxu0 %v663
    %698 = vmatprep.subr.mxu0 0.0
    %699 = vmatpush1.msra.mxu0 %v668
    %700 = vmatprep.subr.mxu0 0.0
    %701 = vmatpush1.msra.mxu0 %v673
    %702 = vmatprep.subr.mxu0 0.0
    %703 = vmatpush1.msra.mxu0 %v678
    %704 = vmatprep.subr.mxu0 0.0
    %705 = vmatpush1.msra.mxu0 %v683
    %706 = vmatprep.subr.mxu0 0.0
    %707 = vmatpush1.msra.mxu0 0.0
    %708 = vmatprep.subr.mxu0 0.0
    %709 = vmatpush1.msra.mxu0 0.0
    %710 = vmatprep.subr.mxu0 0.0
    %711 = vmatpush1.msra.mxu0 0.0
    %712 = vmatprep.subr.mxu0 0.0
    %713 = vmatpush1.msra.mxu0 0.0
    %714 = vmatprep.subr.mxu0 0.0
    %715 = vmatpush1.msra.mxu0 0.0
    %716 = vmatprep.subr.mxu0 0.0
    %717 = vmatpush1.msra.mxu0 0.0
    %718 = vmatprep.subr.mxu0 0.0
    %719 = vmatpush1.msra.mxu0 0.0
    %720 = vmatprep.subr.mxu0 0.0
    %721 = vmatpush1.msra.mxu0 0.0
    %722 = vmatprep.subr.mxu0 0.0
    %723 = vmatpush1.msra.mxu0 0.0
    %724 = vmatprep.subr.mxu0 0.0
    %725 = vmatpush1.msra.mxu0 0.0
    %726 = vmatprep.subr.mxu0 0.0
    %727 = vmatpush1.msra.mxu0 0.0
    %728 = vmatprep.subr.mxu0 0.0
    %729 = vmatpush1.msra.mxu0 0.0
    %730 = vmatprep.subr.mxu0 0.0
    %731 = vmatpush1.msra.mxu0 0.0
    %732 = vmatprep.subr.mxu0 0.0
    %733 = vmatpush1.msra.mxu0 0.0
    %734 = vmatprep.subr.mxu0 0.0
    %735 = vmatpush1.msra.mxu0 0.0
    %736 = vmatprep.subr.mxu0 0.0
    %737 = vmatpush1.msra.mxu0 0.0
    %738 = vmatprep.subr.mxu0 0.0
    %739 = vmatpush1.msra.mxu0 0.0
    %740 = vmatprep.subr.mxu0 0.0
    %741 = vmatpush1.msra.mxu0 0.0
    %742 = vmatprep.subr.mxu0 0.0
    %743 = vmatpush1.msra.mxu0 0.0
    %744 = vmatprep.subr.mxu0 0.0
    %745 = vmatpush1.msra.mxu0 0.0
    %746 = vmatprep.subr.mxu0 0.0
    %747 = vmatpush1.msra.mxu0 0.0
    %748 = vmatprep.subr.mxu0 0.0
    %749 = vmatpush1.msra.mxu0 0.0
    %750 = vmatprep.subr.mxu0 0.0
    %751 = vmatpush1.msra.mxu0 0.0
    %752 = vmatprep.subr.mxu0 0.0
    %753 = vmatpush1.msra.mxu0 0.0
    %754 = vmatprep.mubr.f32.mxu0 0.0
    %755 = vmatmul.mubr.f32.gmra.mrb[0].mxu0 %v306
    %v756 = vpop.f32.mrb[0].mxu0
    %v757 = vadd.f32 %v689, %v756
    %v758 = vpop.f32.mrb[0].mxu0
    %759 = vmatprep.mubr.f32.mxu0 0.0
    %760 = vmatmul.mubr.f32.gmra.mrb[0].mxu0 %v309
    %v761 = vpop.f32.mrb[0].mxu0
    %v762 = vadd.f32 %v689, %v761
    %v763 = vpop.f32.mrb[0].mxu0
    %764 = vmatprep.mubr.f32.mxu0 0.0
    %765 = vmatmul.mubr.f32.gmra.mrb[0].mxu0 %v312
    %v766 = vpop.f32.mrb[0].mxu0
    %v767 = vadd.f32 %v689, %v766
    %v768 = vpop.f32.mrb[0].mxu0
    %769 = vmatprep.mubr.f32.mxu0 0.0
    %770 = vmatmul.mubr.f32.gmra.mrb[0].mxu0 %v315
    %v771 = vpop.f32.mrb[0].mxu0
    %v772 = vadd.f32 %v689, %v771
    %v773 = vpop.f32.mrb[0].mxu0
    %774 = vmatprep.mubr.f32.mxu0 0.0
    %775 = vmatmul.mubr.f32.gmra.mrb[0].mxu0 %v318
    %v776 = vpop.f32.mrb[0].mxu0
    %v777 = vadd.f32 %v689, %v776
    %v778 = vpop.f32.mrb[0].mxu0
    %779 = vmatprep.mubr.f32.mxu0 0.0
    %780 = vmatmul.mubr.f32.gmra.mrb[0].mxu0 %v321
    %v781 = vpop.f32.mrb[0].mxu0
    %v782 = vadd.f32 %v689, %v781
    %v783 = vpop.f32.mrb[0].mxu0
    %784 = vmatprep.mubr.f32.mxu0 0.0
    %785 = vmatmul.mubr.f32.gmra.mrb[0].mxu0 %v324
    %v786 = vpop.f32.mrb[0].mxu0
    %v787 = vadd.f32 %v689, %v786
    %v788 = vpop.f32.mrb[0].mxu0
    %789 = vmatprep.mubr.f32.mxu0 0.0
    %790 = vmatmul.mubr.f32.gmra.mrb[0].mxu0 %v327
    %v791 = vpop.f32.mrb[0].mxu0
    %v792 = vadd.f32 %v689, %v791
    %v793 = vpop.f32.mrb[0].mxu0
    %794 = vdwg.mxu0
    %795 = vadd.xlane.f32.xlu0 %v757
    %v796 = vpop.xlane.xlu0 %795
    %797 = vadd.xlane.f32.xlu0 %v762
    %v798 = vpop.xlane.xlu0 %797
    %799 = vadd.xlane.f32.xlu0 %v767
    %v800 = vpop.xlane.xlu0 %799
    %801 = vadd.xlane.f32.xlu0 %v772
    %v802 = vpop.xlane.xlu0 %801
    %803 = vadd.xlane.f32.xlu0 %v777
    %v804 = vpop.xlane.xlu0 %803
    %805 = vadd.xlane.f32.xlu0 %v782
    %v806 = vpop.xlane.xlu0 %805
    %807 = vadd.xlane.f32.xlu0 %v787
    %v808 = vpop.xlane.xlu0 %807
    %809 = vadd.xlane.f32.xlu0 %v792
    %v810 = vpop.xlane.xlu0 %809
    %v811 = vmul.f32 %v796, 0.03125
    %v812 = vmul.f32 %v798, 0.03125
    %v813 = vmul.f32 %v800, 0.03125
    %v814 = vmul.f32 %v802, 0.03125
    %v815 = vmul.f32 %v804, 0.03125
    %v816 = vmul.f32 %v806, 0.03125
    %v817 = vmul.f32 %v808, 0.03125
    %v818 = vmul.f32 %v810, 0.03125
    %v819 = vsub.f32 %v757, %v811
    %v820 = vsub.f32 %v762, %v812
    %v821 = vsub.f32 %v767, %v813
    %v822 = vsub.f32 %v772, %v814
    %v823 = vsub.f32 %v777, %v815
    %v824 = vsub.f32 %v782, %v816
    %v825 = vsub.f32 %v787, %v817
    %v826 = vsub.f32 %v792, %v818
    %v827 = vmul.f32 %v819, %v819
    %v828 = vmul.f32 %v820, %v820
    %v829 = vmul.f32 %v821, %v821
    %v830 = vmul.f32 %v822, %v822
    %v831 = vmul.f32 %v823, %v823
    %v832 = vmul.f32 %v824, %v824
    %v833 = vmul.f32 %v825, %v825
    %v834 = vmul.f32 %v826, %v826
    %v835 = vsel %vm475, %v827, 0.0
    %v836 = vsel %vm475, %v828, 0.0
    %v837 = vsel %vm475, %v829, 0.0
    %v838 = vsel %vm475, %v830, 0.0
    %v839 = vsel %vm475, %v831, 0.0
    %v840 = vsel %vm475, %v832, 0.0
    %v841 = vsel %vm475, %v833, 0.0
    %v842 = vsel %vm475, %v834, 0.0
    %843 = vadd.xlane.f32.xlu0 %v835
    %v844 = vpop.xlane.xlu0 %843
    %845 = vadd.xlane.f32.xlu0 %v836
    %v846 = vpop.xlane.xlu0 %845
    %847 = vadd.xlane.f32.xlu0 %v837
    %v848 = vpop.xlane.xlu0 %847
    %849 = vadd.xlane.f32.xlu0 %v838
    %v850 = vpop.xlane.xlu0 %849
    %851 = vadd.xlane.f32.xlu0 %v839
    %v852 = vpop.xlane.xlu0 %851
    %853 = vadd.xlane.f32.xlu0 %v840
    %v854 = vpop.xlane.xlu0 %853
    %855 = vadd.xlane.f32.xlu0 %v841
    %v856 = vpop.xlane.xlu0 %855
    %857 = vadd.xlane.f32.xlu0 %v842
    %v858 = vpop.xlane.xlu0 %857
    %v859 = vmul.f32 %v844, 0.03125
    %v860 = vmul.f32 %v846, 0.03125
    %v861 = vmul.f32 %v848, 0.03125
    %v862 = vmul.f32 %v850, 0.03125
    %v863 = vmul.f32 %v852, 0.03125
    %v864 = vmul.f32 %v854, 0.03125
    %v865 = vmul.f32 %v856, 0.03125
    %v866 = vmul.f32 %v858, 0.03125
    %v867 = vadd.f32 %v859, 1e-05
    %v868 = vadd.f32 %v860, 1e-05
    %v869 = vadd.f32 %v861, 1e-05
    %v870 = vadd.f32 %v862, 1e-05
    %v871 = vadd.f32 %v863, 1e-05
    %v872 = vadd.f32 %v864, 1e-05
    %v873 = vadd.f32 %v865, 1e-05
    %v874 = vadd.f32 %v866, 1e-05
    %v875 = vrsqrt.pop %v867
    %v876 = vrsqrt.pop %v868
    %v877 = vrsqrt.pop %v869
    %v878 = vrsqrt.pop %v870
    %v879 = vrsqrt.pop %v871
    %v880 = vrsqrt.pop %v872
    %v881 = vrsqrt.pop %v873
    %v882 = vrsqrt.pop %v874
    %v883 = vmul.f32 %v819, %v875
    %v884 = vmul.f32 %v820, %v876
    %v885 = vmul.f32 %v821, %v877
    %v886 = vmul.f32 %v822, %v878
    %v887 = vmul.f32 %v823, %v879
    %v888 = vmul.f32 %v824, %v880
    %v889 = vmul.f32 %v825, %v881
    %v890 = vmul.f32 %v826, %v882
    %v891 = vlaneseq
    %v892 = vshrl.u32 %v891, 7
    %v893 = vsub.s32 1, %v892
    %v894 = vrot.slane %v564, %v893
    %v895 = vmul.f32 %v883, %v894
    %v896 = vmul.f32 %v884, %v894
    %v897 = vmul.f32 %v885, %v894
    %v898 = vmul.f32 %v886, %v894
    %v899 = vmul.f32 %v887, %v894
    %v900 = vmul.f32 %v888, %v894
    %v901 = vmul.f32 %v889, %v894
    %v902 = vmul.f32 %v890, %v894
    %v903 = vlaneseq
    %v904 = vshrl.u32 %v903, 7
    %v905 = vsub.s32 2, %v904
    %v906 = vrot.slane %v564, %v905
    %v907 = vadd.f32 %v895, %v906
    %v908 = vadd.f32 %v896, %v906
    %v909 = vadd.f32 %v897, %v906
    %v910 = vadd.f32 %v898, %v906
    %v911 = vadd.f32 %v899, %v906
    %v912 = vadd.f32 %v900, %v906
    %v913 = vadd.f32 %v901, %v906
    %v914 = vadd.f32 %v902, %v906
    %v915 = vmax.f32 %v907, 0.0
    %v916 = vmax.f32 %v908, 0.0
    %v917 = vmax.f32 %v909, 0.0
    %v918 = vmax.f32 %v910, 0.0
    %v919 = vmax.f32 %v911, 0.0
    %v920 = vmax.f32 %v912, 0.0
    %v921 = vmax.f32 %v913, 0.0
    %v922 = vmax.f32 %v914, 0.0
    %v923 = vld [vmem:[#allocation11] sm:$0xff]
    %v924 = vld [vmem:[#allocation11 + $0x8] sm:$0xff]
    %v925 = vld [vmem:[#allocation11 + $0x10] sm:$0xff]
    %v926 = vld [vmem:[#allocation11 + $0x18] sm:$0xff]
    %v927 = vld [vmem:[#allocation11 + $0x20] sm:$0xff]
    %v928 = vld [vmem:[#allocation11 + $0x28] sm:$0xff]
    %v929 = vld [vmem:[#allocation11 + $0x30] sm:$0xff]
    %v930 = vld [vmem:[#allocation11 + $0x38] sm:$0xff]
    %v931 = vld [vmem:[#allocation11 + $0x40] sm:$0xff]
    %v932 = vld [vmem:[#allocation11 + $0x48] sm:$0xff]
    %v933 = vld [vmem:[#allocation11 + $0x50] sm:$0xff]
    %v934 = vld [vmem:[#allocation11 + $0x58] sm:$0xff]
    %v935 = vld [vmem:[#allocation11 + $0x60] sm:$0xff]
    %v936 = vld [vmem:[#allocation11 + $0x68] sm:$0xff]
    %v937 = vld [vmem:[#allocation11 + $0x70] sm:$0xff]
    %v938 = vld [vmem:[#allocation11 + $0x78] sm:$0xff]
    %939 = vmatprep.subr.mxu0 0.0
    %940 = vmatpush1.msra.mxu0 %v923
    %941 = vmatprep.subr.mxu0 0.0
    %942 = vmatpush1.msra.mxu0 %v924
    %943 = vmatprep.subr.mxu0 0.0
    %944 = vmatpush1.msra.mxu0 %v925
    %945 = vmatprep.subr.mxu0 0.0
    %946 = vmatpush1.msra.mxu0 %v926
    %947 = vmatprep.subr.mxu0 0.0
    %948 = vmatpush1.msra.mxu0 %v927
    %949 = vmatprep.subr.mxu0 0.0
    %950 = vmatpush1.msra.mxu0 %v928
    %951 = vmatprep.subr.mxu0 0.0
    %952 = vmatpush1.msra.mxu0 %v929
    %953 = vmatprep.subr.mxu0 0.0
    %954 = vmatpush1.msra.mxu0 %v930
    %955 = vmatprep.subr.mxu0 0.0
    %956 = vmatpush1.msra.mxu0 %v931
    %957 = vmatprep.subr.mxu0 0.0
    %958 = vmatpush1.msra.mxu0 %v932
    %959 = vmatprep.subr.mxu0 0.0
    %960 = vmatpush1.msra.mxu0 %v933
    %961 = vmatprep.subr.mxu0 0.0
    %962 = vmatpush1.msra.mxu0 %v934
    %963 = vmatprep.subr.mxu0 0.0
    %964 = vmatpush1.msra.mxu0 %v935
    %965 = vmatprep.subr.mxu0 0.0
    %966 = vmatpush1.msra.mxu0 %v936
    %967 = vmatprep.subr.mxu0 0.0
    %968 = vmatpush1.msra.mxu0 %v937
    %969 = vmatprep.subr.mxu0 0.0
    %970 = vmatpush1.msra.mxu0 %v938
    %971 = vmatprep.subr.mxu0 0.0
    %972 = vmatpush1.msra.mxu0 0.0
    %973 = vmatprep.subr.mxu0 0.0
    %974 = vmatpush1.msra.mxu0 0.0
    %975 = vmatprep.subr.mxu0 0.0
    %976 = vmatpush1.msra.mxu0 0.0
    %977 = vmatprep.subr.mxu0 0.0
    %978 = vmatpush1.msra.mxu0 0.0
    %979 = vmatprep.subr.mxu0 0.0
    %980 = vmatpush1.msra.mxu0 0.0
    %981 = vmatprep.subr.mxu0 0.0
    %982 = vmatpush1.msra.mxu0 0.0
    %983 = vmatprep.subr.mxu0 0.0
    %984 = vmatpush1.msra.mxu0 0.0
    %985 = vmatprep.subr.mxu0 0.0
    %986 = vmatpush1.msra.mxu0 0.0
    %987 = vmatprep.subr.mxu0 0.0
    %988 = vmatpush1.msra.mxu0 0.0
    %989 = vmatprep.subr.mxu0 0.0
    %990 = vmatpush1.msra.mxu0 0.0
    %991 = vmatprep.subr.mxu0 0.0
    %992 = vmatpush1.msra.mxu0 0.0
    %993 = vmatprep.subr.mxu0 0.0
    %994 = vmatpush1.msra.mxu0 0.0
    %995 = vmatprep.subr.mxu0 0.0
    %996 = vmatpush1.msra.mxu0 0.0
    %997 = vmatprep.subr.mxu0 0.0
    %998 = vmatpush1.msra.mxu0 0.0
    %999 = vmatprep.subr.mxu0 0.0
    %1000 = vmatpush1.msra.mxu0 0.0
    %1001 = vmatprep.subr.mxu0 0.0
    %1002 = vmatpush1.msra.mxu0 0.0
    %1003 = vmatprep.mubr.f32.mxu0 0.0
    %1004 = vmatmul.mubr.f32.gmra.mrb[0].mxu0 %v915
    %v1005 = vpop.f32.mrb[0].mxu0
    %v1006 = vadd.f32 0.0, %v1005
    %v1007 = vpop.f32.mrb[0].mxu0
    %1008 = vmatprep.mubr.f32.mxu0 0.0
    %1009 = vmatmul.mubr.f32.gmra.mrb[0].mxu0 %v916
    %v1010 = vpop.f32.mrb[0].mxu0
    %v1011 = vadd.f32 0.0, %v1010
    %v1012 = vpop.f32.mrb[0].mxu0
    %1013 = vmatprep.mubr.f32.mxu0 0.0
    %1014 = vmatmul.mubr.f32.gmra.mrb[0].mxu0 %v917
    %v1015 = vpop.f32.mrb[0].mxu0
    %v1016 = vadd.f32 0.0, %v1015
    %v1017 = vpop.f32.mrb[0].mxu0
    %1018 = vmatprep.mubr.f32.mxu0 0.0
    %1019 = vmatmul.mubr.f32.gmra.mrb[0].mxu0 %v918
    %v1020 = vpop.f32.mrb[0].mxu0
    %v1021 = vadd.f32 0.0, %v1020
    %v1022 = vpop.f32.mrb[0].mxu0
    %1023 = vmatprep.mubr.f32.mxu0 0.0
    %1024 = vmatmul.mubr.f32.gmra.mrb[0].mxu0 %v919
    %v1025 = vpop.f32.mrb[0].mxu0
    %v1026 = vadd.f32 0.0, %v1025
    %v1027 = vpop.f32.mrb[0].mxu0
    %1028 = vmatprep.mubr.f32.mxu0 0.0
    %1029 = vmatmul.mubr.f32.gmra.mrb[0].mxu0 %v920
    %v1030 = vpop.f32.mrb[0].mxu0
    %v1031 = vadd.f32 0.0, %v1030
    %v1032 = vpop.f32.mrb[0].mxu0
    %1033 = vmatprep.mubr.f32.mxu0 0.0
    %1034 = vmatmul.mubr.f32.gmra.mrb[0].mxu0 %v921
    %v1035 = vpop.f32.mrb[0].mxu0
    %v1036 = vadd.f32 0.0, %v1035
    %v1037 = vpop.f32.mrb[0].mxu0
    %1038 = vmatprep.mubr.f32.mxu0 0.0
    %1039 = vmatmul.mubr.f32.gmra.mrb[0].mxu0 %v922
    %v1040 = vpop.f32.mrb[0].mxu0
    %v1041 = vadd.f32 0.0, %v1040
    %v1042 = vpop.f32.mrb[0].mxu0
    %1043 = vdwg.mxu0
    %v1044 = vlaneseq
    %v1045 = vshrl.u32 %v1044, 7
    %v1046 = vsub.s32 3, %v1045
    %v1047 = vrot.slane %v564, %v1046
    %1048 = vmatprep.subr.mxu0 0.0
    %1049 = vmatpush1.msra.mxu0 %v1006
    %1050 = vmatprep.subr.mxu0 0.0
    %1051 = vmatpush1.msra.mxu0 %v1011
    %1052 = vmatprep.subr.mxu0 0.0
    %1053 = vmatpush1.msra.mxu0 %v1016
    %1054 = vmatprep.subr.mxu0 0.0
    %1055 = vmatpush1.msra.mxu0 %v1021
    %1056 = vmatprep.subr.mxu0 0.0
    %1057 = vmatpush1.msra.mxu0 %v1026
    %1058 = vmatprep.subr.mxu0 0.0
    %1059 = vmatpush1.msra.mxu0 %v1031
    %1060 = vmatprep.subr.mxu0 0.0
    %1061 = vmatpush1.msra.mxu0 %v1036
    %1062 = vmatprep.subr.mxu0 0.0
    %1063 = vmatpush1.msra.mxu0 %v1041
    %1064 = vmatprep.subr.mxu0 0.0
    %1065 = vmatpush1.msra.mxu0 0.0
    %1066 = vmatprep.subr.mxu0 0.0
    %1067 = vmatpush1.msra.mxu0 0.0
    %1068 = vmatprep.subr.mxu0 0.0
    %1069 = vmatpush1.msra.mxu0 0.0
    %1070 = vmatprep.subr.mxu0 0.0
    %1071 = vmatpush1.msra.mxu0 0.0
    %1072 = vmatprep.subr.mxu0 0.0
    %1073 = vmatpush1.msra.mxu0 0.0
    %1074 = vmatprep.subr.mxu0 0.0
    %1075 = vmatpush1.msra.mxu0 0.0
    %1076 = vmatprep.subr.mxu0 0.0
    %1077 = vmatpush1.msra.mxu0 0.0
    %1078 = vmatprep.subr.mxu0 0.0
    %1079 = vmatpush1.msra.mxu0 0.0
    %1080 = vmatprep.subr.mxu0 0.0
    %1081 = vmatpush1.msra.mxu0 0.0
    %1082 = vmatprep.subr.mxu0 0.0
    %1083 = vmatpush1.msra.mxu0 0.0
    %1084 = vmatprep.subr.mxu0 0.0
    %1085 = vmatpush1.msra.mxu0 0.0
    %1086 = vmatprep.subr.mxu0 0.0
    %1087 = vmatpush1.msra.mxu0 0.0
    %1088 = vmatprep.subr.mxu0 0.0
    %1089 = vmatpush1.msra.mxu0 0.0
    %1090 = vmatprep.subr.mxu0 0.0
    %1091 = vmatpush1.msra.mxu0 0.0
    %1092 = vmatprep.subr.mxu0 0.0
    %1093 = vmatpush1.msra.mxu0 0.0
    %1094 = vmatprep.subr.mxu0 0.0
    %1095 = vmatpush1.msra.mxu0 0.0
    %1096 = vmatprep.subr.mxu0 0.0
    %1097 = vmatpush1.msra.mxu0 0.0
    %1098 = vmatprep.subr.mxu0 0.0
    %1099 = vmatpush1.msra.mxu0 0.0
    %1100 = vmatprep.subr.mxu0 0.0
    %1101 = vmatpush1.msra.mxu0 0.0
    %1102 = vmatprep.subr.mxu0 0.0
    %1103 = vmatpush1.msra.mxu0 0.0
    %1104 = vmatprep.subr.mxu0 0.0
    %1105 = vmatpush1.msra.mxu0 0.0
    %1106 = vmatprep.subr.mxu0 0.0
    %1107 = vmatpush1.msra.mxu0 0.0
    %1108 = vmatprep.subr.mxu0 0.0
    %1109 = vmatpush1.msra.mxu0 0.0
    %1110 = vmatprep.subr.mxu0 0.0
    %1111 = vmatpush1.msra.mxu0 0.0
    %1112 = vmatprep.mubr.f32.mxu0 0.0
    %1113 = vmatmul.mubr.f32.gmra.mrb[0].mxu0 %v306
    %v1114 = vpop.f32.mrb[0].mxu0
    %v1115 = vadd.f32 %v1047, %v1114
    %v1116 = vpop.f32.mrb[0].mxu0
    %1117 = vmatprep.mubr.f32.mxu0 0.0
    %1118 = vmatmul.mubr.f32.gmra.mrb[0].mxu0 %v309
    %v1119 = vpop.f32.mrb[0].mxu0
    %v1120 = vadd.f32 %v1047, %v1119
    %v1121 = vpop.f32.mrb[0].mxu0
    %1122 = vmatprep.mubr.f32.mxu0 0.0
    %1123 = vmatmul.mubr.f32.gmra.mrb[0].mxu0 %v312
    %v1124 = vpop.f32.mrb[0].mxu0
    %v1125 = vadd.f32 %v1047, %v1124
    %v1126 = vpop.f32.mrb[0].mxu0
    %1127 = vmatprep.mubr.f32.mxu0 0.0
    %1128 = vmatmul.mubr.f32.gmra.mrb[0].mxu0 %v315
    %v1129 = vpop.f32.mrb[0].mxu0
    %v1130 = vadd.f32 %v1047, %v1129
    %v1131 = vpop.f32.mrb[0].mxu0
    %1132 = vmatprep.mubr.f32.mxu0 0.0
    %1133 = vmatmul.mubr.f32.gmra.mrb[0].mxu0 %v318
    %v1134 = vpop.f32.mrb[0].mxu0
    %v1135 = vadd.f32 %v1047, %v1134
    %v1136 = vpop.f32.mrb[0].mxu0
    %1137 = vmatprep.mubr.f32.mxu0 0.0
    %1138 = vmatmul.mubr.f32.gmra.mrb[0].mxu0 %v321
    %v1139 = vpop.f32.mrb[0].mxu0
    %v1140 = vadd.f32 %v1047, %v1139
    %v1141 = vpop.f32.mrb[0].mxu0
    %1142 = vmatprep.mubr.f32.mxu0 0.0
    %1143 = vmatmul.mubr.f32.gmra.mrb[0].mxu0 %v324
    %v1144 = vpop.f32.mrb[0].mxu0
    %v1145 = vadd.f32 %v1047, %v1144
    %v1146 = vpop.f32.mrb[0].mxu0
    %1147 = vmatprep.mubr.f32.mxu0 0.0
    %1148 = vmatmul.mubr.f32.gmra.mrb[0].mxu0 %v327
    %v1149 = vpop.f32.mrb[0].mxu0
    %v1150 = vadd.f32 %v1047, %v1149
    %v1151 = vpop.f32.mrb[0].mxu0
    %1152 = vdwg.mxu0
    %1153 = vadd.xlane.f32.xlu0 %v1115
    %v1154 = vpop.xlane.xlu0 %1153
    %1155 = vadd.xlane.f32.xlu0 %v1120
    %v1156 = vpop.xlane.xlu0 %1155
    %1157 = vadd.xlane.f32.xlu0 %v1125
    %v1158 = vpop.xlane.xlu0 %1157
    %1159 = vadd.xlane.f32.xlu0 %v1130
    %v1160 = vpop.xlane.xlu0 %1159
    %1161 = vadd.xlane.f32.xlu0 %v1135
    %v1162 = vpop.xlane.xlu0 %1161
    %1163 = vadd.xlane.f32.xlu0 %v1140
    %v1164 = vpop.xlane.xlu0 %1163
    %1165 = vadd.xlane.f32.xlu0 %v1145
    %v1166 = vpop.xlane.xlu0 %1165
    %1167 = vadd.xlane.f32.xlu0 %v1150
    %v1168 = vpop.xlane.xlu0 %1167
    %v1169 = vmul.f32 %v1154, 0.03125
    %v1170 = vmul.f32 %v1156, 0.03125
    %v1171 = vmul.f32 %v1158, 0.03125
    %v1172 = vmul.f32 %v1160, 0.03125
    %v1173 = vmul.f32 %v1162, 0.03125
    %v1174 = vmul.f32 %v1164, 0.03125
    %v1175 = vmul.f32 %v1166, 0.03125
    %v1176 = vmul.f32 %v1168, 0.03125
    %v1177 = vsub.f32 %v1115, %v1169
    %v1178 = vsub.f32 %v1120, %v1170
    %v1179 = vsub.f32 %v1125, %v1171
    %v1180 = vsub.f32 %v1130, %v1172
    %v1181 = vsub.f32 %v1135, %v1173
    %v1182 = vsub.f32 %v1140, %v1174
    %v1183 = vsub.f32 %v1145, %v1175
    %v1184 = vsub.f32 %v1150, %v1176
    %v1185 = vmul.f32 %v1177, %v1177
    %v1186 = vmul.f32 %v1178, %v1178
    %v1187 = vmul.f32 %v1179, %v1179
    %v1188 = vmul.f32 %v1180, %v1180
    %v1189 = vmul.f32 %v1181, %v1181
    %v1190 = vmul.f32 %v1182, %v1182
    %v1191 = vmul.f32 %v1183, %v1183
    %v1192 = vmul.f32 %v1184, %v1184
    %v1193 = vsel %vm475, %v1185, 0.0
    %v1194 = vsel %vm475, %v1186, 0.0
    %v1195 = vsel %vm475, %v1187, 0.0
    %v1196 = vsel %vm475, %v1188, 0.0
    %v1197 = vsel %vm475, %v1189, 0.0
    %v1198 = vsel %vm475, %v1190, 0.0
    %v1199 = vsel %vm475, %v1191, 0.0
    %v1200 = vsel %vm475, %v1192, 0.0
    %1201 = vadd.xlane.f32.xlu0 %v1193
    %v1202 = vpop.xlane.xlu0 %1201
    %1203 = vadd.xlane.f32.xlu0 %v1194
    %v1204 = vpop.xlane.xlu0 %1203
    %1205 = vadd.xlane.f32.xlu0 %v1195
    %v1206 = vpop.xlane.xlu0 %1205
    %1207 = vadd.xlane.f32.xlu0 %v1196
    %v1208 = vpop.xlane.xlu0 %1207
    %1209 = vadd.xlane.f32.xlu0 %v1197
    %v1210 = vpop.xlane.xlu0 %1209
    %1211 = vadd.xlane.f32.xlu0 %v1198
    %v1212 = vpop.xlane.xlu0 %1211
    %1213 = vadd.xlane.f32.xlu0 %v1199
    %v1214 = vpop.xlane.xlu0 %1213
    %1215 = vadd.xlane.f32.xlu0 %v1200
    %v1216 = vpop.xlane.xlu0 %1215
    %v1217 = vmul.f32 %v1202, 0.03125
    %v1218 = vmul.f32 %v1204, 0.03125
    %v1219 = vmul.f32 %v1206, 0.03125
    %v1220 = vmul.f32 %v1208, 0.03125
    %v1221 = vmul.f32 %v1210, 0.03125
    %v1222 = vmul.f32 %v1212, 0.03125
    %v1223 = vmul.f32 %v1214, 0.03125
    %v1224 = vmul.f32 %v1216, 0.03125
    %v1225 = vadd.f32 %v1217, 1e-05
    %v1226 = vadd.f32 %v1218, 1e-05
    %v1227 = vadd.f32 %v1219, 1e-05
    %v1228 = vadd.f32 %v1220, 1e-05
    %v1229 = vadd.f32 %v1221, 1e-05
    %v1230 = vadd.f32 %v1222, 1e-05
    %v1231 = vadd.f32 %v1223, 1e-05
    %v1232 = vadd.f32 %v1224, 1e-05
    %v1233 = vrsqrt.pop %v1225
    %v1234 = vrsqrt.pop %v1226
    %v1235 = vrsqrt.pop %v1227
    %v1236 = vrsqrt.pop %v1228
    %v1237 = vrsqrt.pop %v1229
    %v1238 = vrsqrt.pop %v1230
    %v1239 = vrsqrt.pop %v1231
    %v1240 = vrsqrt.pop %v1232
    %v1241 = vmul.f32 %v1177, %v1233
    %v1242 = vmul.f32 %v1178, %v1234
    %v1243 = vmul.f32 %v1179, %v1235
    %v1244 = vmul.f32 %v1180, %v1236
    %v1245 = vmul.f32 %v1181, %v1237
    %v1246 = vmul.f32 %v1182, %v1238
    %v1247 = vmul.f32 %v1183, %v1239
    %v1248 = vmul.f32 %v1184, %v1240
    %v1249 = vlaneseq
    %v1250 = vshrl.u32 %v1249, 7
    %v1251 = vsub.s32 4, %v1250
    %v1252 = vrot.slane %v564, %v1251
    %v1253 = vmul.f32 %v1241, %v1252
    %v1254 = vmul.f32 %v1242, %v1252
    %v1255 = vmul.f32 %v1243, %v1252
    %v1256 = vmul.f32 %v1244, %v1252
    %v1257 = vmul.f32 %v1245, %v1252
    %v1258 = vmul.f32 %v1246, %v1252
    %v1259 = vmul.f32 %v1247, %v1252
    %v1260 = vmul.f32 %v1248, %v1252
    %v1261 = vlaneseq
    %v1262 = vshrl.u32 %v1261, 7
    %v1263 = vsub.s32 5, %v1262
    %v1264 = vrot.slane %v564, %v1263
    %v1265 = vadd.f32 %v1253, %v1264
    %v1266 = vadd.f32 %v1254, %v1264
    %v1267 = vadd.f32 %v1255, %v1264
    %v1268 = vadd.f32 %v1256, %v1264
    %v1269 = vadd.f32 %v1257, %v1264
    %v1270 = vadd.f32 %v1258, %v1264
    %v1271 = vadd.f32 %v1259, %v1264
    %v1272 = vadd.f32 %v1260, %v1264
    %v1273 = vld [vmem:[#allocation13] sm:$0xff]
    %v1274 = vld [vmem:[#allocation13 + $0x8] sm:$0xff]
    %v1275 = vld [vmem:[#allocation13 + $0x10] sm:$0xff]
    %v1276 = vld [vmem:[#allocation13 + $0x18] sm:$0xff]
    %v1277 = vld [vmem:[#allocation13 + $0x20] sm:$0xff]
    %v1278 = vld [vmem:[#allocation13 + $0x28] sm:$0xff]
    %v1279 = vld [vmem:[#allocation13 + $0x30] sm:$0xff]
    %v1280 = vld [vmem:[#allocation13 + $0x38] sm:$0xff]
    %v1281 = vld [vmem:[#allocation13 + $0x40] sm:$0xff]
    %v1282 = vld [vmem:[#allocation13 + $0x48] sm:$0xff]
    %v1283 = vld [vmem:[#allocation13 + $0x50] sm:$0xff]
    %v1284 = vld [vmem:[#allocation13 + $0x58] sm:$0xff]
    %v1285 = vld [vmem:[#allocation13 + $0x60] sm:$0xff]
    %v1286 = vld [vmem:[#allocation13 + $0x68] sm:$0xff]
    %v1287 = vld [vmem:[#allocation13 + $0x70] sm:$0xff]
    %v1288 = vld [vmem:[#allocation13 + $0x78] sm:$0xff]
    %v1289 = vlaneseq
    %v1290 = vshrl.u32 %v1289, 7
    %v1291 = vsub.s32 6, %v1290
    %v1292 = vrot.slane %v564, %v1291
    %1293 = vmatprep.subr.mxu0 0.0
    %1294 = vmatpush1.msra.mxu0 %v1273
    %1295 = vmatprep.subr.mxu0 0.0
    %1296 = vmatpush1.msra.mxu0 %v1274
    %1297 = vmatprep.subr.mxu0 0.0
    %1298 = vmatpush1.msra.mxu0 %v1275
    %1299 = vmatprep.subr.mxu0 0.0
    %1300 = vmatpush1.msra.mxu0 %v1276
    %1301 = vmatprep.subr.mxu0 0.0
    %1302 = vmatpush1.msra.mxu0 %v1277
    %1303 = vmatprep.subr.mxu0 0.0
    %1304 = vmatpush1.msra.mxu0 %v1278
    %1305 = vmatprep.subr.mxu0 0.0
    %1306 = vmatpush1.msra.mxu0 %v1279
    %1307 = vmatprep.subr.mxu0 0.0
    %1308 = vmatpush1.msra.mxu0 %v1280
    %1309 = vmatprep.subr.mxu0 0.0
    %1310 = vmatpush1.msra.mxu0 %v1281
    %1311 = vmatprep.subr.mxu0 0.0
    %1312 = vmatpush1.msra.mxu0 %v1282
    %1313 = vmatprep.subr.mxu0 0.0
    %1314 = vmatpush1.msra.mxu0 %v1283
    %1315 = vmatprep.subr.mxu0 0.0
    %1316 = vmatpush1.msra.mxu0 %v1284
    %1317 = vmatprep.subr.mxu0 0.0
    %1318 = vmatpush1.msra.mxu0 %v1285
    %1319 = vmatprep.subr.mxu0 0.0
    %1320 = vmatpush1.msra.mxu0 %v1286
    %1321 = vmatprep.subr.mxu0 0.0
    %1322 = vmatpush1.msra.mxu0 %v1287
    %1323 = vmatprep.subr.mxu0 0.0
    %1324 = vmatpush1.msra.mxu0 %v1288
    %1325 = vmatprep.subr.mxu0 0.0
    %1326 = vmatpush1.msra.mxu0 0.0
    %1327 = vmatprep.subr.mxu0 0.0
    %1328 = vmatpush1.msra.mxu0 0.0
    %1329 = vmatprep.subr.mxu0 0.0
    %1330 = vmatpush1.msra.mxu0 0.0
    %1331 = vmatprep.subr.mxu0 0.0
    %1332 = vmatpush1.msra.mxu0 0.0
    %1333 = vmatprep.subr.mxu0 0.0
    %1334 = vmatpush1.msra.mxu0 0.0
    %1335 = vmatprep.subr.mxu0 0.0
    %1336 = vmatpush1.msra.mxu0 0.0
    %1337 = vmatprep.subr.mxu0 0.0
    %1338 = vmatpush1.msra.mxu0 0.0
    %1339 = vmatprep.subr.mxu0 0.0
    %1340 = vmatpush1.msra.mxu0 0.0
    %1341 = vmatprep.subr.mxu0 0.0
    %1342 = vmatpush1.msra.mxu0 0.0
    %1343 = vmatprep.subr.mxu0 0.0
    %1344 = vmatpush1.msra.mxu0 0.0
    %1345 = vmatprep.subr.mxu0 0.0
    %1346 = vmatpush1.msra.mxu0 0.0
    %1347 = vmatprep.subr.mxu0 0.0
    %1348 = vmatpush1.msra.mxu0 0.0
    %1349 = vmatprep.subr.mxu0 0.0
    %1350 = vmatpush1.msra.mxu0 0.0
    %1351 = vmatprep.subr.mxu0 0.0
    %1352 = vmatpush1.msra.mxu0 0.0
    %1353 = vmatprep.subr.mxu0 0.0
    %1354 = vmatpush1.msra.mxu0 0.0
    %1355 = vmatprep.subr.mxu0 0.0
    %1356 = vmatpush1.msra.mxu0 0.0
    %1357 = vmatprep.mubr.f32.mxu0 0.0
    %1358 = vmatmul.mubr.f32.gmra.mrb[0].mxu0 %v1265
    %v1359 = vpop.f32.mrb[0].mxu0
    %v1360 = vadd.f32 %v1292, %v1359
    %v1361 = vpop.f32.mrb[0].mxu0
    %1362 = vmatprep.mubr.f32.mxu0 0.0
    %1363 = vmatmul.mubr.f32.gmra.mrb[0].mxu0 %v1266
    %v1364 = vpop.f32.mrb[0].mxu0
    %v1365 = vadd.f32 %v1292, %v1364
    %v1366 = vpop.f32.mrb[0].mxu0
    %1367 = vmatprep.mubr.f32.mxu0 0.0
    %1368 = vmatmul.mubr.f32.gmra.mrb[0].mxu0 %v1267
    %v1369 = vpop.f32.mrb[0].mxu0
    %v1370 = vadd.f32 %v1292, %v1369
    %v1371 = vpop.f32.mrb[0].mxu0
    %1372 = vmatprep.mubr.f32.mxu0 0.0
    %1373 = vmatmul.mubr.f32.gmra.mrb[0].mxu0 %v1268
    %v1374 = vpop.f32.mrb[0].mxu0
    %v1375 = vadd.f32 %v1292, %v1374
    %v1376 = vpop.f32.mrb[0].mxu0
    %1377 = vmatprep.mubr.f32.mxu0 0.0
    %1378 = vmatmul.mubr.f32.gmra.mrb[0].mxu0 %v1269
    %v1379 = vpop.f32.mrb[0].mxu0
    %v1380 = vadd.f32 %v1292, %v1379
    %v1381 = vpop.f32.mrb[0].mxu0
    %1382 = vmatprep.mubr.f32.mxu0 0.0
    %1383 = vmatmul.mubr.f32.gmra.mrb[0].mxu0 %v1270
    %v1384 = vpop.f32.mrb[0].mxu0
    %v1385 = vadd.f32 %v1292, %v1384
    %v1386 = vpop.f32.mrb[0].mxu0
    %1387 = vmatprep.mubr.f32.mxu0 0.0
    %1388 = vmatmul.mubr.f32.gmra.mrb[0].mxu0 %v1271
    %v1389 = vpop.f32.mrb[0].mxu0
    %v1390 = vadd.f32 %v1292, %v1389
    %v1391 = vpop.f32.mrb[0].mxu0
    %1392 = vmatprep.mubr.f32.mxu0 0.0
    %1393 = vmatmul.mubr.f32.gmra.mrb[0].mxu0 %v1272
    %v1394 = vpop.f32.mrb[0].mxu0
    %v1395 = vadd.f32 %v1292, %v1394
    %v1396 = vpop.f32.mrb[0].mxu0
    %1397 = vdwg.mxu0
    %v1398 = vmax.f32 %v1360, 0.0
    %v1399 = vmax.f32 %v1365, 0.0
    %v1400 = vmax.f32 %v1370, 0.0
    %v1401 = vmax.f32 %v1375, 0.0
    %v1402 = vmax.f32 %v1380, 0.0
    %v1403 = vmax.f32 %v1385, 0.0
    %v1404 = vmax.f32 %v1390, 0.0
    %v1405 = vmax.f32 %v1395, 0.0
    %v1406 = vld [vmem:[#allocation14] sm:$0xff]
    %v1407 = vld [vmem:[#allocation14 + $0x8] sm:$0xff]
    %v1408 = vld [vmem:[#allocation14 + $0x10] sm:$0xff]
    %v1409 = vld [vmem:[#allocation14 + $0x18] sm:$0xff]
    %v1410 = vld [vmem:[#allocation14 + $0x20] sm:$0xff]
    %v1411 = vld [vmem:[#allocation14 + $0x28] sm:$0xff]
    %v1412 = vld [vmem:[#allocation14 + $0x30] sm:$0xff]
    %v1413 = vld [vmem:[#allocation14 + $0x38] sm:$0xff]
    %v1414 = vld [vmem:[#allocation14 + $0x40] sm:$0xff]
    %v1415 = vld [vmem:[#allocation14 + $0x48] sm:$0xff]
    %v1416 = vld [vmem:[#allocation14 + $0x50] sm:$0xff]
    %v1417 = vld [vmem:[#allocation14 + $0x58] sm:$0xff]
    %v1418 = vld [vmem:[#allocation14 + $0x60] sm:$0xff]
    %v1419 = vld [vmem:[#allocation14 + $0x68] sm:$0xff]
    %v1420 = vld [vmem:[#allocation14 + $0x70] sm:$0xff]
    %v1421 = vld [vmem:[#allocation14 + $0x78] sm:$0xff]
    %v1422 = vlaneseq
    %v1423 = vshrl.u32 %v1422, 7
    %v1424 = vsub.s32 7, %v1423
    %v1425 = vrot.slane %v564, %v1424
    %1426 = vmatprep.subr.mxu0 0.0
    %1427 = vmatpush1.msra.mxu0 %v1406
    %1428 = vmatprep.subr.mxu0 0.0
    %1429 = vmatpush1.msra.mxu0 %v1407
    %1430 = vmatprep.subr.mxu0 0.0
    %1431 = vmatpush1.msra.mxu0 %v1408
    %1432 = vmatprep.subr.mxu0 0.0
    %1433 = vmatpush1.msra.mxu0 %v1409
    %1434 = vmatprep.subr.mxu0 0.0
    %1435 = vmatpush1.msra.mxu0 %v1410
    %1436 = vmatprep.subr.mxu0 0.0
    %1437 = vmatpush1.msra.mxu0 %v1411
    %1438 = vmatprep.subr.mxu0 0.0
    %1439 = vmatpush1.msra.mxu0 %v1412
    %1440 = vmatprep.subr.mxu0 0.0
    %1441 = vmatpush1.msra.mxu0 %v1413
    %1442 = vmatprep.subr.mxu0 0.0
    %1443 = vmatpush1.msra.mxu0 %v1414
    %1444 = vmatprep.subr.mxu0 0.0
    %1445 = vmatpush1.msra.mxu0 %v1415
    %1446 = vmatprep.subr.mxu0 0.0
    %1447 = vmatpush1.msra.mxu0 %v1416
    %1448 = vmatprep.subr.mxu0 0.0
    %1449 = vmatpush1.msra.mxu0 %v1417
    %1450 = vmatprep.subr.mxu0 0.0
    %1451 = vmatpush1.msra.mxu0 %v1418
    %1452 = vmatprep.subr.mxu0 0.0
    %1453 = vmatpush1.msra.mxu0 %v1419
    %1454 = vmatprep.subr.mxu0 0.0
    %1455 = vmatpush1.msra.mxu0 %v1420
    %1456 = vmatprep.subr.mxu0 0.0
    %1457 = vmatpush1.msra.mxu0 %v1421
    %1458 = vmatprep.subr.mxu0 0.0
    %1459 = vmatpush1.msra.mxu0 0.0
    %1460 = vmatprep.subr.mxu0 0.0
    %1461 = vmatpush1.msra.mxu0 0.0
    %1462 = vmatprep.subr.mxu0 0.0
    %1463 = vmatpush1.msra.mxu0 0.0
    %1464 = vmatprep.subr.mxu0 0.0
    %1465 = vmatpush1.msra.mxu0 0.0
    %1466 = vmatprep.subr.mxu0 0.0
    %1467 = vmatpush1.msra.mxu0 0.0
    %1468 = vmatprep.subr.mxu0 0.0
    %1469 = vmatpush1.msra.mxu0 0.0
    %1470 = vmatprep.subr.mxu0 0.0
    %1471 = vmatpush1.msra.mxu0 0.0
    %1472 = vmatprep.subr.mxu0 0.0
    %1473 = vmatpush1.msra.mxu0 0.0
    %1474 = vmatprep.subr.mxu0 0.0
    %1475 = vmatpush1.msra.mxu0 0.0
    %1476 = vmatprep.subr.mxu0 0.0
    %1477 = vmatpush1.msra.mxu0 0.0
    %1478 = vmatprep.subr.mxu0 0.0
    %1479 = vmatpush1.msra.mxu0 0.0
    %1480 = vmatprep.subr.mxu0 0.0
    %1481 = vmatpush1.msra.mxu0 0.0
    %1482 = vmatprep.subr.mxu0 0.0
    %1483 = vmatpush1.msra.mxu0 0.0
    %1484 = vmatprep.subr.mxu0 0.0
    %1485 = vmatpush1.msra.mxu0 0.0
    %1486 = vmatprep.subr.mxu0 0.0
    %1487 = vmatpush1.msra.mxu0 0.0
    %1488 = vmatprep.subr.mxu0 0.0
    %1489 = vmatpush1.msra.mxu0 0.0
    %1490 = vmatprep.mubr.f32.mxu0 0.0
    %1491 = vmatmul.mubr.f32.gmra.mrb[0].mxu0 %v1398
    %v1492 = vpop.f32.mrb[0].mxu0
    %v1493 = vadd.f32 %v1425, %v1492
    %v1494 = vpop.f32.mrb[0].mxu0
    %1495 = vmatprep.mubr.f32.mxu0 0.0
    %1496 = vmatmul.mubr.f32.gmra.mrb[0].mxu0 %v1399
    %v1497 = vpop.f32.mrb[0].mxu0
    %v1498 = vadd.f32 %v1425, %v1497
    %v1499 = vpop.f32.mrb[0].mxu0
    %1500 = vmatprep.mubr.f32.mxu0 0.0
    %1501 = vmatmul.mubr.f32.gmra.mrb[0].mxu0 %v1400
    %v1502 = vpop.f32.mrb[0].mxu0
    %v1503 = vadd.f32 %v1425, %v1502
    %v1504 = vpop.f32.mrb[0].mxu0
    %1505 = vmatprep.mubr.f32.mxu0 0.0
    %1506 = vmatmul.mubr.f32.gmra.mrb[0].mxu0 %v1401
    %v1507 = vpop.f32.mrb[0].mxu0
    %v1508 = vadd.f32 %v1425, %v1507
    %v1509 = vpop.f32.mrb[0].mxu0
    %1510 = vmatprep.mubr.f32.mxu0 0.0
    %1511 = vmatmul.mubr.f32.gmra.mrb[0].mxu0 %v1402
    %v1512 = vpop.f32.mrb[0].mxu0
    %v1513 = vadd.f32 %v1425, %v1512
    %v1514 = vpop.f32.mrb[0].mxu0
    %1515 = vmatprep.mubr.f32.mxu0 0.0
    %1516 = vmatmul.mubr.f32.gmra.mrb[0].mxu0 %v1403
    %v1517 = vpop.f32.mrb[0].mxu0
    %v1518 = vadd.f32 %v1425, %v1517
    %v1519 = vpop.f32.mrb[0].mxu0
    %1520 = vmatprep.mubr.f32.mxu0 0.0
    %1521 = vmatmul.mubr.f32.gmra.mrb[0].mxu0 %v1404
    %v1522 = vpop.f32.mrb[0].mxu0
    %v1523 = vadd.f32 %v1425, %v1522
    %v1524 = vpop.f32.mrb[0].mxu0
    %1525 = vmatprep.mubr.f32.mxu0 0.0
    %1526 = vmatmul.mubr.f32.gmra.mrb[0].mxu0 %v1405
    %v1527 = vpop.f32.mrb[0].mxu0
    %v1528 = vadd.f32 %v1425, %v1527
    %v1529 = vpop.f32.mrb[0].mxu0
    %1530 = vdwg.mxu0
    %v1531 = vxor.u32 %v1493, 2147483648
    %v1532 = vxor.u32 %v1498, 2147483648
    %v1533 = vxor.u32 %v1503, 2147483648
    %v1534 = vxor.u32 %v1508, 2147483648
    %v1535 = vxor.u32 %v1513, 2147483648
    %v1536 = vxor.u32 %v1518, 2147483648
    %v1537 = vxor.u32 %v1523, 2147483648
    %v1538 = vxor.u32 %v1528, 2147483648
    %v1539 = vmul.f32 %v1531, 1.442695
    %v1540 = vpow.pop %v1539
    %v1541 = vmul.f32 %v1532, 1.442695
    %v1542 = vpow.pop %v1541
    %v1543 = vmul.f32 %v1533, 1.442695
    %v1544 = vpow.pop %v1543
    %v1545 = vmul.f32 %v1534, 1.442695
    %v1546 = vpow.pop %v1545
    %v1547 = vmul.f32 %v1535, 1.442695
    %v1548 = vpow.pop %v1547
    %v1549 = vmul.f32 %v1536, 1.442695
    %v1550 = vpow.pop %v1549
    %v1551 = vmul.f32 %v1537, 1.442695
    %v1552 = vpow.pop %v1551
    %v1553 = vmul.f32 %v1538, 1.442695
    %v1554 = vpow.pop %v1553
    %v1555 = vadd.f32 %v1540, 1.0
    %v1556 = vadd.f32 %v1542, 1.0
    %v1557 = vadd.f32 %v1544, 1.0
    %v1558 = vadd.f32 %v1546, 1.0
    %v1559 = vadd.f32 %v1548, 1.0
    %v1560 = vadd.f32 %v1550, 1.0
    %v1561 = vadd.f32 %v1552, 1.0
    %v1562 = vadd.f32 %v1554, 1.0
    %v1563 = vrcp.pop %v1555
    %v1564 = vmul.f32 1.0, %v1563
    %v1565 = vrcp.pop %v1556
    %v1566 = vmul.f32 1.0, %v1565
    %v1567 = vrcp.pop %v1557
    %v1568 = vmul.f32 1.0, %v1567
    %v1569 = vrcp.pop %v1558
    %v1570 = vmul.f32 1.0, %v1569
    %v1571 = vrcp.pop %v1559
    %v1572 = vmul.f32 1.0, %v1571
    %v1573 = vrcp.pop %v1560
    %v1574 = vmul.f32 1.0, %v1573
    %v1575 = vrcp.pop %v1561
    %v1576 = vmul.f32 1.0, %v1575
    %v1577 = vrcp.pop %v1562
    %v1578 = vmul.f32 1.0, %v1577
    %v1579 = vmul.f32 %v1265, %v1564
    %v1580 = vmul.f32 %v1266, %v1566
    %v1581 = vmul.f32 %v1267, %v1568
    %v1582 = vmul.f32 %v1268, %v1570
    %v1583 = vmul.f32 %v1269, %v1572
    %v1584 = vmul.f32 %v1270, %v1574
    %v1585 = vmul.f32 %v1271, %v1576
    %v1586 = vmul.f32 %v1272, %v1578
    %v1587 = vadd.f32 %v1579, %v556
    %v1588 = vadd.f32 %v1580, %v557
    %v1589 = vadd.f32 %v1581, %v558
    %v1590 = vadd.f32 %v1582, %v559
    %v1591 = vadd.f32 %v1583, %v560
    %v1592 = vadd.f32 %v1584, %v561
    %v1593 = vadd.f32 %v1585, %v562
    %v1594 = vadd.f32 %v1586, %v563
    %v1595 = vmax.f32 %v1587, 0.0
    %v1596 = vmax.f32 %v1588, 0.0
    %v1597 = vmax.f32 %v1589, 0.0
    %v1598 = vmax.f32 %v1590, 0.0
    %v1599 = vmax.f32 %v1591, 0.0
    %v1600 = vmax.f32 %v1592, 0.0
    %v1601 = vmax.f32 %v1593, 0.0
    %v1602 = vmax.f32 %v1594, 0.0
    %s1603 = scalar_lea.vmem [#allocation16], 8
    %v1604 = vld [vmem:[%s1603] sm:$0xff]
    %s1605 = scalar_lea.vmem [#allocation10], 128
    %v1606 = vld [vmem:[%s1605] sm:$0xff]
    %v1607 = vld [vmem:[%s1605 + $0x8] sm:$0xff]
    %v1608 = vld [vmem:[%s1605 + $0x10] sm:$0xff]
    %v1609 = vld [vmem:[%s1605 + $0x18] sm:$0xff]
    %v1610 = vld [vmem:[%s1605 + $0x20] sm:$0xff]
    %v1611 = vld [vmem:[%s1605 + $0x28] sm:$0xff]
    %v1612 = vld [vmem:[%s1605 + $0x30] sm:$0xff]
    %v1613 = vld [vmem:[%s1605 + $0x38] sm:$0xff]
    %v1614 = vld [vmem:[%s1605 + $0x40] sm:$0xff]
    %v1615 = vld [vmem:[%s1605 + $0x48] sm:$0xff]
    %v1616 = vld [vmem:[%s1605 + $0x50] sm:$0xff]
    %v1617 = vld [vmem:[%s1605 + $0x58] sm:$0xff]
    %v1618 = vld [vmem:[%s1605 + $0x60] sm:$0xff]
    %v1619 = vld [vmem:[%s1605 + $0x68] sm:$0xff]
    %v1620 = vld [vmem:[%s1605 + $0x70] sm:$0xff]
    %v1621 = vld [vmem:[%s1605 + $0x78] sm:$0xff]
    %1622 = vmatprep.subr.mxu0 0.0
    %1623 = vmatpush1.msra.mxu0 %v1606
    %1624 = vmatprep.subr.mxu0 0.0
    %1625 = vmatpush1.msra.mxu0 %v1607
    %1626 = vmatprep.subr.mxu0 0.0
    %1627 = vmatpush1.msra.mxu0 %v1608
    %1628 = vmatprep.subr.mxu0 0.0
    %1629 = vmatpush1.msra.mxu0 %v1609
    %1630 = vmatprep.subr.mxu0 0.0
    %1631 = vmatpush1.msra.mxu0 %v1610
    %1632 = vmatprep.subr.mxu0 0.0
    %1633 = vmatpush1.msra.mxu0 %v1611
    %1634 = vmatprep.subr.mxu0 0.0
    %1635 = vmatpush1.msra.mxu0 %v1612
    %1636 = vmatprep.subr.mxu0 0.0
    %1637 = vmatpush1.msra.mxu0 %v1613
    %1638 = vmatprep.subr.mxu0 0.0
    %1639 = vmatpush1.msra.mxu0 %v1614
    %1640 = vmatprep.subr.mxu0 0.0
    %1641 = vmatpush1.msra.mxu0 %v1615
    %1642 = vmatprep.subr.mxu0 0.0
    %1643 = vmatpush1.msra.mxu0 %v1616
    %1644 = vmatprep.subr.mxu0 0.0
    %1645 = vmatpush1.msra.mxu0 %v1617
    %1646 = vmatprep.subr.mxu0 0.0
    %1647 = vmatpush1.msra.mxu0 %v1618
    %1648 = vmatprep.subr.mxu0 0.0
    %1649 = vmatpush1.msra.mxu0 %v1619
    %1650 = vmatprep.subr.mxu0 0.0
    %1651 = vmatpush1.msra.mxu0 %v1620
    %1652 = vmatprep.subr.mxu0 0.0
    %1653 = vmatpush1.msra.mxu0 %v1621
    %1654 = vmatprep.subr.mxu0 0.0
    %1655 = vmatpush1.msra.mxu0 0.0
    %1656 = vmatprep.subr.mxu0 0.0
    %1657 = vmatpush1.msra.mxu0 0.0
    %1658 = vmatprep.subr.mxu0 0.0
    %1659 = vmatpush1.msra.mxu0 0.0
    %1660 = vmatprep.subr.mxu0 0.0
    %1661 = vmatpush1.msra.mxu0 0.0
    %1662 = vmatprep.subr.mxu0 0.0
    %1663 = vmatpush1.msra.mxu0 0.0
    %1664 = vmatprep.subr.mxu0 0.0
    %1665 = vmatpush1.msra.mxu0 0.0
    %1666 = vmatprep.subr.mxu0 0.0
    %1667 = vmatpush1.msra.mxu0 0.0
    %1668 = vmatprep.subr.mxu0 0.0
    %1669 = vmatpush1.msra.mxu0 0.0
    %1670 = vmatprep.subr.mxu0 0.0
    %1671 = vmatpush1.msra.mxu0 0.0
    %1672 = vmatprep.subr.mxu0 0.0
    %1673 = vmatpush1.msra.mxu0 0.0
    %1674 = vmatprep.subr.mxu0 0.0
    %1675 = vmatpush1.msra.mxu0 0.0
    %1676 = vmatprep.subr.mxu0 0.0
    %1677 = vmatpush1.msra.mxu0 0.0
    %1678 = vmatprep.subr.mxu0 0.0
    %1679 = vmatpush1.msra.mxu0 0.0
    %1680 = vmatprep.subr.mxu0 0.0
    %1681 = vmatpush1.msra.mxu0 0.0
    %1682 = vmatprep.subr.mxu0 0.0
    %1683 = vmatpush1.msra.mxu0 0.0
    %1684 = vmatprep.subr.mxu0 0.0
    %1685 = vmatpush1.msra.mxu0 0.0
    %1686 = vmatprep.mubr.f32.mxu0 0.0
    %1687 = vmatmul.mubr.f32.gmra.mrb[0].mxu0 %v1595
    %v1688 = vpop.f32.mrb[0].mxu0
    %v1689 = vadd.f32 0.0, %v1688
    %v1690 = vpop.f32.mrb[0].mxu0
    %1691 = vmatprep.mubr.f32.mxu0 0.0
    %1692 = vmatmul.mubr.f32.gmra.mrb[0].mxu0 %v1596
    %v1693 = vpop.f32.mrb[0].mxu0
    %v1694 = vadd.f32 0.0, %v1693
    %v1695 = vpop.f32.mrb[0].mxu0
    %1696 = vmatprep.mubr.f32.mxu0 0.0
    %1697 = vmatmul.mubr.f32.gmra.mrb[0].mxu0 %v1597
    %v1698 = vpop.f32.mrb[0].mxu0
    %v1699 = vadd.f32 0.0, %v1698
    %v1700 = vpop.f32.mrb[0].mxu0
    %1701 = vmatprep.mubr.f32.mxu0 0.0
    %1702 = vmatmul.mubr.f32.gmra.mrb[0].mxu0 %v1598
    %v1703 = vpop.f32.mrb[0].mxu0
    %v1704 = vadd.f32 0.0, %v1703
    %v1705 = vpop.f32.mrb[0].mxu0
    %1706 = vmatprep.mubr.f32.mxu0 0.0
    %1707 = vmatmul.mubr.f32.gmra.mrb[0].mxu0 %v1599
    %v1708 = vpop.f32.mrb[0].mxu0
    %v1709 = vadd.f32 0.0, %v1708
    %v1710 = vpop.f32.mrb[0].mxu0
    %1711 = vmatprep.mubr.f32.mxu0 0.0
    %1712 = vmatmul.mubr.f32.gmra.mrb[0].mxu0 %v1600
    %v1713 = vpop.f32.mrb[0].mxu0
    %v1714 = vadd.f32 0.0, %v1713
    %v1715 = vpop.f32.mrb[0].mxu0
    %1716 = vmatprep.mubr.f32.mxu0 0.0
    %1717 = vmatmul.mubr.f32.gmra.mrb[0].mxu0 %v1601
    %v1718 = vpop.f32.mrb[0].mxu0
    %v1719 = vadd.f32 0.0, %v1718
    %v1720 = vpop.f32.mrb[0].mxu0
    %1721 = vmatprep.mubr.f32.mxu0 0.0
    %1722 = vmatmul.mubr.f32.gmra.mrb[0].mxu0 %v1602
    %v1723 = vpop.f32.mrb[0].mxu0
    %v1724 = vadd.f32 0.0, %v1723
    %v1725 = vpop.f32.mrb[0].mxu0
    %1726 = vdwg.mxu0
    %v1727 = vlaneseq
    %v1728 = vshrl.u32 %v1727, 7
    %v1729 = vsub.s32 0, %v1728
    %v1730 = vrot.slane %v1604, %v1729
    %1731 = vmatprep.subr.mxu0 0.0
    %1732 = vmatpush1.msra.mxu0 %v1689
    %1733 = vmatprep.subr.mxu0 0.0
    %1734 = vmatpush1.msra.mxu0 %v1694
    %1735 = vmatprep.subr.mxu0 0.0
    %1736 = vmatpush1.msra.mxu0 %v1699
    %1737 = vmatprep.subr.mxu0 0.0
    %1738 = vmatpush1.msra.mxu0 %v1704
    %1739 = vmatprep.subr.mxu0 0.0
    %1740 = vmatpush1.msra.mxu0 %v1709
    %1741 = vmatprep.subr.mxu0 0.0
    %1742 = vmatpush1.msra.mxu0 %v1714
    %1743 = vmatprep.subr.mxu0 0.0
    %1744 = vmatpush1.msra.mxu0 %v1719
    %1745 = vmatprep.subr.mxu0 0.0
    %1746 = vmatpush1.msra.mxu0 %v1724
    %1747 = vmatprep.subr.mxu0 0.0
    %1748 = vmatpush1.msra.mxu0 0.0
    %1749 = vmatprep.subr.mxu0 0.0
    %1750 = vmatpush1.msra.mxu0 0.0
    %1751 = vmatprep.subr.mxu0 0.0
    %1752 = vmatpush1.msra.mxu0 0.0
    %1753 = vmatprep.subr.mxu0 0.0
    %1754 = vmatpush1.msra.mxu0 0.0
    %1755 = vmatprep.subr.mxu0 0.0
    %1756 = vmatpush1.msra.mxu0 0.0
    %1757 = vmatprep.subr.mxu0 0.0
    %1758 = vmatpush1.msra.mxu0 0.0
    %1759 = vmatprep.subr.mxu0 0.0
    %1760 = vmatpush1.msra.mxu0 0.0
    %1761 = vmatprep.subr.mxu0 0.0
    %1762 = vmatpush1.msra.mxu0 0.0
    %1763 = vmatprep.subr.mxu0 0.0
    %1764 = vmatpush1.msra.mxu0 0.0
    %1765 = vmatprep.subr.mxu0 0.0
    %1766 = vmatpush1.msra.mxu0 0.0
    %1767 = vmatprep.subr.mxu0 0.0
    %1768 = vmatpush1.msra.mxu0 0.0
    %1769 = vmatprep.subr.mxu0 0.0
    %1770 = vmatpush1.msra.mxu0 0.0
    %1771 = vmatprep.subr.mxu0 0.0
    %1772 = vmatpush1.msra.mxu0 0.0
    %1773 = vmatprep.subr.mxu0 0.0
    %1774 = vmatpush1.msra.mxu0 0.0
    %1775 = vmatprep.subr.mxu0 0.0
    %1776 = vmatpush1.msra.mxu0 0.0
    %1777 = vmatprep.subr.mxu0 0.0
    %1778 = vmatpush1.msra.mxu0 0.0
    %1779 = vmatprep.subr.mxu0 0.0
    %1780 = vmatpush1.msra.mxu0 0.0
    %1781 = vmatprep.subr.mxu0 0.0
    %1782 = vmatpush1.msra.mxu0 0.0
    %1783 = vmatprep.subr.mxu0 0.0
    %1784 = vmatpush1.msra.mxu0 0.0
    %1785 = vmatprep.subr.mxu0 0.0
    %1786 = vmatpush1.msra.mxu0 0.0
    %1787 = vmatprep.subr.mxu0 0.0
    %1788 = vmatpush1.msra.mxu0 0.0
    %1789 = vmatprep.subr.mxu0 0.0
    %1790 = vmatpush1.msra.mxu0 0.0
    %1791 = vmatprep.subr.mxu0 0.0
    %1792 = vmatpush1.msra.mxu0 0.0
    %1793 = vmatprep.subr.mxu0 0.0
    %1794 = vmatpush1.msra.mxu0 0.0
    %1795 = vmatprep.mubr.f32.mxu0 0.0
    %1796 = vmatmul.mubr.f32.gmra.mrb[0].mxu0 %v306
    %v1797 = vpop.f32.mrb[0].mxu0
    %v1798 = vadd.f32 %v1730, %v1797
    %v1799 = vpop.f32.mrb[0].mxu0
    %1800 = vmatprep.mubr.f32.mxu0 0.0
    %1801 = vmatmul.mubr.f32.gmra.mrb[0].mxu0 %v309
    %v1802 = vpop.f32.mrb[0].mxu0
    %v1803 = vadd.f32 %v1730, %v1802
    %v1804 = vpop.f32.mrb[0].mxu0
    %1805 = vmatprep.mubr.f32.mxu0 0.0
    %1806 = vmatmul.mubr.f32.gmra.mrb[0].mxu0 %v312
    %v1807 = vpop.f32.mrb[0].mxu0
    %v1808 = vadd.f32 %v1730, %v1807
    %v1809 = vpop.f32.mrb[0].mxu0
    %1810 = vmatprep.mubr.f32.mxu0 0.0
    %1811 = vmatmul.mubr.f32.gmra.mrb[0].mxu0 %v315
    %v1812 = vpop.f32.mrb[0].mxu0
    %v1813 = vadd.f32 %v1730, %v1812
    %v1814 = vpop.f32.mrb[0].mxu0
    %1815 = vmatprep.mubr.f32.mxu0 0.0
    %1816 = vmatmul.mubr.f32.gmra.mrb[0].mxu0 %v318
    %v1817 = vpop.f32.mrb[0].mxu0
    %v1818 = vadd.f32 %v1730, %v1817
    %v1819 = vpop.f32.mrb[0].mxu0
    %1820 = vmatprep.mubr.f32.mxu0 0.0
    %1821 = vmatmul.mubr.f32.gmra.mrb[0].mxu0 %v321
    %v1822 = vpop.f32.mrb[0].mxu0
    %v1823 = vadd.f32 %v1730, %v1822
    %v1824 = vpop.f32.mrb[0].mxu0
    %1825 = vmatprep.mubr.f32.mxu0 0.0
    %1826 = vmatmul.mubr.f32.gmra.mrb[0].mxu0 %v324
    %v1827 = vpop.f32.mrb[0].mxu0
    %v1828 = vadd.f32 %v1730, %v1827
    %v1829 = vpop.f32.mrb[0].mxu0
    %1830 = vmatprep.mubr.f32.mxu0 0.0
    %1831 = vmatmul.mubr.f32.gmra.mrb[0].mxu0 %v327
    %v1832 = vpop.f32.mrb[0].mxu0
    %v1833 = vadd.f32 %v1730, %v1832
    %v1834 = vpop.f32.mrb[0].mxu0
    %1835 = vdwg.mxu0
    %1836 = vadd.xlane.f32.xlu0 %v1798
    %v1837 = vpop.xlane.xlu0 %1836
    %1838 = vadd.xlane.f32.xlu0 %v1803
    %v1839 = vpop.xlane.xlu0 %1838
    %1840 = vadd.xlane.f32.xlu0 %v1808
    %v1841 = vpop.xlane.xlu0 %1840
    %1842 = vadd.xlane.f32.xlu0 %v1813
    %v1843 = vpop.xlane.xlu0 %1842
    %1844 = vadd.xlane.f32.xlu0 %v1818
    %v1845 = vpop.xlane.xlu0 %1844
    %1846 = vadd.xlane.f32.xlu0 %v1823
    %v1847 = vpop.xlane.xlu0 %1846
    %1848 = vadd.xlane.f32.xlu0 %v1828
    %v1849 = vpop.xlane.xlu0 %1848
    %1850 = vadd.xlane.f32.xlu0 %v1833
    %v1851 = vpop.xlane.xlu0 %1850
    %v1852 = vmul.f32 %v1837, 0.03125
    %v1853 = vmul.f32 %v1839, 0.03125
    %v1854 = vmul.f32 %v1841, 0.03125
    %v1855 = vmul.f32 %v1843, 0.03125
    %v1856 = vmul.f32 %v1845, 0.03125
    %v1857 = vmul.f32 %v1847, 0.03125
    %v1858 = vmul.f32 %v1849, 0.03125
    %v1859 = vmul.f32 %v1851, 0.03125
    %v1860 = vsub.f32 %v1798, %v1852
    %v1861 = vsub.f32 %v1803, %v1853
    %v1862 = vsub.f32 %v1808, %v1854
    %v1863 = vsub.f32 %v1813, %v1855
    %v1864 = vsub.f32 %v1818, %v1856
    %v1865 = vsub.f32 %v1823, %v1857
    %v1866 = vsub.f32 %v1828, %v1858
    %v1867 = vsub.f32 %v1833, %v1859
    %v1868 = vmul.f32 %v1860, %v1860
    %v1869 = vmul.f32 %v1861, %v1861
    %v1870 = vmul.f32 %v1862, %v1862
    %v1871 = vmul.f32 %v1863, %v1863
    %v1872 = vmul.f32 %v1864, %v1864
    %v1873 = vmul.f32 %v1865, %v1865
    %v1874 = vmul.f32 %v1866, %v1866
    %v1875 = vmul.f32 %v1867, %v1867
    %v1876 = vsel %vm475, %v1868, 0.0
    %v1877 = vsel %vm475, %v1869, 0.0
    %v1878 = vsel %vm475, %v1870, 0.0
    %v1879 = vsel %vm475, %v1871, 0.0
    %v1880 = vsel %vm475, %v1872, 0.0
    %v1881 = vsel %vm475, %v1873, 0.0
    %v1882 = vsel %vm475, %v1874, 0.0
    %v1883 = vsel %vm475, %v1875, 0.0
    %1884 = vadd.xlane.f32.xlu0 %v1876
    %v1885 = vpop.xlane.xlu0 %1884
    %1886 = vadd.xlane.f32.xlu0 %v1877
    %v1887 = vpop.xlane.xlu0 %1886
    %1888 = vadd.xlane.f32.xlu0 %v1878
    %v1889 = vpop.xlane.xlu0 %1888
    %1890 = vadd.xlane.f32.xlu0 %v1879
    %v1891 = vpop.xlane.xlu0 %1890
    %1892 = vadd.xlane.f32.xlu0 %v1880
    %v1893 = vpop.xlane.xlu0 %1892
    %1894 = vadd.xlane.f32.xlu0 %v1881
    %v1895 = vpop.xlane.xlu0 %1894
    %1896 = vadd.xlane.f32.xlu0 %v1882
    %v1897 = vpop.xlane.xlu0 %1896
    %1898 = vadd.xlane.f32.xlu0 %v1883
    %v1899 = vpop.xlane.xlu0 %1898
    %v1900 = vmul.f32 %v1885, 0.03125
    %v1901 = vmul.f32 %v1887, 0.03125
    %v1902 = vmul.f32 %v1889, 0.03125
    %v1903 = vmul.f32 %v1891, 0.03125
    %v1904 = vmul.f32 %v1893, 0.03125
    %v1905 = vmul.f32 %v1895, 0.03125
    %v1906 = vmul.f32 %v1897, 0.03125
    %v1907 = vmul.f32 %v1899, 0.03125
    %v1908 = vadd.f32 %v1900, 1e-05
    %v1909 = vadd.f32 %v1901, 1e-05
    %v1910 = vadd.f32 %v1902, 1e-05
    %v1911 = vadd.f32 %v1903, 1e-05
    %v1912 = vadd.f32 %v1904, 1e-05
    %v1913 = vadd.f32 %v1905, 1e-05
    %v1914 = vadd.f32 %v1906, 1e-05
    %v1915 = vadd.f32 %v1907, 1e-05
    %v1916 = vrsqrt.pop %v1908
    %v1917 = vrsqrt.pop %v1909
    %v1918 = vrsqrt.pop %v1910
    %v1919 = vrsqrt.pop %v1911
    %v1920 = vrsqrt.pop %v1912
    %v1921 = vrsqrt.pop %v1913
    %v1922 = vrsqrt.pop %v1914
    %v1923 = vrsqrt.pop %v1915
    %v1924 = vmul.f32 %v1860, %v1916
    %v1925 = vmul.f32 %v1861, %v1917
    %v1926 = vmul.f32 %v1862, %v1918
    %v1927 = vmul.f32 %v1863, %v1919
    %v1928 = vmul.f32 %v1864, %v1920
    %v1929 = vmul.f32 %v1865, %v1921
    %v1930 = vmul.f32 %v1866, %v1922
    %v1931 = vmul.f32 %v1867, %v1923
    %v1932 = vlaneseq
    %v1933 = vshrl.u32 %v1932, 7
    %v1934 = vsub.s32 1, %v1933
    %v1935 = vrot.slane %v1604, %v1934
    %v1936 = vmul.f32 %v1924, %v1935
    %v1937 = vmul.f32 %v1925, %v1935
    %v1938 = vmul.f32 %v1926, %v1935
    %v1939 = vmul.f32 %v1927, %v1935
    %v1940 = vmul.f32 %v1928, %v1935
    %v1941 = vmul.f32 %v1929, %v1935
    %v1942 = vmul.f32 %v1930, %v1935
    %v1943 = vmul.f32 %v1931, %v1935
    %v1944 = vlaneseq
    %v1945 = vshrl.u32 %v1944, 7
    %v1946 = vsub.s32 2, %v1945
    %v1947 = vrot.slane %v1604, %v1946
    %v1948 = vadd.f32 %v1936, %v1947
    %v1949 = vadd.f32 %v1937, %v1947
    %v1950 = vadd.f32 %v1938, %v1947
    %v1951 = vadd.f32 %v1939, %v1947
    %v1952 = vadd.f32 %v1940, %v1947
    %v1953 = vadd.f32 %v1941, %v1947
    %v1954 = vadd.f32 %v1942, %v1947
    %v1955 = vadd.f32 %v1943, %v1947
    %v1956 = vmax.f32 %v1948, 0.0
    %v1957 = vmax.f32 %v1949, 0.0
    %v1958 = vmax.f32 %v1950, 0.0
    %v1959 = vmax.f32 %v1951, 0.0
    %v1960 = vmax.f32 %v1952, 0.0
    %v1961 = vmax.f32 %v1953, 0.0
    %v1962 = vmax.f32 %v1954, 0.0
    %v1963 = vmax.f32 %v1955, 0.0
    %s1964 = scalar_lea.vmem [#allocation11], 128
    %v1965 = vld [vmem:[%s1964] sm:$0xff]
    %v1966 = vld [vmem:[%s1964 + $0x8] sm:$0xff]
    %v1967 = vld [vmem:[%s1964 + $0x10] sm:$0xff]
    %v1968 = vld [vmem:[%s1964 + $0x18] sm:$0xff]
    %v1969 = vld [vmem:[%s1964 + $0x20] sm:$0xff]
    %v1970 = vld [vmem:[%s1964 + $0x28] sm:$0xff]
    %v1971 = vld [vmem:[%s1964 + $0x30] sm:$0xff]
    %v1972 = vld [vmem:[%s1964 + $0x38] sm:$0xff]
    %v1973 = vld [vmem:[%s1964 + $0x40] sm:$0xff]
    %v1974 = vld [vmem:[%s1964 + $0x48] sm:$0xff]
    %v1975 = vld [vmem:[%s1964 + $0x50] sm:$0xff]
    %v1976 = vld [vmem:[%s1964 + $0x58] sm:$0xff]
    %v1977 = vld [vmem:[%s1964 + $0x60] sm:$0xff]
    %v1978 = vld [vmem:[%s1964 + $0x68] sm:$0xff]
    %v1979 = vld [vmem:[%s1964 + $0x70] sm:$0xff]
    %v1980 = vld [vmem:[%s1964 + $0x78] sm:$0xff]
    %1981 = vmatprep.subr.mxu0 0.0
    %1982 = vmatpush1.msra.mxu0 %v1965
    %1983 = vmatprep.subr.mxu0 0.0
    %1984 = vmatpush1.msra.mxu0 %v1966
    %1985 = vmatprep.subr.mxu0 0.0
    %1986 = vmatpush1.msra.mxu0 %v1967
    %1987 = vmatprep.subr.mxu0 0.0
    %1988 = vmatpush1.msra.mxu0 %v1968
    %1989 = vmatprep.subr.mxu0 0.0
    %1990 = vmatpush1.msra.mxu0 %v1969
    %1991 = vmatprep.subr.mxu0 0.0
    %1992 = vmatpush1.msra.mxu0 %v1970
    %1993 = vmatprep.subr.mxu0 0.0
    %1994 = vmatpush1.msra.mxu0 %v1971
    %1995 = vmatprep.subr.mxu0 0.0
    %1996 = vmatpush1.msra.mxu0 %v1972
    %1997 = vmatprep.subr.mxu0 0.0
    %1998 = vmatpush1.msra.mxu0 %v1973
    %1999 = vmatprep.subr.mxu0 0.0
    %2000 = vmatpush1.msra.mxu0 %v1974
    %2001 = vmatprep.subr.mxu0 0.0
    %2002 = vmatpush1.msra.mxu0 %v1975
    %2003 = vmatprep.subr.mxu0 0.0
    %2004 = vmatpush1.msra.mxu0 %v1976
    %2005 = vmatprep.subr.mxu0 0.0
    %2006 = vmatpush1.msra.mxu0 %v1977
    %2007 = vmatprep.subr.mxu0 0.0
    %2008 = vmatpush1.msra.mxu0 %v1978
    %2009 = vmatprep.subr.mxu0 0.0
    %2010 = vmatpush1.msra.mxu0 %v1979
    %2011 = vmatprep.subr.mxu0 0.0
    %2012 = vmatpush1.msra.mxu0 %v1980
    %2013 = vmatprep.subr.mxu0 0.0
    %2014 = vmatpush1.msra.mxu0 0.0
    %2015 = vmatprep.subr.mxu0 0.0
    %2016 = vmatpush1.msra.mxu0 0.0
    %2017 = vmatprep.subr.mxu0 0.0
    %2018 = vmatpush1.msra.mxu0 0.0
    %2019 = vmatprep.subr.mxu0 0.0
    %2020 = vmatpush1.msra.mxu0 0.0
    %2021 = vmatprep.subr.mxu0 0.0
    %2022 = vmatpush1.msra.mxu0 0.0
    %2023 = vmatprep.subr.mxu0 0.0
    %2024 = vmatpush1.msra.mxu0 0.0
    %2025 = vmatprep.subr.mxu0 0.0
    %2026 = vmatpush1.msra.mxu0 0.0
    %2027 = vmatprep.subr.mxu0 0.0
    %2028 = vmatpush1.msra.mxu0 0.0
    %2029 = vmatprep.subr.mxu0 0.0
    %2030 = vmatpush1.msra.mxu0 0.0
    %2031 = vmatprep.subr.mxu0 0.0
    %2032 = vmatpush1.msra.mxu0 0.0
    %2033 = vmatprep.subr.mxu0 0.0
    %2034 = vmatpush1.msra.mxu0 0.0
    %2035 = vmatprep.subr.mxu0 0.0
    %2036 = vmatpush1.msra.mxu0 0.0
    %2037 = vmatprep.subr.mxu0 0.0
    %2038 = vmatpush1.msra.mxu0 0.0
    %2039 = vmatprep.subr.mxu0 0.0
    %2040 = vmatpush1.msra.mxu0 0.0
    %2041 = vmatprep.subr.mxu0 0.0
    %2042 = vmatpush1.msra.mxu0 0.0
    %2043 = vmatprep.subr.mxu0 0.0
    %2044 = vmatpush1.msra.mxu0 0.0
    %2045 = vmatprep.mubr.f32.mxu0 0.0
    %2046 = vmatmul.mubr.f32.gmra.mrb[0].mxu0 %v1956
    %v2047 = vpop.f32.mrb[0].mxu0
    %v2048 = vadd.f32 0.0, %v2047
    %v2049 = vpop.f32.mrb[0].mxu0
    %2050 = vmatprep.mubr.f32.mxu0 0.0
    %2051 = vmatmul.mubr.f32.gmra.mrb[0].mxu0 %v1957
    %v2052 = vpop.f32.mrb[0].mxu0
    %v2053 = vadd.f32 0.0, %v2052
    %v2054 = vpop.f32.mrb[0].mxu0
    %2055 = vmatprep.mubr.f32.mxu0 0.0
    %2056 = vmatmul.mubr.f32.gmra.mrb[0].mxu0 %v1958
    %v2057 = vpop.f32.mrb[0].mxu0
    %v2058 = vadd.f32 0.0, %v2057
    %v2059 = vpop.f32.mrb[0].mxu0
    %2060 = vmatprep.mubr.f32.mxu0 0.0
    %2061 = vmatmul.mubr.f32.gmra.mrb[0].mxu0 %v1959
    %v2062 = vpop.f32.mrb[0].mxu0
    %v2063 = vadd.f32 0.0, %v2062
    %v2064 = vpop.f32.mrb[0].mxu0
    %2065 = vmatprep.mubr.f32.mxu0 0.0
    %2066 = vmatmul.mubr.f32.gmra.mrb[0].mxu0 %v1960
    %v2067 = vpop.f32.mrb[0].mxu0
    %v2068 = vadd.f32 0.0, %v2067
    %v2069 = vpop.f32.mrb[0].mxu0
    %2070 = vmatprep.mubr.f32.mxu0 0.0
    %2071 = vmatmul.mubr.f32.gmra.mrb[0].mxu0 %v1961
    %v2072 = vpop.f32.mrb[0].mxu0
    %v2073 = vadd.f32 0.0, %v2072
    %v2074 = vpop.f32.mrb[0].mxu0
    %2075 = vmatprep.mubr.f32.mxu0 0.0
    %2076 = vmatmul.mubr.f32.gmra.mrb[0].mxu0 %v1962
    %v2077 = vpop.f32.mrb[0].mxu0
    %v2078 = vadd.f32 0.0, %v2077
    %v2079 = vpop.f32.mrb[0].mxu0
    %2080 = vmatprep.mubr.f32.mxu0 0.0
    %2081 = vmatmul.mubr.f32.gmra.mrb[0].mxu0 %v1963
    %v2082 = vpop.f32.mrb[0].mxu0
    %v2083 = vadd.f32 0.0, %v2082
    %v2084 = vpop.f32.mrb[0].mxu0
    %2085 = vdwg.mxu0
    %v2086 = vlaneseq
    %v2087 = vshrl.u32 %v2086, 7
    %v2088 = vsub.s32 3, %v2087
    %v2089 = vrot.slane %v1604, %v2088
    %2090 = vmatprep.subr.mxu0 0.0
    %2091 = vmatpush1.msra.mxu0 %v2048
    %2092 = vmatprep.subr.mxu0 0.0
    %2093 = vmatpush1.msra.mxu0 %v2053
    %2094 = vmatprep.subr.mxu0 0.0
    %2095 = vmatpush1.msra.mxu0 %v2058
    %2096 = vmatprep.subr.mxu0 0.0
    %2097 = vmatpush1.msra.mxu0 %v2063
    %2098 = vmatprep.subr.mxu0 0.0
    %2099 = vmatpush1.msra.mxu0 %v2068
    %2100 = vmatprep.subr.mxu0 0.0
    %2101 = vmatpush1.msra.mxu0 %v2073
    %2102 = vmatprep.subr.mxu0 0.0
    %2103 = vmatpush1.msra.mxu0 %v2078
    %2104 = vmatprep.subr.mxu0 0.0
    %2105 = vmatpush1.msra.mxu0 %v2083
    %2106 = vmatprep.subr.mxu0 0.0
    %2107 = vmatpush1.msra.mxu0 0.0
    %2108 = vmatprep.subr.mxu0 0.0
    %2109 = vmatpush1.msra.mxu0 0.0
    %2110 = vmatprep.subr.mxu0 0.0
    %2111 = vmatpush1.msra.mxu0 0.0
    %2112 = vmatprep.subr.mxu0 0.0
    %2113 = vmatpush1.msra.mxu0 0.0
    %2114 = vmatprep.subr.mxu0 0.0
    %2115 = vmatpush1.msra.mxu0 0.0
    %2116 = vmatprep.subr.mxu0 0.0
    %2117 = vmatpush1.msra.mxu0 0.0
    %2118 = vmatprep.subr.mxu0 0.0
    %2119 = vmatpush1.msra.mxu0 0.0
    %2120 = vmatprep.subr.mxu0 0.0
    %2121 = vmatpush1.msra.mxu0 0.0
    %2122 = vmatprep.subr.mxu0 0.0
    %2123 = vmatpush1.msra.mxu0 0.0
    %2124 = vmatprep.subr.mxu0 0.0
    %2125 = vmatpush1.msra.mxu0 0.0
    %2126 = vmatprep.subr.mxu0 0.0
    %2127 = vmatpush1.msra.mxu0 0.0
    %2128 = vmatprep.subr.mxu0 0.0
    %2129 = vmatpush1.msra.mxu0 0.0
    %2130 = vmatprep.subr.mxu0 0.0
    %2131 = vmatpush1.msra.mxu0 0.0
    %2132 = vmatprep.subr.mxu0 0.0
    %2133 = vmatpush1.msra.mxu0 0.0
    %2134 = vmatprep.subr.mxu0 0.0
    %2135 = vmatpush1.msra.mxu0 0.0
    %2136 = vmatprep.subr.mxu0 0.0
    %2137 = vmatpush1.msra.mxu0 0.0
    %2138 = vmatprep.subr.mxu0 0.0
    %2139 = vmatpush1.msra.mxu0 0.0
    %2140 = vmatprep.subr.mxu0 0.0
    %2141 = vmatpush1.msra.mxu0 0.0
    %2142 = vmatprep.subr.mxu0 0.0
    %2143 = vmatpush1.msra.mxu0 0.0
    %2144 = vmatprep.subr.mxu0 0.0
    %2145 = vmatpush1.msra.mxu0 0.0
    %2146 = vmatprep.subr.mxu0 0.0
    %2147 = vmatpush1.msra.mxu0 0.0
    %2148 = vmatprep.subr.mxu0 0.0
    %2149 = vmatpush1.msra.mxu0 0.0
    %2150 = vmatprep.subr.mxu0 0.0
    %2151 = vmatpush1.msra.mxu0 0.0
    %2152 = vmatprep.subr.mxu0 0.0
    %2153 = vmatpush1.msra.mxu0 0.0
    %2154 = vmatprep.mubr.f32.mxu0 0.0
    %2155 = vmatmul.mubr.f32.gmra.mrb[0].mxu0 %v306
    %v2156 = vpop.f32.mrb[0].mxu0
    %v2157 = vadd.f32 %v2089, %v2156
    %v2158 = vpop.f32.mrb[0].mxu0
    %2159 = vmatprep.mubr.f32.mxu0 0.0
    %2160 = vmatmul.mubr.f32.gmra.mrb[0].mxu0 %v309
    %v2161 = vpop.f32.mrb[0].mxu0
    %v2162 = vadd.f32 %v2089, %v2161
    %v2163 = vpop.f32.mrb[0].mxu0
    %2164 = vmatprep.mubr.f32.mxu0 0.0
    %2165 = vmatmul.mubr.f32.gmra.mrb[0].mxu0 %v312
    %v2166 = vpop.f32.mrb[0].mxu0
    %v2167 = vadd.f32 %v2089, %v2166
    %v2168 = vpop.f32.mrb[0].mxu0
    %2169 = vmatprep.mubr.f32.mxu0 0.0
    %2170 = vmatmul.mubr.f32.gmra.mrb[0].mxu0 %v315
    %v2171 = vpop.f32.mrb[0].mxu0
    %v2172 = vadd.f32 %v2089, %v2171
    %v2173 = vpop.f32.mrb[0].mxu0
    %2174 = vmatprep.mubr.f32.mxu0 0.0
    %2175 = vmatmul.mubr.f32.gmra.mrb[0].mxu0 %v318
    %v2176 = vpop.f32.mrb[0].mxu0
    %v2177 = vadd.f32 %v2089, %v2176
    %v2178 = vpop.f32.mrb[0].mxu0
    %2179 = vmatprep.mubr.f32.mxu0 0.0
    %2180 = vmatmul.mubr.f32.gmra.mrb[0].mxu0 %v321
    %v2181 = vpop.f32.mrb[0].mxu0
    %v2182 = vadd.f32 %v2089, %v2181
    %v2183 = vpop.f32.mrb[0].mxu0
    %2184 = vmatprep.mubr.f32.mxu0 0.0
    %2185 = vmatmul.mubr.f32.gmra.mrb[0].mxu0 %v324
    %v2186 = vpop.f32.mrb[0].mxu0
    %v2187 = vadd.f32 %v2089, %v2186
    %v2188 = vpop.f32.mrb[0].mxu0
    %2189 = vmatprep.mubr.f32.mxu0 0.0
    %2190 = vmatmul.mubr.f32.gmra.mrb[0].mxu0 %v327
    %v2191 = vpop.f32.mrb[0].mxu0
    %v2192 = vadd.f32 %v2089, %v2191
    %v2193 = vpop.f32.mrb[0].mxu0
    %2194 = vdwg.mxu0
    %2195 = vadd.xlane.f32.xlu0 %v2157
    %v2196 = vpop.xlane.xlu0 %2195
    %2197 = vadd.xlane.f32.xlu0 %v2162
    %v2198 = vpop.xlane.xlu0 %2197
    %2199 = vadd.xlane.f32.xlu0 %v2167
    %v2200 = vpop.xlane.xlu0 %2199
    %2201 = vadd.xlane.f32.xlu0 %v2172
    %v2202 = vpop.xlane.xlu0 %2201
    %2203 = vadd.xlane.f32.xlu0 %v2177
    %v2204 = vpop.xlane.xlu0 %2203
    %2205 = vadd.xlane.f32.xlu0 %v2182
    %v2206 = vpop.xlane.xlu0 %2205
    %2207 = vadd.xlane.f32.xlu0 %v2187
    %v2208 = vpop.xlane.xlu0 %2207
    %2209 = vadd.xlane.f32.xlu0 %v2192
    %v2210 = vpop.xlane.xlu0 %2209
    %v2211 = vmul.f32 %v2196, 0.03125
    %v2212 = vmul.f32 %v2198, 0.03125
    %v2213 = vmul.f32 %v2200, 0.03125
    %v2214 = vmul.f32 %v2202, 0.03125
    %v2215 = vmul.f32 %v2204, 0.03125
    %v2216 = vmul.f32 %v2206, 0.03125
    %v2217 = vmul.f32 %v2208, 0.03125
    %v2218 = vmul.f32 %v2210, 0.03125
    %v2219 = vsub.f32 %v2157, %v2211
    %v2220 = vsub.f32 %v2162, %v2212
    %v2221 = vsub.f32 %v2167, %v2213
    %v2222 = vsub.f32 %v2172, %v2214
    %v2223 = vsub.f32 %v2177, %v2215
    %v2224 = vsub.f32 %v2182, %v2216
    %v2225 = vsub.f32 %v2187, %v2217
    %v2226 = vsub.f32 %v2192, %v2218
    %v2227 = vmul.f32 %v2219, %v2219
    %v2228 = vmul.f32 %v2220, %v2220
    %v2229 = vmul.f32 %v2221, %v2221
    %v2230 = vmul.f32 %v2222, %v2222
    %v2231 = vmul.f32 %v2223, %v2223
    %v2232 = vmul.f32 %v2224, %v2224
    %v2233 = vmul.f32 %v2225, %v2225
    %v2234 = vmul.f32 %v2226, %v2226
    %v2235 = vsel %vm475, %v2227, 0.0
    %v2236 = vsel %vm475, %v2228, 0.0
    %v2237 = vsel %vm475, %v2229, 0.0
    %v2238 = vsel %vm475, %v2230, 0.0
    %v2239 = vsel %vm475, %v2231, 0.0
    %v2240 = vsel %vm475, %v2232, 0.0
    %v2241 = vsel %vm475, %v2233, 0.0
    %v2242 = vsel %vm475, %v2234, 0.0
    %2243 = vadd.xlane.f32.xlu0 %v2235
    %v2244 = vpop.xlane.xlu0 %2243
    %2245 = vadd.xlane.f32.xlu0 %v2236
    %v2246 = vpop.xlane.xlu0 %2245
    %2247 = vadd.xlane.f32.xlu0 %v2237
    %v2248 = vpop.xlane.xlu0 %2247
    %2249 = vadd.xlane.f32.xlu0 %v2238
    %v2250 = vpop.xlane.xlu0 %2249
    %2251 = vadd.xlane.f32.xlu0 %v2239
    %v2252 = vpop.xlane.xlu0 %2251
    %2253 = vadd.xlane.f32.xlu0 %v2240
    %v2254 = vpop.xlane.xlu0 %2253
    %2255 = vadd.xlane.f32.xlu0 %v2241
    %v2256 = vpop.xlane.xlu0 %2255
    %2257 = vadd.xlane.f32.xlu0 %v2242
    %v2258 = vpop.xlane.xlu0 %2257
    %v2259 = vmul.f32 %v2244, 0.03125
    %v2260 = vmul.f32 %v2246, 0.03125
    %v2261 = vmul.f32 %v2248, 0.03125
    %v2262 = vmul.f32 %v2250, 0.03125
    %v2263 = vmul.f32 %v2252, 0.03125
    %v2264 = vmul.f32 %v2254, 0.03125
    %v2265 = vmul.f32 %v2256, 0.03125
    %v2266 = vmul.f32 %v2258, 0.03125
    %v2267 = vadd.f32 %v2259, 1e-05
    %v2268 = vadd.f32 %v2260, 1e-05
    %v2269 = vadd.f32 %v2261, 1e-05
    %v2270 = vadd.f32 %v2262, 1e-05
    %v2271 = vadd.f32 %v2263, 1e-05
    %v2272 = vadd.f32 %v2264, 1e-05
    %v2273 = vadd.f32 %v2265, 1e-05
    %v2274 = vadd.f32 %v2266, 1e-05
    %v2275 = vrsqrt.pop %v2267
    %v2276 = vrsqrt.pop %v2268
    %v2277 = vrsqrt.pop %v2269
    %v2278 = vrsqrt.pop %v2270
    %v2279 = vrsqrt.pop %v2271
    %v2280 = vrsqrt.pop %v2272
    %v2281 = vrsqrt.pop %v2273
    %v2282 = vrsqrt.pop %v2274
    %v2283 = vmul.f32 %v2219, %v2275
    %v2284 = vmul.f32 %v2220, %v2276
    %v2285 = vmul.f32 %v2221, %v2277
    %v2286 = vmul.f32 %v2222, %v2278
    %v2287 = vmul.f32 %v2223, %v2279
    %v2288 = vmul.f32 %v2224, %v2280
    %v2289 = vmul.f32 %v2225, %v2281
    %v2290 = vmul.f32 %v2226, %v2282
    %v2291 = vlaneseq
    %v2292 = vshrl.u32 %v2291, 7
    %v2293 = vsub.s32 4, %v2292
    %v2294 = vrot.slane %v1604, %v2293
    %v2295 = vmul.f32 %v2283, %v2294
    %v2296 = vmul.f32 %v2284, %v2294
    %v2297 = vmul.f32 %v2285, %v2294
    %v2298 = vmul.f32 %v2286, %v2294
    %v2299 = vmul.f32 %v2287, %v2294
    %v2300 = vmul.f32 %v2288, %v2294
    %v2301 = vmul.f32 %v2289, %v2294
    %v2302 = vmul.f32 %v2290, %v2294
    %v2303 = vlaneseq
    %v2304 = vshrl.u32 %v2303, 7
    %v2305 = vsub.s32 5, %v2304
    %v2306 = vrot.slane %v1604, %v2305
    %v2307 = vadd.f32 %v2295, %v2306
    %v2308 = vadd.f32 %v2296, %v2306
    %v2309 = vadd.f32 %v2297, %v2306
    %v2310 = vadd.f32 %v2298, %v2306
    %v2311 = vadd.f32 %v2299, %v2306
    %v2312 = vadd.f32 %v2300, %v2306
    %v2313 = vadd.f32 %v2301, %v2306
    %v2314 = vadd.f32 %v2302, %v2306
    %s2315 = scalar_lea.vmem [#allocation13], 128
    %v2316 = vld [vmem:[%s2315] sm:$0xff]
    %v2317 = vld [vmem:[%s2315 + $0x8] sm:$0xff]
    %v2318 = vld [vmem:[%s2315 + $0x10] sm:$0xff]
    %v2319 = vld [vmem:[%s2315 + $0x18] sm:$0xff]
    %v2320 = vld [vmem:[%s2315 + $0x20] sm:$0xff]
    %v2321 = vld [vmem:[%s2315 + $0x28] sm:$0xff]
    %v2322 = vld [vmem:[%s2315 + $0x30] sm:$0xff]
    %v2323 = vld [vmem:[%s2315 + $0x38] sm:$0xff]
    %v2324 = vld [vmem:[%s2315 + $0x40] sm:$0xff]
    %v2325 = vld [vmem:[%s2315 + $0x48] sm:$0xff]
    %v2326 = vld [vmem:[%s2315 + $0x50] sm:$0xff]
    %v2327 = vld [vmem:[%s2315 + $0x58] sm:$0xff]
    %v2328 = vld [vmem:[%s2315 + $0x60] sm:$0xff]
    %v2329 = vld [vmem:[%s2315 + $0x68] sm:$0xff]
    %v2330 = vld [vmem:[%s2315 + $0x70] sm:$0xff]
    %v2331 = vld [vmem:[%s2315 + $0x78] sm:$0xff]
    %v2332 = vlaneseq
    %v2333 = vshrl.u32 %v2332, 7
    %v2334 = vsub.s32 6, %v2333
    %v2335 = vrot.slane %v1604, %v2334
    %2336 = vmatprep.subr.mxu0 0.0
    %2337 = vmatpush1.msra.mxu0 %v2316
    %2338 = vmatprep.subr.mxu0 0.0
    %2339 = vmatpush1.msra.mxu0 %v2317
    %2340 = vmatprep.subr.mxu0 0.0
    %2341 = vmatpush1.msra.mxu0 %v2318
    %2342 = vmatprep.subr.mxu0 0.0
    %2343 = vmatpush1.msra.mxu0 %v2319
    %2344 = vmatprep.subr.mxu0 0.0
    %2345 = vmatpush1.msra.mxu0 %v2320
    %2346 = vmatprep.subr.mxu0 0.0
    %2347 = vmatpush1.msra.mxu0 %v2321
    %2348 = vmatprep.subr.mxu0 0.0
    %2349 = vmatpush1.msra.mxu0 %v2322
    %2350 = vmatprep.subr.mxu0 0.0
    %2351 = vmatpush1.msra.mxu0 %v2323
    %2352 = vmatprep.subr.mxu0 0.0
    %2353 = vmatpush1.msra.mxu0 %v2324
    %2354 = vmatprep.subr.mxu0 0.0
    %2355 = vmatpush1.msra.mxu0 %v2325
    %2356 = vmatprep.subr.mxu0 0.0
    %2357 = vmatpush1.msra.mxu0 %v2326
    %2358 = vmatprep.subr.mxu0 0.0
    %2359 = vmatpush1.msra.mxu0 %v2327
    %2360 = vmatprep.subr.mxu0 0.0
    %2361 = vmatpush1.msra.mxu0 %v2328
    %2362 = vmatprep.subr.mxu0 0.0
    %2363 = vmatpush1.msra.mxu0 %v2329
    %2364 = vmatprep.subr.mxu0 0.0
    %2365 = vmatpush1.msra.mxu0 %v2330
    %2366 = vmatprep.subr.mxu0 0.0
    %2367 = vmatpush1.msra.mxu0 %v2331
    %2368 = vmatprep.subr.mxu0 0.0
    %2369 = vmatpush1.msra.mxu0 0.0
    %2370 = vmatprep.subr.mxu0 0.0
    %2371 = vmatpush1.msra.mxu0 0.0
    %2372 = vmatprep.subr.mxu0 0.0
    %2373 = vmatpush1.msra.mxu0 0.0
    %2374 = vmatprep.subr.mxu0 0.0
    %2375 = vmatpush1.msra.mxu0 0.0
    %2376 = vmatprep.subr.mxu0 0.0
    %2377 = vmatpush1.msra.mxu0 0.0
    %2378 = vmatprep.subr.mxu0 0.0
    %2379 = vmatpush1.msra.mxu0 0.0
    %2380 = vmatprep.subr.mxu0 0.0
    %2381 = vmatpush1.msra.mxu0 0.0
    %2382 = vmatprep.subr.mxu0 0.0
    %2383 = vmatpush1.msra.mxu0 0.0
    %2384 = vmatprep.subr.mxu0 0.0
    %2385 = vmatpush1.msra.mxu0 0.0
    %2386 = vmatprep.subr.mxu0 0.0
    %2387 = vmatpush1.msra.mxu0 0.0
    %2388 = vmatprep.subr.mxu0 0.0
    %2389 = vmatpush1.msra.mxu0 0.0
    %2390 = vmatprep.subr.mxu0 0.0
    %2391 = vmatpush1.msra.mxu0 0.0
    %2392 = vmatprep.subr.mxu0 0.0
    %2393 = vmatpush1.msra.mxu0 0.0
    %2394 = vmatprep.subr.mxu0 0.0
    %2395 = vmatpush1.msra.mxu0 0.0
    %2396 = vmatprep.subr.mxu0 0.0
    %2397 = vmatpush1.msra.mxu0 0.0
    %2398 = vmatprep.subr.mxu0 0.0
    %2399 = vmatpush1.msra.mxu0 0.0
    %2400 = vmatprep.mubr.f32.mxu0 0.0
    %2401 = vmatmul.mubr.f32.gmra.mrb[0].mxu0 %v2307
    %v2402 = vpop.f32.mrb[0].mxu0
    %v2403 = vadd.f32 %v2335, %v2402
    %v2404 = vpop.f32.mrb[0].mxu0
    %2405 = vmatprep.mubr.f32.mxu0 0.0
    %2406 = vmatmul.mubr.f32.gmra.mrb[0].mxu0 %v2308
    %v2407 = vpop.f32.mrb[0].mxu0
    %v2408 = vadd.f32 %v2335, %v2407
    %v2409 = vpop.f32.mrb[0].mxu0
    %2410 = vmatprep.mubr.f32.mxu0 0.0
    %2411 = vmatmul.mubr.f32.gmra.mrb[0].mxu0 %v2309
    %v2412 = vpop.f32.mrb[0].mxu0
    %v2413 = vadd.f32 %v2335, %v2412
    %v2414 = vpop.f32.mrb[0].mxu0
    %2415 = vmatprep.mubr.f32.mxu0 0.0
    %2416 = vmatmul.mubr.f32.gmra.mrb[0].mxu0 %v2310
    %v2417 = vpop.f32.mrb[0].mxu0
    %v2418 = vadd.f32 %v2335, %v2417
    %v2419 = vpop.f32.mrb[0].mxu0
    %2420 = vmatprep.mubr.f32.mxu0 0.0
    %2421 = vmatmul.mubr.f32.gmra.mrb[0].mxu0 %v2311
    %v2422 = vpop.f32.mrb[0].mxu0
    %v2423 = vadd.f32 %v2335, %v2422
    %v2424 = vpop.f32.mrb[0].mxu0
    %2425 = vmatprep.mubr.f32.mxu0 0.0
    %2426 = vmatmul.mubr.f32.gmra.mrb[0].mxu0 %v2312
    %v2427 = vpop.f32.mrb[0].mxu0
    %v2428 = vadd.f32 %v2335, %v2427
    %v2429 = vpop.f32.mrb[0].mxu0
    %2430 = vmatprep.mubr.f32.mxu0 0.0
    %2431 = vmatmul.mubr.f32.gmra.mrb[0].mxu0 %v2313
    %v2432 = vpop.f32.mrb[0].mxu0
    %v2433 = vadd.f32 %v2335, %v2432
    %v2434 = vpop.f32.mrb[0].mxu0
    %2435 = vmatprep.mubr.f32.mxu0 0.0
    %2436 = vmatmul.mubr.f32.gmra.mrb[0].mxu0 %v2314
    %v2437 = vpop.f32.mrb[0].mxu0
    %v2438 = vadd.f32 %v2335, %v2437
    %v2439 = vpop.f32.mrb[0].mxu0
    %2440 = vdwg.mxu0
    %v2441 = vmax.f32 %v2403, 0.0
    %v2442 = vmax.f32 %v2408, 0.0
    %v2443 = vmax.f32 %v2413, 0.0
    %v2444 = vmax.f32 %v2418, 0.0
    %v2445 = vmax.f32 %v2423, 0.0
    %v2446 = vmax.f32 %v2428, 0.0
    %v2447 = vmax.f32 %v2433, 0.0
    %v2448 = vmax.f32 %v2438, 0.0
    %s2449 = scalar_lea.vmem [#allocation14], 128
    %v2450 = vld [vmem:[%s2449] sm:$0xff]
    %v2451 = vld [vmem:[%s2449 + $0x8] sm:$0xff]
    %v2452 = vld [vmem:[%s2449 + $0x10] sm:$0xff]
    %v2453 = vld [vmem:[%s2449 + $0x18] sm:$0xff]
    %v2454 = vld [vmem:[%s2449 + $0x20] sm:$0xff]
    %v2455 = vld [vmem:[%s2449 + $0x28] sm:$0xff]
    %v2456 = vld [vmem:[%s2449 + $0x30] sm:$0xff]
    %v2457 = vld [vmem:[%s2449 + $0x38] sm:$0xff]
    %v2458 = vld [vmem:[%s2449 + $0x40] sm:$0xff]
    %v2459 = vld [vmem:[%s2449 + $0x48] sm:$0xff]
    %v2460 = vld [vmem:[%s2449 + $0x50] sm:$0xff]
    %v2461 = vld [vmem:[%s2449 + $0x58] sm:$0xff]
    %v2462 = vld [vmem:[%s2449 + $0x60] sm:$0xff]
    %v2463 = vld [vmem:[%s2449 + $0x68] sm:$0xff]
    %v2464 = vld [vmem:[%s2449 + $0x70] sm:$0xff]
    %v2465 = vld [vmem:[%s2449 + $0x78] sm:$0xff]
    %v2466 = vlaneseq
    %v2467 = vshrl.u32 %v2466, 7
    %v2468 = vsub.s32 7, %v2467
    %v2469 = vrot.slane %v1604, %v2468
    %2470 = vmatprep.subr.mxu0 0.0
    %2471 = vmatpush1.msra.mxu0 %v2450
    %2472 = vmatprep.subr.mxu0 0.0
    %2473 = vmatpush1.msra.mxu0 %v2451
    %2474 = vmatprep.subr.mxu0 0.0
    %2475 = vmatpush1.msra.mxu0 %v2452
    %2476 = vmatprep.subr.mxu0 0.0
    %2477 = vmatpush1.msra.mxu0 %v2453
    %2478 = vmatprep.subr.mxu0 0.0
    %2479 = vmatpush1.msra.mxu0 %v2454
    %2480 = vmatprep.subr.mxu0 0.0
    %2481 = vmatpush1.msra.mxu0 %v2455
    %2482 = vmatprep.subr.mxu0 0.0
    %2483 = vmatpush1.msra.mxu0 %v2456
    %2484 = vmatprep.subr.mxu0 0.0
    %2485 = vmatpush1.msra.mxu0 %v2457
    %2486 = vmatprep.subr.mxu0 0.0
    %2487 = vmatpush1.msra.mxu0 %v2458
    %2488 = vmatprep.subr.mxu0 0.0
    %2489 = vmatpush1.msra.mxu0 %v2459
    %2490 = vmatprep.subr.mxu0 0.0
    %2491 = vmatpush1.msra.mxu0 %v2460
    %2492 = vmatprep.subr.mxu0 0.0
    %2493 = vmatpush1.msra.mxu0 %v2461
    %2494 = vmatprep.subr.mxu0 0.0
    %2495 = vmatpush1.msra.mxu0 %v2462
    %2496 = vmatprep.subr.mxu0 0.0
    %2497 = vmatpush1.msra.mxu0 %v2463
    %2498 = vmatprep.subr.mxu0 0.0
    %2499 = vmatpush1.msra.mxu0 %v2464
    %2500 = vmatprep.subr.mxu0 0.0
    %2501 = vmatpush1.msra.mxu0 %v2465
    %2502 = vmatprep.subr.mxu0 0.0
    %2503 = vmatpush1.msra.mxu0 0.0
    %2504 = vmatprep.subr.mxu0 0.0
    %2505 = vmatpush1.msra.mxu0 0.0
    %2506 = vmatprep.subr.mxu0 0.0
    %2507 = vmatpush1.msra.mxu0 0.0
    %2508 = vmatprep.subr.mxu0 0.0
    %2509 = vmatpush1.msra.mxu0 0.0
    %2510 = vmatprep.subr.mxu0 0.0
    %2511 = vmatpush1.msra.mxu0 0.0
    %2512 = vmatprep.subr.mxu0 0.0
    %2513 = vmatpush1.msra.mxu0 0.0
    %2514 = vmatprep.subr.mxu0 0.0
    %2515 = vmatpush1.msra.mxu0 0.0
    %2516 = vmatprep.subr.mxu0 0.0
    %2517 = vmatpush1.msra.mxu0 0.0
    %2518 = vmatprep.subr.mxu0 0.0
    %2519 = vmatpush1.msra.mxu0 0.0
    %2520 = vmatprep.subr.mxu0 0.0
    %2521 = vmatpush1.msra.mxu0 0.0
    %2522 = vmatprep.subr.mxu0 0.0
    %2523 = vmatpush1.msra.mxu0 0.0
    %2524 = vmatprep.subr.mxu0 0.0
    %2525 = vmatpush1.msra.mxu0 0.0
    %2526 = vmatprep.subr.mxu0 0.0
    %2527 = vmatpush1.msra.mxu0 0.0
    %2528 = vmatprep.subr.mxu0 0.0
    %2529 = vmatpush1.msra.mxu0 0.0
    %2530 = vmatprep.subr.mxu0 0.0
    %2531 = vmatpush1.msra.mxu0 0.0
    %2532 = vmatprep.subr.mxu0 0.0
    %2533 = vmatpush1.msra.mxu0 0.0
    %2534 = vmatprep.mubr.f32.mxu0 0.0
    %2535 = vmatmul.mubr.f32.gmra.mrb[0].mxu0 %v2441
    %v2536 = vpop.f32.mrb[0].mxu0
    %v2537 = vadd.f32 %v2469, %v2536
    %v2538 = vpop.f32.mrb[0].mxu0
    %2539 = vmatprep.mubr.f32.mxu0 0.0
    %2540 = vmatmul.mubr.f32.gmra.mrb[0].mxu0 %v2442
    %v2541 = vpop.f32.mrb[0].mxu0
    %v2542 = vadd.f32 %v2469, %v2541
    %v2543 = vpop.f32.mrb[0].mxu0
    %2544 = vmatprep.mubr.f32.mxu0 0.0
    %2545 = vmatmul.mubr.f32.gmra.mrb[0].mxu0 %v2443
    %v2546 = vpop.f32.mrb[0].mxu0
    %v2547 = vadd.f32 %v2469, %v2546
    %v2548 = vpop.f32.mrb[0].mxu0
    %2549 = vmatprep.mubr.f32.mxu0 0.0
    %2550 = vmatmul.mubr.f32.gmra.mrb[0].mxu0 %v2444
    %v2551 = vpop.f32.mrb[0].mxu0
    %v2552 = vadd.f32 %v2469, %v2551
    %v2553 = vpop.f32.mrb[0].mxu0
    %2554 = vmatprep.mubr.f32.mxu0 0.0
    %2555 = vmatmul.mubr.f32.gmra.mrb[0].mxu0 %v2445
    %v2556 = vpop.f32.mrb[0].mxu0
    %v2557 = vadd.f32 %v2469, %v2556
    %v2558 = vpop.f32.mrb[0].mxu0
    %2559 = vmatprep.mubr.f32.mxu0 0.0
    %2560 = vmatmul.mubr.f32.gmra.mrb[0].mxu0 %v2446
    %v2561 = vpop.f32.mrb[0].mxu0
    %v2562 = vadd.f32 %v2469, %v2561
    %v2563 = vpop.f32.mrb[0].mxu0
    %2564 = vmatprep.mubr.f32.mxu0 0.0
    %2565 = vmatmul.mubr.f32.gmra.mrb[0].mxu0 %v2447
    %v2566 = vpop.f32.mrb[0].mxu0
    %v2567 = vadd.f32 %v2469, %v2566
    %v2568 = vpop.f32.mrb[0].mxu0
    %2569 = vmatprep.mubr.f32.mxu0 0.0
    %2570 = vmatmul.mubr.f32.gmra.mrb[0].mxu0 %v2448
    %v2571 = vpop.f32.mrb[0].mxu0
    %v2572 = vadd.f32 %v2469, %v2571
    %v2573 = vpop.f32.mrb[0].mxu0
    %2574 = vdwg.mxu0
    %v2575 = vxor.u32 %v2537, 2147483648
    %v2576 = vxor.u32 %v2542, 2147483648
    %v2577 = vxor.u32 %v2547, 2147483648
    %v2578 = vxor.u32 %v2552, 2147483648
    %v2579 = vxor.u32 %v2557, 2147483648
    %v2580 = vxor.u32 %v2562, 2147483648
    %v2581 = vxor.u32 %v2567, 2147483648
    %v2582 = vxor.u32 %v2572, 2147483648
    %v2583 = vmul.f32 %v2575, 1.442695
    %v2584 = vpow.pop %v2583
    %v2585 = vmul.f32 %v2576, 1.442695
    %v2586 = vpow.pop %v2585
    %v2587 = vmul.f32 %v2577, 1.442695
    %v2588 = vpow.pop %v2587
    %v2589 = vmul.f32 %v2578, 1.442695
    %v2590 = vpow.pop %v2589
    %v2591 = vmul.f32 %v2579, 1.442695
    %v2592 = vpow.pop %v2591
    %v2593 = vmul.f32 %v2580, 1.442695
    %v2594 = vpow.pop %v2593
    %v2595 = vmul.f32 %v2581, 1.442695
    %v2596 = vpow.pop %v2595
    %v2597 = vmul.f32 %v2582, 1.442695
    %v2598 = vpow.pop %v2597
    %v2599 = vadd.f32 %v2584, 1.0
    %v2600 = vadd.f32 %v2586, 1.0
    %v2601 = vadd.f32 %v2588, 1.0
    %v2602 = vadd.f32 %v2590, 1.0
    %v2603 = vadd.f32 %v2592, 1.0
    %v2604 = vadd.f32 %v2594, 1.0
    %v2605 = vadd.f32 %v2596, 1.0
    %v2606 = vadd.f32 %v2598, 1.0
    %v2607 = vrcp.pop %v2599
    %v2608 = vmul.f32 1.0, %v2607
    %v2609 = vrcp.pop %v2600
    %v2610 = vmul.f32 1.0, %v2609
    %v2611 = vrcp.pop %v2601
    %v2612 = vmul.f32 1.0, %v2611
    %v2613 = vrcp.pop %v2602
    %v2614 = vmul.f32 1.0, %v2613
    %v2615 = vrcp.pop %v2603
    %v2616 = vmul.f32 1.0, %v2615
    %v2617 = vrcp.pop %v2604
    %v2618 = vmul.f32 1.0, %v2617
    %v2619 = vrcp.pop %v2605
    %v2620 = vmul.f32 1.0, %v2619
    %v2621 = vrcp.pop %v2606
    %v2622 = vmul.f32 1.0, %v2621
    %v2623 = vmul.f32 %v2307, %v2608
    %v2624 = vmul.f32 %v2308, %v2610
    %v2625 = vmul.f32 %v2309, %v2612
    %v2626 = vmul.f32 %v2310, %v2614
    %v2627 = vmul.f32 %v2311, %v2616
    %v2628 = vmul.f32 %v2312, %v2618
    %v2629 = vmul.f32 %v2313, %v2620
    %v2630 = vmul.f32 %v2314, %v2622
    %v2631 = vadd.f32 %v2623, %v1595
    %v2632 = vadd.f32 %v2624, %v1596
    %v2633 = vadd.f32 %v2625, %v1597
    %v2634 = vadd.f32 %v2626, %v1598
    %v2635 = vadd.f32 %v2627, %v1599
    %v2636 = vadd.f32 %v2628, %v1600
    %v2637 = vadd.f32 %v2629, %v1601
    %v2638 = vadd.f32 %v2630, %v1602
    %v2639 = vmax.f32 %v2631, 0.0
    %v2640 = vmax.f32 %v2632, 0.0
    %v2641 = vmax.f32 %v2633, 0.0
    %v2642 = vmax.f32 %v2634, 0.0
    %v2643 = vmax.f32 %v2635, 0.0
    %v2644 = vmax.f32 %v2636, 0.0
    %v2645 = vmax.f32 %v2637, 0.0
    %v2646 = vmax.f32 %v2638, 0.0
    %s2647 = scalar_lea.vmem [#allocation16], 16
    %v2648 = vld [vmem:[%s2647] sm:$0xff]
    %s2649 = scalar_lea.vmem [#allocation10], 256
    %v2650 = vld [vmem:[%s2649] sm:$0xff]
    %v2651 = vld [vmem:[%s2649 + $0x8] sm:$0xff]
    %v2652 = vld [vmem:[%s2649 + $0x10] sm:$0xff]
    %v2653 = vld [vmem:[%s2649 + $0x18] sm:$0xff]
    %v2654 = vld [vmem:[%s2649 + $0x20] sm:$0xff]
    %v2655 = vld [vmem:[%s2649 + $0x28] sm:$0xff]
    %v2656 = vld [vmem:[%s2649 + $0x30] sm:$0xff]
    %v2657 = vld [vmem:[%s2649 + $0x38] sm:$0xff]
    %v2658 = vld [vmem:[%s2649 + $0x40] sm:$0xff]
    %v2659 = vld [vmem:[%s2649 + $0x48] sm:$0xff]
    %v2660 = vld [vmem:[%s2649 + $0x50] sm:$0xff]
    %v2661 = vld [vmem:[%s2649 + $0x58] sm:$0xff]
    %v2662 = vld [vmem:[%s2649 + $0x60] sm:$0xff]
    %v2663 = vld [vmem:[%s2649 + $0x68] sm:$0xff]
    %v2664 = vld [vmem:[%s2649 + $0x70] sm:$0xff]
    %v2665 = vld [vmem:[%s2649 + $0x78] sm:$0xff]
    %2666 = vmatprep.subr.mxu0 0.0
    %2667 = vmatpush1.msra.mxu0 %v2650
    %2668 = vmatprep.subr.mxu0 0.0
    %2669 = vmatpush1.msra.mxu0 %v2651
    %2670 = vmatprep.subr.mxu0 0.0
    %2671 = vmatpush1.msra.mxu0 %v2652
    %2672 = vmatprep.subr.mxu0 0.0
    %2673 = vmatpush1.msra.mxu0 %v2653
    %2674 = vmatprep.subr.mxu0 0.0
    %2675 = vmatpush1.msra.mxu0 %v2654
    %2676 = vmatprep.subr.mxu0 0.0
    %2677 = vmatpush1.msra.mxu0 %v2655
    %2678 = vmatprep.subr.mxu0 0.0
    %2679 = vmatpush1.msra.mxu0 %v2656
    %2680 = vmatprep.subr.mxu0 0.0
    %2681 = vmatpush1.msra.mxu0 %v2657
    %2682 = vmatprep.subr.mxu0 0.0
    %2683 = vmatpush1.msra.mxu0 %v2658
    %2684 = vmatprep.subr.mxu0 0.0
    %2685 = vmatpush1.msra.mxu0 %v2659
    %2686 = vmatprep.subr.mxu0 0.0
    %2687 = vmatpush1.msra.mxu0 %v2660
    %2688 = vmatprep.subr.mxu0 0.0
    %2689 = vmatpush1.msra.mxu0 %v2661
    %2690 = vmatprep.subr.mxu0 0.0
    %2691 = vmatpush1.msra.mxu0 %v2662
    %2692 = vmatprep.subr.mxu0 0.0
    %2693 = vmatpush1.msra.mxu0 %v2663
    %2694 = vmatprep.subr.mxu0 0.0
    %2695 = vmatpush1.msra.mxu0 %v2664
    %2696 = vmatprep.subr.mxu0 0.0
    %2697 = vmatpush1.msra.mxu0 %v2665
    %2698 = vmatprep.subr.mxu0 0.0
    %2699 = vmatpush1.msra.mxu0 0.0
    %2700 = vmatprep.subr.mxu0 0.0
    %2701 = vmatpush1.msra.mxu0 0.0
    %2702 = vmatprep.subr.mxu0 0.0
    %2703 = vmatpush1.msra.mxu0 0.0
    %2704 = vmatprep.subr.mxu0 0.0
    %2705 = vmatpush1.msra.mxu0 0.0
    %2706 = vmatprep.subr.mxu0 0.0
    %2707 = vmatpush1.msra.mxu0 0.0
    %2708 = vmatprep.subr.mxu0 0.0
    %2709 = vmatpush1.msra.mxu0 0.0
    %2710 = vmatprep.subr.mxu0 0.0
    %2711 = vmatpush1.msra.mxu0 0.0
    %2712 = vmatprep.subr.mxu0 0.0
    %2713 = vmatpush1.msra.mxu0 0.0
    %2714 = vmatprep.subr.mxu0 0.0
    %2715 = vmatpush1.msra.mxu0 0.0
    %2716 = vmatprep.subr.mxu0 0.0
    %2717 = vmatpush1.msra.mxu0 0.0
    %2718 = vmatprep.subr.mxu0 0.0
    %2719 = vmatpush1.msra.mxu0 0.0
    %2720 = vmatprep.subr.mxu0 0.0
    %2721 = vmatpush1.msra.mxu0 0.0
    %2722 = vmatprep.subr.mxu0 0.0
    %2723 = vmatpush1.msra.mxu0 0.0
    %2724 = vmatprep.subr.mxu0 0.0
    %2725 = vmatpush1.msra.mxu0 0.0
    %2726 = vmatprep.subr.mxu0 0.0
    %2727 = vmatpush1.msra.mxu0 0.0
    %2728 = vmatprep.subr.mxu0 0.0
    %2729 = vmatpush1.msra.mxu0 0.0
    %2730 = vmatprep.mubr.f32.mxu0 0.0
    %2731 = vmatmul.mubr.f32.gmra.mrb[0].mxu0 %v2639
    %v2732 = vpop.f32.mrb[0].mxu0
    %v2733 = vadd.f32 0.0, %v2732
    %v2734 = vpop.f32.mrb[0].mxu0
    %2735 = vmatprep.mubr.f32.mxu0 0.0
    %2736 = vmatmul.mubr.f32.gmra.mrb[0].mxu0 %v2640
    %v2737 = vpop.f32.mrb[0].mxu0
    %v2738 = vadd.f32 0.0, %v2737
    %v2739 = vpop.f32.mrb[0].mxu0
    %2740 = vmatprep.mubr.f32.mxu0 0.0
    %2741 = vmatmul.mubr.f32.gmra.mrb[0].mxu0 %v2641
    %v2742 = vpop.f32.mrb[0].mxu0
    %v2743 = vadd.f32 0.0, %v2742
    %v2744 = vpop.f32.mrb[0].mxu0
    %2745 = vmatprep.mubr.f32.mxu0 0.0
    %2746 = vmatmul.mubr.f32.gmra.mrb[0].mxu0 %v2642
    %v2747 = vpop.f32.mrb[0].mxu0
    %v2748 = vadd.f32 0.0, %v2747
    %v2749 = vpop.f32.mrb[0].mxu0
    %2750 = vmatprep.mubr.f32.mxu0 0.0
    %2751 = vmatmul.mubr.f32.gmra.mrb[0].mxu0 %v2643
    %v2752 = vpop.f32.mrb[0].mxu0
    %v2753 = vadd.f32 0.0, %v2752
    %v2754 = vpop.f32.mrb[0].mxu0
    %2755 = vmatprep.mubr.f32.mxu0 0.0
    %2756 = vmatmul.mubr.f32.gmra.mrb[0].mxu0 %v2644
    %v2757 = vpop.f32.mrb[0].mxu0
    %v2758 = vadd.f32 0.0, %v2757
    %v2759 = vpop.f32.mrb[0].mxu0
    %2760 = vmatprep.mubr.f32.mxu0 0.0
    %2761 = vmatmul.mubr.f32.gmra.mrb[0].mxu0 %v2645
    %v2762 = vpop.f32.mrb[0].mxu0
    %v2763 = vadd.f32 0.0, %v2762
    %v2764 = vpop.f32.mrb[0].mxu0
    %2765 = vmatprep.mubr.f32.mxu0 0.0
    %2766 = vmatmul.mubr.f32.gmra.mrb[0].mxu0 %v2646
    %v2767 = vpop.f32.mrb[0].mxu0
    %v2768 = vadd.f32 0.0, %v2767
    %v2769 = vpop.f32.mrb[0].mxu0
    %2770 = vdwg.mxu0
    %v2771 = vlaneseq
    %v2772 = vshrl.u32 %v2771, 7
    %v2773 = vsub.s32 0, %v2772
    %v2774 = vrot.slane %v2648, %v2773
    %2775 = vmatprep.subr.mxu0 0.0
    %2776 = vmatpush1.msra.mxu0 %v2733
    %2777 = vmatprep.subr.mxu0 0.0
    %2778 = vmatpush1.msra.mxu0 %v2738
    %2779 = vmatprep.subr.mxu0 0.0
    %2780 = vmatpush1.msra.mxu0 %v2743
    %2781 = vmatprep.subr.mxu0 0.0
    %2782 = vmatpush1.msra.mxu0 %v2748
    %2783 = vmatprep.subr.mxu0 0.0
    %2784 = vmatpush1.msra.mxu0 %v2753
    %2785 = vmatprep.subr.mxu0 0.0
    %2786 = vmatpush1.msra.mxu0 %v2758
    %2787 = vmatprep.subr.mxu0 0.0
    %2788 = vmatpush1.msra.mxu0 %v2763
    %2789 = vmatprep.subr.mxu0 0.0
    %2790 = vmatpush1.msra.mxu0 %v2768
    %2791 = vmatprep.subr.mxu0 0.0
    %2792 = vmatpush1.msra.mxu0 0.0
    %2793 = vmatprep.subr.mxu0 0.0
    %2794 = vmatpush1.msra.mxu0 0.0
    %2795 = vmatprep.subr.mxu0 0.0
    %2796 = vmatpush1.msra.mxu0 0.0
    %2797 = vmatprep.subr.mxu0 0.0
    %2798 = vmatpush1.msra.mxu0 0.0
    %2799 = vmatprep.subr.mxu0 0.0
    %2800 = vmatpush1.msra.mxu0 0.0
    %2801 = vmatprep.subr.mxu0 0.0
    %2802 = vmatpush1.msra.mxu0 0.0
    %2803 = vmatprep.subr.mxu0 0.0
    %2804 = vmatpush1.msra.mxu0 0.0
    %2805 = vmatprep.subr.mxu0 0.0
    %2806 = vmatpush1.msra.mxu0 0.0
    %2807 = vmatprep.subr.mxu0 0.0
    %2808 = vmatpush1.msra.mxu0 0.0
    %2809 = vmatprep.subr.mxu0 0.0
    %2810 = vmatpush1.msra.mxu0 0.0
    %2811 = vmatprep.subr.mxu0 0.0
    %2812 = vmatpush1.msra.mxu0 0.0
    %2813 = vmatprep.subr.mxu0 0.0
    %2814 = vmatpush1.msra.mxu0 0.0
    %2815 = vmatprep.subr.mxu0 0.0
    %2816 = vmatpush1.msra.mxu0 0.0
    %2817 = vmatprep.subr.mxu0 0.0
    %2818 = vmatpush1.msra.mxu0 0.0
    %2819 = vmatprep.subr.mxu0 0.0
    %2820 = vmatpush1.msra.mxu0 0.0
    %2821 = vmatprep.subr.mxu0 0.0
    %2822 = vmatpush1.msra.mxu0 0.0
    %2823 = vmatprep.subr.mxu0 0.0
    %2824 = vmatpush1.msra.mxu0 0.0
    %2825 = vmatprep.subr.mxu0 0.0
    %2826 = vmatpush1.msra.mxu0 0.0
    %2827 = vmatprep.subr.mxu0 0.0
    %2828 = vmatpush1.msra.mxu0 0.0
    %2829 = vmatprep.subr.mxu0 0.0
    %2830 = vmatpush1.msra.mxu0 0.0
    %2831 = vmatprep.subr.mxu0 0.0
    %2832 = vmatpush1.msra.mxu0 0.0
    %2833 = vmatprep.subr.mxu0 0.0
    %2834 = vmatpush1.msra.mxu0 0.0
    %2835 = vmatprep.subr.mxu0 0.0
    %2836 = vmatpush1.msra.mxu0 0.0
    %2837 = vmatprep.subr.mxu0 0.0
    %2838 = vmatpush1.msra.mxu0 0.0
    %2839 = vmatprep.mubr.f32.mxu0 0.0
    %2840 = vmatmul.mubr.f32.gmra.mrb[0].mxu0 %v306
    %v2841 = vpop.f32.mrb[0].mxu0
    %v2842 = vadd.f32 %v2774, %v2841
    %v2843 = vpop.f32.mrb[0].mxu0
    %2844 = vmatprep.mubr.f32.mxu0 0.0
    %2845 = vmatmul.mubr.f32.gmra.mrb[0].mxu0 %v309
    %v2846 = vpop.f32.mrb[0].mxu0
    %v2847 = vadd.f32 %v2774, %v2846
    %v2848 = vpop.f32.mrb[0].mxu0
    %2849 = vmatprep.mubr.f32.mxu0 0.0
    %2850 = vmatmul.mubr.f32.gmra.mrb[0].mxu0 %v312
    %v2851 = vpop.f32.mrb[0].mxu0
    %v2852 = vadd.f32 %v2774, %v2851
    %v2853 = vpop.f32.mrb[0].mxu0
    %2854 = vmatprep.mubr.f32.mxu0 0.0
    %2855 = vmatmul.mubr.f32.gmra.mrb[0].mxu0 %v315
    %v2856 = vpop.f32.mrb[0].mxu0
    %v2857 = vadd.f32 %v2774, %v2856
    %v2858 = vpop.f32.mrb[0].mxu0
    %2859 = vmatprep.mubr.f32.mxu0 0.0
    %2860 = vmatmul.mubr.f32.gmra.mrb[0].mxu0 %v318
    %v2861 = vpop.f32.mrb[0].mxu0
    %v2862 = vadd.f32 %v2774, %v2861
    %v2863 = vpop.f32.mrb[0].mxu0
    %2864 = vmatprep.mubr.f32.mxu0 0.0
    %2865 = vmatmul.mubr.f32.gmra.mrb[0].mxu0 %v321
    %v2866 = vpop.f32.mrb[0].mxu0
    %v2867 = vadd.f32 %v2774, %v2866
    %v2868 = vpop.f32.mrb[0].mxu0
    %2869 = vmatprep.mubr.f32.mxu0 0.0
    %2870 = vmatmul.mubr.f32.gmra.mrb[0].mxu0 %v324
    %v2871 = vpop.f32.mrb[0].mxu0
    %v2872 = vadd.f32 %v2774, %v2871
    %v2873 = vpop.f32.mrb[0].mxu0
    %2874 = vmatprep.mubr.f32.mxu0 0.0
    %2875 = vmatmul.mubr.f32.gmra.mrb[0].mxu0 %v327
    %v2876 = vpop.f32.mrb[0].mxu0
    %v2877 = vadd.f32 %v2774, %v2876
    %v2878 = vpop.f32.mrb[0].mxu0
    %2879 = vdwg.mxu0
    %2880 = vadd.xlane.f32.xlu0 %v2842
    %v2881 = vpop.xlane.xlu0 %2880
    %2882 = vadd.xlane.f32.xlu0 %v2847
    %v2883 = vpop.xlane.xlu0 %2882
    %2884 = vadd.xlane.f32.xlu0 %v2852
    %v2885 = vpop.xlane.xlu0 %2884
    %2886 = vadd.xlane.f32.xlu0 %v2857
    %v2887 = vpop.xlane.xlu0 %2886
    %2888 = vadd.xlane.f32.xlu0 %v2862
    %v2889 = vpop.xlane.xlu0 %2888
    %2890 = vadd.xlane.f32.xlu0 %v2867
    %v2891 = vpop.xlane.xlu0 %2890
    %2892 = vadd.xlane.f32.xlu0 %v2872
    %v2893 = vpop.xlane.xlu0 %2892
    %2894 = vadd.xlane.f32.xlu0 %v2877
    %v2895 = vpop.xlane.xlu0 %2894
    %v2896 = vmul.f32 %v2881, 0.03125
    %v2897 = vmul.f32 %v2883, 0.03125
    %v2898 = vmul.f32 %v2885, 0.03125
    %v2899 = vmul.f32 %v2887, 0.03125
    %v2900 = vmul.f32 %v2889, 0.03125
    %v2901 = vmul.f32 %v2891, 0.03125
    %v2902 = vmul.f32 %v2893, 0.03125
    %v2903 = vmul.f32 %v2895, 0.03125
    %v2904 = vsub.f32 %v2842, %v2896
    %v2905 = vsub.f32 %v2847, %v2897
    %v2906 = vsub.f32 %v2852, %v2898
    %v2907 = vsub.f32 %v2857, %v2899
    %v2908 = vsub.f32 %v2862, %v2900
    %v2909 = vsub.f32 %v2867, %v2901
    %v2910 = vsub.f32 %v2872, %v2902
    %v2911 = vsub.f32 %v2877, %v2903
    %v2912 = vmul.f32 %v2904, %v2904
    %v2913 = vmul.f32 %v2905, %v2905
    %v2914 = vmul.f32 %v2906, %v2906
    %v2915 = vmul.f32 %v2907, %v2907
    %v2916 = vmul.f32 %v2908, %v2908
    %v2917 = vmul.f32 %v2909, %v2909
    %v2918 = vmul.f32 %v2910, %v2910
    %v2919 = vmul.f32 %v2911, %v2911
    %v2920 = vsel %vm475, %v2912, 0.0
    %v2921 = vsel %vm475, %v2913, 0.0
    %v2922 = vsel %vm475, %v2914, 0.0
    %v2923 = vsel %vm475, %v2915, 0.0
    %v2924 = vsel %vm475, %v2916, 0.0
    %v2925 = vsel %vm475, %v2917, 0.0
    %v2926 = vsel %vm475, %v2918, 0.0
    %v2927 = vsel %vm475, %v2919, 0.0
    %2928 = vadd.xlane.f32.xlu0 %v2920
    %v2929 = vpop.xlane.xlu0 %2928
    %2930 = vadd.xlane.f32.xlu0 %v2921
    %v2931 = vpop.xlane.xlu0 %2930
    %2932 = vadd.xlane.f32.xlu0 %v2922
    %v2933 = vpop.xlane.xlu0 %2932
    %2934 = vadd.xlane.f32.xlu0 %v2923
    %v2935 = vpop.xlane.xlu0 %2934
    %2936 = vadd.xlane.f32.xlu0 %v2924
    %v2937 = vpop.xlane.xlu0 %2936
    %2938 = vadd.xlane.f32.xlu0 %v2925
    %v2939 = vpop.xlane.xlu0 %2938
    %2940 = vadd.xlane.f32.xlu0 %v2926
    %v2941 = vpop.xlane.xlu0 %2940
    %2942 = vadd.xlane.f32.xlu0 %v2927
    %v2943 = vpop.xlane.xlu0 %2942
    %v2944 = vmul.f32 %v2929, 0.03125
    %v2945 = vmul.f32 %v2931, 0.03125
    %v2946 = vmul.f32 %v2933, 0.03125
    %v2947 = vmul.f32 %v2935, 0.03125
    %v2948 = vmul.f32 %v2937, 0.03125
    %v2949 = vmul.f32 %v2939, 0.03125
    %v2950 = vmul.f32 %v2941, 0.03125
    %v2951 = vmul.f32 %v2943, 0.03125
    %v2952 = vadd.f32 %v2944, 1e-05
    %v2953 = vadd.f32 %v2945, 1e-05
    %v2954 = vadd.f32 %v2946, 1e-05
    %v2955 = vadd.f32 %v2947, 1e-05
    %v2956 = vadd.f32 %v2948, 1e-05
    %v2957 = vadd.f32 %v2949, 1e-05
    %v2958 = vadd.f32 %v2950, 1e-05
    %v2959 = vadd.f32 %v2951, 1e-05
    %v2960 = vrsqrt.pop %v2952
    %v2961 = vrsqrt.pop %v2953
    %v2962 = vrsqrt.pop %v2954
    %v2963 = vrsqrt.pop %v2955
    %v2964 = vrsqrt.pop %v2956
    %v2965 = vrsqrt.pop %v2957
    %v2966 = vrsqrt.pop %v2958
    %v2967 = vrsqrt.pop %v2959
    %v2968 = vmul.f32 %v2904, %v2960
    %v2969 = vmul.f32 %v2905, %v2961
    %v2970 = vmul.f32 %v2906, %v2962
    %v2971 = vmul.f32 %v2907, %v2963
    %v2972 = vmul.f32 %v2908, %v2964
    %v2973 = vmul.f32 %v2909, %v2965
    %v2974 = vmul.f32 %v2910, %v2966
    %v2975 = vmul.f32 %v2911, %v2967
    %v2976 = vlaneseq
    %v2977 = vshrl.u32 %v2976, 7
    %v2978 = vsub.s32 1, %v2977
    %v2979 = vrot.slane %v2648, %v2978
    %v2980 = vmul.f32 %v2968, %v2979
    %v2981 = vmul.f32 %v2969, %v2979
    %v2982 = vmul.f32 %v2970, %v2979
    %v2983 = vmul.f32 %v2971, %v2979
    %v2984 = vmul.f32 %v2972, %v2979
    %v2985 = vmul.f32 %v2973, %v2979
    %v2986 = vmul.f32 %v2974, %v2979
    %v2987 = vmul.f32 %v2975, %v2979
    %v2988 = vlaneseq
    %v2989 = vshrl.u32 %v2988, 7
    %v2990 = vsub.s32 2, %v2989
    %v2991 = vrot.slane %v2648, %v2990
    %v2992 = vadd.f32 %v2980, %v2991
    %v2993 = vadd.f32 %v2981, %v2991
    %v2994 = vadd.f32 %v2982, %v2991
    %v2995 = vadd.f32 %v2983, %v2991
    %v2996 = vadd.f32 %v2984, %v2991
    %v2997 = vadd.f32 %v2985, %v2991
    %v2998 = vadd.f32 %v2986, %v2991
    %v2999 = vadd.f32 %v2987, %v2991
    %v3000 = vmax.f32 %v2992, 0.0
    %v3001 = vmax.f32 %v2993, 0.0
    %v3002 = vmax.f32 %v2994, 0.0
    %v3003 = vmax.f32 %v2995, 0.0
    %v3004 = vmax.f32 %v2996, 0.0
    %v3005 = vmax.f32 %v2997, 0.0
    %v3006 = vmax.f32 %v2998, 0.0
    %v3007 = vmax.f32 %v2999, 0.0
    %s3008 = scalar_lea.vmem [#allocation11], 256
    %v3009 = vld [vmem:[%s3008] sm:$0xff]
    %v3010 = vld [vmem:[%s3008 + $0x8] sm:$0xff]
    %v3011 = vld [vmem:[%s3008 + $0x10] sm:$0xff]
    %v3012 = vld [vmem:[%s3008 + $0x18] sm:$0xff]
    %v3013 = vld [vmem:[%s3008 + $0x20] sm:$0xff]
    %v3014 = vld [vmem:[%s3008 + $0x28] sm:$0xff]
    %v3015 = vld [vmem:[%s3008 + $0x30] sm:$0xff]
    %v3016 = vld [vmem:[%s3008 + $0x38] sm:$0xff]
    %v3017 = vld [vmem:[%s3008 + $0x40] sm:$0xff]
    %v3018 = vld [vmem:[%s3008 + $0x48] sm:$0xff]
    %v3019 = vld [vmem:[%s3008 + $0x50] sm:$0xff]
    %v3020 = vld [vmem:[%s3008 + $0x58] sm:$0xff]
    %v3021 = vld [vmem:[%s3008 + $0x60] sm:$0xff]
    %v3022 = vld [vmem:[%s3008 + $0x68] sm:$0xff]
    %v3023 = vld [vmem:[%s3008 + $0x70] sm:$0xff]
    %v3024 = vld [vmem:[%s3008 + $0x78] sm:$0xff]
    %3025 = vmatprep.subr.mxu0 0.0
    %3026 = vmatpush1.msra.mxu0 %v3009
    %3027 = vmatprep.subr.mxu0 0.0
    %3028 = vmatpush1.msra.mxu0 %v3010
    %3029 = vmatprep.subr.mxu0 0.0
    %3030 = vmatpush1.msra.mxu0 %v3011
    %3031 = vmatprep.subr.mxu0 0.0
    %3032 = vmatpush1.msra.mxu0 %v3012
    %3033 = vmatprep.subr.mxu0 0.0
    %3034 = vmatpush1.msra.mxu0 %v3013
    %3035 = vmatprep.subr.mxu0 0.0
    %3036 = vmatpush1.msra.mxu0 %v3014
    %3037 = vmatprep.subr.mxu0 0.0
    %3038 = vmatpush1.msra.mxu0 %v3015
    %3039 = vmatprep.subr.mxu0 0.0
    %3040 = vmatpush1.msra.mxu0 %v3016
    %3041 = vmatprep.subr.mxu0 0.0
    %3042 = vmatpush1.msra.mxu0 %v3017
    %3043 = vmatprep.subr.mxu0 0.0
    %3044 = vmatpush1.msra.mxu0 %v3018
    %3045 = vmatprep.subr.mxu0 0.0
    %3046 = vmatpush1.msra.mxu0 %v3019
    %3047 = vmatprep.subr.mxu0 0.0
    %3048 = vmatpush1.msra.mxu0 %v3020
    %3049 = vmatprep.subr.mxu0 0.0
    %3050 = vmatpush1.msra.mxu0 %v3021
    %3051 = vmatprep.subr.mxu0 0.0
    %3052 = vmatpush1.msra.mxu0 %v3022
    %3053 = vmatprep.subr.mxu0 0.0
    %3054 = vmatpush1.msra.mxu0 %v3023
    %3055 = vmatprep.subr.mxu0 0.0
    %3056 = vmatpush1.msra.mxu0 %v3024
    %3057 = vmatprep.subr.mxu0 0.0
    %3058 = vmatpush1.msra.mxu0 0.0
    %3059 = vmatprep.subr.mxu0 0.0
    %3060 = vmatpush1.msra.mxu0 0.0
    %3061 = vmatprep.subr.mxu0 0.0
    %3062 = vmatpush1.msra.mxu0 0.0
    %3063 = vmatprep.subr.mxu0 0.0
    %3064 = vmatpush1.msra.mxu0 0.0
    %3065 = vmatprep.subr.mxu0 0.0
    %3066 = vmatpush1.msra.mxu0 0.0
    %3067 = vmatprep.subr.mxu0 0.0
    %3068 = vmatpush1.msra.mxu0 0.0
    %3069 = vmatprep.subr.mxu0 0.0
    %3070 = vmatpush1.msra.mxu0 0.0
    %3071 = vmatprep.subr.mxu0 0.0
    %3072 = vmatpush1.msra.mxu0 0.0
    %3073 = vmatprep.subr.mxu0 0.0
    %3074 = vmatpush1.msra.mxu0 0.0
    %3075 = vmatprep.subr.mxu0 0.0
    %3076 = vmatpush1.msra.mxu0 0.0
    %3077 = vmatprep.subr.mxu0 0.0
    %3078 = vmatpush1.msra.mxu0 0.0
    %3079 = vmatprep.subr.mxu0 0.0
    %3080 = vmatpush1.msra.mxu0 0.0
    %3081 = vmatprep.subr.mxu0 0.0
    %3082 = vmatpush1.msra.mxu0 0.0
    %3083 = vmatprep.subr.mxu0 0.0
    %3084 = vmatpush1.msra.mxu0 0.0
    %3085 = vmatprep.subr.mxu0 0.0
    %3086 = vmatpush1.msra.mxu0 0.0
    %3087 = vmatprep.subr.mxu0 0.0
    %3088 = vmatpush1.msra.mxu0 0.0
    %3089 = vmatprep.mubr.f32.mxu0 0.0
    %3090 = vmatmul.mubr.f32.gmra.mrb[0].mxu0 %v3000
    %v3091 = vpop.f32.mrb[0].mxu0
    %v3092 = vadd.f32 0.0, %v3091
    %v3093 = vpop.f32.mrb[0].mxu0
    %3094 = vmatprep.mubr.f32.mxu0 0.0
    %3095 = vmatmul.mubr.f32.gmra.mrb[0].mxu0 %v3001
    %v3096 = vpop.f32.mrb[0].mxu0
    %v3097 = vadd.f32 0.0, %v3096
    %v3098 = vpop.f32.mrb[0].mxu0
    %3099 = vmatprep.mubr.f32.mxu0 0.0
    %3100 = vmatmul.mubr.f32.gmra.mrb[0].mxu0 %v3002
    %v3101 = vpop.f32.mrb[0].mxu0
    %v3102 = vadd.f32 0.0, %v3101
    %v3103 = vpop.f32.mrb[0].mxu0
    %3104 = vmatprep.mubr.f32.mxu0 0.0
    %3105 = vmatmul.mubr.f32.gmra.mrb[0].mxu0 %v3003
    %v3106 = vpop.f32.mrb[0].mxu0
    %v3107 = vadd.f32 0.0, %v3106
    %v3108 = vpop.f32.mrb[0].mxu0
    %3109 = vmatprep.mubr.f32.mxu0 0.0
    %3110 = vmatmul.mubr.f32.gmra.mrb[0].mxu0 %v3004
    %v3111 = vpop.f32.mrb[0].mxu0
    %v3112 = vadd.f32 0.0, %v3111
    %v3113 = vpop.f32.mrb[0].mxu0
    %3114 = vmatprep.mubr.f32.mxu0 0.0
    %3115 = vmatmul.mubr.f32.gmra.mrb[0].mxu0 %v3005
    %v3116 = vpop.f32.mrb[0].mxu0
    %v3117 = vadd.f32 0.0, %v3116
    %v3118 = vpop.f32.mrb[0].mxu0
    %3119 = vmatprep.mubr.f32.mxu0 0.0
    %3120 = vmatmul.mubr.f32.gmra.mrb[0].mxu0 %v3006
    %v3121 = vpop.f32.mrb[0].mxu0
    %v3122 = vadd.f32 0.0, %v3121
    %v3123 = vpop.f32.mrb[0].mxu0
    %3124 = vmatprep.mubr.f32.mxu0 0.0
    %3125 = vmatmul.mubr.f32.gmra.mrb[0].mxu0 %v3007
    %v3126 = vpop.f32.mrb[0].mxu0
    %v3127 = vadd.f32 0.0, %v3126
    %v3128 = vpop.f32.mrb[0].mxu0
    %3129 = vdwg.mxu0
    %v3130 = vlaneseq
    %v3131 = vshrl.u32 %v3130, 7
    %v3132 = vsub.s32 3, %v3131
    %v3133 = vrot.slane %v2648, %v3132
    %3134 = vmatprep.subr.mxu0 0.0
    %3135 = vmatpush1.msra.mxu0 %v3092
    %3136 = vmatprep.subr.mxu0 0.0
    %3137 = vmatpush1.msra.mxu0 %v3097
    %3138 = vmatprep.subr.mxu0 0.0
    %3139 = vmatpush1.msra.mxu0 %v3102
    %3140 = vmatprep.subr.mxu0 0.0
    %3141 = vmatpush1.msra.mxu0 %v3107
    %3142 = vmatprep.subr.mxu0 0.0
    %3143 = vmatpush1.msra.mxu0 %v3112
    %3144 = vmatprep.subr.mxu0 0.0
    %3145 = vmatpush1.msra.mxu0 %v3117
    %3146 = vmatprep.subr.mxu0 0.0
    %3147 = vmatpush1.msra.mxu0 %v3122
    %3148 = vmatprep.subr.mxu0 0.0
    %3149 = vmatpush1.msra.mxu0 %v3127
    %3150 = vmatprep.subr.mxu0 0.0
    %3151 = vmatpush1.msra.mxu0 0.0
    %3152 = vmatprep.subr.mxu0 0.0
    %3153 = vmatpush1.msra.mxu0 0.0
    %3154 = vmatprep.subr.mxu0 0.0
    %3155 = vmatpush1.msra.mxu0 0.0
    %3156 = vmatprep.subr.mxu0 0.0
    %3157 = vmatpush1.msra.mxu0 0.0
    %3158 = vmatprep.subr.mxu0 0.0
    %3159 = vmatpush1.msra.mxu0 0.0
    %3160 = vmatprep.subr.mxu0 0.0
    %3161 = vmatpush1.msra.mxu0 0.0
    %3162 = vmatprep.subr.mxu0 0.0
    %3163 = vmatpush1.msra.mxu0 0.0
    %3164 = vmatprep.subr.mxu0 0.0
    %3165 = vmatpush1.msra.mxu0 0.0
    %3166 = vmatprep.subr.mxu0 0.0
    %3167 = vmatpush1.msra.mxu0 0.0
    %3168 = vmatprep.subr.mxu0 0.0
    %3169 = vmatpush1.msra.mxu0 0.0
    %3170 = vmatprep.subr.mxu0 0.0
    %3171 = vmatpush1.msra.mxu0 0.0
    %3172 = vmatprep.subr.mxu0 0.0
    %3173 = vmatpush1.msra.mxu0 0.0
    %3174 = vmatprep.subr.mxu0 0.0
    %3175 = vmatpush1.msra.mxu0 0.0
    %3176 = vmatprep.subr.mxu0 0.0
    %3177 = vmatpush1.msra.mxu0 0.0
    %3178 = vmatprep.subr.mxu0 0.0
    %3179 = vmatpush1.msra.mxu0 0.0
    %3180 = vmatprep.subr.mxu0 0.0
    %3181 = vmatpush1.msra.mxu0 0.0
    %3182 = vmatprep.subr.mxu0 0.0
    %3183 = vmatpush1.msra.mxu0 0.0
    %3184 = vmatprep.subr.mxu0 0.0
    %3185 = vmatpush1.msra.mxu0 0.0
    %3186 = vmatprep.subr.mxu0 0.0
    %3187 = vmatpush1.msra.mxu0 0.0
    %3188 = vmatprep.subr.mxu0 0.0
    %3189 = vmatpush1.msra.mxu0 0.0
    %3190 = vmatprep.subr.mxu0 0.0
    %3191 = vmatpush1.msra.mxu0 0.0
    %3192 = vmatprep.subr.mxu0 0.0
    %3193 = vmatpush1.msra.mxu0 0.0
    %3194 = vmatprep.subr.mxu0 0.0
    %3195 = vmatpush1.msra.mxu0 0.0
    %3196 = vmatprep.subr.mxu0 0.0
    %3197 = vmatpush1.msra.mxu0 0.0
    %3198 = vmatprep.mubr.f32.mxu0 0.0
    %3199 = vmatmul.mubr.f32.gmra.mrb[0].mxu0 %v306
    %v3200 = vpop.f32.mrb[0].mxu0
    %v3201 = vadd.f32 %v3133, %v3200
    %v3202 = vpop.f32.mrb[0].mxu0
    %3203 = vmatprep.mubr.f32.mxu0 0.0
    %3204 = vmatmul.mubr.f32.gmra.mrb[0].mxu0 %v309
    %v3205 = vpop.f32.mrb[0].mxu0
    %v3206 = vadd.f32 %v3133, %v3205
    %v3207 = vpop.f32.mrb[0].mxu0
    %3208 = vmatprep.mubr.f32.mxu0 0.0
    %3209 = vmatmul.mubr.f32.gmra.mrb[0].mxu0 %v312
    %v3210 = vpop.f32.mrb[0].mxu0
    %v3211 = vadd.f32 %v3133, %v3210
    %v3212 = vpop.f32.mrb[0].mxu0
    %3213 = vmatprep.mubr.f32.mxu0 0.0
    %3214 = vmatmul.mubr.f32.gmra.mrb[0].mxu0 %v315
    %v3215 = vpop.f32.mrb[0].mxu0
    %v3216 = vadd.f32 %v3133, %v3215
    %v3217 = vpop.f32.mrb[0].mxu0
    %3218 = vmatprep.mubr.f32.mxu0 0.0
    %3219 = vmatmul.mubr.f32.gmra.mrb[0].mxu0 %v318
    %v3220 = vpop.f32.mrb[0].mxu0
    %v3221 = vadd.f32 %v3133, %v3220
    %v3222 = vpop.f32.mrb[0].mxu0
    %3223 = vmatprep.mubr.f32.mxu0 0.0
    %3224 = vmatmul.mubr.f32.gmra.mrb[0].mxu0 %v321
    %v3225 = vpop.f32.mrb[0].mxu0
    %v3226 = vadd.f32 %v3133, %v3225
    %v3227 = vpop.f32.mrb[0].mxu0
    %3228 = vmatprep.mubr.f32.mxu0 0.0
    %3229 = vmatmul.mubr.f32.gmra.mrb[0].mxu0 %v324
    %v3230 = vpop.f32.mrb[0].mxu0
    %v3231 = vadd.f32 %v3133, %v3230
    %v3232 = vpop.f32.mrb[0].mxu0
    %3233 = vmatprep.mubr.f32.mxu0 0.0
    %3234 = vmatmul.mubr.f32.gmra.mrb[0].mxu0 %v327
    %v3235 = vpop.f32.mrb[0].mxu0
    %v3236 = vadd.f32 %v3133, %v3235
    %v3237 = vpop.f32.mrb[0].mxu0
    %3238 = vdwg.mxu0
    %3239 = vadd.xlane.f32.xlu0 %v3201
    %v3240 = vpop.xlane.xlu0 %3239
    %3241 = vadd.xlane.f32.xlu0 %v3206
    %v3242 = vpop.xlane.xlu0 %3241
    %3243 = vadd.xlane.f32.xlu0 %v3211
    %v3244 = vpop.xlane.xlu0 %3243
    %3245 = vadd.xlane.f32.xlu0 %v3216
    %v3246 = vpop.xlane.xlu0 %3245
    %3247 = vadd.xlane.f32.xlu0 %v3221
    %v3248 = vpop.xlane.xlu0 %3247
    %3249 = vadd.xlane.f32.xlu0 %v3226
    %v3250 = vpop.xlane.xlu0 %3249
    %3251 = vadd.xlane.f32.xlu0 %v3231
    %v3252 = vpop.xlane.xlu0 %3251
    %3253 = vadd.xlane.f32.xlu0 %v3236
    %v3254 = vpop.xlane.xlu0 %3253
    %v3255 = vmul.f32 %v3240, 0.03125
    %v3256 = vmul.f32 %v3242, 0.03125
    %v3257 = vmul.f32 %v3244, 0.03125
    %v3258 = vmul.f32 %v3246, 0.03125
    %v3259 = vmul.f32 %v3248, 0.03125
    %v3260 = vmul.f32 %v3250, 0.03125
    %v3261 = vmul.f32 %v3252, 0.03125
    %v3262 = vmul.f32 %v3254, 0.03125
    %v3263 = vsub.f32 %v3201, %v3255
    %v3264 = vsub.f32 %v3206, %v3256
    %v3265 = vsub.f32 %v3211, %v3257
    %v3266 = vsub.f32 %v3216, %v3258
    %v3267 = vsub.f32 %v3221, %v3259
    %v3268 = vsub.f32 %v3226, %v3260
    %v3269 = vsub.f32 %v3231, %v3261
    %v3270 = vsub.f32 %v3236, %v3262
    %v3271 = vmul.f32 %v3263, %v3263
    %v3272 = vmul.f32 %v3264, %v3264
    %v3273 = vmul.f32 %v3265, %v3265
    %v3274 = vmul.f32 %v3266, %v3266
    %v3275 = vmul.f32 %v3267, %v3267
    %v3276 = vmul.f32 %v3268, %v3268
    %v3277 = vmul.f32 %v3269, %v3269
    %v3278 = vmul.f32 %v3270, %v3270
    %v3279 = vsel %vm475, %v3271, 0.0
    %v3280 = vsel %vm475, %v3272, 0.0
    %v3281 = vsel %vm475, %v3273, 0.0
    %v3282 = vsel %vm475, %v3274, 0.0
    %v3283 = vsel %vm475, %v3275, 0.0
    %v3284 = vsel %vm475, %v3276, 0.0
    %v3285 = vsel %vm475, %v3277, 0.0
    %v3286 = vsel %vm475, %v3278, 0.0
    %3287 = vadd.xlane.f32.xlu0 %v3279
    %v3288 = vpop.xlane.xlu0 %3287
    %3289 = vadd.xlane.f32.xlu0 %v3280
    %v3290 = vpop.xlane.xlu0 %3289
    %3291 = vadd.xlane.f32.xlu0 %v3281
    %v3292 = vpop.xlane.xlu0 %3291
    %3293 = vadd.xlane.f32.xlu0 %v3282
    %v3294 = vpop.xlane.xlu0 %3293
    %3295 = vadd.xlane.f32.xlu0 %v3283
    %v3296 = vpop.xlane.xlu0 %3295
    %3297 = vadd.xlane.f32.xlu0 %v3284
    %v3298 = vpop.xlane.xlu0 %3297
    %3299 = vadd.xlane.f32.xlu0 %v3285
    %v3300 = vpop.xlane.xlu0 %3299
    %3301 = vadd.xlane.f32.xlu0 %v3286
    %v3302 = vpop.xlane.xlu0 %3301
    %v3303 = vmul.f32 %v3288, 0.03125
    %v3304 = vmul.f32 %v3290, 0.03125
    %v3305 = vmul.f32 %v3292, 0.03125
    %v3306 = vmul.f32 %v3294, 0.03125
    %v3307 = vmul.f32 %v3296, 0.03125
    %v3308 = vmul.f32 %v3298, 0.03125
    %v3309 = vmul.f32 %v3300, 0.03125
    %v3310 = vmul.f32 %v3302, 0.03125
    %v3311 = vadd.f32 %v3303, 1e-05
    %v3312 = vadd.f32 %v3304, 1e-05
    %v3313 = vadd.f32 %v3305, 1e-05
    %v3314 = vadd.f32 %v3306, 1e-05
    %v3315 = vadd.f32 %v3307, 1e-05
    %v3316 = vadd.f32 %v3308, 1e-05
    %v3317 = vadd.f32 %v3309, 1e-05
    %v3318 = vadd.f32 %v3310, 1e-05
    %v3319 = vrsqrt.pop %v3311
    %v3320 = vrsqrt.pop %v3312
    %v3321 = vrsqrt.pop %v3313
    %v3322 = vrsqrt.pop %v3314
    %v3323 = vrsqrt.pop %v3315
    %v3324 = vrsqrt.pop %v3316
    %v3325 = vrsqrt.pop %v3317
    %v3326 = vrsqrt.pop %v3318
    %v3327 = vmul.f32 %v3263, %v3319
    %v3328 = vmul.f32 %v3264, %v3320
    %v3329 = vmul.f32 %v3265, %v3321
    %v3330 = vmul.f32 %v3266, %v3322
    %v3331 = vmul.f32 %v3267, %v3323
    %v3332 = vmul.f32 %v3268, %v3324
    %v3333 = vmul.f32 %v3269, %v3325
    %v3334 = vmul.f32 %v3270, %v3326
    %v3335 = vlaneseq
    %v3336 = vshrl.u32 %v3335, 7
    %v3337 = vsub.s32 4, %v3336
    %v3338 = vrot.slane %v2648, %v3337
    %v3339 = vmul.f32 %v3327, %v3338
    %v3340 = vmul.f32 %v3328, %v3338
    %v3341 = vmul.f32 %v3329, %v3338
    %v3342 = vmul.f32 %v3330, %v3338
    %v3343 = vmul.f32 %v3331, %v3338
    %v3344 = vmul.f32 %v3332, %v3338
    %v3345 = vmul.f32 %v3333, %v3338
    %v3346 = vmul.f32 %v3334, %v3338
    %v3347 = vlaneseq
    %v3348 = vshrl.u32 %v3347, 7
    %v3349 = vsub.s32 5, %v3348
    %v3350 = vrot.slane %v2648, %v3349
    %v3351 = vadd.f32 %v3339, %v3350
    %v3352 = vadd.f32 %v3340, %v3350
    %v3353 = vadd.f32 %v3341, %v3350
    %v3354 = vadd.f32 %v3342, %v3350
    %v3355 = vadd.f32 %v3343, %v3350
    %v3356 = vadd.f32 %v3344, %v3350
    %v3357 = vadd.f32 %v3345, %v3350
    %v3358 = vadd.f32 %v3346, %v3350
    %s3359 = scalar_lea.vmem [#allocation13], 256
    %v3360 = vld [vmem:[%s3359] sm:$0xff]
    %v3361 = vld [vmem:[%s3359 + $0x8] sm:$0xff]
    %v3362 = vld [vmem:[%s3359 + $0x10] sm:$0xff]
    %v3363 = vld [vmem:[%s3359 + $0x18] sm:$0xff]
    %v3364 = vld [vmem:[%s3359 + $0x20] sm:$0xff]
    %v3365 = vld [vmem:[%s3359 + $0x28] sm:$0xff]
    %v3366 = vld [vmem:[%s3359 + $0x30] sm:$0xff]
    %v3367 = vld [vmem:[%s3359 + $0x38] sm:$0xff]
    %v3368 = vld [vmem:[%s3359 + $0x40] sm:$0xff]
    %v3369 = vld [vmem:[%s3359 + $0x48] sm:$0xff]
    %v3370 = vld [vmem:[%s3359 + $0x50] sm:$0xff]
    %v3371 = vld [vmem:[%s3359 + $0x58] sm:$0xff]
    %v3372 = vld [vmem:[%s3359 + $0x60] sm:$0xff]
    %v3373 = vld [vmem:[%s3359 + $0x68] sm:$0xff]
    %v3374 = vld [vmem:[%s3359 + $0x70] sm:$0xff]
    %v3375 = vld [vmem:[%s3359 + $0x78] sm:$0xff]
    %v3376 = vlaneseq
    %v3377 = vshrl.u32 %v3376, 7
    %v3378 = vsub.s32 6, %v3377
    %v3379 = vrot.slane %v2648, %v3378
    %3380 = vmatprep.subr.mxu0 0.0
    %3381 = vmatpush1.msra.mxu0 %v3360
    %3382 = vmatprep.subr.mxu0 0.0
    %3383 = vmatpush1.msra.mxu0 %v3361
    %3384 = vmatprep.subr.mxu0 0.0
    %3385 = vmatpush1.msra.mxu0 %v3362
    %3386 = vmatprep.subr.mxu0 0.0
    %3387 = vmatpush1.msra.mxu0 %v3363
    %3388 = vmatprep.subr.mxu0 0.0
    %3389 = vmatpush1.msra.mxu0 %v3364
    %3390 = vmatprep.subr.mxu0 0.0
    %3391 = vmatpush1.msra.mxu0 %v3365
    %3392 = vmatprep.subr.mxu0 0.0
    %3393 = vmatpush1.msra.mxu0 %v3366
    %3394 = vmatprep.subr.mxu0 0.0
    %3395 = vmatpush1.msra.mxu0 %v3367
    %3396 = vmatprep.subr.mxu0 0.0
    %3397 = vmatpush1.msra.mxu0 %v3368
    %3398 = vmatprep.subr.mxu0 0.0
    %3399 = vmatpush1.msra.mxu0 %v3369
    %3400 = vmatprep.subr.mxu0 0.0
    %3401 = vmatpush1.msra.mxu0 %v3370
    %3402 = vmatprep.subr.mxu0 0.0
    %3403 = vmatpush1.msra.mxu0 %v3371
    %3404 = vmatprep.subr.mxu0 0.0
    %3405 = vmatpush1.msra.mxu0 %v3372
    %3406 = vmatprep.subr.mxu0 0.0
    %3407 = vmatpush1.msra.mxu0 %v3373
    %3408 = vmatprep.subr.mxu0 0.0
    %3409 = vmatpush1.msra.mxu0 %v3374
    %3410 = vmatprep.subr.mxu0 0.0
    %3411 = vmatpush1.msra.mxu0 %v3375
    %3412 = vmatprep.subr.mxu0 0.0
    %3413 = vmatpush1.msra.mxu0 0.0
    %3414 = vmatprep.subr.mxu0 0.0
    %3415 = vmatpush1.msra.mxu0 0.0
    %3416 = vmatprep.subr.mxu0 0.0
    %3417 = vmatpush1.msra.mxu0 0.0
    %3418 = vmatprep.subr.mxu0 0.0
    %3419 = vmatpush1.msra.mxu0 0.0
    %3420 = vmatprep.subr.mxu0 0.0
    %3421 = vmatpush1.msra.mxu0 0.0
    %3422 = vmatprep.subr.mxu0 0.0
    %3423 = vmatpush1.msra.mxu0 0.0
    %3424 = vmatprep.subr.mxu0 0.0
    %3425 = vmatpush1.msra.mxu0 0.0
    %3426 = vmatprep.subr.mxu0 0.0
    %3427 = vmatpush1.msra.mxu0 0.0
    %3428 = vmatprep.subr.mxu0 0.0
    %3429 = vmatpush1.msra.mxu0 0.0
    %3430 = vmatprep.subr.mxu0 0.0
    %3431 = vmatpush1.msra.mxu0 0.0
    %3432 = vmatprep.subr.mxu0 0.0
    %3433 = vmatpush1.msra.mxu0 0.0
    %3434 = vmatprep.subr.mxu0 0.0
    %3435 = vmatpush1.msra.mxu0 0.0
    %3436 = vmatprep.subr.mxu0 0.0
    %3437 = vmatpush1.msra.mxu0 0.0
    %3438 = vmatprep.subr.mxu0 0.0
    %3439 = vmatpush1.msra.mxu0 0.0
    %3440 = vmatprep.subr.mxu0 0.0
    %3441 = vmatpush1.msra.mxu0 0.0
    %3442 = vmatprep.subr.mxu0 0.0
    %3443 = vmatpush1.msra.mxu0 0.0
    %3444 = vmatprep.mubr.f32.mxu0 0.0
    %3445 = vmatmul.mubr.f32.gmra.mrb[0].mxu0 %v3351
    %v3446 = vpop.f32.mrb[0].mxu0
    %v3447 = vadd.f32 %v3379, %v3446
    %v3448 = vpop.f32.mrb[0].mxu0
    %3449 = vmatprep.mubr.f32.mxu0 0.0
    %3450 = vmatmul.mubr.f32.gmra.mrb[0].mxu0 %v3352
    %v3451 = vpop.f32.mrb[0].mxu0
    %v3452 = vadd.f32 %v3379, %v3451
    %v3453 = vpop.f32.mrb[0].mxu0
    %3454 = vmatprep.mubr.f32.mxu0 0.0
    %3455 = vmatmul.mubr.f32.gmra.mrb[0].mxu0 %v3353
    %v3456 = vpop.f32.mrb[0].mxu0
    %v3457 = vadd.f32 %v3379, %v3456
    %v3458 = vpop.f32.mrb[0].mxu0
    %3459 = vmatprep.mubr.f32.mxu0 0.0
    %3460 = vmatmul.mubr.f32.gmra.mrb[0].mxu0 %v3354
    %v3461 = vpop.f32.mrb[0].mxu0
    %v3462 = vadd.f32 %v3379, %v3461
    %v3463 = vpop.f32.mrb[0].mxu0
    %3464 = vmatprep.mubr.f32.mxu0 0.0
    %3465 = vmatmul.mubr.f32.gmra.mrb[0].mxu0 %v3355
    %v3466 = vpop.f32.mrb[0].mxu0
    %v3467 = vadd.f32 %v3379, %v3466
    %v3468 = vpop.f32.mrb[0].mxu0
    %3469 = vmatprep.mubr.f32.mxu0 0.0
    %3470 = vmatmul.mubr.f32.gmra.mrb[0].mxu0 %v3356
    %v3471 = vpop.f32.mrb[0].mxu0
    %v3472 = vadd.f32 %v3379, %v3471
    %v3473 = vpop.f32.mrb[0].mxu0
    %3474 = vmatprep.mubr.f32.mxu0 0.0
    %3475 = vmatmul.mubr.f32.gmra.mrb[0].mxu0 %v3357
    %v3476 = vpop.f32.mrb[0].mxu0
    %v3477 = vadd.f32 %v3379, %v3476
    %v3478 = vpop.f32.mrb[0].mxu0
    %3479 = vmatprep.mubr.f32.mxu0 0.0
    %3480 = vmatmul.mubr.f32.gmra.mrb[0].mxu0 %v3358
    %v3481 = vpop.f32.mrb[0].mxu0
    %v3482 = vadd.f32 %v3379, %v3481
    %v3483 = vpop.f32.mrb[0].mxu0
    %3484 = vdwg.mxu0
    %v3485 = vmax.f32 %v3447, 0.0
    %v3486 = vmax.f32 %v3452, 0.0
    %v3487 = vmax.f32 %v3457, 0.0
    %v3488 = vmax.f32 %v3462, 0.0
    %v3489 = vmax.f32 %v3467, 0.0
    %v3490 = vmax.f32 %v3472, 0.0
    %v3491 = vmax.f32 %v3477, 0.0
    %v3492 = vmax.f32 %v3482, 0.0
    %s3493 = scalar_lea.vmem [#allocation14], 256
    %v3494 = vld [vmem:[%s3493] sm:$0xff]
    %v3495 = vld [vmem:[%s3493 + $0x8] sm:$0xff]
    %v3496 = vld [vmem:[%s3493 + $0x10] sm:$0xff]
    %v3497 = vld [vmem:[%s3493 + $0x18] sm:$0xff]
    %v3498 = vld [vmem:[%s3493 + $0x20] sm:$0xff]
    %v3499 = vld [vmem:[%s3493 + $0x28] sm:$0xff]
    %v3500 = vld [vmem:[%s3493 + $0x30] sm:$0xff]
    %v3501 = vld [vmem:[%s3493 + $0x38] sm:$0xff]
    %v3502 = vld [vmem:[%s3493 + $0x40] sm:$0xff]
    %v3503 = vld [vmem:[%s3493 + $0x48] sm:$0xff]
    %v3504 = vld [vmem:[%s3493 + $0x50] sm:$0xff]
    %v3505 = vld [vmem:[%s3493 + $0x58] sm:$0xff]
    %v3506 = vld [vmem:[%s3493 + $0x60] sm:$0xff]
    %v3507 = vld [vmem:[%s3493 + $0x68] sm:$0xff]
    %v3508 = vld [vmem:[%s3493 + $0x70] sm:$0xff]
    %v3509 = vld [vmem:[%s3493 + $0x78] sm:$0xff]
    %v3510 = vlaneseq
    %v3511 = vshrl.u32 %v3510, 7
    %v3512 = vsub.s32 7, %v3511
    %v3513 = vrot.slane %v2648, %v3512
    %3514 = vmatprep.subr.mxu0 0.0
    %3515 = vmatpush1.msra.mxu0 %v3494
    %3516 = vmatprep.subr.mxu0 0.0
    %3517 = vmatpush1.msra.mxu0 %v3495
    %3518 = vmatprep.subr.mxu0 0.0
    %3519 = vmatpush1.msra.mxu0 %v3496
    %3520 = vmatprep.subr.mxu0 0.0
    %3521 = vmatpush1.msra.mxu0 %v3497
    %3522 = vmatprep.subr.mxu0 0.0
    %3523 = vmatpush1.msra.mxu0 %v3498
    %3524 = vmatprep.subr.mxu0 0.0
    %3525 = vmatpush1.msra.mxu0 %v3499
    %3526 = vmatprep.subr.mxu0 0.0
    %3527 = vmatpush1.msra.mxu0 %v3500
    %3528 = vmatprep.subr.mxu0 0.0
    %3529 = vmatpush1.msra.mxu0 %v3501
    %3530 = vmatprep.subr.mxu0 0.0
    %3531 = vmatpush1.msra.mxu0 %v3502
    %3532 = vmatprep.subr.mxu0 0.0
    %3533 = vmatpush1.msra.mxu0 %v3503
    %3534 = vmatprep.subr.mxu0 0.0
    %3535 = vmatpush1.msra.mxu0 %v3504
    %3536 = vmatprep.subr.mxu0 0.0
    %3537 = vmatpush1.msra.mxu0 %v3505
    %3538 = vmatprep.subr.mxu0 0.0
    %3539 = vmatpush1.msra.mxu0 %v3506
    %3540 = vmatprep.subr.mxu0 0.0
    %3541 = vmatpush1.msra.mxu0 %v3507
    %3542 = vmatprep.subr.mxu0 0.0
    %3543 = vmatpush1.msra.mxu0 %v3508
    %3544 = vmatprep.subr.mxu0 0.0
    %3545 = vmatpush1.msra.mxu0 %v3509
    %3546 = vmatprep.subr.mxu0 0.0
    %3547 = vmatpush1.msra.mxu0 0.0
    %3548 = vmatprep.subr.mxu0 0.0
    %3549 = vmatpush1.msra.mxu0 0.0
    %3550 = vmatprep.subr.mxu0 0.0
    %3551 = vmatpush1.msra.mxu0 0.0
    %3552 = vmatprep.subr.mxu0 0.0
    %3553 = vmatpush1.msra.mxu0 0.0
    %3554 = vmatprep.subr.mxu0 0.0
    %3555 = vmatpush1.msra.mxu0 0.0
    %3556 = vmatprep.subr.mxu0 0.0
    %3557 = vmatpush1.msra.mxu0 0.0
    %3558 = vmatprep.subr.mxu0 0.0
    %3559 = vmatpush1.msra.mxu0 0.0
    %3560 = vmatprep.subr.mxu0 0.0
    %3561 = vmatpush1.msra.mxu0 0.0
    %3562 = vmatprep.subr.mxu0 0.0
    %3563 = vmatpush1.msra.mxu0 0.0
    %3564 = vmatprep.subr.mxu0 0.0
    %3565 = vmatpush1.msra.mxu0 0.0
    %3566 = vmatprep.subr.mxu0 0.0
    %3567 = vmatpush1.msra.mxu0 0.0
    %3568 = vmatprep.subr.mxu0 0.0
    %3569 = vmatpush1.msra.mxu0 0.0
    %3570 = vmatprep.subr.mxu0 0.0
    %3571 = vmatpush1.msra.mxu0 0.0
    %3572 = vmatprep.subr.mxu0 0.0
    %3573 = vmatpush1.msra.mxu0 0.0
    %3574 = vmatprep.subr.mxu0 0.0
    %3575 = vmatpush1.msra.mxu0 0.0
    %3576 = vmatprep.subr.mxu0 0.0
    %3577 = vmatpush1.msra.mxu0 0.0
    %3578 = vmatprep.mubr.f32.mxu0 0.0
    %3579 = vmatmul.mubr.f32.gmra.mrb[0].mxu0 %v3485
    %v3580 = vpop.f32.mrb[0].mxu0
    %v3581 = vadd.f32 %v3513, %v3580
    %v3582 = vpop.f32.mrb[0].mxu0
    %3583 = vmatprep.mubr.f32.mxu0 0.0
    %3584 = vmatmul.mubr.f32.gmra.mrb[0].mxu0 %v3486
    %v3585 = vpop.f32.mrb[0].mxu0
    %v3586 = vadd.f32 %v3513, %v3585
    %v3587 = vpop.f32.mrb[0].mxu0
    %3588 = vmatprep.mubr.f32.mxu0 0.0
    %3589 = vmatmul.mubr.f32.gmra.mrb[0].mxu0 %v3487
    %v3590 = vpop.f32.mrb[0].mxu0
    %v3591 = vadd.f32 %v3513, %v3590
    %v3592 = vpop.f32.mrb[0].mxu0
    %3593 = vmatprep.mubr.f32.mxu0 0.0
    %3594 = vmatmul.mubr.f32.gmra.mrb[0].mxu0 %v3488
    %v3595 = vpop.f32.mrb[0].mxu0
    %v3596 = vadd.f32 %v3513, %v3595
    %v3597 = vpop.f32.mrb[0].mxu0
    %3598 = vmatprep.mubr.f32.mxu0 0.0
    %3599 = vmatmul.mubr.f32.gmra.mrb[0].mxu0 %v3489
    %v3600 = vpop.f32.mrb[0].mxu0
    %v3601 = vadd.f32 %v3513, %v3600
    %v3602 = vpop.f32.mrb[0].mxu0
    %3603 = vmatprep.mubr.f32.mxu0 0.0
    %3604 = vmatmul.mubr.f32.gmra.mrb[0].mxu0 %v3490
    %v3605 = vpop.f32.mrb[0].mxu0
    %v3606 = vadd.f32 %v3513, %v3605
    %v3607 = vpop.f32.mrb[0].mxu0
    %3608 = vmatprep.mubr.f32.mxu0 0.0
    %3609 = vmatmul.mubr.f32.gmra.mrb[0].mxu0 %v3491
    %v3610 = vpop.f32.mrb[0].mxu0
    %v3611 = vadd.f32 %v3513, %v3610
    %v3612 = vpop.f32.mrb[0].mxu0
    %3613 = vmatprep.mubr.f32.mxu0 0.0
    %3614 = vmatmul.mubr.f32.gmra.mrb[0].mxu0 %v3492
    %v3615 = vpop.f32.mrb[0].mxu0
    %v3616 = vadd.f32 %v3513, %v3615
    %v3617 = vpop.f32.mrb[0].mxu0
    %3618 = vdwg.mxu0
    %v3619 = vxor.u32 %v3581, 2147483648
    %v3620 = vxor.u32 %v3586, 2147483648
    %v3621 = vxor.u32 %v3591, 2147483648
    %v3622 = vxor.u32 %v3596, 2147483648
    %v3623 = vxor.u32 %v3601, 2147483648
    %v3624 = vxor.u32 %v3606, 2147483648
    %v3625 = vxor.u32 %v3611, 2147483648
    %v3626 = vxor.u32 %v3616, 2147483648
    %v3627 = vmul.f32 %v3619, 1.442695
    %v3628 = vpow.pop %v3627
    %v3629 = vmul.f32 %v3620, 1.442695
    %v3630 = vpow.pop %v3629
    %v3631 = vmul.f32 %v3621, 1.442695
    %v3632 = vpow.pop %v3631
    %v3633 = vmul.f32 %v3622, 1.442695
    %v3634 = vpow.pop %v3633
    %v3635 = vmul.f32 %v3623, 1.442695
    %v3636 = vpow.pop %v3635
    %v3637 = vmul.f32 %v3624, 1.442695
    %v3638 = vpow.pop %v3637
    %v3639 = vmul.f32 %v3625, 1.442695
    %v3640 = vpow.pop %v3639
    %v3641 = vmul.f32 %v3626, 1.442695
    %v3642 = vpow.pop %v3641
    %v3643 = vadd.f32 %v3628, 1.0
    %v3644 = vadd.f32 %v3630, 1.0
    %v3645 = vadd.f32 %v3632, 1.0
    %v3646 = vadd.f32 %v3634, 1.0
    %v3647 = vadd.f32 %v3636, 1.0
    %v3648 = vadd.f32 %v3638, 1.0
    %v3649 = vadd.f32 %v3640, 1.0
    %v3650 = vadd.f32 %v3642, 1.0
    %v3651 = vrcp.pop %v3643
    %v3652 = vmul.f32 1.0, %v3651
    %v3653 = vrcp.pop %v3644
    %v3654 = vmul.f32 1.0, %v3653
    %v3655 = vrcp.pop %v3645
    %v3656 = vmul.f32 1.0, %v3655
    %v3657 = vrcp.pop %v3646
    %v3658 = vmul.f32 1.0, %v3657
    %v3659 = vrcp.pop %v3647
    %v3660 = vmul.f32 1.0, %v3659
    %v3661 = vrcp.pop %v3648
    %v3662 = vmul.f32 1.0, %v3661
    %v3663 = vrcp.pop %v3649
    %v3664 = vmul.f32 1.0, %v3663
    %v3665 = vrcp.pop %v3650
    %v3666 = vmul.f32 1.0, %v3665
    %v3667 = vmul.f32 %v3351, %v3652
    %v3668 = vmul.f32 %v3352, %v3654
    %v3669 = vmul.f32 %v3353, %v3656
    %v3670 = vmul.f32 %v3354, %v3658
    %v3671 = vmul.f32 %v3355, %v3660
    %v3672 = vmul.f32 %v3356, %v3662
    %v3673 = vmul.f32 %v3357, %v3664
    %v3674 = vmul.f32 %v3358, %v3666
    %v3675 = vadd.f32 %v3667, %v2639
    %v3676 = vadd.f32 %v3668, %v2640
    %v3677 = vadd.f32 %v3669, %v2641
    %v3678 = vadd.f32 %v3670, %v2642
    %v3679 = vadd.f32 %v3671, %v2643
    %v3680 = vadd.f32 %v3672, %v2644
    %v3681 = vadd.f32 %v3673, %v2645
    %v3682 = vadd.f32 %v3674, %v2646
    %v3683 = vmax.f32 %v3675, 0.0
    %v3684 = vmax.f32 %v3676, 0.0
    %v3685 = vmax.f32 %v3677, 0.0
    %v3686 = vmax.f32 %v3678, 0.0
    %v3687 = vmax.f32 %v3679, 0.0
    %v3688 = vmax.f32 %v3680, 0.0
    %v3689 = vmax.f32 %v3681, 0.0
    %v3690 = vmax.f32 %v3682, 0.0
    %s3691 = scalar_lea.vmem [#allocation16], 24
    %v3692 = vld [vmem:[%s3691] sm:$0xff]
    %s3693 = scalar_lea.vmem [#allocation10], 384
    %v3694 = vld [vmem:[%s3693] sm:$0xff]
    %v3695 = vld [vmem:[%s3693 + $0x8] sm:$0xff]
    %v3696 = vld [vmem:[%s3693 + $0x10] sm:$0xff]
    %v3697 = vld [vmem:[%s3693 + $0x18] sm:$0xff]
    %v3698 = vld [vmem:[%s3693 + $0x20] sm:$0xff]
    %v3699 = vld [vmem:[%s3693 + $0x28] sm:$0xff]
    %v3700 = vld [vmem:[%s3693 + $0x30] sm:$0xff]
    %v3701 = vld [vmem:[%s3693 + $0x38] sm:$0xff]
    %v3702 = vld [vmem:[%s3693 + $0x40] sm:$0xff]
    %v3703 = vld [vmem:[%s3693 + $0x48] sm:$0xff]
    %v3704 = vld [vmem:[%s3693 + $0x50] sm:$0xff]
    %v3705 = vld [vmem:[%s3693 + $0x58] sm:$0xff]
    %v3706 = vld [vmem:[%s3693 + $0x60] sm:$0xff]
    %v3707 = vld [vmem:[%s3693 + $0x68] sm:$0xff]
    %v3708 = vld [vmem:[%s3693 + $0x70] sm:$0xff]
    %v3709 = vld [vmem:[%s3693 + $0x78] sm:$0xff]
    %3710 = vmatprep.subr.mxu0 0.0
    %3711 = vmatpush1.msra.mxu0 %v3694
    %3712 = vmatprep.subr.mxu0 0.0
    %3713 = vmatpush1.msra.mxu0 %v3695
    %3714 = vmatprep.subr.mxu0 0.0
    %3715 = vmatpush1.msra.mxu0 %v3696
    %3716 = vmatprep.subr.mxu0 0.0
    %3717 = vmatpush1.msra.mxu0 %v3697
    %3718 = vmatprep.subr.mxu0 0.0
    %3719 = vmatpush1.msra.mxu0 %v3698
    %3720 = vmatprep.subr.mxu0 0.0
    %3721 = vmatpush1.msra.mxu0 %v3699
    %3722 = vmatprep.subr.mxu0 0.0
    %3723 = vmatpush1.msra.mxu0 %v3700
    %3724 = vmatprep.subr.mxu0 0.0
    %3725 = vmatpush1.msra.mxu0 %v3701
    %3726 = vmatprep.subr.mxu0 0.0
    %3727 = vmatpush1.msra.mxu0 %v3702
    %3728 = vmatprep.subr.mxu0 0.0
    %3729 = vmatpush1.msra.mxu0 %v3703
    %3730 = vmatprep.subr.mxu0 0.0
    %3731 = vmatpush1.msra.mxu0 %v3704
    %3732 = vmatprep.subr.mxu0 0.0
    %3733 = vmatpush1.msra.mxu0 %v3705
    %3734 = vmatprep.subr.mxu0 0.0
    %3735 = vmatpush1.msra.mxu0 %v3706
    %3736 = vmatprep.subr.mxu0 0.0
    %3737 = vmatpush1.msra.mxu0 %v3707
    %3738 = vmatprep.subr.mxu0 0.0
    %3739 = vmatpush1.msra.mxu0 %v3708
    %3740 = vmatprep.subr.mxu0 0.0
    %3741 = vmatpush1.msra.mxu0 %v3709
    %3742 = vmatprep.subr.mxu0 0.0
    %3743 = vmatpush1.msra.mxu0 0.0
    %3744 = vmatprep.subr.mxu0 0.0
    %3745 = vmatpush1.msra.mxu0 0.0
    %3746 = vmatprep.subr.mxu0 0.0
    %3747 = vmatpush1.msra.mxu0 0.0
    %3748 = vmatprep.subr.mxu0 0.0
    %3749 = vmatpush1.msra.mxu0 0.0
    %3750 = vmatprep.subr.mxu0 0.0
    %3751 = vmatpush1.msra.mxu0 0.0
    %3752 = vmatprep.subr.mxu0 0.0
    %3753 = vmatpush1.msra.mxu0 0.0
    %3754 = vmatprep.subr.mxu0 0.0
    %3755 = vmatpush1.msra.mxu0 0.0
    %3756 = vmatprep.subr.mxu0 0.0
    %3757 = vmatpush1.msra.mxu0 0.0
    %3758 = vmatprep.subr.mxu0 0.0
    %3759 = vmatpush1.msra.mxu0 0.0
    %3760 = vmatprep.subr.mxu0 0.0
    %3761 = vmatpush1.msra.mxu0 0.0
    %3762 = vmatprep.subr.mxu0 0.0
    %3763 = vmatpush1.msra.mxu0 0.0
    %3764 = vmatprep.subr.mxu0 0.0
    %3765 = vmatpush1.msra.mxu0 0.0
    %3766 = vmatprep.subr.mxu0 0.0
    %3767 = vmatpush1.msra.mxu0 0.0
    %3768 = vmatprep.subr.mxu0 0.0
    %3769 = vmatpush1.msra.mxu0 0.0
    %3770 = vmatprep.subr.mxu0 0.0
    %3771 = vmatpush1.msra.mxu0 0.0
    %3772 = vmatprep.subr.mxu0 0.0
    %3773 = vmatpush1.msra.mxu0 0.0
    %3774 = vmatprep.mubr.f32.mxu0 0.0
    %3775 = vmatmul.mubr.f32.gmra.mrb[0].mxu0 %v3683
    %v3776 = vpop.f32.mrb[0].mxu0
    %v3777 = vadd.f32 0.0, %v3776
    %v3778 = vpop.f32.mrb[0].mxu0
    %3779 = vmatprep.mubr.f32.mxu0 0.0
    %3780 = vmatmul.mubr.f32.gmra.mrb[0].mxu0 %v3684
    %v3781 = vpop.f32.mrb[0].mxu0
    %v3782 = vadd.f32 0.0, %v3781
    %v3783 = vpop.f32.mrb[0].mxu0
    %3784 = vmatprep.mubr.f32.mxu0 0.0
    %3785 = vmatmul.mubr.f32.gmra.mrb[0].mxu0 %v3685
    %v3786 = vpop.f32.mrb[0].mxu0
    %v3787 = vadd.f32 0.0, %v3786
    %v3788 = vpop.f32.mrb[0].mxu0
    %3789 = vmatprep.mubr.f32.mxu0 0.0
    %3790 = vmatmul.mubr.f32.gmra.mrb[0].mxu0 %v3686
    %v3791 = vpop.f32.mrb[0].mxu0
    %v3792 = vadd.f32 0.0, %v3791
    %v3793 = vpop.f32.mrb[0].mxu0
    %3794 = vmatprep.mubr.f32.mxu0 0.0
    %3795 = vmatmul.mubr.f32.gmra.mrb[0].mxu0 %v3687
    %v3796 = vpop.f32.mrb[0].mxu0
    %v3797 = vadd.f32 0.0, %v3796
    %v3798 = vpop.f32.mrb[0].mxu0
    %3799 = vmatprep.mubr.f32.mxu0 0.0
    %3800 = vmatmul.mubr.f32.gmra.mrb[0].mxu0 %v3688
    %v3801 = vpop.f32.mrb[0].mxu0
    %v3802 = vadd.f32 0.0, %v3801
    %v3803 = vpop.f32.mrb[0].mxu0
    %3804 = vmatprep.mubr.f32.mxu0 0.0
    %3805 = vmatmul.mubr.f32.gmra.mrb[0].mxu0 %v3689
    %v3806 = vpop.f32.mrb[0].mxu0
    %v3807 = vadd.f32 0.0, %v3806
    %v3808 = vpop.f32.mrb[0].mxu0
    %3809 = vmatprep.mubr.f32.mxu0 0.0
    %3810 = vmatmul.mubr.f32.gmra.mrb[0].mxu0 %v3690
    %v3811 = vpop.f32.mrb[0].mxu0
    %v3812 = vadd.f32 0.0, %v3811
    %v3813 = vpop.f32.mrb[0].mxu0
    %3814 = vdwg.mxu0
    %v3815 = vlaneseq
    %v3816 = vshrl.u32 %v3815, 7
    %v3817 = vsub.s32 0, %v3816
    %v3818 = vrot.slane %v3692, %v3817
    %3819 = vmatprep.subr.mxu0 0.0
    %3820 = vmatpush1.msra.mxu0 %v3777
    %3821 = vmatprep.subr.mxu0 0.0
    %3822 = vmatpush1.msra.mxu0 %v3782
    %3823 = vmatprep.subr.mxu0 0.0
    %3824 = vmatpush1.msra.mxu0 %v3787
    %3825 = vmatprep.subr.mxu0 0.0
    %3826 = vmatpush1.msra.mxu0 %v3792
    %3827 = vmatprep.subr.mxu0 0.0
    %3828 = vmatpush1.msra.mxu0 %v3797
    %3829 = vmatprep.subr.mxu0 0.0
    %3830 = vmatpush1.msra.mxu0 %v3802
    %3831 = vmatprep.subr.mxu0 0.0
    %3832 = vmatpush1.msra.mxu0 %v3807
    %3833 = vmatprep.subr.mxu0 0.0
    %3834 = vmatpush1.msra.mxu0 %v3812
    %3835 = vmatprep.subr.mxu0 0.0
    %3836 = vmatpush1.msra.mxu0 0.0
    %3837 = vmatprep.subr.mxu0 0.0
    %3838 = vmatpush1.msra.mxu0 0.0
    %3839 = vmatprep.subr.mxu0 0.0
    %3840 = vmatpush1.msra.mxu0 0.0
    %3841 = vmatprep.subr.mxu0 0.0
    %3842 = vmatpush1.msra.mxu0 0.0
    %3843 = vmatprep.subr.mxu0 0.0
    %3844 = vmatpush1.msra.mxu0 0.0
    %3845 = vmatprep.subr.mxu0 0.0
    %3846 = vmatpush1.msra.mxu0 0.0
    %3847 = vmatprep.subr.mxu0 0.0
    %3848 = vmatpush1.msra.mxu0 0.0
    %3849 = vmatprep.subr.mxu0 0.0
    %3850 = vmatpush1.msra.mxu0 0.0
    %3851 = vmatprep.subr.mxu0 0.0
    %3852 = vmatpush1.msra.mxu0 0.0
    %3853 = vmatprep.subr.mxu0 0.0
    %3854 = vmatpush1.msra.mxu0 0.0
    %3855 = vmatprep.subr.mxu0 0.0
    %3856 = vmatpush1.msra.mxu0 0.0
    %3857 = vmatprep.subr.mxu0 0.0
    %3858 = vmatpush1.msra.mxu0 0.0
    %3859 = vmatprep.subr.mxu0 0.0
    %3860 = vmatpush1.msra.mxu0 0.0
    %3861 = vmatprep.subr.mxu0 0.0
    %3862 = vmatpush1.msra.mxu0 0.0
    %3863 = vmatprep.subr.mxu0 0.0
    %3864 = vmatpush1.msra.mxu0 0.0
    %3865 = vmatprep.subr.mxu0 0.0
    %3866 = vmatpush1.msra.mxu0 0.0
    %3867 = vmatprep.subr.mxu0 0.0
    %3868 = vmatpush1.msra.mxu0 0.0
    %3869 = vmatprep.subr.mxu0 0.0
    %3870 = vmatpush1.msra.mxu0 0.0
    %3871 = vmatprep.subr.mxu0 0.0
    %3872 = vmatpush1.msra.mxu0 0.0
    %3873 = vmatprep.subr.mxu0 0.0
    %3874 = vmatpush1.msra.mxu0 0.0
    %3875 = vmatprep.subr.mxu0 0.0
    %3876 = vmatpush1.msra.mxu0 0.0
    %3877 = vmatprep.subr.mxu0 0.0
    %3878 = vmatpush1.msra.mxu0 0.0
    %3879 = vmatprep.subr.mxu0 0.0
    %3880 = vmatpush1.msra.mxu0 0.0
    %3881 = vmatprep.subr.mxu0 0.0
    %3882 = vmatpush1.msra.mxu0 0.0
    %3883 = vmatprep.mubr.f32.mxu0 0.0
    %3884 = vmatmul.mubr.f32.gmra.mrb[0].mxu0 %v306
    %v3885 = vpop.f32.mrb[0].mxu0
    %v3886 = vadd.f32 %v3818, %v3885
    %v3887 = vpop.f32.mrb[0].mxu0
    %3888 = vmatprep.mubr.f32.mxu0 0.0
    %3889 = vmatmul.mubr.f32.gmra.mrb[0].mxu0 %v309
    %v3890 = vpop.f32.mrb[0].mxu0
    %v3891 = vadd.f32 %v3818, %v3890
    %v3892 = vpop.f32.mrb[0].mxu0
    %3893 = vmatprep.mubr.f32.mxu0 0.0
    %3894 = vmatmul.mubr.f32.gmra.mrb[0].mxu0 %v312
    %v3895 = vpop.f32.mrb[0].mxu0
    %v3896 = vadd.f32 %v3818, %v3895
    %v3897 = vpop.f32.mrb[0].mxu0
    %3898 = vmatprep.mubr.f32.mxu0 0.0
    %3899 = vmatmul.mubr.f32.gmra.mrb[0].mxu0 %v315
    %v3900 = vpop.f32.mrb[0].mxu0
    %v3901 = vadd.f32 %v3818, %v3900
    %v3902 = vpop.f32.mrb[0].mxu0
    %3903 = vmatprep.mubr.f32.mxu0 0.0
    %3904 = vmatmul.mubr.f32.gmra.mrb[0].mxu0 %v318
    %v3905 = vpop.f32.mrb[0].mxu0
    %v3906 = vadd.f32 %v3818, %v3905
    %v3907 = vpop.f32.mrb[0].mxu0
    %3908 = vmatprep.mubr.f32.mxu0 0.0
    %3909 = vmatmul.mubr.f32.gmra.mrb[0].mxu0 %v321
    %v3910 = vpop.f32.mrb[0].mxu0
    %v3911 = vadd.f32 %v3818, %v3910
    %v3912 = vpop.f32.mrb[0].mxu0
    %3913 = vmatprep.mubr.f32.mxu0 0.0
    %3914 = vmatmul.mubr.f32.gmra.mrb[0].mxu0 %v324
    %v3915 = vpop.f32.mrb[0].mxu0
    %v3916 = vadd.f32 %v3818, %v3915
    %v3917 = vpop.f32.mrb[0].mxu0
    %3918 = vmatprep.mubr.f32.mxu0 0.0
    %3919 = vmatmul.mubr.f32.gmra.mrb[0].mxu0 %v327
    %v3920 = vpop.f32.mrb[0].mxu0
    %v3921 = vadd.f32 %v3818, %v3920
    %v3922 = vpop.f32.mrb[0].mxu0
    %3923 = vdwg.mxu0
    %3924 = vadd.xlane.f32.xlu0 %v3886
    %v3925 = vpop.xlane.xlu0 %3924
    %3926 = vadd.xlane.f32.xlu0 %v3891
    %v3927 = vpop.xlane.xlu0 %3926
    %3928 = vadd.xlane.f32.xlu0 %v3896
    %v3929 = vpop.xlane.xlu0 %3928
    %3930 = vadd.xlane.f32.xlu0 %v3901
    %v3931 = vpop.xlane.xlu0 %3930
    %3932 = vadd.xlane.f32.xlu0 %v3906
    %v3933 = vpop.xlane.xlu0 %3932
    %3934 = vadd.xlane.f32.xlu0 %v3911
    %v3935 = vpop.xlane.xlu0 %3934
    %3936 = vadd.xlane.f32.xlu0 %v3916
    %v3937 = vpop.xlane.xlu0 %3936
    %3938 = vadd.xlane.f32.xlu0 %v3921
    %v3939 = vpop.xlane.xlu0 %3938
    %v3940 = vmul.f32 %v3925, 0.03125
    %v3941 = vmul.f32 %v3927, 0.03125
    %v3942 = vmul.f32 %v3929, 0.03125
    %v3943 = vmul.f32 %v3931, 0.03125
    %v3944 = vmul.f32 %v3933, 0.03125
    %v3945 = vmul.f32 %v3935, 0.03125
    %v3946 = vmul.f32 %v3937, 0.03125
    %v3947 = vmul.f32 %v3939, 0.03125
    %v3948 = vsub.f32 %v3886, %v3940
    %v3949 = vsub.f32 %v3891, %v3941
    %v3950 = vsub.f32 %v3896, %v3942
    %v3951 = vsub.f32 %v3901, %v3943
    %v3952 = vsub.f32 %v3906, %v3944
    %v3953 = vsub.f32 %v3911, %v3945
    %v3954 = vsub.f32 %v3916, %v3946
    %v3955 = vsub.f32 %v3921, %v3947
    %v3956 = vmul.f32 %v3948, %v3948
    %v3957 = vmul.f32 %v3949, %v3949
    %v3958 = vmul.f32 %v3950, %v3950
    %v3959 = vmul.f32 %v3951, %v3951
    %v3960 = vmul.f32 %v3952, %v3952
    %v3961 = vmul.f32 %v3953, %v3953
    %v3962 = vmul.f32 %v3954, %v3954
    %v3963 = vmul.f32 %v3955, %v3955
    %v3964 = vsel %vm475, %v3956, 0.0
    %v3965 = vsel %vm475, %v3957, 0.0
    %v3966 = vsel %vm475, %v3958, 0.0
    %v3967 = vsel %vm475, %v3959, 0.0
    %v3968 = vsel %vm475, %v3960, 0.0
    %v3969 = vsel %vm475, %v3961, 0.0
    %v3970 = vsel %vm475, %v3962, 0.0
    %v3971 = vsel %vm475, %v3963, 0.0
    %3972 = vadd.xlane.f32.xlu0 %v3964
    %v3973 = vpop.xlane.xlu0 %3972
    %3974 = vadd.xlane.f32.xlu0 %v3965
    %v3975 = vpop.xlane.xlu0 %3974
    %3976 = vadd.xlane.f32.xlu0 %v3966
    %v3977 = vpop.xlane.xlu0 %3976
    %3978 = vadd.xlane.f32.xlu0 %v3967
    %v3979 = vpop.xlane.xlu0 %3978
    %3980 = vadd.xlane.f32.xlu0 %v3968
    %v3981 = vpop.xlane.xlu0 %3980
    %3982 = vadd.xlane.f32.xlu0 %v3969
    %v3983 = vpop.xlane.xlu0 %3982
    %3984 = vadd.xlane.f32.xlu0 %v3970
    %v3985 = vpop.xlane.xlu0 %3984
    %3986 = vadd.xlane.f32.xlu0 %v3971
    %v3987 = vpop.xlane.xlu0 %3986
    %v3988 = vmul.f32 %v3973, 0.03125
    %v3989 = vmul.f32 %v3975, 0.03125
    %v3990 = vmul.f32 %v3977, 0.03125
    %v3991 = vmul.f32 %v3979, 0.03125
    %v3992 = vmul.f32 %v3981, 0.03125
    %v3993 = vmul.f32 %v3983, 0.03125
    %v3994 = vmul.f32 %v3985, 0.03125
    %v3995 = vmul.f32 %v3987, 0.03125
    %v3996 = vadd.f32 %v3988, 1e-05
    %v3997 = vadd.f32 %v3989, 1e-05
    %v3998 = vadd.f32 %v3990, 1e-05
    %v3999 = vadd.f32 %v3991, 1e-05
    %v4000 = vadd.f32 %v3992, 1e-05
    %v4001 = vadd.f32 %v3993, 1e-05
    %v4002 = vadd.f32 %v3994, 1e-05
    %v4003 = vadd.f32 %v3995, 1e-05
    %v4004 = vrsqrt.pop %v3996
    %v4005 = vrsqrt.pop %v3997
    %v4006 = vrsqrt.pop %v3998
    %v4007 = vrsqrt.pop %v3999
    %v4008 = vrsqrt.pop %v4000
    %v4009 = vrsqrt.pop %v4001
    %v4010 = vrsqrt.pop %v4002
    %v4011 = vrsqrt.pop %v4003
    %v4012 = vmul.f32 %v3948, %v4004
    %v4013 = vmul.f32 %v3949, %v4005
    %v4014 = vmul.f32 %v3950, %v4006
    %v4015 = vmul.f32 %v3951, %v4007
    %v4016 = vmul.f32 %v3952, %v4008
    %v4017 = vmul.f32 %v3953, %v4009
    %v4018 = vmul.f32 %v3954, %v4010
    %v4019 = vmul.f32 %v3955, %v4011
    %v4020 = vlaneseq
    %v4021 = vshrl.u32 %v4020, 7
    %v4022 = vsub.s32 1, %v4021
    %v4023 = vrot.slane %v3692, %v4022
    %v4024 = vmul.f32 %v4012, %v4023
    %v4025 = vmul.f32 %v4013, %v4023
    %v4026 = vmul.f32 %v4014, %v4023
    %v4027 = vmul.f32 %v4015, %v4023
    %v4028 = vmul.f32 %v4016, %v4023
    %v4029 = vmul.f32 %v4017, %v4023
    %v4030 = vmul.f32 %v4018, %v4023
    %v4031 = vmul.f32 %v4019, %v4023
    %v4032 = vlaneseq
    %v4033 = vshrl.u32 %v4032, 7
    %v4034 = vsub.s32 2, %v4033
    %v4035 = vrot.slane %v3692, %v4034
    %v4036 = vadd.f32 %v4024, %v4035
    %v4037 = vadd.f32 %v4025, %v4035
    %v4038 = vadd.f32 %v4026, %v4035
    %v4039 = vadd.f32 %v4027, %v4035
    %v4040 = vadd.f32 %v4028, %v4035
    %v4041 = vadd.f32 %v4029, %v4035
    %v4042 = vadd.f32 %v4030, %v4035
    %v4043 = vadd.f32 %v4031, %v4035
    %v4044 = vmax.f32 %v4036, 0.0
    %v4045 = vmax.f32 %v4037, 0.0
    %v4046 = vmax.f32 %v4038, 0.0
    %v4047 = vmax.f32 %v4039, 0.0
    %v4048 = vmax.f32 %v4040, 0.0
    %v4049 = vmax.f32 %v4041, 0.0
    %v4050 = vmax.f32 %v4042, 0.0
    %v4051 = vmax.f32 %v4043, 0.0
    %s4052 = scalar_lea.vmem [#allocation11], 384
    %v4053 = vld [vmem:[%s4052] sm:$0xff]
    %v4054 = vld [vmem:[%s4052 + $0x8] sm:$0xff]
    %v4055 = vld [vmem:[%s4052 + $0x10] sm:$0xff]
    %v4056 = vld [vmem:[%s4052 + $0x18] sm:$0xff]
    %v4057 = vld [vmem:[%s4052 + $0x20] sm:$0xff]
    %v4058 = vld [vmem:[%s4052 + $0x28] sm:$0xff]
    %v4059 = vld [vmem:[%s4052 + $0x30] sm:$0xff]
    %v4060 = vld [vmem:[%s4052 + $0x38] sm:$0xff]
    %v4061 = vld [vmem:[%s4052 + $0x40] sm:$0xff]
    %v4062 = vld [vmem:[%s4052 + $0x48] sm:$0xff]
    %v4063 = vld [vmem:[%s4052 + $0x50] sm:$0xff]
    %v4064 = vld [vmem:[%s4052 + $0x58] sm:$0xff]
    %v4065 = vld [vmem:[%s4052 + $0x60] sm:$0xff]
    %v4066 = vld [vmem:[%s4052 + $0x68] sm:$0xff]
    %v4067 = vld [vmem:[%s4052 + $0x70] sm:$0xff]
    %v4068 = vld [vmem:[%s4052 + $0x78] sm:$0xff]
    %4069 = vmatprep.subr.mxu0 0.0
    %4070 = vmatpush1.msra.mxu0 %v4053
    %4071 = vmatprep.subr.mxu0 0.0
    %4072 = vmatpush1.msra.mxu0 %v4054
    %4073 = vmatprep.subr.mxu0 0.0
    %4074 = vmatpush1.msra.mxu0 %v4055
    %4075 = vmatprep.subr.mxu0 0.0
    %4076 = vmatpush1.msra.mxu0 %v4056
    %4077 = vmatprep.subr.mxu0 0.0
    %4078 = vmatpush1.msra.mxu0 %v4057
    %4079 = vmatprep.subr.mxu0 0.0
    %4080 = vmatpush1.msra.mxu0 %v4058
    %4081 = vmatprep.subr.mxu0 0.0
    %4082 = vmatpush1.msra.mxu0 %v4059
    %4083 = vmatprep.subr.mxu0 0.0
    %4084 = vmatpush1.msra.mxu0 %v4060
    %4085 = vmatprep.subr.mxu0 0.0
    %4086 = vmatpush1.msra.mxu0 %v4061
    %4087 = vmatprep.subr.mxu0 0.0
    %4088 = vmatpush1.msra.mxu0 %v4062
    %4089 = vmatprep.subr.mxu0 0.0
    %4090 = vmatpush1.msra.mxu0 %v4063
    %4091 = vmatprep.subr.mxu0 0.0
    %4092 = vmatpush1.msra.mxu0 %v4064
    %4093 = vmatprep.subr.mxu0 0.0
    %4094 = vmatpush1.msra.mxu0 %v4065
    %4095 = vmatprep.subr.mxu0 0.0
    %4096 = vmatpush1.msra.mxu0 %v4066
    %4097 = vmatprep.subr.mxu0 0.0
    %4098 = vmatpush1.msra.mxu0 %v4067
    %4099 = vmatprep.subr.mxu0 0.0
    %4100 = vmatpush1.msra.mxu0 %v4068
    %4101 = vmatprep.subr.mxu0 0.0
    %4102 = vmatpush1.msra.mxu0 0.0
    %4103 = vmatprep.subr.mxu0 0.0
    %4104 = vmatpush1.msra.mxu0 0.0
    %4105 = vmatprep.subr.mxu0 0.0
    %4106 = vmatpush1.msra.mxu0 0.0
    %4107 = vmatprep.subr.mxu0 0.0
    %4108 = vmatpush1.msra.mxu0 0.0
    %4109 = vmatprep.subr.mxu0 0.0
    %4110 = vmatpush1.msra.mxu0 0.0
    %4111 = vmatprep.subr.mxu0 0.0
    %4112 = vmatpush1.msra.mxu0 0.0
    %4113 = vmatprep.subr.mxu0 0.0
    %4114 = vmatpush1.msra.mxu0 0.0
    %4115 = vmatprep.subr.mxu0 0.0
    %4116 = vmatpush1.msra.mxu0 0.0
    %4117 = vmatprep.subr.mxu0 0.0
    %4118 = vmatpush1.msra.mxu0 0.0
    %4119 = vmatprep.subr.mxu0 0.0
    %4120 = vmatpush1.msra.mxu0 0.0
    %4121 = vmatprep.subr.mxu0 0.0
    %4122 = vmatpush1.msra.mxu0 0.0
    %4123 = vmatprep.subr.mxu0 0.0
    %4124 = vmatpush1.msra.mxu0 0.0
    %4125 = vmatprep.subr.mxu0 0.0
    %4126 = vmatpush1.msra.mxu0 0.0
    %4127 = vmatprep.subr.mxu0 0.0
    %4128 = vmatpush1.msra.mxu0 0.0
    %4129 = vmatprep.subr.mxu0 0.0
    %4130 = vmatpush1.msra.mxu0 0.0
    %4131 = vmatprep.subr.mxu0 0.0
    %4132 = vmatpush1.msra.mxu0 0.0
    %4133 = vmatprep.mubr.f32.mxu0 0.0
    %4134 = vmatmul.mubr.f32.gmra.mrb[0].mxu0 %v4044
    %v4135 = vpop.f32.mrb[0].mxu0
    %v4136 = vadd.f32 0.0, %v4135
    %v4137 = vpop.f32.mrb[0].mxu0
    %4138 = vmatprep.mubr.f32.mxu0 0.0
    %4139 = vmatmul.mubr.f32.gmra.mrb[0].mxu0 %v4045
    %v4140 = vpop.f32.mrb[0].mxu0
    %v4141 = vadd.f32 0.0, %v4140
    %v4142 = vpop.f32.mrb[0].mxu0
    %4143 = vmatprep.mubr.f32.mxu0 0.0
    %4144 = vmatmul.mubr.f32.gmra.mrb[0].mxu0 %v4046
    %v4145 = vpop.f32.mrb[0].mxu0
    %v4146 = vadd.f32 0.0, %v4145
    %v4147 = vpop.f32.mrb[0].mxu0
    %4148 = vmatprep.mubr.f32.mxu0 0.0
    %4149 = vmatmul.mubr.f32.gmra.mrb[0].mxu0 %v4047
    %v4150 = vpop.f32.mrb[0].mxu0
    %v4151 = vadd.f32 0.0, %v4150
    %v4152 = vpop.f32.mrb[0].mxu0
    %4153 = vmatprep.mubr.f32.mxu0 0.0
    %4154 = vmatmul.mubr.f32.gmra.mrb[0].mxu0 %v4048
    %v4155 = vpop.f32.mrb[0].mxu0
    %v4156 = vadd.f32 0.0, %v4155
    %v4157 = vpop.f32.mrb[0].mxu0
    %4158 = vmatprep.mubr.f32.mxu0 0.0
    %4159 = vmatmul.mubr.f32.gmra.mrb[0].mxu0 %v4049
    %v4160 = vpop.f32.mrb[0].mxu0
    %v4161 = vadd.f32 0.0, %v4160
    %v4162 = vpop.f32.mrb[0].mxu0
    %4163 = vmatprep.mubr.f32.mxu0 0.0
    %4164 = vmatmul.mubr.f32.gmra.mrb[0].mxu0 %v4050
    %v4165 = vpop.f32.mrb[0].mxu0
    %v4166 = vadd.f32 0.0, %v4165
    %v4167 = vpop.f32.mrb[0].mxu0
    %4168 = vmatprep.mubr.f32.mxu0 0.0
    %4169 = vmatmul.mubr.f32.gmra.mrb[0].mxu0 %v4051
    %v4170 = vpop.f32.mrb[0].mxu0
    %v4171 = vadd.f32 0.0, %v4170
    %v4172 = vpop.f32.mrb[0].mxu0
    %4173 = vdwg.mxu0
    %v4174 = vlaneseq
    %v4175 = vshrl.u32 %v4174, 7
    %v4176 = vsub.s32 3, %v4175
    %v4177 = vrot.slane %v3692, %v4176
    %4178 = vmatprep.subr.mxu0 0.0
    %4179 = vmatpush1.msra.mxu0 %v4136
    %4180 = vmatprep.subr.mxu0 0.0
    %4181 = vmatpush1.msra.mxu0 %v4141
    %4182 = vmatprep.subr.mxu0 0.0
    %4183 = vmatpush1.msra.mxu0 %v4146
    %4184 = vmatprep.subr.mxu0 0.0
    %4185 = vmatpush1.msra.mxu0 %v4151
    %4186 = vmatprep.subr.mxu0 0.0
    %4187 = vmatpush1.msra.mxu0 %v4156
    %4188 = vmatprep.subr.mxu0 0.0
    %4189 = vmatpush1.msra.mxu0 %v4161
    %4190 = vmatprep.subr.mxu0 0.0
    %4191 = vmatpush1.msra.mxu0 %v4166
    %4192 = vmatprep.subr.mxu0 0.0
    %4193 = vmatpush1.msra.mxu0 %v4171
    %4194 = vmatprep.subr.mxu0 0.0
    %4195 = vmatpush1.msra.mxu0 0.0
    %4196 = vmatprep.subr.mxu0 0.0
    %4197 = vmatpush1.msra.mxu0 0.0
    %4198 = vmatprep.subr.mxu0 0.0
    %4199 = vmatpush1.msra.mxu0 0.0
    %4200 = vmatprep.subr.mxu0 0.0
    %4201 = vmatpush1.msra.mxu0 0.0
    %4202 = vmatprep.subr.mxu0 0.0
    %4203 = vmatpush1.msra.mxu0 0.0
    %4204 = vmatprep.subr.mxu0 0.0
    %4205 = vmatpush1.msra.mxu0 0.0
    %4206 = vmatprep.subr.mxu0 0.0
    %4207 = vmatpush1.msra.mxu0 0.0
    %4208 = vmatprep.subr.mxu0 0.0
    %4209 = vmatpush1.msra.mxu0 0.0
    %4210 = vmatprep.subr.mxu0 0.0
    %4211 = vmatpush1.msra.mxu0 0.0
    %4212 = vmatprep.subr.mxu0 0.0
    %4213 = vmatpush1.msra.mxu0 0.0
    %4214 = vmatprep.subr.mxu0 0.0
    %4215 = vmatpush1.msra.mxu0 0.0
    %4216 = vmatprep.subr.mxu0 0.0
    %4217 = vmatpush1.msra.mxu0 0.0
    %4218 = vmatprep.subr.mxu0 0.0
    %4219 = vmatpush1.msra.mxu0 0.0
    %4220 = vmatprep.subr.mxu0 0.0
    %4221 = vmatpush1.msra.mxu0 0.0
    %4222 = vmatprep.subr.mxu0 0.0
    %4223 = vmatpush1.msra.mxu0 0.0
    %4224 = vmatprep.subr.mxu0 0.0
    %4225 = vmatpush1.msra.mxu0 0.0
    %4226 = vmatprep.subr.mxu0 0.0
    %4227 = vmatpush1.msra.mxu0 0.0
    %4228 = vmatprep.subr.mxu0 0.0
    %4229 = vmatpush1.msra.mxu0 0.0
    %4230 = vmatprep.subr.mxu0 0.0
    %4231 = vmatpush1.msra.mxu0 0.0
    %4232 = vmatprep.subr.mxu0 0.0
    %4233 = vmatpush1.msra.mxu0 0.0
    %4234 = vmatprep.subr.mxu0 0.0
    %4235 = vmatpush1.msra.mxu0 0.0
    %4236 = vmatprep.subr.mxu0 0.0
    %4237 = vmatpush1.msra.mxu0 0.0
    %4238 = vmatprep.subr.mxu0 0.0
    %4239 = vmatpush1.msra.mxu0 0.0
    %4240 = vmatprep.subr.mxu0 0.0
    %4241 = vmatpush1.msra.mxu0 0.0
    %4242 = vmatprep.mubr.f32.mxu0 0.0
    %4243 = vmatmul.mubr.f32.gmra.mrb[0].mxu0 %v306
    %v4244 = vpop.f32.mrb[0].mxu0
    %v4245 = vadd.f32 %v4177, %v4244
    %v4246 = vpop.f32.mrb[0].mxu0
    %4247 = vmatprep.mubr.f32.mxu0 0.0
    %4248 = vmatmul.mubr.f32.gmra.mrb[0].mxu0 %v309
    %v4249 = vpop.f32.mrb[0].mxu0
    %v4250 = vadd.f32 %v4177, %v4249
    %v4251 = vpop.f32.mrb[0].mxu0
    %4252 = vmatprep.mubr.f32.mxu0 0.0
    %4253 = vmatmul.mubr.f32.gmra.mrb[0].mxu0 %v312
    %v4254 = vpop.f32.mrb[0].mxu0
    %v4255 = vadd.f32 %v4177, %v4254
    %v4256 = vpop.f32.mrb[0].mxu0
    %4257 = vmatprep.mubr.f32.mxu0 0.0
    %4258 = vmatmul.mubr.f32.gmra.mrb[0].mxu0 %v315
    %v4259 = vpop.f32.mrb[0].mxu0
    %v4260 = vadd.f32 %v4177, %v4259
    %v4261 = vpop.f32.mrb[0].mxu0
    %4262 = vmatprep.mubr.f32.mxu0 0.0
    %4263 = vmatmul.mubr.f32.gmra.mrb[0].mxu0 %v318
    %v4264 = vpop.f32.mrb[0].mxu0
    %v4265 = vadd.f32 %v4177, %v4264
    %v4266 = vpop.f32.mrb[0].mxu0
    %4267 = vmatprep.mubr.f32.mxu0 0.0
    %4268 = vmatmul.mubr.f32.gmra.mrb[0].mxu0 %v321
    %v4269 = vpop.f32.mrb[0].mxu0
    %v4270 = vadd.f32 %v4177, %v4269
    %v4271 = vpop.f32.mrb[0].mxu0
    %4272 = vmatprep.mubr.f32.mxu0 0.0
    %4273 = vmatmul.mubr.f32.gmra.mrb[0].mxu0 %v324
    %v4274 = vpop.f32.mrb[0].mxu0
    %v4275 = vadd.f32 %v4177, %v4274
    %v4276 = vpop.f32.mrb[0].mxu0
    %4277 = vmatprep.mubr.f32.mxu0 0.0
    %4278 = vmatmul.mubr.f32.gmra.mrb[0].mxu0 %v327
    %v4279 = vpop.f32.mrb[0].mxu0
    %v4280 = vadd.f32 %v4177, %v4279
    %v4281 = vpop.f32.mrb[0].mxu0
    %4282 = vdwg.mxu0
    %4283 = vadd.xlane.f32.xlu0 %v4245
    %v4284 = vpop.xlane.xlu0 %4283
    %4285 = vadd.xlane.f32.xlu0 %v4250
    %v4286 = vpop.xlane.xlu0 %4285
    %4287 = vadd.xlane.f32.xlu0 %v4255
    %v4288 = vpop.xlane.xlu0 %4287
    %4289 = vadd.xlane.f32.xlu0 %v4260
    %v4290 = vpop.xlane.xlu0 %4289
    %4291 = vadd.xlane.f32.xlu0 %v4265
    %v4292 = vpop.xlane.xlu0 %4291
    %4293 = vadd.xlane.f32.xlu0 %v4270
    %v4294 = vpop.xlane.xlu0 %4293
    %4295 = vadd.xlane.f32.xlu0 %v4275
    %v4296 = vpop.xlane.xlu0 %4295
    %4297 = vadd.xlane.f32.xlu0 %v4280
    %v4298 = vpop.xlane.xlu0 %4297
    %v4299 = vmul.f32 %v4284, 0.03125
    %v4300 = vmul.f32 %v4286, 0.03125
    %v4301 = vmul.f32 %v4288, 0.03125
    %v4302 = vmul.f32 %v4290, 0.03125
    %v4303 = vmul.f32 %v4292, 0.03125
    %v4304 = vmul.f32 %v4294, 0.03125
    %v4305 = vmul.f32 %v4296, 0.03125
    %v4306 = vmul.f32 %v4298, 0.03125
    %v4307 = vsub.f32 %v4245, %v4299
    %v4308 = vsub.f32 %v4250, %v4300
    %v4309 = vsub.f32 %v4255, %v4301
    %v4310 = vsub.f32 %v4260, %v4302
    %v4311 = vsub.f32 %v4265, %v4303
    %v4312 = vsub.f32 %v4270, %v4304
    %v4313 = vsub.f32 %v4275, %v4305
    %v4314 = vsub.f32 %v4280, %v4306
    %v4315 = vmul.f32 %v4307, %v4307
    %v4316 = vmul.f32 %v4308, %v4308
    %v4317 = vmul.f32 %v4309, %v4309
    %v4318 = vmul.f32 %v4310, %v4310
    %v4319 = vmul.f32 %v4311, %v4311
    %v4320 = vmul.f32 %v4312, %v4312
    %v4321 = vmul.f32 %v4313, %v4313
    %v4322 = vmul.f32 %v4314, %v4314
    %v4323 = vsel %vm475, %v4315, 0.0
    %v4324 = vsel %vm475, %v4316, 0.0
    %v4325 = vsel %vm475, %v4317, 0.0
    %v4326 = vsel %vm475, %v4318, 0.0
    %v4327 = vsel %vm475, %v4319, 0.0
    %v4328 = vsel %vm475, %v4320, 0.0
    %v4329 = vsel %vm475, %v4321, 0.0
    %v4330 = vsel %vm475, %v4322, 0.0
    %4331 = vadd.xlane.f32.xlu0 %v4323
    %v4332 = vpop.xlane.xlu0 %4331
    %4333 = vadd.xlane.f32.xlu0 %v4324
    %v4334 = vpop.xlane.xlu0 %4333
    %4335 = vadd.xlane.f32.xlu0 %v4325
    %v4336 = vpop.xlane.xlu0 %4335
    %4337 = vadd.xlane.f32.xlu0 %v4326
    %v4338 = vpop.xlane.xlu0 %4337
    %4339 = vadd.xlane.f32.xlu0 %v4327
    %v4340 = vpop.xlane.xlu0 %4339
    %4341 = vadd.xlane.f32.xlu0 %v4328
    %v4342 = vpop.xlane.xlu0 %4341
    %4343 = vadd.xlane.f32.xlu0 %v4329
    %v4344 = vpop.xlane.xlu0 %4343
    %4345 = vadd.xlane.f32.xlu0 %v4330
    %v4346 = vpop.xlane.xlu0 %4345
    %v4347 = vmul.f32 %v4332, 0.03125
    %v4348 = vmul.f32 %v4334, 0.03125
    %v4349 = vmul.f32 %v4336, 0.03125
    %v4350 = vmul.f32 %v4338, 0.03125
    %v4351 = vmul.f32 %v4340, 0.03125
    %v4352 = vmul.f32 %v4342, 0.03125
    %v4353 = vmul.f32 %v4344, 0.03125
    %v4354 = vmul.f32 %v4346, 0.03125
    %v4355 = vadd.f32 %v4347, 1e-05
    %v4356 = vadd.f32 %v4348, 1e-05
    %v4357 = vadd.f32 %v4349, 1e-05
    %v4358 = vadd.f32 %v4350, 1e-05
    %v4359 = vadd.f32 %v4351, 1e-05
    %v4360 = vadd.f32 %v4352, 1e-05
    %v4361 = vadd.f32 %v4353, 1e-05
    %v4362 = vadd.f32 %v4354, 1e-05
    %v4363 = vrsqrt.pop %v4355
    %v4364 = vrsqrt.pop %v4356
    %v4365 = vrsqrt.pop %v4357
    %v4366 = vrsqrt.pop %v4358
    %v4367 = vrsqrt.pop %v4359
    %v4368 = vrsqrt.pop %v4360
    %v4369 = vrsqrt.pop %v4361
    %v4370 = vrsqrt.pop %v4362
    %v4371 = vmul.f32 %v4307, %v4363
    %v4372 = vmul.f32 %v4308, %v4364
    %v4373 = vmul.f32 %v4309, %v4365
    %v4374 = vmul.f32 %v4310, %v4366
    %v4375 = vmul.f32 %v4311, %v4367
    %v4376 = vmul.f32 %v4312, %v4368
    %v4377 = vmul.f32 %v4313, %v4369
    %v4378 = vmul.f32 %v4314, %v4370
    %v4379 = vlaneseq
    %v4380 = vshrl.u32 %v4379, 7
    %v4381 = vsub.s32 4, %v4380
    %v4382 = vrot.slane %v3692, %v4381
    %v4383 = vmul.f32 %v4371, %v4382
    %v4384 = vmul.f32 %v4372, %v4382
    %v4385 = vmul.f32 %v4373, %v4382
    %v4386 = vmul.f32 %v4374, %v4382
    %v4387 = vmul.f32 %v4375, %v4382
    %v4388 = vmul.f32 %v4376, %v4382
    %v4389 = vmul.f32 %v4377, %v4382
    %v4390 = vmul.f32 %v4378, %v4382
    %v4391 = vlaneseq
    %v4392 = vshrl.u32 %v4391, 7
    %v4393 = vsub.s32 5, %v4392
    %v4394 = vrot.slane %v3692, %v4393
    %v4395 = vadd.f32 %v4383, %v4394
    %v4396 = vadd.f32 %v4384, %v4394
    %v4397 = vadd.f32 %v4385, %v4394
    %v4398 = vadd.f32 %v4386, %v4394
    %v4399 = vadd.f32 %v4387, %v4394
    %v4400 = vadd.f32 %v4388, %v4394
    %v4401 = vadd.f32 %v4389, %v4394
    %v4402 = vadd.f32 %v4390, %v4394
    %s4403 = scalar_lea.vmem [#allocation13], 384
    %v4404 = vld [vmem:[%s4403] sm:$0xff]
    %v4405 = vld [vmem:[%s4403 + $0x8] sm:$0xff]
    %v4406 = vld [vmem:[%s4403 + $0x10] sm:$0xff]
    %v4407 = vld [vmem:[%s4403 + $0x18] sm:$0xff]
    %v4408 = vld [vmem:[%s4403 + $0x20] sm:$0xff]
    %v4409 = vld [vmem:[%s4403 + $0x28] sm:$0xff]
    %v4410 = vld [vmem:[%s4403 + $0x30] sm:$0xff]
    %v4411 = vld [vmem:[%s4403 + $0x38] sm:$0xff]
    %v4412 = vld [vmem:[%s4403 + $0x40] sm:$0xff]
    %v4413 = vld [vmem:[%s4403 + $0x48] sm:$0xff]
    %v4414 = vld [vmem:[%s4403 + $0x50] sm:$0xff]
    %v4415 = vld [vmem:[%s4403 + $0x58] sm:$0xff]
    %v4416 = vld [vmem:[%s4403 + $0x60] sm:$0xff]
    %v4417 = vld [vmem:[%s4403 + $0x68] sm:$0xff]
    %v4418 = vld [vmem:[%s4403 + $0x70] sm:$0xff]
    %v4419 = vld [vmem:[%s4403 + $0x78] sm:$0xff]
    %v4420 = vlaneseq
    %v4421 = vshrl.u32 %v4420, 7
    %v4422 = vsub.s32 6, %v4421
    %v4423 = vrot.slane %v3692, %v4422
    %4424 = vmatprep.subr.mxu0 0.0
    %4425 = vmatpush1.msra.mxu0 %v4404
    %4426 = vmatprep.subr.mxu0 0.0
    %4427 = vmatpush1.msra.mxu0 %v4405
    %4428 = vmatprep.subr.mxu0 0.0
    %4429 = vmatpush1.msra.mxu0 %v4406
    %4430 = vmatprep.subr.mxu0 0.0
    %4431 = vmatpush1.msra.mxu0 %v4407
    %4432 = vmatprep.subr.mxu0 0.0
    %4433 = vmatpush1.msra.mxu0 %v4408
    %4434 = vmatprep.subr.mxu0 0.0
    %4435 = vmatpush1.msra.mxu0 %v4409
    %4436 = vmatprep.subr.mxu0 0.0
    %4437 = vmatpush1.msra.mxu0 %v4410
    %4438 = vmatprep.subr.mxu0 0.0
    %4439 = vmatpush1.msra.mxu0 %v4411
    %4440 = vmatprep.subr.mxu0 0.0
    %4441 = vmatpush1.msra.mxu0 %v4412
    %4442 = vmatprep.subr.mxu0 0.0
    %4443 = vmatpush1.msra.mxu0 %v4413
    %4444 = vmatprep.subr.mxu0 0.0
    %4445 = vmatpush1.msra.mxu0 %v4414
    %4446 = vmatprep.subr.mxu0 0.0
    %4447 = vmatpush1.msra.mxu0 %v4415
    %4448 = vmatprep.subr.mxu0 0.0
    %4449 = vmatpush1.msra.mxu0 %v4416
    %4450 = vmatprep.subr.mxu0 0.0
    %4451 = vmatpush1.msra.mxu0 %v4417
    %4452 = vmatprep.subr.mxu0 0.0
    %4453 = vmatpush1.msra.mxu0 %v4418
    %4454 = vmatprep.subr.mxu0 0.0
    %4455 = vmatpush1.msra.mxu0 %v4419
    %4456 = vmatprep.subr.mxu0 0.0
    %4457 = vmatpush1.msra.mxu0 0.0
    %4458 = vmatprep.subr.mxu0 0.0
    %4459 = vmatpush1.msra.mxu0 0.0
    %4460 = vmatprep.subr.mxu0 0.0
    %4461 = vmatpush1.msra.mxu0 0.0
    %4462 = vmatprep.subr.mxu0 0.0
    %4463 = vmatpush1.msra.mxu0 0.0
    %4464 = vmatprep.subr.mxu0 0.0
    %4465 = vmatpush1.msra.mxu0 0.0
    %4466 = vmatprep.subr.mxu0 0.0
    %4467 = vmatpush1.msra.mxu0 0.0
    %4468 = vmatprep.subr.mxu0 0.0
    %4469 = vmatpush1.msra.mxu0 0.0
    %4470 = vmatprep.subr.mxu0 0.0
    %4471 = vmatpush1.msra.mxu0 0.0
    %4472 = vmatprep.subr.mxu0 0.0
    %4473 = vmatpush1.msra.mxu0 0.0
    %4474 = vmatprep.subr.mxu0 0.0
    %4475 = vmatpush1.msra.mxu0 0.0
    %4476 = vmatprep.subr.mxu0 0.0
    %4477 = vmatpush1.msra.mxu0 0.0
    %4478 = vmatprep.subr.mxu0 0.0
    %4479 = vmatpush1.msra.mxu0 0.0
    %4480 = vmatprep.subr.mxu0 0.0
    %4481 = vmatpush1.msra.mxu0 0.0
    %4482 = vmatprep.subr.mxu0 0.0
    %4483 = vmatpush1.msra.mxu0 0.0
    %4484 = vmatprep.subr.mxu0 0.0
    %4485 = vmatpush1.msra.mxu0 0.0
    %4486 = vmatprep.subr.mxu0 0.0
    %4487 = vmatpush1.msra.mxu0 0.0
    %4488 = vmatprep.mubr.f32.mxu0 0.0
    %4489 = vmatmul.mubr.f32.gmra.mrb[0].mxu0 %v4395
    %v4490 = vpop.f32.mrb[0].mxu0
    %v4491 = vadd.f32 %v4423, %v4490
    %v4492 = vpop.f32.mrb[0].mxu0
    %4493 = vmatprep.mubr.f32.mxu0 0.0
    %4494 = vmatmul.mubr.f32.gmra.mrb[0].mxu0 %v4396
    %v4495 = vpop.f32.mrb[0].mxu0
    %v4496 = vadd.f32 %v4423, %v4495
    %v4497 = vpop.f32.mrb[0].mxu0
    %4498 = vmatprep.mubr.f32.mxu0 0.0
    %4499 = vmatmul.mubr.f32.gmra.mrb[0].mxu0 %v4397
    %v4500 = vpop.f32.mrb[0].mxu0
    %v4501 = vadd.f32 %v4423, %v4500
    %v4502 = vpop.f32.mrb[0].mxu0
    %4503 = vmatprep.mubr.f32.mxu0 0.0
    %4504 = vmatmul.mubr.f32.gmra.mrb[0].mxu0 %v4398
    %v4505 = vpop.f32.mrb[0].mxu0
    %v4506 = vadd.f32 %v4423, %v4505
    %v4507 = vpop.f32.mrb[0].mxu0
    %4508 = vmatprep.mubr.f32.mxu0 0.0
    %4509 = vmatmul.mubr.f32.gmra.mrb[0].mxu0 %v4399
    %v4510 = vpop.f32.mrb[0].mxu0
    %v4511 = vadd.f32 %v4423, %v4510
    %v4512 = vpop.f32.mrb[0].mxu0
    %4513 = vmatprep.mubr.f32.mxu0 0.0
    %4514 = vmatmul.mubr.f32.gmra.mrb[0].mxu0 %v4400
    %v4515 = vpop.f32.mrb[0].mxu0
    %v4516 = vadd.f32 %v4423, %v4515
    %v4517 = vpop.f32.mrb[0].mxu0
    %4518 = vmatprep.mubr.f32.mxu0 0.0
    %4519 = vmatmul.mubr.f32.gmra.mrb[0].mxu0 %v4401
    %v4520 = vpop.f32.mrb[0].mxu0
    %v4521 = vadd.f32 %v4423, %v4520
    %v4522 = vpop.f32.mrb[0].mxu0
    %4523 = vmatprep.mubr.f32.mxu0 0.0
    %4524 = vmatmul.mubr.f32.gmra.mrb[0].mxu0 %v4402
    %v4525 = vpop.f32.mrb[0].mxu0
    %v4526 = vadd.f32 %v4423, %v4525
    %v4527 = vpop.f32.mrb[0].mxu0
    %4528 = vdwg.mxu0
    %v4529 = vmax.f32 %v4491, 0.0
    %v4530 = vmax.f32 %v4496, 0.0
    %v4531 = vmax.f32 %v4501, 0.0
    %v4532 = vmax.f32 %v4506, 0.0
    %v4533 = vmax.f32 %v4511, 0.0
    %v4534 = vmax.f32 %v4516, 0.0
    %v4535 = vmax.f32 %v4521, 0.0
    %v4536 = vmax.f32 %v4526, 0.0
    %s4537 = scalar_lea.vmem [#allocation14], 384
    %v4538 = vld [vmem:[%s4537] sm:$0xff]
    %v4539 = vld [vmem:[%s4537 + $0x8] sm:$0xff]
    %v4540 = vld [vmem:[%s4537 + $0x10] sm:$0xff]
    %v4541 = vld [vmem:[%s4537 + $0x18] sm:$0xff]
    %v4542 = vld [vmem:[%s4537 + $0x20] sm:$0xff]
    %v4543 = vld [vmem:[%s4537 + $0x28] sm:$0xff]
    %v4544 = vld [vmem:[%s4537 + $0x30] sm:$0xff]
    %v4545 = vld [vmem:[%s4537 + $0x38] sm:$0xff]
    %v4546 = vld [vmem:[%s4537 + $0x40] sm:$0xff]
    %v4547 = vld [vmem:[%s4537 + $0x48] sm:$0xff]
    %v4548 = vld [vmem:[%s4537 + $0x50] sm:$0xff]
    %v4549 = vld [vmem:[%s4537 + $0x58] sm:$0xff]
    %v4550 = vld [vmem:[%s4537 + $0x60] sm:$0xff]
    %v4551 = vld [vmem:[%s4537 + $0x68] sm:$0xff]
    %v4552 = vld [vmem:[%s4537 + $0x70] sm:$0xff]
    %v4553 = vld [vmem:[%s4537 + $0x78] sm:$0xff]
    %v4554 = vlaneseq
    %v4555 = vshrl.u32 %v4554, 7
    %v4556 = vsub.s32 7, %v4555
    %v4557 = vrot.slane %v3692, %v4556
    %4558 = vmatprep.subr.mxu0 0.0
    %4559 = vmatpush1.msra.mxu0 %v4538
    %4560 = vmatprep.subr.mxu0 0.0
    %4561 = vmatpush1.msra.mxu0 %v4539
    %4562 = vmatprep.subr.mxu0 0.0
    %4563 = vmatpush1.msra.mxu0 %v4540
    %4564 = vmatprep.subr.mxu0 0.0
    %4565 = vmatpush1.msra.mxu0 %v4541
    %4566 = vmatprep.subr.mxu0 0.0
    %4567 = vmatpush1.msra.mxu0 %v4542
    %4568 = vmatprep.subr.mxu0 0.0
    %4569 = vmatpush1.msra.mxu0 %v4543
    %4570 = vmatprep.subr.mxu0 0.0
    %4571 = vmatpush1.msra.mxu0 %v4544
    %4572 = vmatprep.subr.mxu0 0.0
    %4573 = vmatpush1.msra.mxu0 %v4545
    %4574 = vmatprep.subr.mxu0 0.0
    %4575 = vmatpush1.msra.mxu0 %v4546
    %4576 = vmatprep.subr.mxu0 0.0
    %4577 = vmatpush1.msra.mxu0 %v4547
    %4578 = vmatprep.subr.mxu0 0.0
    %4579 = vmatpush1.msra.mxu0 %v4548
    %4580 = vmatprep.subr.mxu0 0.0
    %4581 = vmatpush1.msra.mxu0 %v4549
    %4582 = vmatprep.subr.mxu0 0.0
    %4583 = vmatpush1.msra.mxu0 %v4550
    %4584 = vmatprep.subr.mxu0 0.0
    %4585 = vmatpush1.msra.mxu0 %v4551
    %4586 = vmatprep.subr.mxu0 0.0
    %4587 = vmatpush1.msra.mxu0 %v4552
    %4588 = vmatprep.subr.mxu0 0.0
    %4589 = vmatpush1.msra.mxu0 %v4553
    %4590 = vmatprep.subr.mxu0 0.0
    %4591 = vmatpush1.msra.mxu0 0.0
    %4592 = vmatprep.subr.mxu0 0.0
    %4593 = vmatpush1.msra.mxu0 0.0
    %4594 = vmatprep.subr.mxu0 0.0
    %4595 = vmatpush1.msra.mxu0 0.0
    %4596 = vmatprep.subr.mxu0 0.0
    %4597 = vmatpush1.msra.mxu0 0.0
    %4598 = vmatprep.subr.mxu0 0.0
    %4599 = vmatpush1.msra.mxu0 0.0
    %4600 = vmatprep.subr.mxu0 0.0
    %4601 = vmatpush1.msra.mxu0 0.0
    %4602 = vmatprep.subr.mxu0 0.0
    %4603 = vmatpush1.msra.mxu0 0.0
    %4604 = vmatprep.subr.mxu0 0.0
    %4605 = vmatpush1.msra.mxu0 0.0
    %4606 = vmatprep.subr.mxu0 0.0
    %4607 = vmatpush1.msra.mxu0 0.0
    %4608 = vmatprep.subr.mxu0 0.0
    %4609 = vmatpush1.msra.mxu0 0.0
    %4610 = vmatprep.subr.mxu0 0.0
    %4611 = vmatpush1.msra.mxu0 0.0
    %4612 = vmatprep.subr.mxu0 0.0
    %4613 = vmatpush1.msra.mxu0 0.0
    %4614 = vmatprep.subr.mxu0 0.0
    %4615 = vmatpush1.msra.mxu0 0.0
    %4616 = vmatprep.subr.mxu0 0.0
    %4617 = vmatpush1.msra.mxu0 0.0
    %4618 = vmatprep.subr.mxu0 0.0
    %4619 = vmatpush1.msra.mxu0 0.0
    %4620 = vmatprep.subr.mxu0 0.0
    %4621 = vmatpush1.msra.mxu0 0.0
    %4622 = vmatprep.mubr.f32.mxu0 0.0
    %4623 = vmatmul.mubr.f32.gmra.mrb[0].mxu0 %v4529
    %v4624 = vpop.f32.mrb[0].mxu0
    %v4625 = vadd.f32 %v4557, %v4624
    %v4626 = vpop.f32.mrb[0].mxu0
    %4627 = vmatprep.mubr.f32.mxu0 0.0
    %4628 = vmatmul.mubr.f32.gmra.mrb[0].mxu0 %v4530
    %v4629 = vpop.f32.mrb[0].mxu0
    %v4630 = vadd.f32 %v4557, %v4629
    %v4631 = vpop.f32.mrb[0].mxu0
    %4632 = vmatprep.mubr.f32.mxu0 0.0
    %4633 = vmatmul.mubr.f32.gmra.mrb[0].mxu0 %v4531
    %v4634 = vpop.f32.mrb[0].mxu0
    %v4635 = vadd.f32 %v4557, %v4634
    %v4636 = vpop.f32.mrb[0].mxu0
    %4637 = vmatprep.mubr.f32.mxu0 0.0
    %4638 = vmatmul.mubr.f32.gmra.mrb[0].mxu0 %v4532
    %v4639 = vpop.f32.mrb[0].mxu0
    %v4640 = vadd.f32 %v4557, %v4639
    %v4641 = vpop.f32.mrb[0].mxu0
    %4642 = vmatprep.mubr.f32.mxu0 0.0
    %4643 = vmatmul.mubr.f32.gmra.mrb[0].mxu0 %v4533
    %v4644 = vpop.f32.mrb[0].mxu0
    %v4645 = vadd.f32 %v4557, %v4644
    %v4646 = vpop.f32.mrb[0].mxu0
    %4647 = vmatprep.mubr.f32.mxu0 0.0
    %4648 = vmatmul.mubr.f32.gmra.mrb[0].mxu0 %v4534
    %v4649 = vpop.f32.mrb[0].mxu0
    %v4650 = vadd.f32 %v4557, %v4649
    %v4651 = vpop.f32.mrb[0].mxu0
    %4652 = vmatprep.mubr.f32.mxu0 0.0
    %4653 = vmatmul.mubr.f32.gmra.mrb[0].mxu0 %v4535
    %v4654 = vpop.f32.mrb[0].mxu0
    %v4655 = vadd.f32 %v4557, %v4654
    %v4656 = vpop.f32.mrb[0].mxu0
    %4657 = vmatprep.mubr.f32.mxu0 0.0
    %4658 = vmatmul.mubr.f32.gmra.mrb[0].mxu0 %v4536
    %v4659 = vpop.f32.mrb[0].mxu0
    %v4660 = vadd.f32 %v4557, %v4659
    %v4661 = vpop.f32.mrb[0].mxu0
    %4662 = vdwg.mxu0
    %v4663 = vxor.u32 %v4625, 2147483648
    %v4664 = vxor.u32 %v4630, 2147483648
    %v4665 = vxor.u32 %v4635, 2147483648
    %v4666 = vxor.u32 %v4640, 2147483648
    %v4667 = vxor.u32 %v4645, 2147483648
    %v4668 = vxor.u32 %v4650, 2147483648
    %v4669 = vxor.u32 %v4655, 2147483648
    %v4670 = vxor.u32 %v4660, 2147483648
    %v4671 = vmul.f32 %v4663, 1.442695
    %v4672 = vpow.pop %v4671
    %v4673 = vmul.f32 %v4664, 1.442695
    %v4674 = vpow.pop %v4673
    %v4675 = vmul.f32 %v4665, 1.442695
    %v4676 = vpow.pop %v4675
    %v4677 = vmul.f32 %v4666, 1.442695
    %v4678 = vpow.pop %v4677
    %v4679 = vmul.f32 %v4667, 1.442695
    %v4680 = vpow.pop %v4679
    %v4681 = vmul.f32 %v4668, 1.442695
    %v4682 = vpow.pop %v4681
    %v4683 = vmul.f32 %v4669, 1.442695
    %v4684 = vpow.pop %v4683
    %v4685 = vmul.f32 %v4670, 1.442695
    %v4686 = vpow.pop %v4685
    %v4687 = vadd.f32 %v4672, 1.0
    %v4688 = vadd.f32 %v4674, 1.0
    %v4689 = vadd.f32 %v4676, 1.0
    %v4690 = vadd.f32 %v4678, 1.0
    %v4691 = vadd.f32 %v4680, 1.0
    %v4692 = vadd.f32 %v4682, 1.0
    %v4693 = vadd.f32 %v4684, 1.0
    %v4694 = vadd.f32 %v4686, 1.0
    %v4695 = vrcp.pop %v4687
    %v4696 = vmul.f32 1.0, %v4695
    %v4697 = vrcp.pop %v4688
    %v4698 = vmul.f32 1.0, %v4697
    %v4699 = vrcp.pop %v4689
    %v4700 = vmul.f32 1.0, %v4699
    %v4701 = vrcp.pop %v4690
    %v4702 = vmul.f32 1.0, %v4701
    %v4703 = vrcp.pop %v4691
    %v4704 = vmul.f32 1.0, %v4703
    %v4705 = vrcp.pop %v4692
    %v4706 = vmul.f32 1.0, %v4705
    %v4707 = vrcp.pop %v4693
    %v4708 = vmul.f32 1.0, %v4707
    %v4709 = vrcp.pop %v4694
    %v4710 = vmul.f32 1.0, %v4709
    %v4711 = vmul.f32 %v4395, %v4696
    %v4712 = vmul.f32 %v4396, %v4698
    %v4713 = vmul.f32 %v4397, %v4700
    %v4714 = vmul.f32 %v4398, %v4702
    %v4715 = vmul.f32 %v4399, %v4704
    %v4716 = vmul.f32 %v4400, %v4706
    %v4717 = vmul.f32 %v4401, %v4708
    %v4718 = vmul.f32 %v4402, %v4710
    %v4719 = vadd.f32 %v4711, %v3683
    %v4720 = vadd.f32 %v4712, %v3684
    %v4721 = vadd.f32 %v4713, %v3685
    %v4722 = vadd.f32 %v4714, %v3686
    %v4723 = vadd.f32 %v4715, %v3687
    %v4724 = vadd.f32 %v4716, %v3688
    %v4725 = vadd.f32 %v4717, %v3689
    %v4726 = vadd.f32 %v4718, %v3690
    %v4727 = vmax.f32 %v4719, 0.0
    %v4728 = vmax.f32 %v4720, 0.0
    %v4729 = vmax.f32 %v4721, 0.0
    %v4730 = vmax.f32 %v4722, 0.0
    %v4731 = vmax.f32 %v4723, 0.0
    %v4732 = vmax.f32 %v4724, 0.0
    %v4733 = vmax.f32 %v4725, 0.0
    %v4734 = vmax.f32 %v4726, 0.0
    %s4735 = scalar_lea.vmem [#allocation16], 32
    %v4736 = vld [vmem:[%s4735] sm:$0xff]
    %s4737 = scalar_lea.vmem [#allocation10], 512
    %v4738 = vld [vmem:[%s4737] sm:$0xff]
    %v4739 = vld [vmem:[%s4737 + $0x8] sm:$0xff]
    %v4740 = vld [vmem:[%s4737 + $0x10] sm:$0xff]
    %v4741 = vld [vmem:[%s4737 + $0x18] sm:$0xff]
    %v4742 = vld [vmem:[%s4737 + $0x20] sm:$0xff]
    %v4743 = vld [vmem:[%s4737 + $0x28] sm:$0xff]
    %v4744 = vld [vmem:[%s4737 + $0x30] sm:$0xff]
    %v4745 = vld [vmem:[%s4737 + $0x38] sm:$0xff]
    %v4746 = vld [vmem:[%s4737 + $0x40] sm:$0xff]
    %v4747 = vld [vmem:[%s4737 + $0x48] sm:$0xff]
    %v4748 = vld [vmem:[%s4737 + $0x50] sm:$0xff]
    %v4749 = vld [vmem:[%s4737 + $0x58] sm:$0xff]
    %v4750 = vld [vmem:[%s4737 + $0x60] sm:$0xff]
    %v4751 = vld [vmem:[%s4737 + $0x68] sm:$0xff]
    %v4752 = vld [vmem:[%s4737 + $0x70] sm:$0xff]
    %v4753 = vld [vmem:[%s4737 + $0x78] sm:$0xff]
    %4754 = vmatprep.subr.mxu0 0.0
    %4755 = vmatpush1.msra.mxu0 %v4738
    %4756 = vmatprep.subr.mxu0 0.0
    %4757 = vmatpush1.msra.mxu0 %v4739
    %4758 = vmatprep.subr.mxu0 0.0
    %4759 = vmatpush1.msra.mxu0 %v4740
    %4760 = vmatprep.subr.mxu0 0.0
    %4761 = vmatpush1.msra.mxu0 %v4741
    %4762 = vmatprep.subr.mxu0 0.0
    %4763 = vmatpush1.msra.mxu0 %v4742
    %4764 = vmatprep.subr.mxu0 0.0
    %4765 = vmatpush1.msra.mxu0 %v4743
    %4766 = vmatprep.subr.mxu0 0.0
    %4767 = vmatpush1.msra.mxu0 %v4744
    %4768 = vmatprep.subr.mxu0 0.0
    %4769 = vmatpush1.msra.mxu0 %v4745
    %4770 = vmatprep.subr.mxu0 0.0
    %4771 = vmatpush1.msra.mxu0 %v4746
    %4772 = vmatprep.subr.mxu0 0.0
    %4773 = vmatpush1.msra.mxu0 %v4747
    %4774 = vmatprep.subr.mxu0 0.0
    %4775 = vmatpush1.msra.mxu0 %v4748
    %4776 = vmatprep.subr.mxu0 0.0
    %4777 = vmatpush1.msra.mxu0 %v4749
    %4778 = vmatprep.subr.mxu0 0.0
    %4779 = vmatpush1.msra.mxu0 %v4750
    %4780 = vmatprep.subr.mxu0 0.0
    %4781 = vmatpush1.msra.mxu0 %v4751
    %4782 = vmatprep.subr.mxu0 0.0
    %4783 = vmatpush1.msra.mxu0 %v4752
    %4784 = vmatprep.subr.mxu0 0.0
    %4785 = vmatpush1.msra.mxu0 %v4753
    %4786 = vmatprep.subr.mxu0 0.0
    %4787 = vmatpush1.msra.mxu0 0.0
    %4788 = vmatprep.subr.mxu0 0.0
    %4789 = vmatpush1.msra.mxu0 0.0
    %4790 = vmatprep.subr.mxu0 0.0
    %4791 = vmatpush1.msra.mxu0 0.0
    %4792 = vmatprep.subr.mxu0 0.0
    %4793 = vmatpush1.msra.mxu0 0.0
    %4794 = vmatprep.subr.mxu0 0.0
    %4795 = vmatpush1.msra.mxu0 0.0
    %4796 = vmatprep.subr.mxu0 0.0
    %4797 = vmatpush1.msra.mxu0 0.0
    %4798 = vmatprep.subr.mxu0 0.0
    %4799 = vmatpush1.msra.mxu0 0.0
    %4800 = vmatprep.subr.mxu0 0.0
    %4801 = vmatpush1.msra.mxu0 0.0
    %4802 = vmatprep.subr.mxu0 0.0
    %4803 = vmatpush1.msra.mxu0 0.0
    %4804 = vmatprep.subr.mxu0 0.0
    %4805 = vmatpush1.msra.mxu0 0.0
    %4806 = vmatprep.subr.mxu0 0.0
    %4807 = vmatpush1.msra.mxu0 0.0
    %4808 = vmatprep.subr.mxu0 0.0
    %4809 = vmatpush1.msra.mxu0 0.0
    %4810 = vmatprep.subr.mxu0 0.0
    %4811 = vmatpush1.msra.mxu0 0.0
    %4812 = vmatprep.subr.mxu0 0.0
    %4813 = vmatpush1.msra.mxu0 0.0
    %4814 = vmatprep.subr.mxu0 0.0
    %4815 = vmatpush1.msra.mxu0 0.0
    %4816 = vmatprep.subr.mxu0 0.0
    %4817 = vmatpush1.msra.mxu0 0.0
    %4818 = vmatprep.mubr.f32.mxu0 0.0
    %4819 = vmatmul.mubr.f32.gmra.mrb[0].mxu0 %v4727
    %v4820 = vpop.f32.mrb[0].mxu0
    %v4821 = vadd.f32 0.0, %v4820
    %v4822 = vpop.f32.mrb[0].mxu0
    %4823 = vmatprep.mubr.f32.mxu0 0.0
    %4824 = vmatmul.mubr.f32.gmra.mrb[0].mxu0 %v4728
    %v4825 = vpop.f32.mrb[0].mxu0
    %v4826 = vadd.f32 0.0, %v4825
    %v4827 = vpop.f32.mrb[0].mxu0
    %4828 = vmatprep.mubr.f32.mxu0 0.0
    %4829 = vmatmul.mubr.f32.gmra.mrb[0].mxu0 %v4729
    %v4830 = vpop.f32.mrb[0].mxu0
    %v4831 = vadd.f32 0.0, %v4830
    %v4832 = vpop.f32.mrb[0].mxu0
    %4833 = vmatprep.mubr.f32.mxu0 0.0
    %4834 = vmatmul.mubr.f32.gmra.mrb[0].mxu0 %v4730
    %v4835 = vpop.f32.mrb[0].mxu0
    %v4836 = vadd.f32 0.0, %v4835
    %v4837 = vpop.f32.mrb[0].mxu0
    %4838 = vmatprep.mubr.f32.mxu0 0.0
    %4839 = vmatmul.mubr.f32.gmra.mrb[0].mxu0 %v4731
    %v4840 = vpop.f32.mrb[0].mxu0
    %v4841 = vadd.f32 0.0, %v4840
    %v4842 = vpop.f32.mrb[0].mxu0
    %4843 = vmatprep.mubr.f32.mxu0 0.0
    %4844 = vmatmul.mubr.f32.gmra.mrb[0].mxu0 %v4732
    %v4845 = vpop.f32.mrb[0].mxu0
    %v4846 = vadd.f32 0.0, %v4845
    %v4847 = vpop.f32.mrb[0].mxu0
    %4848 = vmatprep.mubr.f32.mxu0 0.0
    %4849 = vmatmul.mubr.f32.gmra.mrb[0].mxu0 %v4733
    %v4850 = vpop.f32.mrb[0].mxu0
    %v4851 = vadd.f32 0.0, %v4850
    %v4852 = vpop.f32.mrb[0].mxu0
    %4853 = vmatprep.mubr.f32.mxu0 0.0
    %4854 = vmatmul.mubr.f32.gmra.mrb[0].mxu0 %v4734
    %v4855 = vpop.f32.mrb[0].mxu0
    %v4856 = vadd.f32 0.0, %v4855
    %v4857 = vpop.f32.mrb[0].mxu0
    %4858 = vdwg.mxu0
    %v4859 = vlaneseq
    %v4860 = vshrl.u32 %v4859, 7
    %v4861 = vsub.s32 0, %v4860
    %v4862 = vrot.slane %v4736, %v4861
    %4863 = vmatprep.subr.mxu0 0.0
    %4864 = vmatpush1.msra.mxu0 %v4821
    %4865 = vmatprep.subr.mxu0 0.0
    %4866 = vmatpush1.msra.mxu0 %v4826
    %4867 = vmatprep.subr.mxu0 0.0
    %4868 = vmatpush1.msra.mxu0 %v4831
    %4869 = vmatprep.subr.mxu0 0.0
    %4870 = vmatpush1.msra.mxu0 %v4836
    %4871 = vmatprep.subr.mxu0 0.0
    %4872 = vmatpush1.msra.mxu0 %v4841
    %4873 = vmatprep.subr.mxu0 0.0
    %4874 = vmatpush1.msra.mxu0 %v4846
    %4875 = vmatprep.subr.mxu0 0.0
    %4876 = vmatpush1.msra.mxu0 %v4851
    %4877 = vmatprep.subr.mxu0 0.0
    %4878 = vmatpush1.msra.mxu0 %v4856
    %4879 = vmatprep.subr.mxu0 0.0
    %4880 = vmatpush1.msra.mxu0 0.0
    %4881 = vmatprep.subr.mxu0 0.0
    %4882 = vmatpush1.msra.mxu0 0.0
    %4883 = vmatprep.subr.mxu0 0.0
    %4884 = vmatpush1.msra.mxu0 0.0
    %4885 = vmatprep.subr.mxu0 0.0
    %4886 = vmatpush1.msra.mxu0 0.0
    %4887 = vmatprep.subr.mxu0 0.0
    %4888 = vmatpush1.msra.mxu0 0.0
    %4889 = vmatprep.subr.mxu0 0.0
    %4890 = vmatpush1.msra.mxu0 0.0
    %4891 = vmatprep.subr.mxu0 0.0
    %4892 = vmatpush1.msra.mxu0 0.0
    %4893 = vmatprep.subr.mxu0 0.0
    %4894 = vmatpush1.msra.mxu0 0.0
    %4895 = vmatprep.subr.mxu0 0.0
    %4896 = vmatpush1.msra.mxu0 0.0
    %4897 = vmatprep.subr.mxu0 0.0
    %4898 = vmatpush1.msra.mxu0 0.0
    %4899 = vmatprep.subr.mxu0 0.0
    %4900 = vmatpush1.msra.mxu0 0.0
    %4901 = vmatprep.subr.mxu0 0.0
    %4902 = vmatpush1.msra.mxu0 0.0
    %4903 = vmatprep.subr.mxu0 0.0
    %4904 = vmatpush1.msra.mxu0 0.0
    %4905 = vmatprep.subr.mxu0 0.0
    %4906 = vmatpush1.msra.mxu0 0.0
    %4907 = vmatprep.subr.mxu0 0.0
    %4908 = vmatpush1.msra.mxu0 0.0
    %4909 = vmatprep.subr.mxu0 0.0
    %4910 = vmatpush1.msra.mxu0 0.0
    %4911 = vmatprep.subr.mxu0 0.0
    %4912 = vmatpush1.msra.mxu0 0.0
    %4913 = vmatprep.subr.mxu0 0.0
    %4914 = vmatpush1.msra.mxu0 0.0
    %4915 = vmatprep.subr.mxu0 0.0
    %4916 = vmatpush1.msra.mxu0 0.0
    %4917 = vmatprep.subr.mxu0 0.0
    %4918 = vmatpush1.msra.mxu0 0.0
    %4919 = vmatprep.subr.mxu0 0.0
    %4920 = vmatpush1.msra.mxu0 0.0
    %4921 = vmatprep.subr.mxu0 0.0
    %4922 = vmatpush1.msra.mxu0 0.0
    %4923 = vmatprep.subr.mxu0 0.0
    %4924 = vmatpush1.msra.mxu0 0.0
    %4925 = vmatprep.subr.mxu0 0.0
    %4926 = vmatpush1.msra.mxu0 0.0
    %4927 = vmatprep.mubr.f32.mxu0 0.0
    %4928 = vmatmul.mubr.f32.gmra.mrb[0].mxu0 %v306
    %v4929 = vpop.f32.mrb[0].mxu0
    %v4930 = vadd.f32 %v4862, %v4929
    %v4931 = vpop.f32.mrb[0].mxu0
    %4932 = vmatprep.mubr.f32.mxu0 0.0
    %4933 = vmatmul.mubr.f32.gmra.mrb[0].mxu0 %v309
    %v4934 = vpop.f32.mrb[0].mxu0
    %v4935 = vadd.f32 %v4862, %v4934
    %v4936 = vpop.f32.mrb[0].mxu0
    %4937 = vmatprep.mubr.f32.mxu0 0.0
    %4938 = vmatmul.mubr.f32.gmra.mrb[0].mxu0 %v312
    %v4939 = vpop.f32.mrb[0].mxu0
    %v4940 = vadd.f32 %v4862, %v4939
    %v4941 = vpop.f32.mrb[0].mxu0
    %4942 = vmatprep.mubr.f32.mxu0 0.0
    %4943 = vmatmul.mubr.f32.gmra.mrb[0].mxu0 %v315
    %v4944 = vpop.f32.mrb[0].mxu0
    %v4945 = vadd.f32 %v4862, %v4944
    %v4946 = vpop.f32.mrb[0].mxu0
    %4947 = vmatprep.mubr.f32.mxu0 0.0
    %4948 = vmatmul.mubr.f32.gmra.mrb[0].mxu0 %v318
    %v4949 = vpop.f32.mrb[0].mxu0
    %v4950 = vadd.f32 %v4862, %v4949
    %v4951 = vpop.f32.mrb[0].mxu0
    %4952 = vmatprep.mubr.f32.mxu0 0.0
    %4953 = vmatmul.mubr.f32.gmra.mrb[0].mxu0 %v321
    %v4954 = vpop.f32.mrb[0].mxu0
    %v4955 = vadd.f32 %v4862, %v4954
    %v4956 = vpop.f32.mrb[0].mxu0
    %4957 = vmatprep.mubr.f32.mxu0 0.0
    %4958 = vmatmul.mubr.f32.gmra.mrb[0].mxu0 %v324
    %v4959 = vpop.f32.mrb[0].mxu0
    %v4960 = vadd.f32 %v4862, %v4959
    %v4961 = vpop.f32.mrb[0].mxu0
    %4962 = vmatprep.mubr.f32.mxu0 0.0
    %4963 = vmatmul.mubr.f32.gmra.mrb[0].mxu0 %v327
    %v4964 = vpop.f32.mrb[0].mxu0
    %v4965 = vadd.f32 %v4862, %v4964
    %v4966 = vpop.f32.mrb[0].mxu0
    %4967 = vdwg.mxu0
    %4968 = vadd.xlane.f32.xlu0 %v4930
    %v4969 = vpop.xlane.xlu0 %4968
    %4970 = vadd.xlane.f32.xlu0 %v4935
    %v4971 = vpop.xlane.xlu0 %4970
    %4972 = vadd.xlane.f32.xlu0 %v4940
    %v4973 = vpop.xlane.xlu0 %4972
    %4974 = vadd.xlane.f32.xlu0 %v4945
    %v4975 = vpop.xlane.xlu0 %4974
    %4976 = vadd.xlane.f32.xlu0 %v4950
    %v4977 = vpop.xlane.xlu0 %4976
    %4978 = vadd.xlane.f32.xlu0 %v4955
    %v4979 = vpop.xlane.xlu0 %4978
    %4980 = vadd.xlane.f32.xlu0 %v4960
    %v4981 = vpop.xlane.xlu0 %4980
    %4982 = vadd.xlane.f32.xlu0 %v4965
    %v4983 = vpop.xlane.xlu0 %4982
    %v4984 = vmul.f32 %v4969, 0.03125
    %v4985 = vmul.f32 %v4971, 0.03125
    %v4986 = vmul.f32 %v4973, 0.03125
    %v4987 = vmul.f32 %v4975, 0.03125
    %v4988 = vmul.f32 %v4977, 0.03125
    %v4989 = vmul.f32 %v4979, 0.03125
    %v4990 = vmul.f32 %v4981, 0.03125
    %v4991 = vmul.f32 %v4983, 0.03125
    %v4992 = vsub.f32 %v4930, %v4984
    %v4993 = vsub.f32 %v4935, %v4985
    %v4994 = vsub.f32 %v4940, %v4986
    %v4995 = vsub.f32 %v4945, %v4987
    %v4996 = vsub.f32 %v4950, %v4988
    %v4997 = vsub.f32 %v4955, %v4989
    %v4998 = vsub.f32 %v4960, %v4990
    %v4999 = vsub.f32 %v4965, %v4991
    %v5000 = vmul.f32 %v4992, %v4992
    %v5001 = vmul.f32 %v4993, %v4993
    %v5002 = vmul.f32 %v4994, %v4994
    %v5003 = vmul.f32 %v4995, %v4995
    %v5004 = vmul.f32 %v4996, %v4996
    %v5005 = vmul.f32 %v4997, %v4997
    %v5006 = vmul.f32 %v4998, %v4998
    %v5007 = vmul.f32 %v4999, %v4999
    %v5008 = vsel %vm475, %v5000, 0.0
    %v5009 = vsel %vm475, %v5001, 0.0
    %v5010 = vsel %vm475, %v5002, 0.0
    %v5011 = vsel %vm475, %v5003, 0.0
    %v5012 = vsel %vm475, %v5004, 0.0
    %v5013 = vsel %vm475, %v5005, 0.0
    %v5014 = vsel %vm475, %v5006, 0.0
    %v5015 = vsel %vm475, %v5007, 0.0
    %5016 = vadd.xlane.f32.xlu0 %v5008
    %v5017 = vpop.xlane.xlu0 %5016
    %5018 = vadd.xlane.f32.xlu0 %v5009
    %v5019 = vpop.xlane.xlu0 %5018
    %5020 = vadd.xlane.f32.xlu0 %v5010
    %v5021 = vpop.xlane.xlu0 %5020
    %5022 = vadd.xlane.f32.xlu0 %v5011
    %v5023 = vpop.xlane.xlu0 %5022
    %5024 = vadd.xlane.f32.xlu0 %v5012
    %v5025 = vpop.xlane.xlu0 %5024
    %5026 = vadd.xlane.f32.xlu0 %v5013
    %v5027 = vpop.xlane.xlu0 %5026
    %5028 = vadd.xlane.f32.xlu0 %v5014
    %v5029 = vpop.xlane.xlu0 %5028
    %5030 = vadd.xlane.f32.xlu0 %v5015
    %v5031 = vpop.xlane.xlu0 %5030
    %v5032 = vmul.f32 %v5017, 0.03125
    %v5033 = vmul.f32 %v5019, 0.03125
    %v5034 = vmul.f32 %v5021, 0.03125
    %v5035 = vmul.f32 %v5023, 0.03125
    %v5036 = vmul.f32 %v5025, 0.03125
    %v5037 = vmul.f32 %v5027, 0.03125
    %v5038 = vmul.f32 %v5029, 0.03125
    %v5039 = vmul.f32 %v5031, 0.03125
    %v5040 = vadd.f32 %v5032, 1e-05
    %v5041 = vadd.f32 %v5033, 1e-05
    %v5042 = vadd.f32 %v5034, 1e-05
    %v5043 = vadd.f32 %v5035, 1e-05
    %v5044 = vadd.f32 %v5036, 1e-05
    %v5045 = vadd.f32 %v5037, 1e-05
    %v5046 = vadd.f32 %v5038, 1e-05
    %v5047 = vadd.f32 %v5039, 1e-05
    %v5048 = vrsqrt.pop %v5040
    %v5049 = vrsqrt.pop %v5041
    %v5050 = vrsqrt.pop %v5042
    %v5051 = vrsqrt.pop %v5043
    %v5052 = vrsqrt.pop %v5044
    %v5053 = vrsqrt.pop %v5045
    %v5054 = vrsqrt.pop %v5046
    %v5055 = vrsqrt.pop %v5047
    %v5056 = vmul.f32 %v4992, %v5048
    %v5057 = vmul.f32 %v4993, %v5049
    %v5058 = vmul.f32 %v4994, %v5050
    %v5059 = vmul.f32 %v4995, %v5051
    %v5060 = vmul.f32 %v4996, %v5052
    %v5061 = vmul.f32 %v4997, %v5053
    %v5062 = vmul.f32 %v4998, %v5054
    %v5063 = vmul.f32 %v4999, %v5055
    %v5064 = vlaneseq
    %v5065 = vshrl.u32 %v5064, 7
    %v5066 = vsub.s32 1, %v5065
    %v5067 = vrot.slane %v4736, %v5066
    %v5068 = vmul.f32 %v5056, %v5067
    %v5069 = vmul.f32 %v5057, %v5067
    %v5070 = vmul.f32 %v5058, %v5067
    %v5071 = vmul.f32 %v5059, %v5067
    %v5072 = vmul.f32 %v5060, %v5067
    %v5073 = vmul.f32 %v5061, %v5067
    %v5074 = vmul.f32 %v5062, %v5067
    %v5075 = vmul.f32 %v5063, %v5067
    %v5076 = vlaneseq
    %v5077 = vshrl.u32 %v5076, 7
    %v5078 = vsub.s32 2, %v5077
    %v5079 = vrot.slane %v4736, %v5078
    %v5080 = vadd.f32 %v5068, %v5079
    %v5081 = vadd.f32 %v5069, %v5079
    %v5082 = vadd.f32 %v5070, %v5079
    %v5083 = vadd.f32 %v5071, %v5079
    %v5084 = vadd.f32 %v5072, %v5079
    %v5085 = vadd.f32 %v5073, %v5079
    %v5086 = vadd.f32 %v5074, %v5079
    %v5087 = vadd.f32 %v5075, %v5079
    %v5088 = vmax.f32 %v5080, 0.0
    %v5089 = vmax.f32 %v5081, 0.0
    %v5090 = vmax.f32 %v5082, 0.0
    %v5091 = vmax.f32 %v5083, 0.0
    %v5092 = vmax.f32 %v5084, 0.0
    %v5093 = vmax.f32 %v5085, 0.0
    %v5094 = vmax.f32 %v5086, 0.0
    %v5095 = vmax.f32 %v5087, 0.0
    %s5096 = scalar_lea.vmem [#allocation11], 512
    %v5097 = vld [vmem:[%s5096] sm:$0xff]
    %v5098 = vld [vmem:[%s5096 + $0x8] sm:$0xff]
    %v5099 = vld [vmem:[%s5096 + $0x10] sm:$0xff]
    %v5100 = vld [vmem:[%s5096 + $0x18] sm:$0xff]
    %v5101 = vld [vmem:[%s5096 + $0x20] sm:$0xff]
    %v5102 = vld [vmem:[%s5096 + $0x28] sm:$0xff]
    %v5103 = vld [vmem:[%s5096 + $0x30] sm:$0xff]
    %v5104 = vld [vmem:[%s5096 + $0x38] sm:$0xff]
    %v5105 = vld [vmem:[%s5096 + $0x40] sm:$0xff]
    %v5106 = vld [vmem:[%s5096 + $0x48] sm:$0xff]
    %v5107 = vld [vmem:[%s5096 + $0x50] sm:$0xff]
    %v5108 = vld [vmem:[%s5096 + $0x58] sm:$0xff]
    %v5109 = vld [vmem:[%s5096 + $0x60] sm:$0xff]
    %v5110 = vld [vmem:[%s5096 + $0x68] sm:$0xff]
    %v5111 = vld [vmem:[%s5096 + $0x70] sm:$0xff]
    %v5112 = vld [vmem:[%s5096 + $0x78] sm:$0xff]
    %5113 = vmatprep.subr.mxu0 0.0
    %5114 = vmatpush1.msra.mxu0 %v5097
    %5115 = vmatprep.subr.mxu0 0.0
    %5116 = vmatpush1.msra.mxu0 %v5098
    %5117 = vmatprep.subr.mxu0 0.0
    %5118 = vmatpush1.msra.mxu0 %v5099
    %5119 = vmatprep.subr.mxu0 0.0
    %5120 = vmatpush1.msra.mxu0 %v5100
    %5121 = vmatprep.subr.mxu0 0.0
    %5122 = vmatpush1.msra.mxu0 %v5101
    %5123 = vmatprep.subr.mxu0 0.0
    %5124 = vmatpush1.msra.mxu0 %v5102
    %5125 = vmatprep.subr.mxu0 0.0
    %5126 = vmatpush1.msra.mxu0 %v5103
    %5127 = vmatprep.subr.mxu0 0.0
    %5128 = vmatpush1.msra.mxu0 %v5104
    %5129 = vmatprep.subr.mxu0 0.0
    %5130 = vmatpush1.msra.mxu0 %v5105
    %5131 = vmatprep.subr.mxu0 0.0
    %5132 = vmatpush1.msra.mxu0 %v5106
    %5133 = vmatprep.subr.mxu0 0.0
    %5134 = vmatpush1.msra.mxu0 %v5107
    %5135 = vmatprep.subr.mxu0 0.0
    %5136 = vmatpush1.msra.mxu0 %v5108
    %5137 = vmatprep.subr.mxu0 0.0
    %5138 = vmatpush1.msra.mxu0 %v5109
    %5139 = vmatprep.subr.mxu0 0.0
    %5140 = vmatpush1.msra.mxu0 %v5110
    %5141 = vmatprep.subr.mxu0 0.0
    %5142 = vmatpush1.msra.mxu0 %v5111
    %5143 = vmatprep.subr.mxu0 0.0
    %5144 = vmatpush1.msra.mxu0 %v5112
    %5145 = vmatprep.subr.mxu0 0.0
    %5146 = vmatpush1.msra.mxu0 0.0
    %5147 = vmatprep.subr.mxu0 0.0
    %5148 = vmatpush1.msra.mxu0 0.0
    %5149 = vmatprep.subr.mxu0 0.0
    %5150 = vmatpush1.msra.mxu0 0.0
    %5151 = vmatprep.subr.mxu0 0.0
    %5152 = vmatpush1.msra.mxu0 0.0
    %5153 = vmatprep.subr.mxu0 0.0
    %5154 = vmatpush1.msra.mxu0 0.0
    %5155 = vmatprep.subr.mxu0 0.0
    %5156 = vmatpush1.msra.mxu0 0.0
    %5157 = vmatprep.subr.mxu0 0.0
    %5158 = vmatpush1.msra.mxu0 0.0
    %5159 = vmatprep.subr.mxu0 0.0
    %5160 = vmatpush1.msra.mxu0 0.0
    %5161 = vmatprep.subr.mxu0 0.0
    %5162 = vmatpush1.msra.mxu0 0.0
    %5163 = vmatprep.subr.mxu0 0.0
    %5164 = vmatpush1.msra.mxu0 0.0
    %5165 = vmatprep.subr.mxu0 0.0
    %5166 = vmatpush1.msra.mxu0 0.0
    %5167 = vmatprep.subr.mxu0 0.0
    %5168 = vmatpush1.msra.mxu0 0.0
    %5169 = vmatprep.subr.mxu0 0.0
    %5170 = vmatpush1.msra.mxu0 0.0
    %5171 = vmatprep.subr.mxu0 0.0
    %5172 = vmatpush1.msra.mxu0 0.0
    %5173 = vmatprep.subr.mxu0 0.0
    %5174 = vmatpush1.msra.mxu0 0.0
    %5175 = vmatprep.subr.mxu0 0.0
    %5176 = vmatpush1.msra.mxu0 0.0
    %5177 = vmatprep.mubr.f32.mxu0 0.0
    %5178 = vmatmul.mubr.f32.gmra.mrb[0].mxu0 %v5088
    %v5179 = vpop.f32.mrb[0].mxu0
    %v5180 = vadd.f32 0.0, %v5179
    %v5181 = vpop.f32.mrb[0].mxu0
    %5182 = vmatprep.mubr.f32.mxu0 0.0
    %5183 = vmatmul.mubr.f32.gmra.mrb[0].mxu0 %v5089
    %v5184 = vpop.f32.mrb[0].mxu0
    %v5185 = vadd.f32 0.0, %v5184
    %v5186 = vpop.f32.mrb[0].mxu0
    %5187 = vmatprep.mubr.f32.mxu0 0.0
    %5188 = vmatmul.mubr.f32.gmra.mrb[0].mxu0 %v5090
    %v5189 = vpop.f32.mrb[0].mxu0
    %v5190 = vadd.f32 0.0, %v5189
    %v5191 = vpop.f32.mrb[0].mxu0
    %5192 = vmatprep.mubr.f32.mxu0 0.0
    %5193 = vmatmul.mubr.f32.gmra.mrb[0].mxu0 %v5091
    %v5194 = vpop.f32.mrb[0].mxu0
    %v5195 = vadd.f32 0.0, %v5194
    %v5196 = vpop.f32.mrb[0].mxu0
    %5197 = vmatprep.mubr.f32.mxu0 0.0
    %5198 = vmatmul.mubr.f32.gmra.mrb[0].mxu0 %v5092
    %v5199 = vpop.f32.mrb[0].mxu0
    %v5200 = vadd.f32 0.0, %v5199
    %v5201 = vpop.f32.mrb[0].mxu0
    %5202 = vmatprep.mubr.f32.mxu0 0.0
    %5203 = vmatmul.mubr.f32.gmra.mrb[0].mxu0 %v5093
    %v5204 = vpop.f32.mrb[0].mxu0
    %v5205 = vadd.f32 0.0, %v5204
    %v5206 = vpop.f32.mrb[0].mxu0
    %5207 = vmatprep.mubr.f32.mxu0 0.0
    %5208 = vmatmul.mubr.f32.gmra.mrb[0].mxu0 %v5094
    %v5209 = vpop.f32.mrb[0].mxu0
    %v5210 = vadd.f32 0.0, %v5209
    %v5211 = vpop.f32.mrb[0].mxu0
    %5212 = vmatprep.mubr.f32.mxu0 0.0
    %5213 = vmatmul.mubr.f32.gmra.mrb[0].mxu0 %v5095
    %v5214 = vpop.f32.mrb[0].mxu0
    %v5215 = vadd.f32 0.0, %v5214
    %v5216 = vpop.f32.mrb[0].mxu0
    %5217 = vdwg.mxu0
    %v5218 = vlaneseq
    %v5219 = vshrl.u32 %v5218, 7
    %v5220 = vsub.s32 3, %v5219
    %v5221 = vrot.slane %v4736, %v5220
    %5222 = vmatprep.subr.mxu0 0.0
    %5223 = vmatpush1.msra.mxu0 %v5180
    %5224 = vmatprep.subr.mxu0 0.0
    %5225 = vmatpush1.msra.mxu0 %v5185
    %5226 = vmatprep.subr.mxu0 0.0
    %5227 = vmatpush1.msra.mxu0 %v5190
    %5228 = vmatprep.subr.mxu0 0.0
    %5229 = vmatpush1.msra.mxu0 %v5195
    %5230 = vmatprep.subr.mxu0 0.0
    %5231 = vmatpush1.msra.mxu0 %v5200
    %5232 = vmatprep.subr.mxu0 0.0
    %5233 = vmatpush1.msra.mxu0 %v5205
    %5234 = vmatprep.subr.mxu0 0.0
    %5235 = vmatpush1.msra.mxu0 %v5210
    %5236 = vmatprep.subr.mxu0 0.0
    %5237 = vmatpush1.msra.mxu0 %v5215
    %5238 = vmatprep.subr.mxu0 0.0
    %5239 = vmatpush1.msra.mxu0 0.0
    %5240 = vmatprep.subr.mxu0 0.0
    %5241 = vmatpush1.msra.mxu0 0.0
    %5242 = vmatprep.subr.mxu0 0.0
    %5243 = vmatpush1.msra.mxu0 0.0
    %5244 = vmatprep.subr.mxu0 0.0
    %5245 = vmatpush1.msra.mxu0 0.0
    %5246 = vmatprep.subr.mxu0 0.0
    %5247 = vmatpush1.msra.mxu0 0.0
    %5248 = vmatprep.subr.mxu0 0.0
    %5249 = vmatpush1.msra.mxu0 0.0
    %5250 = vmatprep.subr.mxu0 0.0
    %5251 = vmatpush1.msra.mxu0 0.0
    %5252 = vmatprep.subr.mxu0 0.0
    %5253 = vmatpush1.msra.mxu0 0.0
    %5254 = vmatprep.subr.mxu0 0.0
    %5255 = vmatpush1.msra.mxu0 0.0
    %5256 = vmatprep.subr.mxu0 0.0
    %5257 = vmatpush1.msra.mxu0 0.0
    %5258 = vmatprep.subr.mxu0 0.0
    %5259 = vmatpush1.msra.mxu0 0.0
    %5260 = vmatprep.subr.mxu0 0.0
    %5261 = vmatpush1.msra.mxu0 0.0
    %5262 = vmatprep.subr.mxu0 0.0
    %5263 = vmatpush1.msra.mxu0 0.0
    %5264 = vmatprep.subr.mxu0 0.0
    %5265 = vmatpush1.msra.mxu0 0.0
    %5266 = vmatprep.subr.mxu0 0.0
    %5267 = vmatpush1.msra.mxu0 0.0
    %5268 = vmatprep.subr.mxu0 0.0
    %5269 = vmatpush1.msra.mxu0 0.0
    %5270 = vmatprep.subr.mxu0 0.0
    %5271 = vmatpush1.msra.mxu0 0.0
    %5272 = vmatprep.subr.mxu0 0.0
    %5273 = vmatpush1.msra.mxu0 0.0
    %5274 = vmatprep.subr.mxu0 0.0
    %5275 = vmatpush1.msra.mxu0 0.0
    %5276 = vmatprep.subr.mxu0 0.0
    %5277 = vmatpush1.msra.mxu0 0.0
    %5278 = vmatprep.subr.mxu0 0.0
    %5279 = vmatpush1.msra.mxu0 0.0
    %5280 = vmatprep.subr.mxu0 0.0
    %5281 = vmatpush1.msra.mxu0 0.0
    %5282 = vmatprep.subr.mxu0 0.0
    %5283 = vmatpush1.msra.mxu0 0.0
    %5284 = vmatprep.subr.mxu0 0.0
    %5285 = vmatpush1.msra.mxu0 0.0
    %5286 = vmatprep.mubr.f32.mxu0 0.0
    %5287 = vmatmul.mubr.f32.gmra.mrb[0].mxu0 %v306
    %v5288 = vpop.f32.mrb[0].mxu0
    %v5289 = vadd.f32 %v5221, %v5288
    %v5290 = vpop.f32.mrb[0].mxu0
    %5291 = vmatprep.mubr.f32.mxu0 0.0
    %5292 = vmatmul.mubr.f32.gmra.mrb[0].mxu0 %v309
    %v5293 = vpop.f32.mrb[0].mxu0
    %v5294 = vadd.f32 %v5221, %v5293
    %v5295 = vpop.f32.mrb[0].mxu0
    %5296 = vmatprep.mubr.f32.mxu0 0.0
    %5297 = vmatmul.mubr.f32.gmra.mrb[0].mxu0 %v312
    %v5298 = vpop.f32.mrb[0].mxu0
    %v5299 = vadd.f32 %v5221, %v5298
    %v5300 = vpop.f32.mrb[0].mxu0
    %5301 = vmatprep.mubr.f32.mxu0 0.0
    %5302 = vmatmul.mubr.f32.gmra.mrb[0].mxu0 %v315
    %v5303 = vpop.f32.mrb[0].mxu0
    %v5304 = vadd.f32 %v5221, %v5303
    %v5305 = vpop.f32.mrb[0].mxu0
    %5306 = vmatprep.mubr.f32.mxu0 0.0
    %5307 = vmatmul.mubr.f32.gmra.mrb[0].mxu0 %v318
    %v5308 = vpop.f32.mrb[0].mxu0
    %v5309 = vadd.f32 %v5221, %v5308
    %v5310 = vpop.f32.mrb[0].mxu0
    %5311 = vmatprep.mubr.f32.mxu0 0.0
    %5312 = vmatmul.mubr.f32.gmra.mrb[0].mxu0 %v321
    %v5313 = vpop.f32.mrb[0].mxu0
    %v5314 = vadd.f32 %v5221, %v5313
    %v5315 = vpop.f32.mrb[0].mxu0
    %5316 = vmatprep.mubr.f32.mxu0 0.0
    %5317 = vmatmul.mubr.f32.gmra.mrb[0].mxu0 %v324
    %v5318 = vpop.f32.mrb[0].mxu0
    %v5319 = vadd.f32 %v5221, %v5318
    %v5320 = vpop.f32.mrb[0].mxu0
    %5321 = vmatprep.mubr.f32.mxu0 0.0
    %5322 = vmatmul.mubr.f32.gmra.mrb[0].mxu0 %v327
    %v5323 = vpop.f32.mrb[0].mxu0
    %v5324 = vadd.f32 %v5221, %v5323
    %v5325 = vpop.f32.mrb[0].mxu0
    %5326 = vdwg.mxu0
    %5327 = vadd.xlane.f32.xlu0 %v5289
    %v5328 = vpop.xlane.xlu0 %5327
    %5329 = vadd.xlane.f32.xlu0 %v5294
    %v5330 = vpop.xlane.xlu0 %5329
    %5331 = vadd.xlane.f32.xlu0 %v5299
    %v5332 = vpop.xlane.xlu0 %5331
    %5333 = vadd.xlane.f32.xlu0 %v5304
    %v5334 = vpop.xlane.xlu0 %5333
    %5335 = vadd.xlane.f32.xlu0 %v5309
    %v5336 = vpop.xlane.xlu0 %5335
    %5337 = vadd.xlane.f32.xlu0 %v5314
    %v5338 = vpop.xlane.xlu0 %5337
    %5339 = vadd.xlane.f32.xlu0 %v5319
    %v5340 = vpop.xlane.xlu0 %5339
    %5341 = vadd.xlane.f32.xlu0 %v5324
    %v5342 = vpop.xlane.xlu0 %5341
    %v5343 = vmul.f32 %v5328, 0.03125
    %v5344 = vmul.f32 %v5330, 0.03125
    %v5345 = vmul.f32 %v5332, 0.03125
    %v5346 = vmul.f32 %v5334, 0.03125
    %v5347 = vmul.f32 %v5336, 0.03125
    %v5348 = vmul.f32 %v5338, 0.03125
    %v5349 = vmul.f32 %v5340, 0.03125
    %v5350 = vmul.f32 %v5342, 0.03125
    %v5351 = vsub.f32 %v5289, %v5343
    %v5352 = vsub.f32 %v5294, %v5344
    %v5353 = vsub.f32 %v5299, %v5345
    %v5354 = vsub.f32 %v5304, %v5346
    %v5355 = vsub.f32 %v5309, %v5347
    %v5356 = vsub.f32 %v5314, %v5348
    %v5357 = vsub.f32 %v5319, %v5349
    %v5358 = vsub.f32 %v5324, %v5350
    %v5359 = vmul.f32 %v5351, %v5351
    %v5360 = vmul.f32 %v5352, %v5352
    %v5361 = vmul.f32 %v5353, %v5353
    %v5362 = vmul.f32 %v5354, %v5354
    %v5363 = vmul.f32 %v5355, %v5355
    %v5364 = vmul.f32 %v5356, %v5356
    %v5365 = vmul.f32 %v5357, %v5357
    %v5366 = vmul.f32 %v5358, %v5358
    %v5367 = vsel %vm475, %v5359, 0.0
    %v5368 = vsel %vm475, %v5360, 0.0
    %v5369 = vsel %vm475, %v5361, 0.0
    %v5370 = vsel %vm475, %v5362, 0.0
    %v5371 = vsel %vm475, %v5363, 0.0
    %v5372 = vsel %vm475, %v5364, 0.0
    %v5373 = vsel %vm475, %v5365, 0.0
    %v5374 = vsel %vm475, %v5366, 0.0
    %5375 = vadd.xlane.f32.xlu0 %v5367
    %v5376 = vpop.xlane.xlu0 %5375
    %5377 = vadd.xlane.f32.xlu0 %v5368
    %v5378 = vpop.xlane.xlu0 %5377
    %5379 = vadd.xlane.f32.xlu0 %v5369
    %v5380 = vpop.xlane.xlu0 %5379
    %5381 = vadd.xlane.f32.xlu0 %v5370
    %v5382 = vpop.xlane.xlu0 %5381
    %5383 = vadd.xlane.f32.xlu0 %v5371
    %v5384 = vpop.xlane.xlu0 %5383
    %5385 = vadd.xlane.f32.xlu0 %v5372
    %v5386 = vpop.xlane.xlu0 %5385
    %5387 = vadd.xlane.f32.xlu0 %v5373
    %v5388 = vpop.xlane.xlu0 %5387
    %5389 = vadd.xlane.f32.xlu0 %v5374
    %v5390 = vpop.xlane.xlu0 %5389
    %v5391 = vmul.f32 %v5376, 0.03125
    %v5392 = vmul.f32 %v5378, 0.03125
    %v5393 = vmul.f32 %v5380, 0.03125
    %v5394 = vmul.f32 %v5382, 0.03125
    %v5395 = vmul.f32 %v5384, 0.03125
    %v5396 = vmul.f32 %v5386, 0.03125
    %v5397 = vmul.f32 %v5388, 0.03125
    %v5398 = vmul.f32 %v5390, 0.03125
    %v5399 = vadd.f32 %v5391, 1e-05
    %v5400 = vadd.f32 %v5392, 1e-05
    %v5401 = vadd.f32 %v5393, 1e-05
    %v5402 = vadd.f32 %v5394, 1e-05
    %v5403 = vadd.f32 %v5395, 1e-05
    %v5404 = vadd.f32 %v5396, 1e-05
    %v5405 = vadd.f32 %v5397, 1e-05
    %v5406 = vadd.f32 %v5398, 1e-05
    %v5407 = vrsqrt.pop %v5399
    %v5408 = vrsqrt.pop %v5400
    %v5409 = vrsqrt.pop %v5401
    %v5410 = vrsqrt.pop %v5402
    %v5411 = vrsqrt.pop %v5403
    %v5412 = vrsqrt.pop %v5404
    %v5413 = vrsqrt.pop %v5405
    %v5414 = vrsqrt.pop %v5406
    %v5415 = vmul.f32 %v5351, %v5407
    %v5416 = vmul.f32 %v5352, %v5408
    %v5417 = vmul.f32 %v5353, %v5409
    %v5418 = vmul.f32 %v5354, %v5410
    %v5419 = vmul.f32 %v5355, %v5411
    %v5420 = vmul.f32 %v5356, %v5412
    %v5421 = vmul.f32 %v5357, %v5413
    %v5422 = vmul.f32 %v5358, %v5414
    %v5423 = vlaneseq
    %v5424 = vshrl.u32 %v5423, 7
    %v5425 = vsub.s32 4, %v5424
    %v5426 = vrot.slane %v4736, %v5425
    %v5427 = vmul.f32 %v5415, %v5426
    %v5428 = vmul.f32 %v5416, %v5426
    %v5429 = vmul.f32 %v5417, %v5426
    %v5430 = vmul.f32 %v5418, %v5426
    %v5431 = vmul.f32 %v5419, %v5426
    %v5432 = vmul.f32 %v5420, %v5426
    %v5433 = vmul.f32 %v5421, %v5426
    %v5434 = vmul.f32 %v5422, %v5426
    %v5435 = vlaneseq
    %v5436 = vshrl.u32 %v5435, 7
    %v5437 = vsub.s32 5, %v5436
    %v5438 = vrot.slane %v4736, %v5437
    %v5439 = vadd.f32 %v5427, %v5438
    %v5440 = vadd.f32 %v5428, %v5438
    %v5441 = vadd.f32 %v5429, %v5438
    %v5442 = vadd.f32 %v5430, %v5438
    %v5443 = vadd.f32 %v5431, %v5438
    %v5444 = vadd.f32 %v5432, %v5438
    %v5445 = vadd.f32 %v5433, %v5438
    %v5446 = vadd.f32 %v5434, %v5438
    %s5447 = scalar_lea.vmem [#allocation13], 512
    %v5448 = vld [vmem:[%s5447] sm:$0xff]
    %v5449 = vld [vmem:[%s5447 + $0x8] sm:$0xff]
    %v5450 = vld [vmem:[%s5447 + $0x10] sm:$0xff]
    %v5451 = vld [vmem:[%s5447 + $0x18] sm:$0xff]
    %v5452 = vld [vmem:[%s5447 + $0x20] sm:$0xff]
    %v5453 = vld [vmem:[%s5447 + $0x28] sm:$0xff]
    %v5454 = vld [vmem:[%s5447 + $0x30] sm:$0xff]
    %v5455 = vld [vmem:[%s5447 + $0x38] sm:$0xff]
    %v5456 = vld [vmem:[%s5447 + $0x40] sm:$0xff]
    %v5457 = vld [vmem:[%s5447 + $0x48] sm:$0xff]
    %v5458 = vld [vmem:[%s5447 + $0x50] sm:$0xff]
    %v5459 = vld [vmem:[%s5447 + $0x58] sm:$0xff]
    %v5460 = vld [vmem:[%s5447 + $0x60] sm:$0xff]
    %v5461 = vld [vmem:[%s5447 + $0x68] sm:$0xff]
    %v5462 = vld [vmem:[%s5447 + $0x70] sm:$0xff]
    %v5463 = vld [vmem:[%s5447 + $0x78] sm:$0xff]
    %v5464 = vlaneseq
    %v5465 = vshrl.u32 %v5464, 7
    %v5466 = vsub.s32 6, %v5465
    %v5467 = vrot.slane %v4736, %v5466
    %5468 = vmatprep.subr.mxu0 0.0
    %5469 = vmatpush1.msra.mxu0 %v5448
    %5470 = vmatprep.subr.mxu0 0.0
    %5471 = vmatpush1.msra.mxu0 %v5449
    %5472 = vmatprep.subr.mxu0 0.0
    %5473 = vmatpush1.msra.mxu0 %v5450
    %5474 = vmatprep.subr.mxu0 0.0
    %5475 = vmatpush1.msra.mxu0 %v5451
    %5476 = vmatprep.subr.mxu0 0.0
    %5477 = vmatpush1.msra.mxu0 %v5452
    %5478 = vmatprep.subr.mxu0 0.0
    %5479 = vmatpush1.msra.mxu0 %v5453
    %5480 = vmatprep.subr.mxu0 0.0
    %5481 = vmatpush1.msra.mxu0 %v5454
    %5482 = vmatprep.subr.mxu0 0.0
    %5483 = vmatpush1.msra.mxu0 %v5455
    %5484 = vmatprep.subr.mxu0 0.0
    %5485 = vmatpush1.msra.mxu0 %v5456
    %5486 = vmatprep.subr.mxu0 0.0
    %5487 = vmatpush1.msra.mxu0 %v5457
    %5488 = vmatprep.subr.mxu0 0.0
    %5489 = vmatpush1.msra.mxu0 %v5458
    %5490 = vmatprep.subr.mxu0 0.0
    %5491 = vmatpush1.msra.mxu0 %v5459
    %5492 = vmatprep.subr.mxu0 0.0
    %5493 = vmatpush1.msra.mxu0 %v5460
    %5494 = vmatprep.subr.mxu0 0.0
    %5495 = vmatpush1.msra.mxu0 %v5461
    %5496 = vmatprep.subr.mxu0 0.0
    %5497 = vmatpush1.msra.mxu0 %v5462
    %5498 = vmatprep.subr.mxu0 0.0
    %5499 = vmatpush1.msra.mxu0 %v5463
    %5500 = vmatprep.subr.mxu0 0.0
    %5501 = vmatpush1.msra.mxu0 0.0
    %5502 = vmatprep.subr.mxu0 0.0
    %5503 = vmatpush1.msra.mxu0 0.0
    %5504 = vmatprep.subr.mxu0 0.0
    %5505 = vmatpush1.msra.mxu0 0.0
    %5506 = vmatprep.subr.mxu0 0.0
    %5507 = vmatpush1.msra.mxu0 0.0
    %5508 = vmatprep.subr.mxu0 0.0
    %5509 = vmatpush1.msra.mxu0 0.0
    %5510 = vmatprep.subr.mxu0 0.0
    %5511 = vmatpush1.msra.mxu0 0.0
    %5512 = vmatprep.subr.mxu0 0.0
    %5513 = vmatpush1.msra.mxu0 0.0
    %5514 = vmatprep.subr.mxu0 0.0
    %5515 = vmatpush1.msra.mxu0 0.0
    %5516 = vmatprep.subr.mxu0 0.0
    %5517 = vmatpush1.msra.mxu0 0.0
    %5518 = vmatprep.subr.mxu0 0.0
    %5519 = vmatpush1.msra.mxu0 0.0
    %5520 = vmatprep.subr.mxu0 0.0
    %5521 = vmatpush1.msra.mxu0 0.0
    %5522 = vmatprep.subr.mxu0 0.0
    %5523 = vmatpush1.msra.mxu0 0.0
    %5524 = vmatprep.subr.mxu0 0.0
    %5525 = vmatpush1.msra.mxu0 0.0
    %5526 = vmatprep.subr.mxu0 0.0
    %5527 = vmatpush1.msra.mxu0 0.0
    %5528 = vmatprep.subr.mxu0 0.0
    %5529 = vmatpush1.msra.mxu0 0.0
    %5530 = vmatprep.subr.mxu0 0.0
    %5531 = vmatpush1.msra.mxu0 0.0
    %5532 = vmatprep.mubr.f32.mxu0 0.0
    %5533 = vmatmul.mubr.f32.gmra.mrb[0].mxu0 %v5439
    %v5534 = vpop.f32.mrb[0].mxu0
    %v5535 = vadd.f32 %v5467, %v5534
    %v5536 = vpop.f32.mrb[0].mxu0
    %5537 = vmatprep.mubr.f32.mxu0 0.0
    %5538 = vmatmul.mubr.f32.gmra.mrb[0].mxu0 %v5440
    %v5539 = vpop.f32.mrb[0].mxu0
    %v5540 = vadd.f32 %v5467, %v5539
    %v5541 = vpop.f32.mrb[0].mxu0
    %5542 = vmatprep.mubr.f32.mxu0 0.0
    %5543 = vmatmul.mubr.f32.gmra.mrb[0].mxu0 %v5441
    %v5544 = vpop.f32.mrb[0].mxu0
    %v5545 = vadd.f32 %v5467, %v5544
    %v5546 = vpop.f32.mrb[0].mxu0
    %5547 = vmatprep.mubr.f32.mxu0 0.0
    %5548 = vmatmul.mubr.f32.gmra.mrb[0].mxu0 %v5442
    %v5549 = vpop.f32.mrb[0].mxu0
    %v5550 = vadd.f32 %v5467, %v5549
    %v5551 = vpop.f32.mrb[0].mxu0
    %5552 = vmatprep.mubr.f32.mxu0 0.0
    %5553 = vmatmul.mubr.f32.gmra.mrb[0].mxu0 %v5443
    %v5554 = vpop.f32.mrb[0].mxu0
    %v5555 = vadd.f32 %v5467, %v5554
    %v5556 = vpop.f32.mrb[0].mxu0
    %5557 = vmatprep.mubr.f32.mxu0 0.0
    %5558 = vmatmul.mubr.f32.gmra.mrb[0].mxu0 %v5444
    %v5559 = vpop.f32.mrb[0].mxu0
    %v5560 = vadd.f32 %v5467, %v5559
    %v5561 = vpop.f32.mrb[0].mxu0
    %5562 = vmatprep.mubr.f32.mxu0 0.0
    %5563 = vmatmul.mubr.f32.gmra.mrb[0].mxu0 %v5445
    %v5564 = vpop.f32.mrb[0].mxu0
    %v5565 = vadd.f32 %v5467, %v5564
    %v5566 = vpop.f32.mrb[0].mxu0
    %5567 = vmatprep.mubr.f32.mxu0 0.0
    %5568 = vmatmul.mubr.f32.gmra.mrb[0].mxu0 %v5446
    %v5569 = vpop.f32.mrb[0].mxu0
    %v5570 = vadd.f32 %v5467, %v5569
    %v5571 = vpop.f32.mrb[0].mxu0
    %5572 = vdwg.mxu0
    %v5573 = vmax.f32 %v5535, 0.0
    %v5574 = vmax.f32 %v5540, 0.0
    %v5575 = vmax.f32 %v5545, 0.0
    %v5576 = vmax.f32 %v5550, 0.0
    %v5577 = vmax.f32 %v5555, 0.0
    %v5578 = vmax.f32 %v5560, 0.0
    %v5579 = vmax.f32 %v5565, 0.0
    %v5580 = vmax.f32 %v5570, 0.0
    %s5581 = scalar_lea.vmem [#allocation14], 512
    %v5582 = vld [vmem:[%s5581] sm:$0xff]
    %v5583 = vld [vmem:[%s5581 + $0x8] sm:$0xff]
    %v5584 = vld [vmem:[%s5581 + $0x10] sm:$0xff]
    %v5585 = vld [vmem:[%s5581 + $0x18] sm:$0xff]
    %v5586 = vld [vmem:[%s5581 + $0x20] sm:$0xff]
    %v5587 = vld [vmem:[%s5581 + $0x28] sm:$0xff]
    %v5588 = vld [vmem:[%s5581 + $0x30] sm:$0xff]
    %v5589 = vld [vmem:[%s5581 + $0x38] sm:$0xff]
    %v5590 = vld [vmem:[%s5581 + $0x40] sm:$0xff]
    %v5591 = vld [vmem:[%s5581 + $0x48] sm:$0xff]
    %v5592 = vld [vmem:[%s5581 + $0x50] sm:$0xff]
    %v5593 = vld [vmem:[%s5581 + $0x58] sm:$0xff]
    %v5594 = vld [vmem:[%s5581 + $0x60] sm:$0xff]
    %v5595 = vld [vmem:[%s5581 + $0x68] sm:$0xff]
    %v5596 = vld [vmem:[%s5581 + $0x70] sm:$0xff]
    %v5597 = vld [vmem:[%s5581 + $0x78] sm:$0xff]
    %v5598 = vlaneseq
    %v5599 = vshrl.u32 %v5598, 7
    %v5600 = vsub.s32 7, %v5599
    %v5601 = vrot.slane %v4736, %v5600
    %5602 = vmatprep.subr.mxu0 0.0
    %5603 = vmatpush1.msra.mxu0 %v5582
    %5604 = vmatprep.subr.mxu0 0.0
    %5605 = vmatpush1.msra.mxu0 %v5583
    %5606 = vmatprep.subr.mxu0 0.0
    %5607 = vmatpush1.msra.mxu0 %v5584
    %5608 = vmatprep.subr.mxu0 0.0
    %5609 = vmatpush1.msra.mxu0 %v5585
    %5610 = vmatprep.subr.mxu0 0.0
    %5611 = vmatpush1.msra.mxu0 %v5586
    %5612 = vmatprep.subr.mxu0 0.0
    %5613 = vmatpush1.msra.mxu0 %v5587
    %5614 = vmatprep.subr.mxu0 0.0
    %5615 = vmatpush1.msra.mxu0 %v5588
    %5616 = vmatprep.subr.mxu0 0.0
    %5617 = vmatpush1.msra.mxu0 %v5589
    %5618 = vmatprep.subr.mxu0 0.0
    %5619 = vmatpush1.msra.mxu0 %v5590
    %5620 = vmatprep.subr.mxu0 0.0
    %5621 = vmatpush1.msra.mxu0 %v5591
    %5622 = vmatprep.subr.mxu0 0.0
    %5623 = vmatpush1.msra.mxu0 %v5592
    %5624 = vmatprep.subr.mxu0 0.0
    %5625 = vmatpush1.msra.mxu0 %v5593
    %5626 = vmatprep.subr.mxu0 0.0
    %5627 = vmatpush1.msra.mxu0 %v5594
    %5628 = vmatprep.subr.mxu0 0.0
    %5629 = vmatpush1.msra.mxu0 %v5595
    %5630 = vmatprep.subr.mxu0 0.0
    %5631 = vmatpush1.msra.mxu0 %v5596
    %5632 = vmatprep.subr.mxu0 0.0
    %5633 = vmatpush1.msra.mxu0 %v5597
    %5634 = vmatprep.subr.mxu0 0.0
    %5635 = vmatpush1.msra.mxu0 0.0
    %5636 = vmatprep.subr.mxu0 0.0
    %5637 = vmatpush1.msra.mxu0 0.0
    %5638 = vmatprep.subr.mxu0 0.0
    %5639 = vmatpush1.msra.mxu0 0.0
    %5640 = vmatprep.subr.mxu0 0.0
    %5641 = vmatpush1.msra.mxu0 0.0
    %5642 = vmatprep.subr.mxu0 0.0
    %5643 = vmatpush1.msra.mxu0 0.0
    %5644 = vmatprep.subr.mxu0 0.0
    %5645 = vmatpush1.msra.mxu0 0.0
    %5646 = vmatprep.subr.mxu0 0.0
    %5647 = vmatpush1.msra.mxu0 0.0
    %5648 = vmatprep.subr.mxu0 0.0
    %5649 = vmatpush1.msra.mxu0 0.0
    %5650 = vmatprep.subr.mxu0 0.0
    %5651 = vmatpush1.msra.mxu0 0.0
    %5652 = vmatprep.subr.mxu0 0.0
    %5653 = vmatpush1.msra.mxu0 0.0
    %5654 = vmatprep.subr.mxu0 0.0
    %5655 = vmatpush1.msra.mxu0 0.0
    %5656 = vmatprep.subr.mxu0 0.0
    %5657 = vmatpush1.msra.mxu0 0.0
    %5658 = vmatprep.subr.mxu0 0.0
    %5659 = vmatpush1.msra.mxu0 0.0
    %5660 = vmatprep.subr.mxu0 0.0
    %5661 = vmatpush1.msra.mxu0 0.0
    %5662 = vmatprep.subr.mxu0 0.0
    %5663 = vmatpush1.msra.mxu0 0.0
    %5664 = vmatprep.subr.mxu0 0.0
    %5665 = vmatpush1.msra.mxu0 0.0
    %5666 = vmatprep.mubr.f32.mxu0 0.0
    %5667 = vmatmul.mubr.f32.gmra.mrb[0].mxu0 %v5573
    %v5668 = vpop.f32.mrb[0].mxu0
    %v5669 = vadd.f32 %v5601, %v5668
    %v5670 = vpop.f32.mrb[0].mxu0
    %5671 = vmatprep.mubr.f32.mxu0 0.0
    %5672 = vmatmul.mubr.f32.gmra.mrb[0].mxu0 %v5574
    %v5673 = vpop.f32.mrb[0].mxu0
    %v5674 = vadd.f32 %v5601, %v5673
    %v5675 = vpop.f32.mrb[0].mxu0
    %5676 = vmatprep.mubr.f32.mxu0 0.0
    %5677 = vmatmul.mubr.f32.gmra.mrb[0].mxu0 %v5575
    %v5678 = vpop.f32.mrb[0].mxu0
    %v5679 = vadd.f32 %v5601, %v5678
    %v5680 = vpop.f32.mrb[0].mxu0
    %5681 = vmatprep.mubr.f32.mxu0 0.0
    %5682 = vmatmul.mubr.f32.gmra.mrb[0].mxu0 %v5576
    %v5683 = vpop.f32.mrb[0].mxu0
    %v5684 = vadd.f32 %v5601, %v5683
    %v5685 = vpop.f32.mrb[0].mxu0
    %5686 = vmatprep.mubr.f32.mxu0 0.0
    %5687 = vmatmul.mubr.f32.gmra.mrb[0].mxu0 %v5577
    %v5688 = vpop.f32.mrb[0].mxu0
    %v5689 = vadd.f32 %v5601, %v5688
    %v5690 = vpop.f32.mrb[0].mxu0
    %5691 = vmatprep.mubr.f32.mxu0 0.0
    %5692 = vmatmul.mubr.f32.gmra.mrb[0].mxu0 %v5578
    %v5693 = vpop.f32.mrb[0].mxu0
    %v5694 = vadd.f32 %v5601, %v5693
    %v5695 = vpop.f32.mrb[0].mxu0
    %5696 = vmatprep.mubr.f32.mxu0 0.0
    %5697 = vmatmul.mubr.f32.gmra.mrb[0].mxu0 %v5579
    %v5698 = vpop.f32.mrb[0].mxu0
    %v5699 = vadd.f32 %v5601, %v5698
    %v5700 = vpop.f32.mrb[0].mxu0
    %5701 = vmatprep.mubr.f32.mxu0 0.0
    %5702 = vmatmul.mubr.f32.gmra.mrb[0].mxu0 %v5580
    %v5703 = vpop.f32.mrb[0].mxu0
    %v5704 = vadd.f32 %v5601, %v5703
    %v5705 = vpop.f32.mrb[0].mxu0
    %5706 = vdwg.mxu0
    %v5707 = vxor.u32 %v5669, 2147483648
    %v5708 = vxor.u32 %v5674, 2147483648
    %v5709 = vxor.u32 %v5679, 2147483648
    %v5710 = vxor.u32 %v5684, 2147483648
    %v5711 = vxor.u32 %v5689, 2147483648
    %v5712 = vxor.u32 %v5694, 2147483648
    %v5713 = vxor.u32 %v5699, 2147483648
    %v5714 = vxor.u32 %v5704, 2147483648
    %v5715 = vmul.f32 %v5707, 1.442695
    %v5716 = vpow.pop %v5715
    %v5717 = vmul.f32 %v5708, 1.442695
    %v5718 = vpow.pop %v5717
    %v5719 = vmul.f32 %v5709, 1.442695
    %v5720 = vpow.pop %v5719
    %v5721 = vmul.f32 %v5710, 1.442695
    %v5722 = vpow.pop %v5721
    %v5723 = vmul.f32 %v5711, 1.442695
    %v5724 = vpow.pop %v5723
    %v5725 = vmul.f32 %v5712, 1.442695
    %v5726 = vpow.pop %v5725
    %v5727 = vmul.f32 %v5713, 1.442695
    %v5728 = vpow.pop %v5727
    %v5729 = vmul.f32 %v5714, 1.442695
    %v5730 = vpow.pop %v5729
    %v5731 = vadd.f32 %v5716, 1.0
    %v5732 = vadd.f32 %v5718, 1.0
    %v5733 = vadd.f32 %v5720, 1.0
    %v5734 = vadd.f32 %v5722, 1.0
    %v5735 = vadd.f32 %v5724, 1.0
    %v5736 = vadd.f32 %v5726, 1.0
    %v5737 = vadd.f32 %v5728, 1.0
    %v5738 = vadd.f32 %v5730, 1.0
    %v5739 = vrcp.pop %v5731
    %v5740 = vmul.f32 1.0, %v5739
    %v5741 = vrcp.pop %v5732
    %v5742 = vmul.f32 1.0, %v5741
    %v5743 = vrcp.pop %v5733
    %v5744 = vmul.f32 1.0, %v5743
    %v5745 = vrcp.pop %v5734
    %v5746 = vmul.f32 1.0, %v5745
    %v5747 = vrcp.pop %v5735
    %v5748 = vmul.f32 1.0, %v5747
    %v5749 = vrcp.pop %v5736
    %v5750 = vmul.f32 1.0, %v5749
    %v5751 = vrcp.pop %v5737
    %v5752 = vmul.f32 1.0, %v5751
    %v5753 = vrcp.pop %v5738
    %v5754 = vmul.f32 1.0, %v5753
    %v5755 = vmul.f32 %v5439, %v5740
    %v5756 = vmul.f32 %v5440, %v5742
    %v5757 = vmul.f32 %v5441, %v5744
    %v5758 = vmul.f32 %v5442, %v5746
    %v5759 = vmul.f32 %v5443, %v5748
    %v5760 = vmul.f32 %v5444, %v5750
    %v5761 = vmul.f32 %v5445, %v5752
    %v5762 = vmul.f32 %v5446, %v5754
    %v5763 = vadd.f32 %v5755, %v4727
    %v5764 = vadd.f32 %v5756, %v4728
    %v5765 = vadd.f32 %v5757, %v4729
    %v5766 = vadd.f32 %v5758, %v4730
    %v5767 = vadd.f32 %v5759, %v4731
    %v5768 = vadd.f32 %v5760, %v4732
    %v5769 = vadd.f32 %v5761, %v4733
    %v5770 = vadd.f32 %v5762, %v4734
    %v5771 = vmax.f32 %v5763, 0.0
    %v5772 = vmax.f32 %v5764, 0.0
    %v5773 = vmax.f32 %v5765, 0.0
    %v5774 = vmax.f32 %v5766, 0.0
    %v5775 = vmax.f32 %v5767, 0.0
    %v5776 = vmax.f32 %v5768, 0.0
    %v5777 = vmax.f32 %v5769, 0.0
    %v5778 = vmax.f32 %v5770, 0.0
    %v5779 = vld [vmem:[#allocation8] sm:$0xff]
    %v5780 = vld [vmem:[#allocation8 + $0x8] sm:$0xff]
    %v5781 = vld [vmem:[#allocation8 + $0x10] sm:$0xff]
    %v5782 = vld [vmem:[#allocation8 + $0x18] sm:$0xff]
    %v5783 = vld [vmem:[#allocation8 + $0x20] sm:$0xff]
    %v5784 = vld [vmem:[#allocation8 + $0x28] sm:$0xff]
    %v5785 = vld [vmem:[#allocation8 + $0x30] sm:$0xff]
    %v5786 = vld [vmem:[#allocation8 + $0x38] sm:$0xff]
    %v5787 = vld [vmem:[#allocation8 + $0x40] sm:$0xff]
    %v5788 = vld [vmem:[#allocation8 + $0x48] sm:$0xff]
    %v5789 = vld [vmem:[#allocation8 + $0x50] sm:$0xff]
    %v5790 = vld [vmem:[#allocation8 + $0x58] sm:$0xff]
    %v5791 = vld [vmem:[#allocation8 + $0x60] sm:$0xff]
    %v5792 = vld [vmem:[#allocation8 + $0x68] sm:$0xff]
    %v5793 = vld [vmem:[#allocation8 + $0x70] sm:$0xff]
    %v5794 = vld [vmem:[#allocation8 + $0x78] sm:$0xff]
    %5795 = vmatprep.subr.mxu0 0.0
    %5796 = vmatpush1.msra.mxu0 %v5779
    %5797 = vmatprep.subr.mxu0 0.0
    %5798 = vmatpush1.msra.mxu0 %v5780
    %5799 = vmatprep.subr.mxu0 0.0
    %5800 = vmatpush1.msra.mxu0 %v5781
    %5801 = vmatprep.subr.mxu0 0.0
    %5802 = vmatpush1.msra.mxu0 %v5782
    %5803 = vmatprep.subr.mxu0 0.0
    %5804 = vmatpush1.msra.mxu0 %v5783
    %5805 = vmatprep.subr.mxu0 0.0
    %5806 = vmatpush1.msra.mxu0 %v5784
    %5807 = vmatprep.subr.mxu0 0.0
    %5808 = vmatpush1.msra.mxu0 %v5785
    %5809 = vmatprep.subr.mxu0 0.0
    %5810 = vmatpush1.msra.mxu0 %v5786
    %5811 = vmatprep.subr.mxu0 0.0
    %5812 = vmatpush1.msra.mxu0 %v5787
    %5813 = vmatprep.subr.mxu0 0.0
    %5814 = vmatpush1.msra.mxu0 %v5788
    %5815 = vmatprep.subr.mxu0 0.0
    %5816 = vmatpush1.msra.mxu0 %v5789
    %5817 = vmatprep.subr.mxu0 0.0
    %5818 = vmatpush1.msra.mxu0 %v5790
    %5819 = vmatprep.subr.mxu0 0.0
    %5820 = vmatpush1.msra.mxu0 %v5791
    %5821 = vmatprep.subr.mxu0 0.0
    %5822 = vmatpush1.msra.mxu0 %v5792
    %5823 = vmatprep.subr.mxu0 0.0
    %5824 = vmatpush1.msra.mxu0 %v5793
    %5825 = vmatprep.subr.mxu0 0.0
    %5826 = vmatpush1.msra.mxu0 %v5794
    %5827 = vmatprep.subr.mxu0 0.0
    %5828 = vmatpush1.msra.mxu0 0.0
    %5829 = vmatprep.subr.mxu0 0.0
    %5830 = vmatpush1.msra.mxu0 0.0
    %5831 = vmatprep.subr.mxu0 0.0
    %5832 = vmatpush1.msra.mxu0 0.0
    %5833 = vmatprep.subr.mxu0 0.0
    %5834 = vmatpush1.msra.mxu0 0.0
    %5835 = vmatprep.subr.mxu0 0.0
    %5836 = vmatpush1.msra.mxu0 0.0
    %5837 = vmatprep.subr.mxu0 0.0
    %5838 = vmatpush1.msra.mxu0 0.0
    %5839 = vmatprep.subr.mxu0 0.0
    %5840 = vmatpush1.msra.mxu0 0.0
    %5841 = vmatprep.subr.mxu0 0.0
    %5842 = vmatpush1.msra.mxu0 0.0
    %5843 = vmatprep.subr.mxu0 0.0
    %5844 = vmatpush1.msra.mxu0 0.0
    %5845 = vmatprep.subr.mxu0 0.0
    %5846 = vmatpush1.msra.mxu0 0.0
    %5847 = vmatprep.subr.mxu0 0.0
    %5848 = vmatpush1.msra.mxu0 0.0
    %5849 = vmatprep.subr.mxu0 0.0
    %5850 = vmatpush1.msra.mxu0 0.0
    %5851 = vmatprep.subr.mxu0 0.0
    %5852 = vmatpush1.msra.mxu0 0.0
    %5853 = vmatprep.subr.mxu0 0.0
    %5854 = vmatpush1.msra.mxu0 0.0
    %5855 = vmatprep.subr.mxu0 0.0
    %5856 = vmatpush1.msra.mxu0 0.0
    %5857 = vmatprep.subr.mxu0 0.0
    %5858 = vmatpush1.msra.mxu0 0.0
    %5859 = vmatprep.mubr.f32.mxu0 0.0
    %5860 = vmatmul.mubr.f32.gmra.mrb[0].mxu0 %v5771
    %v5861 = vpop.f32.mrb[0].mxu0
    %v5862 = vadd.f32 0.0, %v5861
    %v5863 = vpop.f32.mrb[0].mxu0
    %5864 = vmatprep.mubr.f32.mxu0 0.0
    %5865 = vmatmul.mubr.f32.gmra.mrb[0].mxu0 %v5772
    %v5866 = vpop.f32.mrb[0].mxu0
    %v5867 = vadd.f32 0.0, %v5866
    %v5868 = vpop.f32.mrb[0].mxu0
    %5869 = vmatprep.mubr.f32.mxu0 0.0
    %5870 = vmatmul.mubr.f32.gmra.mrb[0].mxu0 %v5773
    %v5871 = vpop.f32.mrb[0].mxu0
    %v5872 = vadd.f32 0.0, %v5871
    %v5873 = vpop.f32.mrb[0].mxu0
    %5874 = vmatprep.mubr.f32.mxu0 0.0
    %5875 = vmatmul.mubr.f32.gmra.mrb[0].mxu0 %v5774
    %v5876 = vpop.f32.mrb[0].mxu0
    %v5877 = vadd.f32 0.0, %v5876
    %v5878 = vpop.f32.mrb[0].mxu0
    %5879 = vmatprep.mubr.f32.mxu0 0.0
    %5880 = vmatmul.mubr.f32.gmra.mrb[0].mxu0 %v5775
    %v5881 = vpop.f32.mrb[0].mxu0
    %v5882 = vadd.f32 0.0, %v5881
    %v5883 = vpop.f32.mrb[0].mxu0
    %5884 = vmatprep.mubr.f32.mxu0 0.0
    %5885 = vmatmul.mubr.f32.gmra.mrb[0].mxu0 %v5776
    %v5886 = vpop.f32.mrb[0].mxu0
    %v5887 = vadd.f32 0.0, %v5886
    %v5888 = vpop.f32.mrb[0].mxu0
    %5889 = vmatprep.mubr.f32.mxu0 0.0
    %5890 = vmatmul.mubr.f32.gmra.mrb[0].mxu0 %v5777
    %v5891 = vpop.f32.mrb[0].mxu0
    %v5892 = vadd.f32 0.0, %v5891
    %v5893 = vpop.f32.mrb[0].mxu0
    %5894 = vmatprep.mubr.f32.mxu0 0.0
    %5895 = vmatmul.mubr.f32.gmra.mrb[0].mxu0 %v5778
    %v5896 = vpop.f32.mrb[0].mxu0
    %v5897 = vadd.f32 0.0, %v5896
    %v5898 = vpop.f32.mrb[0].mxu0
    %5899 = vdwg.mxu0
    %v5900 = vlaneseq
    %v5901 = vshrl.u32 %v5900, 7
    %v5902 = vsub.s32 3, %v5901
    %v5903 = vrot.slane %v178, %v5902
    %5904 = vmatprep.subr.mxu0 0.0
    %5905 = vmatpush1.msra.mxu0 %v5862
    %5906 = vmatprep.subr.mxu0 0.0
    %5907 = vmatpush1.msra.mxu0 %v5867
    %5908 = vmatprep.subr.mxu0 0.0
    %5909 = vmatpush1.msra.mxu0 %v5872
    %5910 = vmatprep.subr.mxu0 0.0
    %5911 = vmatpush1.msra.mxu0 %v5877
    %5912 = vmatprep.subr.mxu0 0.0
    %5913 = vmatpush1.msra.mxu0 %v5882
    %5914 = vmatprep.subr.mxu0 0.0
    %5915 = vmatpush1.msra.mxu0 %v5887
    %5916 = vmatprep.subr.mxu0 0.0
    %5917 = vmatpush1.msra.mxu0 %v5892
    %5918 = vmatprep.subr.mxu0 0.0
    %5919 = vmatpush1.msra.mxu0 %v5897
    %5920 = vmatprep.subr.mxu0 0.0
    %5921 = vmatpush1.msra.mxu0 0.0
    %5922 = vmatprep.subr.mxu0 0.0
    %5923 = vmatpush1.msra.mxu0 0.0
    %5924 = vmatprep.subr.mxu0 0.0
    %5925 = vmatpush1.msra.mxu0 0.0
    %5926 = vmatprep.subr.mxu0 0.0
    %5927 = vmatpush1.msra.mxu0 0.0
    %5928 = vmatprep.subr.mxu0 0.0
    %5929 = vmatpush1.msra.mxu0 0.0
    %5930 = vmatprep.subr.mxu0 0.0
    %5931 = vmatpush1.msra.mxu0 0.0
    %5932 = vmatprep.subr.mxu0 0.0
    %5933 = vmatpush1.msra.mxu0 0.0
    %5934 = vmatprep.subr.mxu0 0.0
    %5935 = vmatpush1.msra.mxu0 0.0
    %5936 = vmatprep.subr.mxu0 0.0
    %5937 = vmatpush1.msra.mxu0 0.0
    %5938 = vmatprep.subr.mxu0 0.0
    %5939 = vmatpush1.msra.mxu0 0.0
    %5940 = vmatprep.subr.mxu0 0.0
    %5941 = vmatpush1.msra.mxu0 0.0
    %5942 = vmatprep.subr.mxu0 0.0
    %5943 = vmatpush1.msra.mxu0 0.0
    %5944 = vmatprep.subr.mxu0 0.0
    %5945 = vmatpush1.msra.mxu0 0.0
    %5946 = vmatprep.subr.mxu0 0.0
    %5947 = vmatpush1.msra.mxu0 0.0
    %5948 = vmatprep.subr.mxu0 0.0
    %5949 = vmatpush1.msra.mxu0 0.0
    %5950 = vmatprep.subr.mxu0 0.0
    %5951 = vmatpush1.msra.mxu0 0.0
    %5952 = vmatprep.subr.mxu0 0.0
    %5953 = vmatpush1.msra.mxu0 0.0
    %5954 = vmatprep.subr.mxu0 0.0
    %5955 = vmatpush1.msra.mxu0 0.0
    %5956 = vmatprep.subr.mxu0 0.0
    %5957 = vmatpush1.msra.mxu0 0.0
    %5958 = vmatprep.subr.mxu0 0.0
    %5959 = vmatpush1.msra.mxu0 0.0
    %5960 = vmatprep.subr.mxu0 0.0
    %5961 = vmatpush1.msra.mxu0 0.0
    %5962 = vmatprep.subr.mxu0 0.0
    %5963 = vmatpush1.msra.mxu0 0.0
    %5964 = vmatprep.subr.mxu0 0.0
    %5965 = vmatpush1.msra.mxu0 0.0
    %5966 = vmatprep.subr.mxu0 0.0
    %5967 = vmatpush1.msra.mxu0 0.0
    %5968 = vmatprep.mubr.f32.mxu0 0.0
    %5969 = vmatmul.mubr.f32.gmra.mrb[0].mxu0 %v306
    %v5970 = vpop.f32.mrb[0].mxu0
    %v5971 = vadd.f32 %v5903, %v5970
    %v5972 = vpop.f32.mrb[0].mxu0
    %5973 = vmatprep.mubr.f32.mxu0 0.0
    %5974 = vmatmul.mubr.f32.gmra.mrb[0].mxu0 %v309
    %v5975 = vpop.f32.mrb[0].mxu0
    %v5976 = vadd.f32 %v5903, %v5975
    %v5977 = vpop.f32.mrb[0].mxu0
    %5978 = vmatprep.mubr.f32.mxu0 0.0
    %5979 = vmatmul.mubr.f32.gmra.mrb[0].mxu0 %v312
    %v5980 = vpop.f32.mrb[0].mxu0
    %v5981 = vadd.f32 %v5903, %v5980
    %v5982 = vpop.f32.mrb[0].mxu0
    %5983 = vmatprep.mubr.f32.mxu0 0.0
    %5984 = vmatmul.mubr.f32.gmra.mrb[0].mxu0 %v315
    %v5985 = vpop.f32.mrb[0].mxu0
    %v5986 = vadd.f32 %v5903, %v5985
    %v5987 = vpop.f32.mrb[0].mxu0
    %5988 = vmatprep.mubr.f32.mxu0 0.0
    %5989 = vmatmul.mubr.f32.gmra.mrb[0].mxu0 %v318
    %v5990 = vpop.f32.mrb[0].mxu0
    %v5991 = vadd.f32 %v5903, %v5990
    %v5992 = vpop.f32.mrb[0].mxu0
    %5993 = vmatprep.mubr.f32.mxu0 0.0
    %5994 = vmatmul.mubr.f32.gmra.mrb[0].mxu0 %v321
    %v5995 = vpop.f32.mrb[0].mxu0
    %v5996 = vadd.f32 %v5903, %v5995
    %v5997 = vpop.f32.mrb[0].mxu0
    %5998 = vmatprep.mubr.f32.mxu0 0.0
    %5999 = vmatmul.mubr.f32.gmra.mrb[0].mxu0 %v324
    %v6000 = vpop.f32.mrb[0].mxu0
    %v6001 = vadd.f32 %v5903, %v6000
    %v6002 = vpop.f32.mrb[0].mxu0
    %6003 = vmatprep.mubr.f32.mxu0 0.0
    %6004 = vmatmul.mubr.f32.gmra.mrb[0].mxu0 %v327
    %v6005 = vpop.f32.mrb[0].mxu0
    %v6006 = vadd.f32 %v5903, %v6005
    %v6007 = vpop.f32.mrb[0].mxu0
    %6008 = vdwg.mxu0
    %v6009 = vsel %vm177, 1, 0
    %vm6010 = vcmp.eq.s32.totalorder %v6009, 1
    %v6011 = vsel %vm6010, %v5971, -1e+30
    %v6012 = vsel %vm6010, %v5976, -1e+30
    %v6013 = vsel %vm6010, %v5981, -1e+30
    %v6014 = vsel %vm6010, %v5986, -1e+30
    %v6015 = vsel %vm6010, %v5991, -1e+30
    %v6016 = vsel %vm6010, %v5996, -1e+30
    %v6017 = vsel %vm6010, %v6001, -1e+30
    %v6018 = vsel %vm6010, %v6006, -1e+30
    %6019 = vmax.xlane.f32.xlu0 %v6011
    %v6020 = vpop.xlane.xlu0 %6019
    %6021 = vmax.xlane.f32.xlu0 %v6012
    %v6022 = vpop.xlane.xlu0 %6021
    %6023 = vmax.xlane.f32.xlu0 %v6013
    %v6024 = vpop.xlane.xlu0 %6023
    %6025 = vmax.xlane.f32.xlu0 %v6014
    %v6026 = vpop.xlane.xlu0 %6025
    %6027 = vmax.xlane.f32.xlu0 %v6015
    %v6028 = vpop.xlane.xlu0 %6027
    %6029 = vmax.xlane.f32.xlu0 %v6016
    %v6030 = vpop.xlane.xlu0 %6029
    %6031 = vmax.xlane.f32.xlu0 %v6017
    %v6032 = vpop.xlane.xlu0 %6031
    %6033 = vmax.xlane.f32.xlu0 %v6018
    %v6034 = vpop.xlane.xlu0 %6033
    %v6035 = vsub.f32 %v6011, %v6020
    %v6036 = vsub.f32 %v6012, %v6022
    %v6037 = vsub.f32 %v6013, %v6024
    %v6038 = vsub.f32 %v6014, %v6026
    %v6039 = vsub.f32 %v6015, %v6028
    %v6040 = vsub.f32 %v6016, %v6030
    %v6041 = vsub.f32 %v6017, %v6032
    %v6042 = vsub.f32 %v6018, %v6034
    %v6043 = vmul.f32 %v6035, 1.442695
    %v6044 = vpow.pop %v6043
    %v6045 = vmul.f32 %v6036, 1.442695
    %v6046 = vpow.pop %v6045
    %v6047 = vmul.f32 %v6037, 1.442695
    %v6048 = vpow.pop %v6047
    %v6049 = vmul.f32 %v6038, 1.442695
    %v6050 = vpow.pop %v6049
    %v6051 = vmul.f32 %v6039, 1.442695
    %v6052 = vpow.pop %v6051
    %v6053 = vmul.f32 %v6040, 1.442695
    %v6054 = vpow.pop %v6053
    %v6055 = vmul.f32 %v6041, 1.442695
    %v6056 = vpow.pop %v6055
    %v6057 = vmul.f32 %v6042, 1.442695
    %v6058 = vpow.pop %v6057
    %6059 = vadd.xlane.f32.xlu0 %v6044
    %v6060 = vpop.xlane.xlu0 %6059
    %6061 = vadd.xlane.f32.xlu0 %v6046
    %v6062 = vpop.xlane.xlu0 %6061
    %6063 = vadd.xlane.f32.xlu0 %v6048
    %v6064 = vpop.xlane.xlu0 %6063
    %6065 = vadd.xlane.f32.xlu0 %v6050
    %v6066 = vpop.xlane.xlu0 %6065
    %6067 = vadd.xlane.f32.xlu0 %v6052
    %v6068 = vpop.xlane.xlu0 %6067
    %6069 = vadd.xlane.f32.xlu0 %v6054
    %v6070 = vpop.xlane.xlu0 %6069
    %6071 = vadd.xlane.f32.xlu0 %v6056
    %v6072 = vpop.xlane.xlu0 %6071
    %6073 = vadd.xlane.f32.xlu0 %v6058
    %v6074 = vpop.xlane.xlu0 %6073
    %v6075 = vlog2.pop %v6060
    %v6076 = vmul.f32 %v6075, 0.6931472
    %v6077 = vlog2.pop %v6062
    %v6078 = vmul.f32 %v6077, 0.6931472
    %v6079 = vlog2.pop %v6064
    %v6080 = vmul.f32 %v6079, 0.6931472
    %v6081 = vlog2.pop %v6066
    %v6082 = vmul.f32 %v6081, 0.6931472
    %v6083 = vlog2.pop %v6068
    %v6084 = vmul.f32 %v6083, 0.6931472
    %v6085 = vlog2.pop %v6070
    %v6086 = vmul.f32 %v6085, 0.6931472
    %v6087 = vlog2.pop %v6072
    %v6088 = vmul.f32 %v6087, 0.6931472
    %v6089 = vlog2.pop %v6074
    %v6090 = vmul.f32 %v6089, 0.6931472
    %v6091 = vadd.f32 %v6020, %v6076
    %v6092 = vadd.f32 %v6022, %v6078
    %v6093 = vadd.f32 %v6024, %v6080
    %v6094 = vadd.f32 %v6026, %v6082
    %v6095 = vadd.f32 %v6028, %v6084
    %v6096 = vadd.f32 %v6030, %v6086
    %v6097 = vadd.f32 %v6032, %v6088
    %v6098 = vadd.f32 %v6034, %v6090
    %v6099 = vsub.f32 %v6011, %v6091
    %v6100 = vsub.f32 %v6012, %v6092
    %v6101 = vsub.f32 %v6013, %v6093
    %v6102 = vsub.f32 %v6014, %v6094
    %v6103 = vsub.f32 %v6015, %v6095
    %v6104 = vsub.f32 %v6016, %v6096
    %v6105 = vsub.f32 %v6017, %v6097
    %v6106 = vsub.f32 %v6018, %v6098
    %6107 = vst [vmem:[#allocation17] sm:$0xff] %v6099
    %6108 = vst [vmem:[#allocation17 + $0x8] sm:$0xff] %v6100
    %6109 = vst [vmem:[#allocation17 + $0x10] sm:$0xff] %v6101
    %6110 = vst [vmem:[#allocation17 + $0x18] sm:$0xff] %v6102
    %6111 = vst [vmem:[#allocation17 + $0x20] sm:$0xff] %v6103
    %6112 = vst [vmem:[#allocation17 + $0x28] sm:$0xff] %v6104
    %6113 = vst [vmem:[#allocation17 + $0x30] sm:$0xff] %v6105
    %6114 = vst [vmem:[#allocation17 + $0x38] sm:$0xff] %v6106
    // Predicated region
    $region78: #{tpu_custom_call.1} parent=1 // pred_check
      _
    $region79: #{tpu_custom_call.1} parent=1 // pred_check_branch
      %6116 = sbr.rel (0) target = $region81
    $region80: #{tpu_custom_call.1} parent=1 // pred_region
      %s6118 = ssub.s32 1024, 1024
      %6119 = vsyncadd [#allocation4], %s6118
      %s6120 = sshll.u32 [#allocation17], 4
      %s6121 = int_to_ptr.vmem [resolvable:$true] %s6120
      %6126 = dma.vmem_to_hbm [thread:$0]  %s6121, 1024, %s10, [#allocation4], 128, 128, 8
    $region81: #{tpu_custom_call.1} parent=1 // pred_fallthru
      _
    // Predicated region
    $region82: #{tpu_custom_call.1} parent=1 // pred_check
      _
    $region83: #{tpu_custom_call.1} parent=1 // pred_check_branch
      %6128 = sbr.rel (0) target = $region85
    $region84: #{tpu_custom_call.1} parent=1 // pred_region
      %6129 = dma.done [#allocation4], 1024
    $region85: #{tpu_custom_call.1} parent=1 // pred_fallthru
      _
    %6130 = vsyncpa [#allocation3], 1
    %6131 = vsyncpa [#allocation6], 1
    %6132 = vsyncpa [#allocation9], 1
    %6133 = vsyncpa [#allocation12], 1
    %6134 = vsyncpa [#allocation15], 1
    %6135 = vsyncpa [#allocation4], 1

</llo_original>
